<compile_context>
chip_gen: v5e
topology: v5e:2x2
jax: 0.10.0
libtpu: 0.0.40
codegen_flags: <defaults>
</compile_context>

<pallas_src>
import functools

import jax
import jax.numpy as jnp
import numpy as np
from jax.experimental import pallas as pl
from jax.experimental.pallas import tpu as pltpu


_CONV1_K, _CONV1_STRIDE, _CONV1_PAD = 7, 4, 3
_PATCH = 8  # conv1 taps zero-padded 7x7 -> 8x8 for the grouped im2col


def _ceil_to(x, m):
    return (x + m - 1) // m * m


# ---------------------------------------------------------------------------
# In-kernel helpers
# ---------------------------------------------------------------------------

def _conv3x3(pad_ref, h, w_ref, b_ref, top, W, N):
    """3x3 / pad 1 convolution + bias + ReLU on a raster-flattened activation.

    h:       (N, C_in) value, rows ordered as y * W + x.
    pad_ref: (top + N + top, C_in) VMEM scratch; taps are read as row-shifted
             slices.  Left/right image edges are zeroed with an iota mask.
    w_ref:   (9, C_in, C_out) bf16 taps, tap order (dy, dx) row-major.
    """
    f32, bf16 = jnp.float32, jnp.bfloat16
    c_in = h.shape[1]
    c_out = w_ref.shape[2]
    rows = pad_ref.shape[0]

    pad_ref[pl.ds(0, top), :] = jnp.zeros((top, c_in), f32)
    pad_ref[pl.ds(top + N, rows - top - N), :] = jnp.zeros(
        (rows - top - N, c_in), f32)
    pad_ref[pl.ds(top, N), :] = h

    xcol = jnp.bitwise_and(
        jax.lax.broadcasted_iota(jnp.int32, (N, c_in), 0), W - 1)
    left_edge = xcol == 0
    right_edge = xcol == W - 1

    acc = jnp.zeros((N, c_out), f32)
    t = 0
    for dy in (-1, 0, 1):
        for dx in (-1, 0, 1):
            patch = pad_ref[pl.ds(top + dy * W + dx, N), :]
            if dx == 1:
                patch = jnp.where(right_edge, 0.0, patch)
            elif dx == -1:
                patch = jnp.where(left_edge, 0.0, patch)
            acc = acc + jnp.dot(patch.astype(bf16), w_ref[t],
                                preferred_element_type=f32)
            t += 1
    return jnp.maximum(acc + b_ref[...], 0.0)


def _maxpool2_select(pad_ref, h, sel_ref, W, N):
    """2x2 max pool on a raster-flattened (.., W) activation.

    Max of the 4 row shifts {0, 1, W, W+1} (overflow rows are zero and are
    never selected), then a 0/1 selection matmul picks the even positions.
    """
    f32, bf16 = jnp.float32, jnp.bfloat16
    c = h.shape[1]
    rows = pad_ref.shape[0]
    pad_ref[pl.ds(0, N), :] = h
    pad_ref[pl.ds(N, rows - N), :] = jnp.zeros((rows - N, c), f32)
    m = jnp.maximum(
        jnp.maximum(pad_ref[pl.ds(0, N), :], pad_ref[pl.ds(1, N), :]),
        jnp.maximum(pad_ref[pl.ds(W, N), :], pad_ref[pl.ds(W + 1, N), :]))
    return jnp.dot(sel_ref[...], m.astype(bf16), preferred_element_type=f32)


# ---------------------------------------------------------------------------
# Fused encoder kernel (one grid step == one image)
# ---------------------------------------------------------------------------

def _fused_encoder_kernel(cols_ref, w1_ref, b1_ref, w2_ref, b2_ref,
                          w3_ref, b3_ref, sel1_ref, sel2_ref, avg_ref,
                          wp_ref, bp_ref, pos_ref,
                          o_ref,
                          p1_ref, c2_ref, p2_ref, c3_ref,
                          *, W0, W1, W2, N0, N1, N2, T2, T3):
    f32, bf16 = jnp.float32, jnp.bfloat16

    # conv1 (pre-packed im2col patches) + bias + ReLU  -> (N0, 32)
    h0 = jnp.dot(cols_ref[...], w1_ref[...], preferred_element_type=f32)
    h0 = jnp.maximum(h0 + b1_ref[...], 0.0)

    # MaxPool2d(2) on the (H0, W0) raster -> (N1, 32)
    h1 = _maxpool2_select(p1_ref, h0, sel1_ref, W0, N0)

    # conv2 3x3 pad 1 + ReLU -> (N1, 64)
    h2 = _conv3x3(c2_ref, h1, w2_ref, b2_ref, T2, W1, N1)

    # MaxPool2d(2) on the (H1, W1) raster -> (N2, 64)
    h2p = _maxpool2_select(p2_ref, h2, sel2_ref, W1, N1)

    # conv3 3x3 pad 1 + ReLU -> (N2, 128)
    h3 = _conv3x3(c3_ref, h2p, w3_ref, b3_ref, T3, W2, N2)

    # AdaptiveAvgPool2d((4,4)) as an averaging matmul -> (16, 128)
    p4 = jnp.dot(avg_ref[...], h3.astype(bf16), preferred_element_type=f32)

    # Linear projection + positional encoding -> (16, d_model), lane-dense
    out = jnp.dot(p4.astype(bf16), wp_ref[...], preferred_element_type=f32)
    o_ref[...] = out + bp_ref[...] + pos_ref[...]


# ---------------------------------------------------------------------------
# Wrapper-side glue (layout / patch extraction only)
# ---------------------------------------------------------------------------

def _im2col_conv1(x):
    """(B, H, W, C) -> (B, Ho*Wo, 8*8*C) patches for the 7x7/stride-4/pad-3 conv.

    Taps are zero-padded 7x7 -> 8x8 so each output needs exactly two 4-wide
    column groups and two 4-high row groups: the whole im2col is one pad, one
    reshape, two concats and one transpose (instead of 49 strided slices)."""
    B, H, W, C = x.shape
    Ho = (H + 2 * _CONV1_PAD - _CONV1_K) // _CONV1_STRIDE + 1
    Wo = (W + 2 * _CONV1_PAD - _CONV1_K) // _CONV1_STRIDE + 1
    hp, wp = 4 * (Ho + 1), 4 * (Wo + 1)
    xp = jnp.pad(x, ((0, 0), (_CONV1_PAD, hp - H - _CONV1_PAD),
                     (_CONV1_PAD, wp - W - _CONV1_PAD), (0, 0)))
    g = xp.reshape(B, Ho + 1, 4, Wo + 1, 4, C)
    g = jnp.concatenate([g[:, :Ho], g[:, 1:Ho + 1]], axis=2)
    g = jnp.concatenate([g[:, :, :, :Wo], g[:, :, :, 1:Wo + 1]], axis=4)
    cols = jnp.transpose(g, (0, 1, 3, 2, 4, 5)).reshape(
        B, Ho * Wo, _PATCH * _PATCH * C)
    return cols, Ho, Wo


def _pool_select_matrix(h, w):
    """0/1 matrix picking the (2i, 2j) entries of a flattened (h, w) raster."""
    ho, wo = h // 2, w // 2
    m = np.zeros((ho * wo, h * w), np.float32)
    for i in range(ho):
        for j in range(wo):
            m[i * wo + j, (2 * i) * w + 2 * j] = 1.0
    return m


def _avg_pool_matrix(h, w, oh, ow):
    """Averaging matrix for an exact AdaptiveAvgPool2d((oh, ow))."""
    ph, pw = h // oh, w // ow
    m = np.zeros((oh * ow, h * w), np.float32)
    for a in range(oh):
        for b in range(ow):
            for dy in range(ph):
                for dx in range(pw):
                    m[a * ow + b, (a * ph + dy) * w + b * pw + dx] = 1.0 / (ph * pw)
    return m


# ---------------------------------------------------------------------------
# Parameters
# ---------------------------------------------------------------------------

def init_params(key, d_model=256):
    ks = jax.random.split(key, 9)
    p = {}
    p["w1"] = 0.05 * jax.random.normal(ks[0], (32, 3, 7, 7), jnp.float32)
    p["b1"] = 0.05 * jax.random.normal(ks[1], (32,), jnp.float32)
    p["w2"] = 0.05 * jax.random.normal(ks[2], (64, 32, 3, 3), jnp.float32)
    p["b2"] = 0.05 * jax.random.normal(ks[3], (64,), jnp.float32)
    p["w3"] = 0.05 * jax.random.normal(ks[4], (128, 64, 3, 3), jnp.float32)
    p["b3"] = 0.05 * jax.random.normal(ks[5], (128,), jnp.float32)
    # torch nn.Linear stores weight as (out_features, in_features)
    p["wp"] = 0.05 * jax.random.normal(ks[6], (d_model, 128), jnp.float32)
    p["bp"] = 0.05 * jax.random.normal(ks[7], (d_model,), jnp.float32)
    p["pos"] = jax.random.normal(ks[8], (16, d_model), jnp.float32)
    return p


def prepare_params(params):
    """One-time conversion of PyTorch-layout params to kernel-ready form."""
    bf16, f32 = jnp.bfloat16, jnp.float32
    w1 = jnp.transpose(params["w1"], (2, 3, 1, 0))          # (7,7,Cin,Cout)
    w1 = jnp.pad(w1, ((0, 1), (0, 1), (0, 0), (0, 0)))      # (8,8,Cin,Cout)
    c_in1 = w1.shape[2]
    return {
        "w1": w1.reshape(_PATCH * _PATCH * c_in1, -1).astype(bf16),
        "b1": params["b1"].reshape(1, -1).astype(f32),
        "w2": jnp.transpose(params["w2"], (2, 3, 1, 0)).reshape(
            9, params["w2"].shape[1], params["w2"].shape[0]).astype(bf16),
        "b2": params["b2"].reshape(1, -1).astype(f32),
        "w3": jnp.transpose(params["w3"], (2, 3, 1, 0)).reshape(
            9, params["w3"].shape[1], params["w3"].shape[0]).astype(bf16),
        "b3": params["b3"].reshape(1, -1).astype(f32),
        "wp": params["wp"].T.astype(bf16),                   # (128, d_model)
        "bp": params["bp"].reshape(1, -1).astype(f32),
        "pos": params["pos"].astype(f32),
    }


# ---------------------------------------------------------------------------
# Forward pass
# ---------------------------------------------------------------------------

@jax.jit
def simple_vision_encoder(prep, screenshot_nchw):
    """SimpleVisionEncoder forward: (B, 3, H, W) float32 -> (B, 16, d_model)."""
    B = screenshot_nchw.shape[0]
    d_model = prep["pos"].shape[-1]
    x = jnp.transpose(screenshot_nchw, (0, 2, 3, 1)).astype(jnp.bfloat16)

    cols, H0, W0 = _im2col_conv1(x)
    assert H0 % 2 == 0 and W0 % 2 == 0, "conv1 output must be even for MaxPool2d(2)"
    H1, W1 = H0 // 2, W0 // 2
    assert H1 % 2 == 0 and W1 % 2 == 0, "conv2 output must be even for MaxPool2d(2)"
    H2, W2 = H1 // 2, W1 // 2
    # TODO(synk): AdaptiveAvgPool2d((4,4)) is implemented exactly only when the
    # final feature map is a multiple of 4 (true for e.g. 64x64 / 128x128 inputs).
    assert H2 % 4 == 0 and W2 % 4 == 0, "final feature map must be a multiple of 4"
    assert W1 & (W1 - 1) == 0 and W2 & (W2 - 1) == 0, "edge masks use power-of-2 widths"

    N0, N1, N2 = H0 * W0, H1 * W1, H2 * W2
    C1 = prep["b1"].shape[1]
    C2 = prep["b2"].shape[1]
    C3 = prep["b3"].shape[1]
    K1 = cols.shape[-1]

    # scratch sizing (all static python ints)
    P1 = _ceil_to(N0 + W0 + 1, 8)            # pool1 shift buffer
    T2 = _ceil_to(W1 + 1, 8)                 # conv2 top/bottom pad rows
    P2 = 2 * T2 + N1
    P3 = _ceil_to(N1 + W1 + 1, 8)            # pool2 shift buffer
    T3 = _ceil_to(W2 + 1, 8)                 # conv3 top/bottom pad rows
    P4 = 2 * T3 + N2

    # trace-time constant selection / averaging matrices (0, 1, 0.25 are exact in bf16)
    sel1 = jnp.asarray(_pool_select_matrix(H0, W0), jnp.bfloat16)
    sel2 = jnp.asarray(_pool_select_matrix(H1, W1), jnp.bfloat16)
    avgm = jnp.asarray(_avg_pool_matrix(H2, W2, 4, 4), jnp.bfloat16)

    kernel = functools.partial(_fused_encoder_kernel,
                               W0=W0, W1=W1, W2=W2,
                               N0=N0, N1=N1, N2=N2, T2=T2, T3=T3)

    out = pl.pallas_call(
        kernel,
        out_shape=jax.ShapeDtypeStruct((B, 16, d_model), jnp.float32),
        grid=(B,),
        in_specs=[
            pl.BlockSpec((None, N0, K1), lambda i: (i, 0, 0)),   # conv1 patches
            pl.BlockSpec((K1, C1), lambda i: (0, 0)),            # w1
            pl.BlockSpec((1, C1), lambda i: (0, 0)),             # b1
            pl.BlockSpec((9, C1, C2), lambda i: (0, 0, 0)),      # w2 taps
            pl.BlockSpec((1, C2), lambda i: (0, 0)),             # b2
            pl.BlockSpec((9, C2, C3), lambda i: (0, 0, 0)),      # w3 taps
            pl.BlockSpec((1, C3), lambda i: (0, 0)),             # b3
            pl.BlockSpec((N1, N0), lambda i: (0, 0)),            # pool1 select
            pl.BlockSpec((N2, N1), lambda i: (0, 0)),            # pool2 select
            pl.BlockSpec((16, N2), lambda i: (0, 0)),            # adaptive avg pool
            pl.BlockSpec((C3, d_model), lambda i: (0, 0)),       # projection weight
            pl.BlockSpec((1, d_model), lambda i: (0, 0)),        # projection bias
            pl.BlockSpec((16, d_model), lambda i: (0, 0)),       # positional encoding
        ],
        out_specs=pl.BlockSpec((None, 16, d_model), lambda i: (i, 0, 0)),
        scratch_shapes=[
            pltpu.VMEM((P1, C1), jnp.float32),   # pool1 shift buffer
            pltpu.VMEM((P2, C1), jnp.float32),   # conv2 padded activation
            pltpu.VMEM((P3, C2), jnp.float32),   # pool2 shift buffer
            pltpu.VMEM((P4, C2), jnp.float32),   # conv3 padded activation
        ],
        compiler_params=pltpu.CompilerParams(
            dimension_semantics=("parallel",)),
    )(cols, prep["w1"], prep["b1"], prep["w2"], prep["b2"],
      prep["w3"], prep["b3"], sel1, sel2, avgm,
      prep["wp"], prep["bp"], prep["pos"])
    return out


if __name__ == "__main__":
    key = jax.random.PRNGKey(0)
    k_in, k_par = jax.random.split(key)
    # (B, 3, H, W) NCHW screenshot; 128x128 -> 32 -> 16 -> 16 -> 8 -> 8 -> 4x4
    x = jax.random.normal(k_in, (2, 3, 128, 128), jnp.float32)
    params = init_params(k_par, d_model=256)
    prep = prepare_params(params)

    out = simple_vision_encoder(prep, x)
    out = jax.block_until_ready(out)

    assert out.shape == (2, 16, 256), out.shape
    assert bool(jnp.all(jnp.isfinite(out)))
    print("KERNEL_OK")
</pallas_src>

<mosaic_0001>
module attributes {stable_mosaic.version = 11 : i64} {
  func.func @_fused_encoder_kernel(%arg0: i32, %arg1: memref<1x1024x192xbf16, #tpu.memory_space<vmem>>, %arg2: memref<192x32xbf16, #tpu.memory_space<vmem>>, %arg3: memref<1x32xf32, #tpu.memory_space<vmem>>, %arg4: memref<9x32x64xbf16, #tpu.memory_space<vmem>>, %arg5: memref<1x64xf32, #tpu.memory_space<vmem>>, %arg6: memref<9x64x128xbf16, #tpu.memory_space<vmem>>, %arg7: memref<1x128xf32, #tpu.memory_space<vmem>>, %arg8: memref<256x1024xbf16, #tpu.memory_space<vmem>>, %arg9: memref<64x256xbf16, #tpu.memory_space<vmem>>, %arg10: memref<16x64xbf16, #tpu.memory_space<vmem>>, %arg11: memref<128x256xbf16, #tpu.memory_space<vmem>>, %arg12: memref<1x256xf32, #tpu.memory_space<vmem>>, %arg13: memref<16x256xf32, #tpu.memory_space<vmem>>, %arg14: memref<1x16x256xf32, #tpu.memory_space<vmem>>, %arg15: memref<1064x32xf32, #tpu.memory_space<vmem>>, %arg16: memref<304x32xf32, #tpu.memory_space<vmem>>, %arg17: memref<280x64xf32, #tpu.memory_space<vmem>>, %arg18: memref<96x64xf32, #tpu.memory_space<vmem>>) attributes {dimension_semantics = [#tpu.dimension_semantics<parallel>], iteration_bounds = array<i64: 2>, scalar_prefetch = 0 : i64, scratch_operands = 4 : i64, tpu.core_type = #tpu.core_type<tc>, window_params = [{transform_indices = @transform_0, window_bounds = array<i64: 1, 1024, 192>}, {pipeline_mode = #tpu.pipeline_mode<synchronous>, transform_indices = @transform_1, window_bounds = array<i64: 192, 32>}, {pipeline_mode = #tpu.pipeline_mode<synchronous>, transform_indices = @transform_2, window_bounds = array<i64: 1, 32>}, {pipeline_mode = #tpu.pipeline_mode<synchronous>, transform_indices = @transform_3, window_bounds = array<i64: 9, 32, 64>}, {pipeline_mode = #tpu.pipeline_mode<synchronous>, transform_indices = @transform_4, window_bounds = array<i64: 1, 64>}, {pipeline_mode = #tpu.pipeline_mode<synchronous>, transform_indices = @transform_5, window_bounds = array<i64: 9, 64, 128>}, {pipeline_mode = #tpu.pipeline_mode<synchronous>, transform_indices = @transform_6, window_bounds = array<i64: 1, 128>}, {pipeline_mode = #tpu.pipeline_mode<synchronous>, transform_indices = @transform_7, window_bounds = array<i64: 256, 1024>}, {pipeline_mode = #tpu.pipeline_mode<synchronous>, transform_indices = @transform_8, window_bounds = array<i64: 64, 256>}, {pipeline_mode = #tpu.pipeline_mode<synchronous>, transform_indices = @transform_9, window_bounds = array<i64: 16, 64>}, {pipeline_mode = #tpu.pipeline_mode<synchronous>, transform_indices = @transform_10, window_bounds = array<i64: 128, 256>}, {pipeline_mode = #tpu.pipeline_mode<synchronous>, transform_indices = @transform_11, window_bounds = array<i64: 1, 256>}, {pipeline_mode = #tpu.pipeline_mode<synchronous>, transform_indices = @transform_12, window_bounds = array<i64: 16, 256>}, {transform_indices = @transform_13, window_bounds = array<i64: 1, 16, 256>}]} {
    %c0 = arith.constant 0 : index
    %c0_0 = arith.constant 0 : index
    %c0_1 = arith.constant 0 : index
    %0 = vector.load %arg1[%c0, %c0_0, %c0_1] : memref<1x1024x192xbf16, #tpu.memory_space<vmem>>, vector<1x1024x192xbf16>
    %1 = vector.shape_cast %0 : vector<1x1024x192xbf16> to vector<1024x192xbf16>
    %c0_2 = arith.constant 0 : index
    %c0_3 = arith.constant 0 : index
    %2 = vector.load %arg2[%c0_2, %c0_3] : memref<192x32xbf16, #tpu.memory_space<vmem>>, vector<192x32xbf16>
    %cst = arith.constant dense<0.000000e+00> : vector<1024x32xf32>
    %3 = tpu.matmul %1, %2, %cst {dimension_numbers = #tpu.dot_dimension_numbers<[1], [0], [0], [1], [0, 0, 1, 1], [], []>} : vector<1024x192xbf16>, vector<192x32xbf16>, vector<1024x32xf32> -> vector<1024x32xf32>
    %c0_4 = arith.constant 0 : index
    %c0_5 = arith.constant 0 : index
    %4 = vector.load %arg3[%c0_4, %c0_5] : memref<1x32xf32, #tpu.memory_space<vmem>>, vector<1x32xf32>
    %5 = vector.broadcast %4 : vector<1x32xf32> to vector<1024x32xf32>
    %6 = arith.addf %3, %5 : vector<1024x32xf32>
    %cst_6 = arith.constant 0.000000e+00 : f32
    %7 = vector.broadcast %cst_6 : f32 to vector<1024x32xf32>
    %8 = arith.maximumf %6, %7 : vector<1024x32xf32>
    %c0_7 = arith.constant 0 : index
    %c0_8 = arith.constant 0 : index
    %9 = vector.load %arg15[%c0_7, %c0_8] : memref<1064x32xf32, #tpu.memory_space<vmem>>, vector<1024x32xf32>
    tpu.vector_store %arg15[%c0_7, %c0_8], %8 {strides = array<i32>} : memref<1064x32xf32, #tpu.memory_space<vmem>>, vector<1024x32xf32>,
    %cst_9 = arith.constant 0.000000e+00 : f32
    %10 = vector.broadcast %cst_9 : f32 to vector<40x32xf32>
    %c1024 = arith.constant 1024 : index
    %c0_10 = arith.constant 0 : index
    %11 = vector.load %arg15[%c1024, %c0_10] : memref<1064x32xf32, #tpu.memory_space<vmem>>, vector<40x32xf32>
    tpu.vector_store %arg15[%c1024, %c0_10], %10 {strides = array<i32>} : memref<1064x32xf32, #tpu.memory_space<vmem>>, vector<40x32xf32>,
    %c0_11 = arith.constant 0 : index
    %c0_12 = arith.constant 0 : index
    %12 = vector.load %arg15[%c0_11, %c0_12] : memref<1064x32xf32, #tpu.memory_space<vmem>>, vector<1024x32xf32>
    %c1 = arith.constant 1 : index
    %c0_13 = arith.constant 0 : index
    %13 = vector.load %arg15[%c1, %c0_13] : memref<1064x32xf32, #tpu.memory_space<vmem>>, vector<1024x32xf32>
    %14 = arith.maximumf %12, %13 : vector<1024x32xf32>
    %c32 = arith.constant 32 : index
    %c0_14 = arith.constant 0 : index
    %15 = vector.load %arg15[%c32, %c0_14] : memref<1064x32xf32, #tpu.memory_space<vmem>>, vector<1024x32xf32>
    %c33 = arith.constant 33 : index
    %c0_15 = arith.constant 0 : index
    %16 = vector.load %arg15[%c33, %c0_15] : memref<1064x32xf32, #tpu.memory_space<vmem>>, vector<1024x32xf32>
    %17 = arith.maximumf %15, %16 : vector<1024x32xf32>
    %18 = arith.maximumf %14, %17 : vector<1024x32xf32>
    %c0_16 = arith.constant 0 : index
    %c0_17 = arith.constant 0 : index
    %19 = vector.load %arg8[%c0_16, %c0_17] : memref<256x1024xbf16, #tpu.memory_space<vmem>>, vector<256x1024xbf16>
    %20 = arith.truncf %18 : vector<1024x32xf32> to vector<1024x32xbf16>
    %cst_18 = arith.constant dense<0.000000e+00> : vector<256x32xf32>
    %21 = tpu.matmul %19, %20, %cst_18 {dimension_numbers = #tpu.dot_dimension_numbers<[1], [0], [0], [1], [0, 0, 1, 1], [], []>} : vector<256x1024xbf16>, vector<1024x32xbf16>, vector<256x32xf32> -> vector<256x32xf32>
    %cst_19 = arith.constant 0.000000e+00 : f32
    %22 = vector.broadcast %cst_19 : f32 to vector<24x32xf32>
    %c0_20 = arith.constant 0 : index
    %c0_21 = arith.constant 0 : index
    %23 = vector.load %arg16[%c0_20, %c0_21] : memref<304x32xf32, #tpu.memory_space<vmem>>, vector<24x32xf32>
    tpu.vector_store %arg16[%c0_20, %c0_21], %22 {strides = array<i32>} : memref<304x32xf32, #tpu.memory_space<vmem>>, vector<24x32xf32>,
    %cst_22 = arith.constant 0.000000e+00 : f32
    %24 = vector.broadcast %cst_22 : f32 to vector<24x32xf32>
    %c280 = arith.constant 280 : index
    %c0_23 = arith.constant 0 : index
    %25 = vector.load %arg16[%c280, %c0_23] : memref<304x32xf32, #tpu.memory_space<vmem>>, vector<24x32xf32>
    tpu.vector_store %arg16[%c280, %c0_23], %24 {strides = array<i32>} : memref<304x32xf32, #tpu.memory_space<vmem>>, vector<24x32xf32>,
    %c24 = arith.constant 24 : index
    %c0_24 = arith.constant 0 : index
    %26 = vector.load %arg16[%c24, %c0_24] : memref<304x32xf32, #tpu.memory_space<vmem>>, vector<256x32xf32>
    tpu.vector_store %arg16[%c24, %c0_24], %21 {strides = array<i32>} : memref<304x32xf32, #tpu.memory_space<vmem>>, vector<256x32xf32>,
    %27 = tpu.iota {dimensions = array<i32: 0>} : vector<256x32xi32>
    %c15_i32 = arith.constant 15 : i32
    %28 = vector.broadcast %c15_i32 : i32 to vector<256x32xi32>
    %29 = arith.andi %27, %28 : vector<256x32xi32>
    %c0_i32 = arith.constant 0 : i32
    %30 = vector.broadcast %c0_i32 : i32 to vector<256x32xi32>
    %31 = arith.cmpi eq, %29, %30 : vector<256x32xi32>
    %c15_i32_25 = arith.constant 15 : i32
    %32 = vector.broadcast %c15_i32_25 : i32 to vector<256x32xi32>
    %33 = arith.cmpi eq, %29, %32 : vector<256x32xi32>
    %cst_26 = arith.constant 0.000000e+00 : f32
    %34 = vector.broadcast %cst_26 : f32 to vector<256x64xf32>
    %c7 = arith.constant 7 : index
    %c0_27 = arith.constant 0 : index
    %35 = vector.load %arg16[%c7, %c0_27] : memref<304x32xf32, #tpu.memory_space<vmem>>, vector<256x32xf32>
    %cst_28 = arith.constant 0.000000e+00 : f32
    %36 = vector.broadcast %cst_28 : f32 to vector<256x32xf32>
    %37 = arith.select %31, %36, %35 : vector<256x32xi1>, vector<256x32xf32>
    %38 = arith.truncf %37 : vector<256x32xf32> to vector<256x32xbf16>
    %c0_29 = arith.constant 0 : index
    %c0_30 = arith.constant 0 : index
    %c0_31 = arith.constant 0 : index
    %39 = vector.load %arg4[%c0_29, %c0_30, %c0_31] : memref<9x32x64xbf16, #tpu.memory_space<vmem>>, vector<1x32x64xbf16>
    %40 = vector.shape_cast %39 : vector<1x32x64xbf16> to vector<32x64xbf16>
    %cst_32 = arith.constant dense<0.000000e+00> : vector<256x64xf32>
    %41 = tpu.matmul %38, %40, %cst_32 {dimension_numbers = #tpu.dot_dimension_numbers<[1], [0], [0], [1], [0, 0, 1, 1], [], []>} : vector<256x32xbf16>, vector<32x64xbf16>, vector<256x64xf32> -> vector<256x64xf32>
    %42 = arith.addf %34, %41 : vector<256x64xf32>
    %c8 = arith.constant 8 : index
    %c0_33 = arith.constant 0 : index
    %43 = vector.load %arg16[%c8, %c0_33] : memref<304x32xf32, #tpu.memory_space<vmem>>, vector<256x32xf32>
    %44 = arith.truncf %43 : vector<256x32xf32> to vector<256x32xbf16>
    %c1_34 = arith.constant 1 : index
    %c0_35 = arith.constant 0 : index
    %c0_36 = arith.constant 0 : index
    %45 = vector.load %arg4[%c1_34, %c0_35, %c0_36] : memref<9x32x64xbf16, #tpu.memory_space<vmem>>, vector<1x32x64xbf16>
    %46 = vector.shape_cast %45 : vector<1x32x64xbf16> to vector<32x64xbf16>
    %cst_37 = arith.constant dense<0.000000e+00> : vector<256x64xf32>
    %47 = tpu.matmul %44, %46, %cst_37 {dimension_numbers = #tpu.dot_dimension_numbers<[1], [0], [0], [1], [0, 0, 1, 1], [], []>} : vector<256x32xbf16>, vector<32x64xbf16>, vector<256x64xf32> -> vector<256x64xf32>
    %48 = arith.addf %42, %47 : vector<256x64xf32>
    %c9 = arith.constant 9 : index
    %c0_38 = arith.constant 0 : index
    %49 = vector.load %arg16[%c9, %c0_38] : memref<304x32xf32, #tpu.memory_space<vmem>>, vector<256x32xf32>
    %cst_39 = arith.constant 0.000000e+00 : f32
    %50 = vector.broadcast %cst_39 : f32 to vector<256x32xf32>
    %51 = arith.select %33, %50, %49 : vector<256x32xi1>, vector<256x32xf32>
    %52 = arith.truncf %51 : vector<256x32xf32> to vector<256x32xbf16>
    %c2 = arith.constant 2 : index
    %c0_40 = arith.constant 0 : index
    %c0_41 = arith.constant 0 : index
    %53 = vector.load %arg4[%c2, %c0_40, %c0_41] : memref<9x32x64xbf16, #tpu.memory_space<vmem>>, vector<1x32x64xbf16>
    %54 = vector.shape_cast %53 : vector<1x32x64xbf16> to vector<32x64xbf16>
    %cst_42 = arith.constant dense<0.000000e+00> : vector<256x64xf32>
    %55 = tpu.matmul %52, %54, %cst_42 {dimension_numbers = #tpu.dot_dimension_numbers<[1], [0], [0], [1], [0, 0, 1, 1], [], []>} : vector<256x32xbf16>, vector<32x64xbf16>, vector<256x64xf32> -> vector<256x64xf32>
    %56 = arith.addf %48, %55 : vector<256x64xf32>
    %c23 = arith.constant 23 : index
    %c0_43 = arith.constant 0 : index
    %57 = vector.load %arg16[%c23, %c0_43] : memref<304x32xf32, #tpu.memory_space<vmem>>, vector<256x32xf32>
    %cst_44 = arith.constant 0.000000e+00 : f32
    %58 = vector.broadcast %cst_44 : f32 to vector<256x32xf32>
    %59 = arith.select %31, %58, %57 : vector<256x32xi1>, vector<256x32xf32>
    %60 = arith.truncf %59 : vector<256x32xf32> to vector<256x32xbf16>
    %c3 = arith.constant 3 : index
    %c0_45 = arith.constant 0 : index
    %c0_46 = arith.constant 0 : index
    %61 = vector.load %arg4[%c3, %c0_45, %c0_46] : memref<9x32x64xbf16, #tpu.memory_space<vmem>>, vector<1x32x64xbf16>
    %62 = vector.shape_cast %61 : vector<1x32x64xbf16> to vector<32x64xbf16>
    %cst_47 = arith.constant dense<0.000000e+00> : vector<256x64xf32>
    %63 = tpu.matmul %60, %62, %cst_47 {dimension_numbers = #tpu.dot_dimension_numbers<[1], [0], [0], [1], [0, 0, 1, 1], [], []>} : vector<256x32xbf16>, vector<32x64xbf16>, vector<256x64xf32> -> vector<256x64xf32>
    %64 = arith.addf %56, %63 : vector<256x64xf32>
    %c24_48 = arith.constant 24 : index
    %c0_49 = arith.constant 0 : index
    %65 = vector.load %arg16[%c24_48, %c0_49] : memref<304x32xf32, #tpu.memory_space<vmem>>, vector<256x32xf32>
    %66 = arith.truncf %65 : vector<256x32xf32> to vector<256x32xbf16>
    %c4 = arith.constant 4 : index
    %c0_50 = arith.constant 0 : index
    %c0_51 = arith.constant 0 : index
    %67 = vector.load %arg4[%c4, %c0_50, %c0_51] : memref<9x32x64xbf16, #tpu.memory_space<vmem>>, vector<1x32x64xbf16>
    %68 = vector.shape_cast %67 : vector<1x32x64xbf16> to vector<32x64xbf16>
    %cst_52 = arith.constant dense<0.000000e+00> : vector<256x64xf32>
    %69 = tpu.matmul %66, %68, %cst_52 {dimension_numbers = #tpu.dot_dimension_numbers<[1], [0], [0], [1], [0, 0, 1, 1], [], []>} : vector<256x32xbf16>, vector<32x64xbf16>, vector<256x64xf32> -> vector<256x64xf32>
    %70 = arith.addf %64, %69 : vector<256x64xf32>
    %c25 = arith.constant 25 : index
    %c0_53 = arith.constant 0 : index
    %71 = vector.load %arg16[%c25, %c0_53] : memref<304x32xf32, #tpu.memory_space<vmem>>, vector<256x32xf32>
    %cst_54 = arith.constant 0.000000e+00 : f32
    %72 = vector.broadcast %cst_54 : f32 to vector<256x32xf32>
    %73 = arith.select %33, %72, %71 : vector<256x32xi1>, vector<256x32xf32>
    %74 = arith.truncf %73 : vector<256x32xf32> to vector<256x32xbf16>
    %c5 = arith.constant 5 : index
    %c0_55 = arith.constant 0 : index
    %c0_56 = arith.constant 0 : index
    %75 = vector.load %arg4[%c5, %c0_55, %c0_56] : memref<9x32x64xbf16, #tpu.memory_space<vmem>>, vector<1x32x64xbf16>
    %76 = vector.shape_cast %75 : vector<1x32x64xbf16> to vector<32x64xbf16>
    %cst_57 = arith.constant dense<0.000000e+00> : vector<256x64xf32>
    %77 = tpu.matmul %74, %76, %cst_57 {dimension_numbers = #tpu.dot_dimension_numbers<[1], [0], [0], [1], [0, 0, 1, 1], [], []>} : vector<256x32xbf16>, vector<32x64xbf16>, vector<256x64xf32> -> vector<256x64xf32>
    %78 = arith.addf %70, %77 : vector<256x64xf32>
    %c39 = arith.constant 39 : index
    %c0_58 = arith.constant 0 : index
    %79 = vector.load %arg16[%c39, %c0_58] : memref<304x32xf32, #tpu.memory_space<vmem>>, vector<256x32xf32>
    %cst_59 = arith.constant 0.000000e+00 : f32
    %80 = vector.broadcast %cst_59 : f32 to vector<256x32xf32>
    %81 = arith.select %31, %80, %79 : vector<256x32xi1>, vector<256x32xf32>
    %82 = arith.truncf %81 : vector<256x32xf32> to vector<256x32xbf16>
    %c6 = arith.constant 6 : index
    %c0_60 = arith.constant 0 : index
    %c0_61 = arith.constant 0 : index
    %83 = vector.load %arg4[%c6, %c0_60, %c0_61] : memref<9x32x64xbf16, #tpu.memory_space<vmem>>, vector<1x32x64xbf16>
    %84 = vector.shape_cast %83 : vector<1x32x64xbf16> to vector<32x64xbf16>
    %cst_62 = arith.constant dense<0.000000e+00> : vector<256x64xf32>
    %85 = tpu.matmul %82, %84, %cst_62 {dimension_numbers = #tpu.dot_dimension_numbers<[1], [0], [0], [1], [0, 0, 1, 1], [], []>} : vector<256x32xbf16>, vector<32x64xbf16>, vector<256x64xf32> -> vector<256x64xf32>
    %86 = arith.addf %78, %85 : vector<256x64xf32>
    %c40 = arith.constant 40 : index
    %c0_63 = arith.constant 0 : index
    %87 = vector.load %arg16[%c40, %c0_63] : memref<304x32xf32, #tpu.memory_space<vmem>>, vector<256x32xf32>
    %88 = arith.truncf %87 : vector<256x32xf32> to vector<256x32xbf16>
    %c7_64 = arith.constant 7 : index
    %c0_65 = arith.constant 0 : index
    %c0_66 = arith.constant 0 : index
    %89 = vector.load %arg4[%c7_64, %c0_65, %c0_66] : memref<9x32x64xbf16, #tpu.memory_space<vmem>>, vector<1x32x64xbf16>
    %90 = vector.shape_cast %89 : vector<1x32x64xbf16> to vector<32x64xbf16>
    %cst_67 = arith.constant dense<0.000000e+00> : vector<256x64xf32>
    %91 = tpu.matmul %88, %90, %cst_67 {dimension_numbers = #tpu.dot_dimension_numbers<[1], [0], [0], [1], [0, 0, 1, 1], [], []>} : vector<256x32xbf16>, vector<32x64xbf16>, vector<256x64xf32> -> vector<256x64xf32>
    %92 = arith.addf %86, %91 : vector<256x64xf32>
    %c41 = arith.constant 41 : index
    %c0_68 = arith.constant 0 : index
    %93 = vector.load %arg16[%c41, %c0_68] : memref<304x32xf32, #tpu.memory_space<vmem>>, vector<256x32xf32>
    %cst_69 = arith.constant 0.000000e+00 : f32
    %94 = vector.broadcast %cst_69 : f32 to vector<256x32xf32>
    %95 = arith.select %33, %94, %93 : vector<256x32xi1>, vector<256x32xf32>
    %96 = arith.truncf %95 : vector<256x32xf32> to vector<256x32xbf16>
    %c8_70 = arith.constant 8 : index
    %c0_71 = arith.constant 0 : index
    %c0_72 = arith.constant 0 : index
    %97 = vector.load %arg4[%c8_70, %c0_71, %c0_72] : memref<9x32x64xbf16, #tpu.memory_space<vmem>>, vector<1x32x64xbf16>
    %98 = vector.shape_cast %97 : vector<1x32x64xbf16> to vector<32x64xbf16>
    %cst_73 = arith.constant dense<0.000000e+00> : vector<256x64xf32>
    %99 = tpu.matmul %96, %98, %cst_73 {dimension_numbers = #tpu.dot_dimension_numbers<[1], [0], [0], [1], [0, 0, 1, 1], [], []>} : vector<256x32xbf16>, vector<32x64xbf16>, vector<256x64xf32> -> vector<256x64xf32>
    %100 = arith.addf %92, %99 : vector<256x64xf32>
    %c0_74 = arith.constant 0 : index
    %c0_75 = arith.constant 0 : index
    %101 = vector.load %arg5[%c0_74, %c0_75] : memref<1x64xf32, #tpu.memory_space<vmem>>, vector<1x64xf32>
    %102 = vector.broadcast %101 : vector<1x64xf32> to vector<256x64xf32>
    %103 = arith.addf %100, %102 : vector<256x64xf32>
    %cst_76 = arith.constant 0.000000e+00 : f32
    %104 = vector.broadcast %cst_76 : f32 to vector<256x64xf32>
    %105 = arith.maximumf %103, %104 : vector<256x64xf32>
    %c0_77 = arith.constant 0 : index
    %c0_78 = arith.constant 0 : index
    %106 = vector.load %arg17[%c0_77, %c0_78] : memref<280x64xf32, #tpu.memory_space<vmem>>, vector<256x64xf32>
    tpu.vector_store %arg17[%c0_77, %c0_78], %105 {strides = array<i32>} : memref<280x64xf32, #tpu.memory_space<vmem>>, vector<256x64xf32>,
    %cst_79 = arith.constant 0.000000e+00 : f32
    %107 = vector.broadcast %cst_79 : f32 to vector<24x64xf32>
    %c256 = arith.constant 256 : index
    %c0_80 = arith.constant 0 : index
    %108 = vector.load %arg17[%c256, %c0_80] : memref<280x64xf32, #tpu.memory_space<vmem>>, vector<24x64xf32>
    tpu.vector_store %arg17[%c256, %c0_80], %107 {strides = array<i32>} : memref<280x64xf32, #tpu.memory_space<vmem>>, vector<24x64xf32>,
    %c0_81 = arith.constant 0 : index
    %c0_82 = arith.constant 0 : index
    %109 = vector.load %arg17[%c0_81, %c0_82] : memref<280x64xf32, #tpu.memory_space<vmem>>, vector<256x64xf32>
    %c1_83 = arith.constant 1 : index
    %c0_84 = arith.constant 0 : index
    %110 = vector.load %arg17[%c1_83, %c0_84] : memref<280x64xf32, #tpu.memory_space<vmem>>, vector<256x64xf32>
    %111 = arith.maximumf %109, %110 : vector<256x64xf32>
    %c16 = arith.constant 16 : index
    %c0_85 = arith.constant 0 : index
    %112 = vector.load %arg17[%c16, %c0_85] : memref<280x64xf32, #tpu.memory_space<vmem>>, vector<256x64xf32>
    %c17 = arith.constant 17 : index
    %c0_86 = arith.constant 0 : index
    %113 = vector.load %arg17[%c17, %c0_86] : memref<280x64xf32, #tpu.memory_space<vmem>>, vector<256x64xf32>
    %114 = arith.maximumf %112, %113 : vector<256x64xf32>
    %115 = arith.maximumf %111, %114 : vector<256x64xf32>
    %c0_87 = arith.constant 0 : index
    %c0_88 = arith.constant 0 : index
    %116 = vector.load %arg9[%c0_87, %c0_88] : memref<64x256xbf16, #tpu.memory_space<vmem>>, vector<64x256xbf16>
    %117 = arith.truncf %115 : vector<256x64xf32> to vector<256x64xbf16>
    %cst_89 = arith.constant dense<0.000000e+00> : vector<64x64xf32>
    %118 = tpu.matmul %116, %117, %cst_89 {dimension_numbers = #tpu.dot_dimension_numbers<[1], [0], [0], [1], [0, 0, 1, 1], [], []>} : vector<64x256xbf16>, vector<256x64xbf16>, vector<64x64xf32> -> vector<64x64xf32>
    %cst_90 = arith.constant 0.000000e+00 : f32
    %119 = vector.broadcast %cst_90 : f32 to vector<16x64xf32>
    %c0_91 = arith.constant 0 : index
    %c0_92 = arith.constant 0 : index
    %120 = vector.load %arg18[%c0_91, %c0_92] : memref<96x64xf32, #tpu.memory_space<vmem>>, vector<16x64xf32>
    tpu.vector_store %arg18[%c0_91, %c0_92], %119 {strides = array<i32>} : memref<96x64xf32, #tpu.memory_space<vmem>>, vector<16x64xf32>,
    %cst_93 = arith.constant 0.000000e+00 : f32
    %121 = vector.broadcast %cst_93 : f32 to vector<16x64xf32>
    %c80 = arith.constant 80 : index
    %c0_94 = arith.constant 0 : index
    %122 = vector.load %arg18[%c80, %c0_94] : memref<96x64xf32, #tpu.memory_space<vmem>>, vector<16x64xf32>
    tpu.vector_store %arg18[%c80, %c0_94], %121 {strides = array<i32>} : memref<96x64xf32, #tpu.memory_space<vmem>>, vector<16x64xf32>,
    %c16_95 = arith.constant 16 : index
    %c0_96 = arith.constant 0 : index
    %123 = vector.load %arg18[%c16_95, %c0_96] : memref<96x64xf32, #tpu.memory_space<vmem>>, vector<64x64xf32>
    tpu.vector_store %arg18[%c16_95, %c0_96], %118 {strides = array<i32>} : memref<96x64xf32, #tpu.memory_space<vmem>>, vector<64x64xf32>,
    %124 = tpu.iota {dimensions = array<i32: 0>} : vector<64x64xi32>
    %c7_i32 = arith.constant 7 : i32
    %125 = vector.broadcast %c7_i32 : i32 to vector<64x64xi32>
    %126 = arith.andi %124, %125 : vector<64x64xi32>
    %c0_i32_97 = arith.constant 0 : i32
    %127 = vector.broadcast %c0_i32_97 : i32 to vector<64x64xi32>
    %128 = arith.cmpi eq, %126, %127 : vector<64x64xi32>
    %c7_i32_98 = arith.constant 7 : i32
    %129 = vector.broadcast %c7_i32_98 : i32 to vector<64x64xi32>
    %130 = arith.cmpi eq, %126, %129 : vector<64x64xi32>
    %cst_99 = arith.constant 0.000000e+00 : f32
    %131 = vector.broadcast %cst_99 : f32 to vector<64x128xf32>
    %c7_100 = arith.constant 7 : index
    %c0_101 = arith.constant 0 : index
    %132 = vector.load %arg18[%c7_100, %c0_101] : memref<96x64xf32, #tpu.memory_space<vmem>>, vector<64x64xf32>
    %cst_102 = arith.constant 0.000000e+00 : f32
    %133 = vector.broadcast %cst_102 : f32 to vector<64x64xf32>
    %134 = arith.select %128, %133, %132 : vector<64x64xi1>, vector<64x64xf32>
    %135 = arith.truncf %134 : vector<64x64xf32> to vector<64x64xbf16>
    %c0_103 = arith.constant 0 : index
    %c0_104 = arith.constant 0 : index
    %c0_105 = arith.constant 0 : index
    %136 = vector.load %arg6[%c0_103, %c0_104, %c0_105] : memref<9x64x128xbf16, #tpu.memory_space<vmem>>, vector<1x64x128xbf16>
    %137 = vector.shape_cast %136 : vector<1x64x128xbf16> to vector<64x128xbf16>
    %cst_106 = arith.constant dense<0.000000e+00> : vector<64x128xf32>
    %138 = tpu.matmul %135, %137, %cst_106 {dimension_numbers = #tpu.dot_dimension_numbers<[1], [0], [0], [1], [0, 0, 1, 1], [], []>} : vector<64x64xbf16>, vector<64x128xbf16>, vector<64x128xf32> -> vector<64x128xf32>
    %139 = arith.addf %131, %138 : vector<64x128xf32>
    %c8_107 = arith.constant 8 : index
    %c0_108 = arith.constant 0 : index
    %140 = vector.load %arg18[%c8_107, %c0_108] : memref<96x64xf32, #tpu.memory_space<vmem>>, vector<64x64xf32>
    %141 = arith.truncf %140 : vector<64x64xf32> to vector<64x64xbf16>
    %c1_109 = arith.constant 1 : index
    %c0_110 = arith.constant 0 : index
    %c0_111 = arith.constant 0 : index
    %142 = vector.load %arg6[%c1_109, %c0_110, %c0_111] : memref<9x64x128xbf16, #tpu.memory_space<vmem>>, vector<1x64x128xbf16>
    %143 = vector.shape_cast %142 : vector<1x64x128xbf16> to vector<64x128xbf16>
    %cst_112 = arith.constant dense<0.000000e+00> : vector<64x128xf32>
    %144 = tpu.matmul %141, %143, %cst_112 {dimension_numbers = #tpu.dot_dimension_numbers<[1], [0], [0], [1], [0, 0, 1, 1], [], []>} : vector<64x64xbf16>, vector<64x128xbf16>, vector<64x128xf32> -> vector<64x128xf32>
    %145 = arith.addf %139, %144 : vector<64x128xf32>
    %c9_113 = arith.constant 9 : index
    %c0_114 = arith.constant 0 : index
    %146 = vector.load %arg18[%c9_113, %c0_114] : memref<96x64xf32, #tpu.memory_space<vmem>>, vector<64x64xf32>
    %cst_115 = arith.constant 0.000000e+00 : f32
    %147 = vector.broadcast %cst_115 : f32 to vector<64x64xf32>
    %148 = arith.select %130, %147, %146 : vector<64x64xi1>, vector<64x64xf32>
    %149 = arith.truncf %148 : vector<64x64xf32> to vector<64x64xbf16>
    %c2_116 = arith.constant 2 : index
    %c0_117 = arith.constant 0 : index
    %c0_118 = arith.constant 0 : index
    %150 = vector.load %arg6[%c2_116, %c0_117, %c0_118] : memref<9x64x128xbf16, #tpu.memory_space<vmem>>, vector<1x64x128xbf16>
    %151 = vector.shape_cast %150 : vector<1x64x128xbf16> to vector<64x128xbf16>
    %cst_119 = arith.constant dense<0.000000e+00> : vector<64x128xf32>
    %152 = tpu.matmul %149, %151, %cst_119 {dimension_numbers = #tpu.dot_dimension_numbers<[1], [0], [0], [1], [0, 0, 1, 1], [], []>} : vector<64x64xbf16>, vector<64x128xbf16>, vector<64x128xf32> -> vector<64x128xf32>
    %153 = arith.addf %145, %152 : vector<64x128xf32>
    %c15 = arith.constant 15 : index
    %c0_120 = arith.constant 0 : index
    %154 = vector.load %arg18[%c15, %c0_120] : memref<96x64xf32, #tpu.memory_space<vmem>>, vector<64x64xf32>
    %cst_121 = arith.constant 0.000000e+00 : f32
    %155 = vector.broadcast %cst_121 : f32 to vector<64x64xf32>
    %156 = arith.select %128, %155, %154 : vector<64x64xi1>, vector<64x64xf32>
    %157 = arith.truncf %156 : vector<64x64xf32> to vector<64x64xbf16>
    %c3_122 = arith.constant 3 : index
    %c0_123 = arith.constant 0 : index
    %c0_124 = arith.constant 0 : index
    %158 = vector.load %arg6[%c3_122, %c0_123, %c0_124] : memref<9x64x128xbf16, #tpu.memory_space<vmem>>, vector<1x64x128xbf16>
    %159 = vector.shape_cast %158 : vector<1x64x128xbf16> to vector<64x128xbf16>
    %cst_125 = arith.constant dense<0.000000e+00> : vector<64x128xf32>
    %160 = tpu.matmul %157, %159, %cst_125 {dimension_numbers = #tpu.dot_dimension_numbers<[1], [0], [0], [1], [0, 0, 1, 1], [], []>} : vector<64x64xbf16>, vector<64x128xbf16>, vector<64x128xf32> -> vector<64x128xf32>
    %161 = arith.addf %153, %160 : vector<64x128xf32>
    %c16_126 = arith.constant 16 : index
    %c0_127 = arith.constant 0 : index
    %162 = vector.load %arg18[%c16_126, %c0_127] : memref<96x64xf32, #tpu.memory_space<vmem>>, vector<64x64xf32>
    %163 = arith.truncf %162 : vector<64x64xf32> to vector<64x64xbf16>
    %c4_128 = arith.constant 4 : index
    %c0_129 = arith.constant 0 : index
    %c0_130 = arith.constant 0 : index
    %164 = vector.load %arg6[%c4_128, %c0_129, %c0_130] : memref<9x64x128xbf16, #tpu.memory_space<vmem>>, vector<1x64x128xbf16>
    %165 = vector.shape_cast %164 : vector<1x64x128xbf16> to vector<64x128xbf16>
    %cst_131 = arith.constant dense<0.000000e+00> : vector<64x128xf32>
    %166 = tpu.matmul %163, %165, %cst_131 {dimension_numbers = #tpu.dot_dimension_numbers<[1], [0], [0], [1], [0, 0, 1, 1], [], []>} : vector<64x64xbf16>, vector<64x128xbf16>, vector<64x128xf32> -> vector<64x128xf32>
    %167 = arith.addf %161, %166 : vector<64x128xf32>
    %c17_132 = arith.constant 17 : index
    %c0_133 = arith.constant 0 : index
    %168 = vector.load %arg18[%c17_132, %c0_133] : memref<96x64xf32, #tpu.memory_space<vmem>>, vector<64x64xf32>
    %cst_134 = arith.constant 0.000000e+00 : f32
    %169 = vector.broadcast %cst_134 : f32 to vector<64x64xf32>
    %170 = arith.select %130, %169, %168 : vector<64x64xi1>, vector<64x64xf32>
    %171 = arith.truncf %170 : vector<64x64xf32> to vector<64x64xbf16>
    %c5_135 = arith.constant 5 : index
    %c0_136 = arith.constant 0 : index
    %c0_137 = arith.constant 0 : index
    %172 = vector.load %arg6[%c5_135, %c0_136, %c0_137] : memref<9x64x128xbf16, #tpu.memory_space<vmem>>, vector<1x64x128xbf16>
    %173 = vector.shape_cast %172 : vector<1x64x128xbf16> to vector<64x128xbf16>
    %cst_138 = arith.constant dense<0.000000e+00> : vector<64x128xf32>
    %174 = tpu.matmul %171, %173, %cst_138 {dimension_numbers = #tpu.dot_dimension_numbers<[1], [0], [0], [1], [0, 0, 1, 1], [], []>} : vector<64x64xbf16>, vector<64x128xbf16>, vector<64x128xf32> -> vector<64x128xf32>
    %175 = arith.addf %167, %174 : vector<64x128xf32>
    %c23_139 = arith.constant 23 : index
    %c0_140 = arith.constant 0 : index
    %176 = vector.load %arg18[%c23_139, %c0_140] : memref<96x64xf32, #tpu.memory_space<vmem>>, vector<64x64xf32>
    %cst_141 = arith.constant 0.000000e+00 : f32
    %177 = vector.broadcast %cst_141 : f32 to vector<64x64xf32>
    %178 = arith.select %128, %177, %176 : vector<64x64xi1>, vector<64x64xf32>
    %179 = arith.truncf %178 : vector<64x64xf32> to vector<64x64xbf16>
    %c6_142 = arith.constant 6 : index
    %c0_143 = arith.constant 0 : index
    %c0_144 = arith.constant 0 : index
    %180 = vector.load %arg6[%c6_142, %c0_143, %c0_144] : memref<9x64x128xbf16, #tpu.memory_space<vmem>>, vector<1x64x128xbf16>
    %181 = vector.shape_cast %180 : vector<1x64x128xbf16> to vector<64x128xbf16>
    %cst_145 = arith.constant dense<0.000000e+00> : vector<64x128xf32>
    %182 = tpu.matmul %179, %181, %cst_145 {dimension_numbers = #tpu.dot_dimension_numbers<[1], [0], [0], [1], [0, 0, 1, 1], [], []>} : vector<64x64xbf16>, vector<64x128xbf16>, vector<64x128xf32> -> vector<64x128xf32>
    %183 = arith.addf %175, %182 : vector<64x128xf32>
    %c24_146 = arith.constant 24 : index
    %c0_147 = arith.constant 0 : index
    %184 = vector.load %arg18[%c24_146, %c0_147] : memref<96x64xf32, #tpu.memory_space<vmem>>, vector<64x64xf32>
    %185 = arith.truncf %184 : vector<64x64xf32> to vector<64x64xbf16>
    %c7_148 = arith.constant 7 : index
    %c0_149 = arith.constant 0 : index
    %c0_150 = arith.constant 0 : index
    %186 = vector.load %arg6[%c7_148, %c0_149, %c0_150] : memref<9x64x128xbf16, #tpu.memory_space<vmem>>, vector<1x64x128xbf16>
    %187 = vector.shape_cast %186 : vector<1x64x128xbf16> to vector<64x128xbf16>
    %cst_151 = arith.constant dense<0.000000e+00> : vector<64x128xf32>
    %188 = tpu.matmul %185, %187, %cst_151 {dimension_numbers = #tpu.dot_dimension_numbers<[1], [0], [0], [1], [0, 0, 1, 1], [], []>} : vector<64x64xbf16>, vector<64x128xbf16>, vector<64x128xf32> -> vector<64x128xf32>
    %189 = arith.addf %183, %188 : vector<64x128xf32>
    %c25_152 = arith.constant 25 : index
    %c0_153 = arith.constant 0 : index
    %190 = vector.load %arg18[%c25_152, %c0_153] : memref<96x64xf32, #tpu.memory_space<vmem>>, vector<64x64xf32>
    %cst_154 = arith.constant 0.000000e+00 : f32
    %191 = vector.broadcast %cst_154 : f32 to vector<64x64xf32>
    %192 = arith.select %130, %191, %190 : vector<64x64xi1>, vector<64x64xf32>
    %193 = arith.truncf %192 : vector<64x64xf32> to vector<64x64xbf16>
    %c8_155 = arith.constant 8 : index
    %c0_156 = arith.constant 0 : index
    %c0_157 = arith.constant 0 : index
    %194 = vector.load %arg6[%c8_155, %c0_156, %c0_157] : memref<9x64x128xbf16, #tpu.memory_space<vmem>>, vector<1x64x128xbf16>
    %195 = vector.shape_cast %194 : vector<1x64x128xbf16> to vector<64x128xbf16>
    %cst_158 = arith.constant dense<0.000000e+00> : vector<64x128xf32>
    %196 = tpu.matmul %193, %195, %cst_158 {dimension_numbers = #tpu.dot_dimension_numbers<[1], [0], [0], [1], [0, 0, 1, 1], [], []>} : vector<64x64xbf16>, vector<64x128xbf16>, vector<64x128xf32> -> vector<64x128xf32>
    %197 = arith.addf %189, %196 : vector<64x128xf32>
    %c0_159 = arith.constant 0 : index
    %c0_160 = arith.constant 0 : index
    %198 = vector.load %arg7[%c0_159, %c0_160] : memref<1x128xf32, #tpu.memory_space<vmem>>, vector<1x128xf32>
    %199 = vector.broadcast %198 : vector<1x128xf32> to vector<64x128xf32>
    %200 = arith.addf %197, %199 : vector<64x128xf32>
    %cst_161 = arith.constant 0.000000e+00 : f32
    %201 = vector.broadcast %cst_161 : f32 to vector<64x128xf32>
    %202 = arith.maximumf %200, %201 : vector<64x128xf32>
    %c0_162 = arith.constant 0 : index
    %c0_163 = arith.constant 0 : index
    %203 = vector.load %arg10[%c0_162, %c0_163] : memref<16x64xbf16, #tpu.memory_space<vmem>>, vector<16x64xbf16>
    %204 = arith.truncf %202 : vector<64x128xf32> to vector<64x128xbf16>
    %cst_164 = arith.constant dense<0.000000e+00> : vector<16x128xf32>
    %205 = tpu.matmul %203, %204, %cst_164 {dimension_numbers = #tpu.dot_dimension_numbers<[1], [0], [0], [1], [0, 0, 1, 1], [], []>} : vector<16x64xbf16>, vector<64x128xbf16>, vector<16x128xf32> -> vector<16x128xf32>
    %206 = arith.truncf %205 : vector<16x128xf32> to vector<16x128xbf16>
    %c0_165 = arith.constant 0 : index
    %c0_166 = arith.constant 0 : index
    %207 = vector.load %arg11[%c0_165, %c0_166] : memref<128x256xbf16, #tpu.memory_space<vmem>>, vector<128x256xbf16>
    %cst_167 = arith.constant dense<0.000000e+00> : vector<16x256xf32>
    %208 = tpu.matmul %206, %207, %cst_167 {dimension_numbers = #tpu.dot_dimension_numbers<[1], [0], [0], [1], [0, 0, 1, 1], [], []>} : vector<16x128xbf16>, vector<128x256xbf16>, vector<16x256xf32> -> vector<16x256xf32>
    %c0_168 = arith.constant 0 : index
    %c0_169 = arith.constant 0 : index
    %209 = vector.load %arg12[%c0_168, %c0_169] : memref<1x256xf32, #tpu.memory_space<vmem>>, vector<1x256xf32>
    %210 = vector.broadcast %209 : vector<1x256xf32> to vector<16x256xf32>
    %211 = arith.addf %208, %210 : vector<16x256xf32>
    %c0_170 = arith.constant 0 : index
    %c0_171 = arith.constant 0 : index
    %212 = vector.load %arg13[%c0_170, %c0_171] : memref<16x256xf32, #tpu.memory_space<vmem>>, vector<16x256xf32>
    %213 = arith.addf %211, %212 : vector<16x256xf32>
    %c0_172 = arith.constant 0 : index
    %c0_173 = arith.constant 0 : index
    %c0_174 = arith.constant 0 : index
    %214 = vector.load %arg14[%c0_172, %c0_173, %c0_174] : memref<1x16x256xf32, #tpu.memory_space<vmem>>, vector<1x16x256xf32>
    %215 = vector.shape_cast %214 : vector<1x16x256xf32> to vector<16x256xf32>
    %216 = vector.shape_cast %213 : vector<16x256xf32> to vector<1x16x256xf32>
    tpu.vector_store %arg14[%c0_172, %c0_173, %c0_174], %216 {strides = array<i32>} : memref<1x16x256xf32, #tpu.memory_space<vmem>>, vector<1x16x256xf32>,
    return
  }
  func.func @transform_0(%arg0: i32) -> (i32, i32, i32) {
    %c0_i32 = arith.constant 0 : i32
    %c0_i32_0 = arith.constant 0 : i32
    %c0_i32_1 = arith.constant 0 : i32
    return %arg0, %c0_i32, %c0_i32_0 : i32, i32, i32
  }
  func.func @transform_1(%arg0: i32) -> (i32, i32) {
    %c0_i32 = arith.constant 0 : i32
    %c0_i32_0 = arith.constant 0 : i32
    %c0_i32_1 = arith.constant 0 : i32
    return %c0_i32, %c0_i32_0 : i32, i32
  }
  func.func @transform_2(%arg0: i32) -> (i32, i32) {
    %c0_i32 = arith.constant 0 : i32
    %c0_i32_0 = arith.constant 0 : i32
    %c0_i32_1 = arith.constant 0 : i32
    return %c0_i32, %c0_i32_0 : i32, i32
  }
  func.func @transform_3(%arg0: i32) -> (i32, i32, i32) {
    %c0_i32 = arith.constant 0 : i32
    %c0_i32_0 = arith.constant 0 : i32
    %c0_i32_1 = arith.constant 0 : i32
    %c0_i32_2 = arith.constant 0 : i32
    return %c0_i32, %c0_i32_0, %c0_i32_1 : i32, i32, i32
  }
  func.func @transform_4(%arg0: i32) -> (i32, i32) {
    %c0_i32 = arith.constant 0 : i32
    %c0_i32_0 = arith.constant 0 : i32
    %c0_i32_1 = arith.constant 0 : i32
    return %c0_i32, %c0_i32_0 : i32, i32
  }
  func.func @transform_5(%arg0: i32) -> (i32, i32, i32) {
    %c0_i32 = arith.constant 0 : i32
    %c0_i32_0 = arith.constant 0 : i32
    %c0_i32_1 = arith.constant 0 : i32
    %c0_i32_2 = arith.constant 0 : i32
    return %c0_i32, %c0_i32_0, %c0_i32_1 : i32, i32, i32
  }
  func.func @transform_6(%arg0: i32) -> (i32, i32) {
    %c0_i32 = arith.constant 0 : i32
    %c0_i32_0 = arith.constant 0 : i32
    %c0_i32_1 = arith.constant 0 : i32
    return %c0_i32, %c0_i32_0 : i32, i32
  }
  func.func @transform_7(%arg0: i32) -> (i32, i32) {
    %c0_i32 = arith.constant 0 : i32
    %c0_i32_0 = arith.constant 0 : i32
    %c0_i32_1 = arith.constant 0 : i32
    return %c0_i32, %c0_i32_0 : i32, i32
  }
  func.func @transform_8(%arg0: i32) -> (i32, i32) {
    %c0_i32 = arith.constant 0 : i32
    %c0_i32_0 = arith.constant 0 : i32
    %c0_i32_1 = arith.constant 0 : i32
    return %c0_i32, %c0_i32_0 : i32, i32
  }
  func.func @transform_9(%arg0: i32) -> (i32, i32) {
    %c0_i32 = arith.constant 0 : i32
    %c0_i32_0 = arith.constant 0 : i32
    %c0_i32_1 = arith.constant 0 : i32
    return %c0_i32, %c0_i32_0 : i32, i32
  }
  func.func @transform_10(%arg0: i32) -> (i32, i32) {
    %c0_i32 = arith.constant 0 : i32
    %c0_i32_0 = arith.constant 0 : i32
    %c0_i32_1 = arith.constant 0 : i32
    return %c0_i32, %c0_i32_0 : i32, i32
  }
  func.func @transform_11(%arg0: i32) -> (i32, i32) {
    %c0_i32 = arith.constant 0 : i32
    %c0_i32_0 = arith.constant 0 : i32
    %c0_i32_1 = arith.constant 0 : i32
    return %c0_i32, %c0_i32_0 : i32, i32
  }
  func.func @transform_12(%arg0: i32) -> (i32, i32) {
    %c0_i32 = arith.constant 0 : i32
    %c0_i32_0 = arith.constant 0 : i32
    %c0_i32_1 = arith.constant 0 : i32
    return %c0_i32, %c0_i32_0 : i32, i32
  }
  func.func @transform_13(%arg0: i32) -> (i32, i32, i32) {
    %c0_i32 = arith.constant 0 : i32
    %c0_i32_0 = arith.constant 0 : i32
    %c0_i32_1 = arith.constant 0 : i32
    return %arg0, %c0_i32, %c0_i32_0 : i32, i32, i32
  }
}

</mosaic_0001>

<llo_original>
// kernel: simple_vision_encoder.1
$region0: #{simple_vision_encoder.1}
  #allocation0 [shape = 'u32[]', space=smem, size = 0x4, offset = 0x4, fixed_abs, tag = 'smem constant byte address 0x4 - core index']
  #allocation1 [shape = 'u32[72,128]{1,0:T(1,128)}', space=vmem, size = 0x9000, scoped, tag = 'internal scratch']
  #allocation2 [shape = 'f32[1064,32]{1,0:T(8,128)}', space=vmem, size = 0x85000, scoped, tag = 'scratch operand']
  #allocation3 [shape = 'f32[304,32]{1,0:T(8,128)}', space=vmem, size = 0x26000, scoped, tag = 'scratch operand']
  #allocation4 [shape = 'f32[280,64]{1,0:T(8,128)}', space=vmem, size = 0x23000, scoped, tag = 'scratch operand']
  #allocation5 [shape = 'f32[96,64]{1,0:T(8,128)}', space=vmem, size = 0xc000, scoped, tag = 'scratch operand']
  %s0 = inlined_call_operand.vmem [shape: bf16[2,1024,192], index: 0, kind: input, shape index: {}]
  %s1 = inlined_call_operand.vmem [shape: bf16[192,32], index: 1, kind: input, shape index: {}]
  %s2 = inlined_call_operand.vmem [shape: f32[1,32], index: 2, kind: input, shape index: {}]
  %s3 = inlined_call_operand.vmem [shape: bf16[9,32,64], index: 3, kind: input, shape index: {}]
  %s4 = inlined_call_operand.vmem [shape: f32[1,64], index: 4, kind: input, shape index: {}]
  %s5 = inlined_call_operand.vmem [shape: bf16[9,64,128], index: 5, kind: input, shape index: {}]
  %s6 = inlined_call_operand.vmem [shape: f32[1,128], index: 6, kind: input, shape index: {}]
  %s7 = inlined_call_operand.vmem [shape: bf16[256,1024], index: 7, kind: input, shape index: {}]
  %s8 = inlined_call_operand.vmem [shape: bf16[64,256], index: 8, kind: input, shape index: {}]
  %s9 = inlined_call_operand.vmem [shape: bf16[16,64], index: 9, kind: input, shape index: {}]
  %s10 = inlined_call_operand.vmem [shape: bf16[128,256], index: 10, kind: input, shape index: {}]
  %s11 = inlined_call_operand.vmem [shape: f32[1,256], index: 11, kind: input, shape index: {}]
  %s12 = inlined_call_operand.vmem [shape: f32[16,256], index: 12, kind: input, shape index: {}]
  %s13 = inlined_call_operand.hbm [shape: f32[2,16,256], index: 13, kind: output, shape index: {}]
  %s14 = sld [smem:[#allocation0]]
  $region85: #{simple_vision_encoder.1} parent=0
    _
  %s16 = ssub.s32 1, %s14
  %s17 = scalar_select 0, %s16, %s14
  $region1: #{simple_vision_encoder.1} parent=0
    #allocation6 [shape = 'u8[32768]{0}', space=vmem, size = 0x8000, scoped, tag = 'output window, operand 0']
    #allocation7 [shape = 's32[2]{0}', space=sflag, size = 0x8, scoped, tag = 'scoped memory for simple_vision_encoder.1']
    %18 = vsyncpa [#allocation7], 0
    %s19 = scalar_lea.sflag [#allocation7], 1
    %20 = vsyncpa %s19, 0
    loop: start=0, step=1, limit=4
    $region2: #{simple_vision_encoder.1} parent=1 // loop_pre_header
      _
    $region3: #{simple_vision_encoder.1} parent=1 // loop_header
      %s22 = sphi 0, %s26
      %p23 = scmp.ge.s32.totalorder %s22, 4
      %s32 = sphi 0, %s34
      %s35 = sphi 0, %s32
      %s36 = sphi 0, %s35
      %s52 = sphi 0, %s36
      %s56 = sphi 0, %s56
      %s58 = sphi 0, %s56
      %s59 = sphi 0, %s58
      %s73 = sphi 0, %s59
      %s77 = sphi 0, %s77
      %s79 = sphi 0, %s77
      %s80 = sphi 0, %s79
      %s94 = sphi 0, %s80
      %s98 = sphi 0, %s98
      %s100 = sphi 0, %s98
      %s101 = sphi 0, %s100
      %s115 = sphi 0, %s101
      %s119 = sphi 0, %s119
      %s121 = sphi 0, %s119
      %s122 = sphi 0, %s121
      %s136 = sphi 0, %s122
      %s140 = sphi 0, %s140
      %s142 = sphi 0, %s140
      %s143 = sphi 0, %s142
      %s157 = sphi 0, %s143
      %s161 = sphi 0, %s161
      %s163 = sphi 0, %s161
      %s164 = sphi 0, %s163
      %s178 = sphi 0, %s164
      %s182 = sphi 0, %s182
      %s184 = sphi 0, %s182
      %s185 = sphi 0, %s184
      %s199 = sphi 0, %s185
      %s203 = sphi 0, %s203
      %s205 = sphi 0, %s203
      %s206 = sphi 0, %s205
      %s220 = sphi 0, %s206
      %s224 = sphi 0, %s224
      %s226 = sphi 0, %s224
      %s227 = sphi 0, %s226
      %s241 = sphi 0, %s227
      %s245 = sphi 0, %s245
      %s247 = sphi 0, %s245
      %s248 = sphi 0, %s247
      %s262 = sphi 0, %s248
      %s266 = sphi 0, %s266
      %s268 = sphi 0, %s266
      %s269 = sphi 0, %s268
      %s283 = sphi 0, %s269
      %s287 = sphi 0, %s287
      %s289 = sphi 0, %s287
      %s290 = sphi 0, %s289
      %s304 = sphi 0, %s290
      %s310 = sphi 0, %s312
      %s313 = sphi 0, %s310
      %s314 = sphi 0, %s313
      %s330 = sphi 0, %s314
    $region4: #{simple_vision_encoder.1} parent=1 // loop_header_branch
      %25 = sbr.rel (%p23) target = $region8
    $region5: #{simple_vision_encoder.1} parent=1 // loop_body
      %s27 = ssub.s32 %s22, 1
      %s28 = ssub.s32 %s22, 2
      %s29 = sadd.s32 %s22, 1
      %s30 = ssub.s32 %s22, %s29
      %p31 = scmp.eq.s32.totalorder %s30, 0
      %s33 = sadd.s32 %s32, 1
      %s34 = scalar_select %p31, %s32, %s33
      %p37 = pneg %p31
      %p38 = scmp.eq.s32.totalorder %s22, 1
      %p39 = por %p37, %p38
      %p40 = scmp.ne.s32.totalorder %s32, %s35
      %p41 = scmp.eq.s32.totalorder %s22, 0
      %p42 = por %p40, %p41
      %p43 = scmp.ne.s32.totalorder %s32, %s35
      %p44 = scmp.eq.s32.totalorder %s27, 1
      %p45 = por %p43, %p44
      %p46 = scmp.ne.s32.totalorder %s35, %s36
      %p47 = scmp.eq.s32.totalorder %s27, 0
      %p48 = por %p46, %p47
      %p49 = scmp.ne.s32.totalorder %s35, %s36
      %p50 = scmp.eq.s32.totalorder %s28, 1
      %p51 = por %p49, %p50
      %p53 = scmp.ne.s32.totalorder %s36, %s52
      %p54 = scmp.eq.s32.totalorder %s28, 0
      %p55 = por %p53, %p54
      %s57 = sadd.s32 %s56, 1
      %p60 = scmp.eq.s32.totalorder %s22, 1
      %p61 = scmp.ne.s32.totalorder %s56, %s58
      %p62 = scmp.eq.s32.totalorder %s22, 0
      %p63 = por %p61, %p62
      %p64 = scmp.ne.s32.totalorder %s56, %s58
      %p65 = scmp.eq.s32.totalorder %s27, 1
      %p66 = por %p64, %p65
      %p67 = scmp.ne.s32.totalorder %s58, %s59
      %p68 = scmp.eq.s32.totalorder %s27, 0
      %p69 = por %p67, %p68
      %p70 = scmp.ne.s32.totalorder %s58, %s59
      %p71 = scmp.eq.s32.totalorder %s28, 1
      %p72 = por %p70, %p71
      %p74 = scmp.ne.s32.totalorder %s59, %s73
      %p75 = scmp.eq.s32.totalorder %s28, 0
      %p76 = por %p74, %p75
      %s78 = sadd.s32 %s77, 1
      %p81 = scmp.eq.s32.totalorder %s22, 1
      %p82 = scmp.ne.s32.totalorder %s77, %s79
      %p83 = scmp.eq.s32.totalorder %s22, 0
      %p84 = por %p82, %p83
      %p85 = scmp.ne.s32.totalorder %s77, %s79
      %p86 = scmp.eq.s32.totalorder %s27, 1
      %p87 = por %p85, %p86
      %p88 = scmp.ne.s32.totalorder %s79, %s80
      %p89 = scmp.eq.s32.totalorder %s27, 0
      %p90 = por %p88, %p89
      %p91 = scmp.ne.s32.totalorder %s79, %s80
      %p92 = scmp.eq.s32.totalorder %s28, 1
      %p93 = por %p91, %p92
      %p95 = scmp.ne.s32.totalorder %s80, %s94
      %p96 = scmp.eq.s32.totalorder %s28, 0
      %p97 = por %p95, %p96
      %s99 = sadd.s32 %s98, 1
      %p102 = scmp.eq.s32.totalorder %s22, 1
      %p103 = scmp.ne.s32.totalorder %s98, %s100
      %p104 = scmp.eq.s32.totalorder %s22, 0
      %p105 = por %p103, %p104
      %p106 = scmp.ne.s32.totalorder %s98, %s100
      %p107 = scmp.eq.s32.totalorder %s27, 1
      %p108 = por %p106, %p107
      %p109 = scmp.ne.s32.totalorder %s100, %s101
      %p110 = scmp.eq.s32.totalorder %s27, 0
      %p111 = por %p109, %p110
      %p112 = scmp.ne.s32.totalorder %s100, %s101
      %p113 = scmp.eq.s32.totalorder %s28, 1
      %p114 = por %p112, %p113
      %p116 = scmp.ne.s32.totalorder %s101, %s115
      %p117 = scmp.eq.s32.totalorder %s28, 0
      %p118 = por %p116, %p117
      %s120 = sadd.s32 %s119, 1
      %p123 = scmp.eq.s32.totalorder %s22, 1
      %p124 = scmp.ne.s32.totalorder %s119, %s121
      %p125 = scmp.eq.s32.totalorder %s22, 0
      %p126 = por %p124, %p125
      %p127 = scmp.ne.s32.totalorder %s119, %s121
      %p128 = scmp.eq.s32.totalorder %s27, 1
      %p129 = por %p127, %p128
      %p130 = scmp.ne.s32.totalorder %s121, %s122
      %p131 = scmp.eq.s32.totalorder %s27, 0
      %p132 = por %p130, %p131
      %p133 = scmp.ne.s32.totalorder %s121, %s122
      %p134 = scmp.eq.s32.totalorder %s28, 1
      %p135 = por %p133, %p134
      %p137 = scmp.ne.s32.totalorder %s122, %s136
      %p138 = scmp.eq.s32.totalorder %s28, 0
      %p139 = por %p137, %p138
      %s141 = sadd.s32 %s140, 1
      %p144 = scmp.eq.s32.totalorder %s22, 1
      %p145 = scmp.ne.s32.totalorder %s140, %s142
      %p146 = scmp.eq.s32.totalorder %s22, 0
      %p147 = por %p145, %p146
      %p148 = scmp.ne.s32.totalorder %s140, %s142
      %p149 = scmp.eq.s32.totalorder %s27, 1
      %p150 = por %p148, %p149
      %p151 = scmp.ne.s32.totalorder %s142, %s143
      %p152 = scmp.eq.s32.totalorder %s27, 0
      %p153 = por %p151, %p152
      %p154 = scmp.ne.s32.totalorder %s142, %s143
      %p155 = scmp.eq.s32.totalorder %s28, 1
      %p156 = por %p154, %p155
      %p158 = scmp.ne.s32.totalorder %s143, %s157
      %p159 = scmp.eq.s32.totalorder %s28, 0
      %p160 = por %p158, %p159
      %s162 = sadd.s32 %s161, 1
      %p165 = scmp.eq.s32.totalorder %s22, 1
      %p166 = scmp.ne.s32.totalorder %s161, %s163
      %p167 = scmp.eq.s32.totalorder %s22, 0
      %p168 = por %p166, %p167
      %p169 = scmp.ne.s32.totalorder %s161, %s163
      %p170 = scmp.eq.s32.totalorder %s27, 1
      %p171 = por %p169, %p170
      %p172 = scmp.ne.s32.totalorder %s163, %s164
      %p173 = scmp.eq.s32.totalorder %s27, 0
      %p174 = por %p172, %p173
      %p175 = scmp.ne.s32.totalorder %s163, %s164
      %p176 = scmp.eq.s32.totalorder %s28, 1
      %p177 = por %p175, %p176
      %p179 = scmp.ne.s32.totalorder %s164, %s178
      %p180 = scmp.eq.s32.totalorder %s28, 0
      %p181 = por %p179, %p180
      %s183 = sadd.s32 %s182, 1
      %p186 = scmp.eq.s32.totalorder %s22, 1
      %p187 = scmp.ne.s32.totalorder %s182, %s184
      %p188 = scmp.eq.s32.totalorder %s22, 0
      %p189 = por %p187, %p188
      %p190 = scmp.ne.s32.totalorder %s182, %s184
      %p191 = scmp.eq.s32.totalorder %s27, 1
      %p192 = por %p190, %p191
      %p193 = scmp.ne.s32.totalorder %s184, %s185
      %p194 = scmp.eq.s32.totalorder %s27, 0
      %p195 = por %p193, %p194
      %p196 = scmp.ne.s32.totalorder %s184, %s185
      %p197 = scmp.eq.s32.totalorder %s28, 1
      %p198 = por %p196, %p197
      %p200 = scmp.ne.s32.totalorder %s185, %s199
      %p201 = scmp.eq.s32.totalorder %s28, 0
      %p202 = por %p200, %p201
      %s204 = sadd.s32 %s203, 1
      %p207 = scmp.eq.s32.totalorder %s22, 1
      %p208 = scmp.ne.s32.totalorder %s203, %s205
      %p209 = scmp.eq.s32.totalorder %s22, 0
      %p210 = por %p208, %p209
      %p211 = scmp.ne.s32.totalorder %s203, %s205
      %p212 = scmp.eq.s32.totalorder %s27, 1
      %p213 = por %p211, %p212
      %p214 = scmp.ne.s32.totalorder %s205, %s206
      %p215 = scmp.eq.s32.totalorder %s27, 0
      %p216 = por %p214, %p215
      %p217 = scmp.ne.s32.totalorder %s205, %s206
      %p218 = scmp.eq.s32.totalorder %s28, 1
      %p219 = por %p217, %p218
      %p221 = scmp.ne.s32.totalorder %s206, %s220
      %p222 = scmp.eq.s32.totalorder %s28, 0
      %p223 = por %p221, %p222
      %s225 = sadd.s32 %s224, 1
      %p228 = scmp.eq.s32.totalorder %s22, 1
      %p229 = scmp.ne.s32.totalorder %s224, %s226
      %p230 = scmp.eq.s32.totalorder %s22, 0
      %p231 = por %p229, %p230
      %p232 = scmp.ne.s32.totalorder %s224, %s226
      %p233 = scmp.eq.s32.totalorder %s27, 1
      %p234 = por %p232, %p233
      %p235 = scmp.ne.s32.totalorder %s226, %s227
      %p236 = scmp.eq.s32.totalorder %s27, 0
      %p237 = por %p235, %p236
      %p238 = scmp.ne.s32.totalorder %s226, %s227
      %p239 = scmp.eq.s32.totalorder %s28, 1
      %p240 = por %p238, %p239
      %p242 = scmp.ne.s32.totalorder %s227, %s241
      %p243 = scmp.eq.s32.totalorder %s28, 0
      %p244 = por %p242, %p243
      %s246 = sadd.s32 %s245, 1
      %p249 = scmp.eq.s32.totalorder %s22, 1
      %p250 = scmp.ne.s32.totalorder %s245, %s247
      %p251 = scmp.eq.s32.totalorder %s22, 0
      %p252 = por %p250, %p251
      %p253 = scmp.ne.s32.totalorder %s245, %s247
      %p254 = scmp.eq.s32.totalorder %s27, 1
      %p255 = por %p253, %p254
      %p256 = scmp.ne.s32.totalorder %s247, %s248
      %p257 = scmp.eq.s32.totalorder %s27, 0
      %p258 = por %p256, %p257
      %p259 = scmp.ne.s32.totalorder %s247, %s248
      %p260 = scmp.eq.s32.totalorder %s28, 1
      %p261 = por %p259, %p260
      %p263 = scmp.ne.s32.totalorder %s248, %s262
      %p264 = scmp.eq.s32.totalorder %s28, 0
      %p265 = por %p263, %p264
      %s267 = sadd.s32 %s266, 1
      %p270 = scmp.eq.s32.totalorder %s22, 1
      %p271 = scmp.ne.s32.totalorder %s266, %s268
      %p272 = scmp.eq.s32.totalorder %s22, 0
      %p273 = por %p271, %p272
      %p274 = scmp.ne.s32.totalorder %s266, %s268
      %p275 = scmp.eq.s32.totalorder %s27, 1
      %p276 = por %p274, %p275
      %p277 = scmp.ne.s32.totalorder %s268, %s269
      %p278 = scmp.eq.s32.totalorder %s27, 0
      %p279 = por %p277, %p278
      %p280 = scmp.ne.s32.totalorder %s268, %s269
      %p281 = scmp.eq.s32.totalorder %s28, 1
      %p282 = por %p280, %p281
      %p284 = scmp.ne.s32.totalorder %s269, %s283
      %p285 = scmp.eq.s32.totalorder %s28, 0
      %p286 = por %p284, %p285
      %s288 = sadd.s32 %s287, 1
      %p291 = scmp.eq.s32.totalorder %s22, 1
      %p292 = scmp.ne.s32.totalorder %s287, %s289
      %p293 = scmp.eq.s32.totalorder %s22, 0
      %p294 = por %p292, %p293
      %p295 = scmp.ne.s32.totalorder %s287, %s289
      %p296 = scmp.eq.s32.totalorder %s27, 1
      %p297 = por %p295, %p296
      %p298 = scmp.ne.s32.totalorder %s289, %s290
      %p299 = scmp.eq.s32.totalorder %s27, 0
      %p300 = por %p298, %p299
      %p301 = scmp.ne.s32.totalorder %s289, %s290
      %p302 = scmp.eq.s32.totalorder %s28, 1
      %p303 = por %p301, %p302
      %p305 = scmp.ne.s32.totalorder %s290, %s304
      %p306 = scmp.eq.s32.totalorder %s28, 0
      %p307 = por %p305, %p306
      %s308 = ssub.s32 %s22, %s29
      %p309 = scmp.eq.s32.totalorder %s308, 0
      %s311 = sadd.s32 %s310, 1
      %s312 = scalar_select %p309, %s310, %s311
      %p315 = pneg %p309
      %p316 = scmp.eq.s32.totalorder %s22, 1
      %p317 = por %p315, %p316
      %p318 = scmp.ne.s32.totalorder %s310, %s313
      %p319 = scmp.eq.s32.totalorder %s22, 0
      %p320 = por %p318, %p319
      %p321 = scmp.ne.s32.totalorder %s310, %s313
      %p322 = scmp.eq.s32.totalorder %s27, 1
      %p323 = por %p321, %p322
      %p324 = scmp.ne.s32.totalorder %s313, %s314
      %p325 = scmp.eq.s32.totalorder %s27, 0
      %p326 = por %p324, %p325
      %p327 = scmp.ne.s32.totalorder %s313, %s314
      %p328 = scmp.eq.s32.totalorder %s28, 1
      %p329 = por %p327, %p328
      %p331 = scmp.ne.s32.totalorder %s314, %s330
      %p332 = scmp.eq.s32.totalorder %s28, 0
      %p333 = por %p331, %p332
      %p334 = scmp.le.s32.totalorder 1, %s22
      %p335 = scmp.lt.s32.totalorder %s22, 3
      %p336 = pnand %p334, %p335
      %p337 = pneg %p336
      // Predicated region
      $region9: #{simple_vision_encoder.1} parent=5 // pred_check
        _
      $region10: #{simple_vision_encoder.1} parent=5 // pred_check_branch
        %339 = sbr.rel (%p336) target = $region12
      $region11: #{simple_vision_encoder.1} parent=5 // pred_region
        %s340 = ssub.s32 %s22, 1
        // Predicated region
        $region13: #{simple_vision_encoder.1} parent=11 // pred_check
          %p341 = pneg %p69
        $region14: #{simple_vision_encoder.1} parent=11 // pred_check_branch
          %343 = sbr.rel (%p341) target = $region16
        $region15: #{simple_vision_encoder.1} parent=11 // pred_region
          _
        $region16: #{simple_vision_encoder.1} parent=11 // pred_fallthru
          _
        // Predicated region
        $region17: #{simple_vision_encoder.1} parent=11 // pred_check
          %p344 = pneg %p90
        $region18: #{simple_vision_encoder.1} parent=11 // pred_check_branch
          %346 = sbr.rel (%p344) target = $region20
        $region19: #{simple_vision_encoder.1} parent=11 // pred_region
          _
        $region20: #{simple_vision_encoder.1} parent=11 // pred_fallthru
          _
        // Predicated region
        $region21: #{simple_vision_encoder.1} parent=11 // pred_check
          %p347 = pneg %p111
        $region22: #{simple_vision_encoder.1} parent=11 // pred_check_branch
          %349 = sbr.rel (%p347) target = $region24
        $region23: #{simple_vision_encoder.1} parent=11 // pred_region
          _
        $region24: #{simple_vision_encoder.1} parent=11 // pred_fallthru
          _
        // Predicated region
        $region25: #{simple_vision_encoder.1} parent=11 // pred_check
          %p350 = pneg %p132
        $region26: #{simple_vision_encoder.1} parent=11 // pred_check_branch
          %352 = sbr.rel (%p350) target = $region28
        $region27: #{simple_vision_encoder.1} parent=11 // pred_region
          _
        $region28: #{simple_vision_encoder.1} parent=11 // pred_fallthru
          _
        // Predicated region
        $region29: #{simple_vision_encoder.1} parent=11 // pred_check
          %p353 = pneg %p153
        $region30: #{simple_vision_encoder.1} parent=11 // pred_check_branch
          %355 = sbr.rel (%p353) target = $region32
        $region31: #{simple_vision_encoder.1} parent=11 // pred_region
          _
        $region32: #{simple_vision_encoder.1} parent=11 // pred_fallthru
          _
        // Predicated region
        $region33: #{simple_vision_encoder.1} parent=11 // pred_check
          %p356 = pneg %p174
        $region34: #{simple_vision_encoder.1} parent=11 // pred_check_branch
          %358 = sbr.rel (%p356) target = $region36
        $region35: #{simple_vision_encoder.1} parent=11 // pred_region
          _
        $region36: #{simple_vision_encoder.1} parent=11 // pred_fallthru
          _
        // Predicated region
        $region37: #{simple_vision_encoder.1} parent=11 // pred_check
          %p359 = pneg %p195
        $region38: #{simple_vision_encoder.1} parent=11 // pred_check_branch
          %361 = sbr.rel (%p359) target = $region40
        $region39: #{simple_vision_encoder.1} parent=11 // pred_region
          _
        $region40: #{simple_vision_encoder.1} parent=11 // pred_fallthru
          _
        // Predicated region
        $region41: #{simple_vision_encoder.1} parent=11 // pred_check
          %p362 = pneg %p216
        $region42: #{simple_vision_encoder.1} parent=11 // pred_check_branch
          %364 = sbr.rel (%p362) target = $region44
        $region43: #{simple_vision_encoder.1} parent=11 // pred_region
          _
        $region44: #{simple_vision_encoder.1} parent=11 // pred_fallthru
          _
        // Predicated region
        $region45: #{simple_vision_encoder.1} parent=11 // pred_check
          %p365 = pneg %p237
        $region46: #{simple_vision_encoder.1} parent=11 // pred_check_branch
          %367 = sbr.rel (%p365) target = $region48
        $region47: #{simple_vision_encoder.1} parent=11 // pred_region
          _
        $region48: #{simple_vision_encoder.1} parent=11 // pred_fallthru
          _
        // Predicated region
        $region49: #{simple_vision_encoder.1} parent=11 // pred_check
          %p368 = pneg %p258
        $region50: #{simple_vision_encoder.1} parent=11 // pred_check_branch
          %370 = sbr.rel (%p368) target = $region52
        $region51: #{simple_vision_encoder.1} parent=11 // pred_region
          _
        $region52: #{simple_vision_encoder.1} parent=11 // pred_fallthru
          _
        // Predicated region
        $region53: #{simple_vision_encoder.1} parent=11 // pred_check
          %p371 = pneg %p279
        $region54: #{simple_vision_encoder.1} parent=11 // pred_check_branch
          %373 = sbr.rel (%p371) target = $region56
        $region55: #{simple_vision_encoder.1} parent=11 // pred_region
          _
        $region56: #{simple_vision_encoder.1} parent=11 // pred_fallthru
          _
        // Predicated region
        $region57: #{simple_vision_encoder.1} parent=11 // pred_check
          %p374 = pneg %p300
        $region58: #{simple_vision_encoder.1} parent=11 // pred_check_branch
          %376 = sbr.rel (%p374) target = $region60
        $region59: #{simple_vision_encoder.1} parent=11 // pred_region
          _
        $region60: #{simple_vision_encoder.1} parent=11 // pred_fallthru
          _
      $region12: #{simple_vision_encoder.1} parent=5 // pred_fallthru
        _
      %p377 = scmp.lt.s32.totalorder %s22, 2
      // Predicated region
      $region61: #{simple_vision_encoder.1} parent=5 // pred_check
        %p378 = pneg %p377
      $region62: #{simple_vision_encoder.1} parent=5 // pred_check_branch
        %380 = sbr.rel (%p378) target = $region64
      $region63: #{simple_vision_encoder.1} parent=5 // pred_region
        // Predicated region
        $region65: #{simple_vision_encoder.1} parent=63 // pred_check
          %p381 = pneg %p42
        $region66: #{simple_vision_encoder.1} parent=63 // pred_check_branch
          %383 = sbr.rel (%p381) target = $region68
        $region67: #{simple_vision_encoder.1} parent=63 // pred_region
          %p384 = scmp.lt.s32.totalorder %s22, 1
          %s385 = scalar_select %p384, %s22, 1
          %s386 = smul.addr %s385, 256
          %s387 = smul.addr %s386, 4
          %s388 = scalar_lea.vmem %s0, %s387
        $region68: #{simple_vision_encoder.1} parent=63 // pred_fallthru
          _
      $region64: #{simple_vision_encoder.1} parent=5 // pred_fallthru
        _
      %p389 = scmp.le.s32.totalorder 1, %s22
      %p390 = scmp.lt.s32.totalorder %s22, 3
      %p391 = pnand %p389, %p390
      %p392 = pneg %p391
      // Predicated region
      $region69: #{simple_vision_encoder.1} parent=5 // pred_check
        _
      $region70: #{simple_vision_encoder.1} parent=5 // pred_check_branch
        %394 = sbr.rel (%p391) target = $region72
      $region71: #{simple_vision_encoder.1} parent=5 // pred_region
        %s395 = ssub.s32 %s22, 1
        %p396 = scmp.lt.s32.totalorder %s27, 1
        %s397 = scalar_select %p396, %s27, 1
        %s398 = smul.addr %s397, 256
        %s399 = smul.addr %s398, 4
        %s400 = scalar_lea.vmem %s0, %s399
        %p401 = pneg %p48
        %p402 = pneg %p45
        %p403 = pneg %p69
        %p404 = pneg %p66
        %p405 = pneg %p90
        %p406 = pneg %p87
        %p407 = pneg %p111
        %p408 = pneg %p108
        %p409 = pneg %p132
        %p410 = pneg %p129
        %p411 = pneg %p153
        %p412 = pneg %p150
        %p413 = pneg %p174
        %p414 = pneg %p171
        %p415 = pneg %p195
        %p416 = pneg %p192
        %p417 = pneg %p216
        %p418 = pneg %p213
        %p419 = pneg %p237
        %p420 = pneg %p234
        %p421 = pneg %p258
        %p422 = pneg %p255
        %p423 = pneg %p279
        %p424 = pneg %p276
        %p425 = pneg %p300
        %p426 = pneg %p297
        %p427 = pneg %p326
        %p428 = pneg %p323
        %s429 = sand.u32 %s313, 1
        %s430 = scalar_lea.sflag [#allocation7], %s429
        %s431 = sand.u32 %s313, 1
        %s432 = smul.addr %s431, 32
        %s433 = scalar_lea.vmem [#allocation6], %s432
        %p434 = scmp.lt.s32.totalorder %s27, 1
        %s435 = scalar_select %p434, %s27, 1
        %s436 = smul.addr %s435, 256
        %s437 = smul.addr %s436, 4
        %s438 = scalar_lea.vmem %s0, %s437
        %v440 = vld [vmem:[%s438] sm:$0xff]
        %v441 = vld [vmem:[%s438 + $0x8] sm:$0xff]
        %v442 = vld [vmem:[%s438 + $0x10] sm:$0xff]
        %v443 = vld [vmem:[%s438 + $0x18] sm:$0xff]
        %v444 = vld [vmem:[%s438 + $0x20] sm:$0xff]
        %v445 = vld [vmem:[%s438 + $0x28] sm:$0xff]
        %v446 = vld [vmem:[%s438 + $0x30] sm:$0xff]
        %v447 = vld [vmem:[%s438 + $0x38] sm:$0xff]
        %v448 = vld [vmem:[%s438 + $0x40] sm:$0xff]
        %v449 = vld [vmem:[%s438 + $0x48] sm:$0xff]
        %v450 = vld [vmem:[%s438 + $0x50] sm:$0xff]
        %v451 = vld [vmem:[%s438 + $0x58] sm:$0xff]
        %v452 = vld [vmem:[%s438 + $0x60] sm:$0xff]
        %v453 = vld [vmem:[%s438 + $0x68] sm:$0xff]
        %v454 = vld [vmem:[%s438 + $0x70] sm:$0xff]
        %v455 = vld [vmem:[%s438 + $0x78] sm:$0xff]
        %v456 = vld [vmem:[%s438 + $0x80] sm:$0xff]
        %v457 = vld [vmem:[%s438 + $0x88] sm:$0xff]
        %v458 = vld [vmem:[%s438 + $0x90] sm:$0xff]
        %v459 = vld [vmem:[%s438 + $0x98] sm:$0xff]
        %v460 = vld [vmem:[%s438 + $0xa0] sm:$0xff]
        %v461 = vld [vmem:[%s438 + $0xa8] sm:$0xff]
        %v462 = vld [vmem:[%s438 + $0xb0] sm:$0xff]
        %v463 = vld [vmem:[%s438 + $0xb8] sm:$0xff]
        %v464 = vld [vmem:[%s438 + $0xc0] sm:$0xff]
        %v465 = vld [vmem:[%s438 + $0xc8] sm:$0xff]
        %v466 = vld [vmem:[%s438 + $0xd0] sm:$0xff]
        %v467 = vld [vmem:[%s438 + $0xd8] sm:$0xff]
        %v468 = vld [vmem:[%s438 + $0xe0] sm:$0xff]
        %v469 = vld [vmem:[%s438 + $0xe8] sm:$0xff]
        %v470 = vld [vmem:[%s438 + $0xf0] sm:$0xff]
        %v471 = vld [vmem:[%s438 + $0xf8] sm:$0xff]
        %v472 = vld [vmem:[%s438 + $0x100] sm:$0xff]
        %v473 = vld [vmem:[%s438 + $0x108] sm:$0xff]
        %v474 = vld [vmem:[%s438 + $0x110] sm:$0xff]
        %v475 = vld [vmem:[%s438 + $0x118] sm:$0xff]
        %v476 = vld [vmem:[%s438 + $0x120] sm:$0xff]
        %v477 = vld [vmem:[%s438 + $0x128] sm:$0xff]
        %v478 = vld [vmem:[%s438 + $0x130] sm:$0xff]
        %v479 = vld [vmem:[%s438 + $0x138] sm:$0xff]
        %v480 = vld [vmem:[%s438 + $0x140] sm:$0xff]
        %v481 = vld [vmem:[%s438 + $0x148] sm:$0xff]
        %v482 = vld [vmem:[%s438 + $0x150] sm:$0xff]
        %v483 = vld [vmem:[%s438 + $0x158] sm:$0xff]
        %v484 = vld [vmem:[%s438 + $0x160] sm:$0xff]
        %v485 = vld [vmem:[%s438 + $0x168] sm:$0xff]
        %v486 = vld [vmem:[%s438 + $0x170] sm:$0xff]
        %v487 = vld [vmem:[%s438 + $0x178] sm:$0xff]
        %v488 = vld [vmem:[%s438 + $0x180] sm:$0xff]
        %v489 = vld [vmem:[%s438 + $0x188] sm:$0xff]
        %v490 = vld [vmem:[%s438 + $0x190] sm:$0xff]
        %v491 = vld [vmem:[%s438 + $0x198] sm:$0xff]
        %v492 = vld [vmem:[%s438 + $0x1a0] sm:$0xff]
        %v493 = vld [vmem:[%s438 + $0x1a8] sm:$0xff]
        %v494 = vld [vmem:[%s438 + $0x1b0] sm:$0xff]
        %v495 = vld [vmem:[%s438 + $0x1b8] sm:$0xff]
        %v496 = vld [vmem:[%s438 + $0x1c0] sm:$0xff]
        %v497 = vld [vmem:[%s438 + $0x1c8] sm:$0xff]
        %v498 = vld [vmem:[%s438 + $0x1d0] sm:$0xff]
        %v499 = vld [vmem:[%s438 + $0x1d8] sm:$0xff]
        %v500 = vld [vmem:[%s438 + $0x1e0] sm:$0xff]
        %v501 = vld [vmem:[%s438 + $0x1e8] sm:$0xff]
        %v502 = vld [vmem:[%s438 + $0x1f0] sm:$0xff]
        %v503 = vld [vmem:[%s438 + $0x1f8] sm:$0xff]
        %v504 = vld [vmem:[%s438 + $0x200] sm:$0xff]
        %v505 = vld [vmem:[%s438 + $0x208] sm:$0xff]
        %v506 = vld [vmem:[%s438 + $0x210] sm:$0xff]
        %v507 = vld [vmem:[%s438 + $0x218] sm:$0xff]
        %v508 = vld [vmem:[%s438 + $0x220] sm:$0xff]
        %v509 = vld [vmem:[%s438 + $0x228] sm:$0xff]
        %v510 = vld [vmem:[%s438 + $0x230] sm:$0xff]
        %v511 = vld [vmem:[%s438 + $0x238] sm:$0xff]
        %v512 = vld [vmem:[%s438 + $0x240] sm:$0xff]
        %v513 = vld [vmem:[%s438 + $0x248] sm:$0xff]
        %v514 = vld [vmem:[%s438 + $0x250] sm:$0xff]
        %v515 = vld [vmem:[%s438 + $0x258] sm:$0xff]
        %v516 = vld [vmem:[%s438 + $0x260] sm:$0xff]
        %v517 = vld [vmem:[%s438 + $0x268] sm:$0xff]
        %v518 = vld [vmem:[%s438 + $0x270] sm:$0xff]
        %v519 = vld [vmem:[%s438 + $0x278] sm:$0xff]
        %v520 = vld [vmem:[%s438 + $0x280] sm:$0xff]
        %v521 = vld [vmem:[%s438 + $0x288] sm:$0xff]
        %v522 = vld [vmem:[%s438 + $0x290] sm:$0xff]
        %v523 = vld [vmem:[%s438 + $0x298] sm:$0xff]
        %v524 = vld [vmem:[%s438 + $0x2a0] sm:$0xff]
        %v525 = vld [vmem:[%s438 + $0x2a8] sm:$0xff]
        %v526 = vld [vmem:[%s438 + $0x2b0] sm:$0xff]
        %v527 = vld [vmem:[%s438 + $0x2b8] sm:$0xff]
        %v528 = vld [vmem:[%s438 + $0x2c0] sm:$0xff]
        %v529 = vld [vmem:[%s438 + $0x2c8] sm:$0xff]
        %v530 = vld [vmem:[%s438 + $0x2d0] sm:$0xff]
        %v531 = vld [vmem:[%s438 + $0x2d8] sm:$0xff]
        %v532 = vld [vmem:[%s438 + $0x2e0] sm:$0xff]
        %v533 = vld [vmem:[%s438 + $0x2e8] sm:$0xff]
        %v534 = vld [vmem:[%s438 + $0x2f0] sm:$0xff]
        %v535 = vld [vmem:[%s438 + $0x2f8] sm:$0xff]
        %v536 = vld [vmem:[%s438 + $0x300] sm:$0xff]
        %v537 = vld [vmem:[%s438 + $0x308] sm:$0xff]
        %v538 = vld [vmem:[%s438 + $0x310] sm:$0xff]
        %v539 = vld [vmem:[%s438 + $0x318] sm:$0xff]
        %v540 = vld [vmem:[%s438 + $0x320] sm:$0xff]
        %v541 = vld [vmem:[%s438 + $0x328] sm:$0xff]
        %v542 = vld [vmem:[%s438 + $0x330] sm:$0xff]
        %v543 = vld [vmem:[%s438 + $0x338] sm:$0xff]
        %v544 = vld [vmem:[%s438 + $0x340] sm:$0xff]
        %v545 = vld [vmem:[%s438 + $0x348] sm:$0xff]
        %v546 = vld [vmem:[%s438 + $0x350] sm:$0xff]
        %v547 = vld [vmem:[%s438 + $0x358] sm:$0xff]
        %v548 = vld [vmem:[%s438 + $0x360] sm:$0xff]
        %v549 = vld [vmem:[%s438 + $0x368] sm:$0xff]
        %v550 = vld [vmem:[%s438 + $0x370] sm:$0xff]
        %v551 = vld [vmem:[%s438 + $0x378] sm:$0xff]
        %v552 = vld [vmem:[%s438 + $0x380] sm:$0xff]
        %v553 = vld [vmem:[%s438 + $0x388] sm:$0xff]
        %v554 = vld [vmem:[%s438 + $0x390] sm:$0xff]
        %v555 = vld [vmem:[%s438 + $0x398] sm:$0xff]
        %v556 = vld [vmem:[%s438 + $0x3a0] sm:$0xff]
        %v557 = vld [vmem:[%s438 + $0x3a8] sm:$0xff]
        %v558 = vld [vmem:[%s438 + $0x3b0] sm:$0xff]
        %v559 = vld [vmem:[%s438 + $0x3b8] sm:$0xff]
        %v560 = vld [vmem:[%s438 + $0x3c0] sm:$0xff]
        %v561 = vld [vmem:[%s438 + $0x3c8] sm:$0xff]
        %v562 = vld [vmem:[%s438 + $0x3d0] sm:$0xff]
        %v563 = vld [vmem:[%s438 + $0x3d8] sm:$0xff]
        %v564 = vld [vmem:[%s438 + $0x3e0] sm:$0xff]
        %v565 = vld [vmem:[%s438 + $0x3e8] sm:$0xff]
        %v566 = vld [vmem:[%s438 + $0x3f0] sm:$0xff]
        %v567 = vld [vmem:[%s438 + $0x3f8] sm:$0xff]
        %v568 = vld [vmem:[%s1] sm:$0xf]
        %v569 = vld [vmem:[%s1 + $0x4] sm:$0xf]
        %v570 = vld [vmem:[%s1 + $0x8] sm:$0xf]
        %v571 = vld [vmem:[%s1 + $0xc] sm:$0xf]
        %v572 = vld [vmem:[%s1 + $0x10] sm:$0xf]
        %v573 = vld [vmem:[%s1 + $0x14] sm:$0xf]
        %v574 = vld [vmem:[%s1 + $0x18] sm:$0xf]
        %v575 = vld [vmem:[%s1 + $0x1c] sm:$0xf]
        %v576 = vld [vmem:[%s1 + $0x20] sm:$0xf]
        %v577 = vld [vmem:[%s1 + $0x24] sm:$0xf]
        %v578 = vld [vmem:[%s1 + $0x28] sm:$0xf]
        %v579 = vld [vmem:[%s1 + $0x2c] sm:$0xf]
        %v580 = vld [vmem:[%s1 + $0x30] sm:$0xf]
        %v581 = vld [vmem:[%s1 + $0x34] sm:$0xf]
        %v582 = vld [vmem:[%s1 + $0x38] sm:$0xf]
        %v583 = vld [vmem:[%s1 + $0x3c] sm:$0xf]
        %v584 = vld [vmem:[%s1 + $0x40] sm:$0xf]
        %v585 = vld [vmem:[%s1 + $0x44] sm:$0xf]
        %v586 = vld [vmem:[%s1 + $0x48] sm:$0xf]
        %v587 = vld [vmem:[%s1 + $0x4c] sm:$0xf]
        %v588 = vld [vmem:[%s1 + $0x50] sm:$0xf]
        %v589 = vld [vmem:[%s1 + $0x54] sm:$0xf]
        %v590 = vld [vmem:[%s1 + $0x58] sm:$0xf]
        %v591 = vld [vmem:[%s1 + $0x5c] sm:$0xf]
        %v592 = vld [vmem:[%s2] sm:$0x1]
        %v594 = vperm.slane %v592, 0
        %v724 = vunpack.c.l.b16 %v440
        %v725 = vunpack.c.h.b16 %v440
        %v726 = vunpack.c.l.b16 %v441
        %v727 = vunpack.c.h.b16 %v441
        %v728 = vunpack.c.l.b16 %v442
        %v729 = vunpack.c.h.b16 %v442
        %v730 = vunpack.c.l.b16 %v443
        %v731 = vunpack.c.h.b16 %v443
        %v732 = vunpack.c.l.b16 %v444
        %v733 = vunpack.c.h.b16 %v444
        %v734 = vunpack.c.l.b16 %v445
        %v735 = vunpack.c.h.b16 %v445
        %v736 = vunpack.c.l.b16 %v446
        %v737 = vunpack.c.h.b16 %v446
        %v738 = vunpack.c.l.b16 %v447
        %v739 = vunpack.c.h.b16 %v447
        %v740 = vunpack.c.l.b16 %v448
        %v741 = vunpack.c.h.b16 %v448
        %v742 = vunpack.c.l.b16 %v449
        %v743 = vunpack.c.h.b16 %v449
        %v744 = vunpack.c.l.b16 %v450
        %v745 = vunpack.c.h.b16 %v450
        %v746 = vunpack.c.l.b16 %v451
        %v747 = vunpack.c.h.b16 %v451
        %v748 = vunpack.c.l.b16 %v452
        %v749 = vunpack.c.h.b16 %v452
        %v750 = vunpack.c.l.b16 %v453
        %v751 = vunpack.c.h.b16 %v453
        %v752 = vunpack.c.l.b16 %v454
        %v753 = vunpack.c.h.b16 %v454
        %v754 = vunpack.c.l.b16 %v455
        %v755 = vunpack.c.h.b16 %v455
        %v756 = vunpack.c.l.b16 %v456
        %v757 = vunpack.c.h.b16 %v456
        %v758 = vunpack.c.l.b16 %v457
        %v759 = vunpack.c.h.b16 %v457
        %v760 = vunpack.c.l.b16 %v458
        %v761 = vunpack.c.h.b16 %v458
        %v762 = vunpack.c.l.b16 %v459
        %v763 = vunpack.c.h.b16 %v459
        %v764 = vunpack.c.l.b16 %v460
        %v765 = vunpack.c.h.b16 %v460
        %v766 = vunpack.c.l.b16 %v461
        %v767 = vunpack.c.h.b16 %v461
        %v768 = vunpack.c.l.b16 %v462
        %v769 = vunpack.c.h.b16 %v462
        %v770 = vunpack.c.l.b16 %v463
        %v771 = vunpack.c.h.b16 %v463
        %v772 = vunpack.c.l.b16 %v464
        %v773 = vunpack.c.h.b16 %v464
        %v774 = vunpack.c.l.b16 %v465
        %v775 = vunpack.c.h.b16 %v465
        %v776 = vunpack.c.l.b16 %v466
        %v777 = vunpack.c.h.b16 %v466
        %v778 = vunpack.c.l.b16 %v467
        %v779 = vunpack.c.h.b16 %v467
        %v780 = vunpack.c.l.b16 %v468
        %v781 = vunpack.c.h.b16 %v468
        %v782 = vunpack.c.l.b16 %v469
        %v783 = vunpack.c.h.b16 %v469
        %v784 = vunpack.c.l.b16 %v470
        %v785 = vunpack.c.h.b16 %v470
        %v786 = vunpack.c.l.b16 %v471
        %v787 = vunpack.c.h.b16 %v471
        %v788 = vunpack.c.l.b16 %v472
        %v789 = vunpack.c.h.b16 %v472
        %v790 = vunpack.c.l.b16 %v473
        %v791 = vunpack.c.h.b16 %v473
        %v792 = vunpack.c.l.b16 %v474
        %v793 = vunpack.c.h.b16 %v474
        %v794 = vunpack.c.l.b16 %v475
        %v795 = vunpack.c.h.b16 %v475
        %v796 = vunpack.c.l.b16 %v476
        %v797 = vunpack.c.h.b16 %v476
        %v798 = vunpack.c.l.b16 %v477
        %v799 = vunpack.c.h.b16 %v477
        %v800 = vunpack.c.l.b16 %v478
        %v801 = vunpack.c.h.b16 %v478
        %v802 = vunpack.c.l.b16 %v479
        %v803 = vunpack.c.h.b16 %v479
        %v804 = vunpack.c.l.b16 %v480
        %v805 = vunpack.c.h.b16 %v480
        %v806 = vunpack.c.l.b16 %v481
        %v807 = vunpack.c.h.b16 %v481
        %v808 = vunpack.c.l.b16 %v482
        %v809 = vunpack.c.h.b16 %v482
        %v810 = vunpack.c.l.b16 %v483
        %v811 = vunpack.c.h.b16 %v483
        %v812 = vunpack.c.l.b16 %v484
        %v813 = vunpack.c.h.b16 %v484
        %v814 = vunpack.c.l.b16 %v485
        %v815 = vunpack.c.h.b16 %v485
        %v816 = vunpack.c.l.b16 %v486
        %v817 = vunpack.c.h.b16 %v486
        %v818 = vunpack.c.l.b16 %v487
        %v819 = vunpack.c.h.b16 %v487
        %v820 = vunpack.c.l.b16 %v488
        %v821 = vunpack.c.h.b16 %v488
        %v822 = vunpack.c.l.b16 %v489
        %v823 = vunpack.c.h.b16 %v489
        %v824 = vunpack.c.l.b16 %v490
        %v825 = vunpack.c.h.b16 %v490
        %v826 = vunpack.c.l.b16 %v491
        %v827 = vunpack.c.h.b16 %v491
        %v828 = vunpack.c.l.b16 %v492
        %v829 = vunpack.c.h.b16 %v492
        %v830 = vunpack.c.l.b16 %v493
        %v831 = vunpack.c.h.b16 %v493
        %v832 = vunpack.c.l.b16 %v494
        %v833 = vunpack.c.h.b16 %v494
        %v834 = vunpack.c.l.b16 %v495
        %v835 = vunpack.c.h.b16 %v495
        %v836 = vunpack.c.l.b16 %v496
        %v837 = vunpack.c.h.b16 %v496
        %v838 = vunpack.c.l.b16 %v497
        %v839 = vunpack.c.h.b16 %v497
        %v840 = vunpack.c.l.b16 %v498
        %v841 = vunpack.c.h.b16 %v498
        %v842 = vunpack.c.l.b16 %v499
        %v843 = vunpack.c.h.b16 %v499
        %v844 = vunpack.c.l.b16 %v500
        %v845 = vunpack.c.h.b16 %v500
        %v846 = vunpack.c.l.b16 %v501
        %v847 = vunpack.c.h.b16 %v501
        %v848 = vunpack.c.l.b16 %v502
        %v849 = vunpack.c.h.b16 %v502
        %v850 = vunpack.c.l.b16 %v503
        %v851 = vunpack.c.h.b16 %v503
        %v852 = vunpack.c.l.b16 %v504
        %v853 = vunpack.c.h.b16 %v504
        %v854 = vunpack.c.l.b16 %v505
        %v855 = vunpack.c.h.b16 %v505
        %v856 = vunpack.c.l.b16 %v506
        %v857 = vunpack.c.h.b16 %v506
        %v858 = vunpack.c.l.b16 %v507
        %v859 = vunpack.c.h.b16 %v507
        %v860 = vunpack.c.l.b16 %v508
        %v861 = vunpack.c.h.b16 %v508
        %v862 = vunpack.c.l.b16 %v509
        %v863 = vunpack.c.h.b16 %v509
        %v864 = vunpack.c.l.b16 %v510
        %v865 = vunpack.c.h.b16 %v510
        %v866 = vunpack.c.l.b16 %v511
        %v867 = vunpack.c.h.b16 %v511
        %v868 = vunpack.c.l.b16 %v512
        %v869 = vunpack.c.h.b16 %v512
        %v870 = vunpack.c.l.b16 %v513
        %v871 = vunpack.c.h.b16 %v513
        %v872 = vunpack.c.l.b16 %v514
        %v873 = vunpack.c.h.b16 %v514
        %v874 = vunpack.c.l.b16 %v515
        %v875 = vunpack.c.h.b16 %v515
        %v876 = vunpack.c.l.b16 %v516
        %v877 = vunpack.c.h.b16 %v516
        %v878 = vunpack.c.l.b16 %v517
        %v879 = vunpack.c.h.b16 %v517
        %v880 = vunpack.c.l.b16 %v518
        %v881 = vunpack.c.h.b16 %v518
        %v882 = vunpack.c.l.b16 %v519
        %v883 = vunpack.c.h.b16 %v519
        %v884 = vunpack.c.l.b16 %v520
        %v885 = vunpack.c.h.b16 %v520
        %v886 = vunpack.c.l.b16 %v521
        %v887 = vunpack.c.h.b16 %v521
        %v888 = vunpack.c.l.b16 %v522
        %v889 = vunpack.c.h.b16 %v522
        %v890 = vunpack.c.l.b16 %v523
        %v891 = vunpack.c.h.b16 %v523
        %v892 = vunpack.c.l.b16 %v524
        %v893 = vunpack.c.h.b16 %v524
        %v894 = vunpack.c.l.b16 %v525
        %v895 = vunpack.c.h.b16 %v525
        %v896 = vunpack.c.l.b16 %v526
        %v897 = vunpack.c.h.b16 %v526
        %v898 = vunpack.c.l.b16 %v527
        %v899 = vunpack.c.h.b16 %v527
        %v900 = vunpack.c.l.b16 %v528
        %v901 = vunpack.c.h.b16 %v528
        %v902 = vunpack.c.l.b16 %v529
        %v903 = vunpack.c.h.b16 %v529
        %v904 = vunpack.c.l.b16 %v530
        %v905 = vunpack.c.h.b16 %v530
        %v906 = vunpack.c.l.b16 %v531
        %v907 = vunpack.c.h.b16 %v531
        %v908 = vunpack.c.l.b16 %v532
        %v909 = vunpack.c.h.b16 %v532
        %v910 = vunpack.c.l.b16 %v533
        %v911 = vunpack.c.h.b16 %v533
        %v912 = vunpack.c.l.b16 %v534
        %v913 = vunpack.c.h.b16 %v534
        %v914 = vunpack.c.l.b16 %v535
        %v915 = vunpack.c.h.b16 %v535
        %v916 = vunpack.c.l.b16 %v536
        %v917 = vunpack.c.h.b16 %v536
        %v918 = vunpack.c.l.b16 %v537
        %v919 = vunpack.c.h.b16 %v537
        %v920 = vunpack.c.l.b16 %v538
        %v921 = vunpack.c.h.b16 %v538
        %v922 = vunpack.c.l.b16 %v539
        %v923 = vunpack.c.h.b16 %v539
        %v924 = vunpack.c.l.b16 %v540
        %v925 = vunpack.c.h.b16 %v540
        %v926 = vunpack.c.l.b16 %v541
        %v927 = vunpack.c.h.b16 %v541
        %v928 = vunpack.c.l.b16 %v542
        %v929 = vunpack.c.h.b16 %v542
        %v930 = vunpack.c.l.b16 %v543
        %v931 = vunpack.c.h.b16 %v543
        %v932 = vunpack.c.l.b16 %v544
        %v933 = vunpack.c.h.b16 %v544
        %v934 = vunpack.c.l.b16 %v545
        %v935 = vunpack.c.h.b16 %v545
        %v936 = vunpack.c.l.b16 %v546
        %v937 = vunpack.c.h.b16 %v546
        %v938 = vunpack.c.l.b16 %v547
        %v939 = vunpack.c.h.b16 %v547
        %v940 = vunpack.c.l.b16 %v548
        %v941 = vunpack.c.h.b16 %v548
        %v942 = vunpack.c.l.b16 %v549
        %v943 = vunpack.c.h.b16 %v549
        %v944 = vunpack.c.l.b16 %v550
        %v945 = vunpack.c.h.b16 %v550
        %v946 = vunpack.c.l.b16 %v551
        %v947 = vunpack.c.h.b16 %v551
        %v948 = vunpack.c.l.b16 %v552
        %v949 = vunpack.c.h.b16 %v552
        %v950 = vunpack.c.l.b16 %v553
        %v951 = vunpack.c.h.b16 %v553
        %v952 = vunpack.c.l.b16 %v554
        %v953 = vunpack.c.h.b16 %v554
        %v954 = vunpack.c.l.b16 %v555
        %v955 = vunpack.c.h.b16 %v555
        %v956 = vunpack.c.l.b16 %v556
        %v957 = vunpack.c.h.b16 %v556
        %v958 = vunpack.c.l.b16 %v557
        %v959 = vunpack.c.h.b16 %v557
        %v960 = vunpack.c.l.b16 %v558
        %v961 = vunpack.c.h.b16 %v558
        %v962 = vunpack.c.l.b16 %v559
        %v963 = vunpack.c.h.b16 %v559
        %v964 = vunpack.c.l.b16 %v560
        %v965 = vunpack.c.h.b16 %v560
        %v966 = vunpack.c.l.b16 %v561
        %v967 = vunpack.c.h.b16 %v561
        %v968 = vunpack.c.l.b16 %v562
        %v969 = vunpack.c.h.b16 %v562
        %v970 = vunpack.c.l.b16 %v563
        %v971 = vunpack.c.h.b16 %v563
        %v972 = vunpack.c.l.b16 %v564
        %v973 = vunpack.c.h.b16 %v564
        %v974 = vunpack.c.l.b16 %v565
        %v975 = vunpack.c.h.b16 %v565
        %v976 = vunpack.c.l.b16 %v566
        %v977 = vunpack.c.h.b16 %v566
        %v978 = vunpack.c.l.b16 %v567
        %v979 = vunpack.c.h.b16 %v567
        %v980 = vpack.c.b16 %v726, %v724
        %v981 = vpack.c.b16 %v727, %v725
        %v982 = vpack.c.b16 %v730, %v728
        %v983 = vpack.c.b16 %v731, %v729
        %v984 = vpack.c.b16 %v734, %v732
        %v985 = vpack.c.b16 %v735, %v733
        %v986 = vpack.c.b16 %v738, %v736
        %v987 = vpack.c.b16 %v739, %v737
        %v988 = vpack.c.b16 %v742, %v740
        %v989 = vpack.c.b16 %v743, %v741
        %v990 = vpack.c.b16 %v746, %v744
        %v991 = vpack.c.b16 %v747, %v745
        %v992 = vpack.c.b16 %v750, %v748
        %v993 = vpack.c.b16 %v751, %v749
        %v994 = vpack.c.b16 %v754, %v752
        %v995 = vpack.c.b16 %v755, %v753
        %v996 = vpack.c.b16 %v758, %v756
        %v997 = vpack.c.b16 %v759, %v757
        %v998 = vpack.c.b16 %v762, %v760
        %v999 = vpack.c.b16 %v763, %v761
        %v1000 = vpack.c.b16 %v766, %v764
        %v1001 = vpack.c.b16 %v767, %v765
        %v1002 = vpack.c.b16 %v770, %v768
        %v1003 = vpack.c.b16 %v771, %v769
        %v1004 = vpack.c.b16 %v774, %v772
        %v1005 = vpack.c.b16 %v775, %v773
        %v1006 = vpack.c.b16 %v778, %v776
        %v1007 = vpack.c.b16 %v779, %v777
        %v1008 = vpack.c.b16 %v782, %v780
        %v1009 = vpack.c.b16 %v783, %v781
        %v1010 = vpack.c.b16 %v786, %v784
        %v1011 = vpack.c.b16 %v787, %v785
        %v1012 = vpack.c.b16 %v790, %v788
        %v1013 = vpack.c.b16 %v791, %v789
        %v1014 = vpack.c.b16 %v794, %v792
        %v1015 = vpack.c.b16 %v795, %v793
        %v1016 = vpack.c.b16 %v798, %v796
        %v1017 = vpack.c.b16 %v799, %v797
        %v1018 = vpack.c.b16 %v802, %v800
        %v1019 = vpack.c.b16 %v803, %v801
        %v1020 = vpack.c.b16 %v806, %v804
        %v1021 = vpack.c.b16 %v807, %v805
        %v1022 = vpack.c.b16 %v810, %v808
        %v1023 = vpack.c.b16 %v811, %v809
        %v1024 = vpack.c.b16 %v814, %v812
        %v1025 = vpack.c.b16 %v815, %v813
        %v1026 = vpack.c.b16 %v818, %v816
        %v1027 = vpack.c.b16 %v819, %v817
        %v1028 = vpack.c.b16 %v822, %v820
        %v1029 = vpack.c.b16 %v823, %v821
        %v1030 = vpack.c.b16 %v826, %v824
        %v1031 = vpack.c.b16 %v827, %v825
        %v1032 = vpack.c.b16 %v830, %v828
        %v1033 = vpack.c.b16 %v831, %v829
        %v1034 = vpack.c.b16 %v834, %v832
        %v1035 = vpack.c.b16 %v835, %v833
        %v1036 = vpack.c.b16 %v838, %v836
        %v1037 = vpack.c.b16 %v839, %v837
        %v1038 = vpack.c.b16 %v842, %v840
        %v1039 = vpack.c.b16 %v843, %v841
        %v1040 = vpack.c.b16 %v846, %v844
        %v1041 = vpack.c.b16 %v847, %v845
        %v1042 = vpack.c.b16 %v850, %v848
        %v1043 = vpack.c.b16 %v851, %v849
        %v1044 = vpack.c.b16 %v854, %v852
        %v1045 = vpack.c.b16 %v855, %v853
        %v1046 = vpack.c.b16 %v858, %v856
        %v1047 = vpack.c.b16 %v859, %v857
        %v1048 = vpack.c.b16 %v862, %v860
        %v1049 = vpack.c.b16 %v863, %v861
        %v1050 = vpack.c.b16 %v866, %v864
        %v1051 = vpack.c.b16 %v867, %v865
        %v1052 = vpack.c.b16 %v870, %v868
        %v1053 = vpack.c.b16 %v871, %v869
        %v1054 = vpack.c.b16 %v874, %v872
        %v1055 = vpack.c.b16 %v875, %v873
        %v1056 = vpack.c.b16 %v878, %v876
        %v1057 = vpack.c.b16 %v879, %v877
        %v1058 = vpack.c.b16 %v882, %v880
        %v1059 = vpack.c.b16 %v883, %v881
        %v1060 = vpack.c.b16 %v886, %v884
        %v1061 = vpack.c.b16 %v887, %v885
        %v1062 = vpack.c.b16 %v890, %v888
        %v1063 = vpack.c.b16 %v891, %v889
        %v1064 = vpack.c.b16 %v894, %v892
        %v1065 = vpack.c.b16 %v895, %v893
        %v1066 = vpack.c.b16 %v898, %v896
        %v1067 = vpack.c.b16 %v899, %v897
        %v1068 = vpack.c.b16 %v902, %v900
        %v1069 = vpack.c.b16 %v903, %v901
        %v1070 = vpack.c.b16 %v906, %v904
        %v1071 = vpack.c.b16 %v907, %v905
        %v1072 = vpack.c.b16 %v910, %v908
        %v1073 = vpack.c.b16 %v911, %v909
        %v1074 = vpack.c.b16 %v914, %v912
        %v1075 = vpack.c.b16 %v915, %v913
        %v1076 = vpack.c.b16 %v918, %v916
        %v1077 = vpack.c.b16 %v919, %v917
        %v1078 = vpack.c.b16 %v922, %v920
        %v1079 = vpack.c.b16 %v923, %v921
        %v1080 = vpack.c.b16 %v926, %v924
        %v1081 = vpack.c.b16 %v927, %v925
        %v1082 = vpack.c.b16 %v930, %v928
        %v1083 = vpack.c.b16 %v931, %v929
        %v1084 = vpack.c.b16 %v934, %v932
        %v1085 = vpack.c.b16 %v935, %v933
        %v1086 = vpack.c.b16 %v938, %v936
        %v1087 = vpack.c.b16 %v939, %v937
        %v1088 = vpack.c.b16 %v942, %v940
        %v1089 = vpack.c.b16 %v943, %v941
        %v1090 = vpack.c.b16 %v946, %v944
        %v1091 = vpack.c.b16 %v947, %v945
        %v1092 = vpack.c.b16 %v950, %v948
        %v1093 = vpack.c.b16 %v951, %v949
        %v1094 = vpack.c.b16 %v954, %v952
        %v1095 = vpack.c.b16 %v955, %v953
        %v1096 = vpack.c.b16 %v958, %v956
        %v1097 = vpack.c.b16 %v959, %v957
        %v1098 = vpack.c.b16 %v962, %v960
        %v1099 = vpack.c.b16 %v963, %v961
        %v1100 = vpack.c.b16 %v966, %v964
        %v1101 = vpack.c.b16 %v967, %v965
        %v1102 = vpack.c.b16 %v970, %v968
        %v1103 = vpack.c.b16 %v971, %v969
        %v1104 = vpack.c.b16 %v974, %v972
        %v1105 = vpack.c.b16 %v975, %v973
        %v1106 = vpack.c.b16 %v978, %v976
        %v1107 = vpack.c.b16 %v979, %v977
        %v1196 = vunpack.c.l.b16 %v568
        %v1197 = vunpack.c.l.b16 %v569
        %v1198 = vunpack.c.l.b16 %v570
        %v1199 = vunpack.c.l.b16 %v571
        %v1200 = vunpack.c.l.b16 %v572
        %v1201 = vunpack.c.l.b16 %v573
        %v1202 = vunpack.c.l.b16 %v574
        %v1203 = vunpack.c.l.b16 %v575
        %v1204 = vunpack.c.l.b16 %v576
        %v1205 = vunpack.c.l.b16 %v577
        %v1206 = vunpack.c.l.b16 %v578
        %v1207 = vunpack.c.l.b16 %v579
        %v1208 = vunpack.c.l.b16 %v580
        %v1209 = vunpack.c.l.b16 %v581
        %v1210 = vunpack.c.l.b16 %v582
        %v1211 = vunpack.c.l.b16 %v583
        %v1212 = vunpack.c.l.b16 %v584
        %v1213 = vunpack.c.l.b16 %v585
        %v1214 = vunpack.c.l.b16 %v586
        %v1215 = vunpack.c.l.b16 %v587
        %v1216 = vunpack.c.l.b16 %v588
        %v1217 = vunpack.c.l.b16 %v589
        %v1218 = vunpack.c.l.b16 %v590
        %v1219 = vunpack.c.l.b16 %v591
        %v1220 = vpack.c.b16 %v1197, %v1196
        %v1221 = vpack.c.b16 %v1199, %v1198
        %v1222 = vpack.c.b16 %v1201, %v1200
        %v1223 = vpack.c.b16 %v1203, %v1202
        %v1224 = vpack.c.b16 %v1205, %v1204
        %v1225 = vpack.c.b16 %v1207, %v1206
        %v1226 = vpack.c.b16 %v1209, %v1208
        %v1227 = vpack.c.b16 %v1211, %v1210
        %v1228 = vpack.c.b16 %v1213, %v1212
        %v1229 = vpack.c.b16 %v1215, %v1214
        %v1230 = vpack.c.b16 %v1217, %v1216
        %v1231 = vpack.c.b16 %v1219, %v1218
        %vm1244 = vcmask 523264
        %v1246 = vsel %vm1244, %v981, 0
        %v1249 = vsel %vm1244, %v983, 0
        %v1252 = vsel %vm1244, %v985, 0
        %v1255 = vsel %vm1244, %v987, 0
        %v1258 = vsel %vm1244, %v989, 0
        %v1261 = vsel %vm1244, %v991, 0
        %v1264 = vsel %vm1244, %v993, 0
        %v1267 = vsel %vm1244, %v995, 0
        %v1270 = vsel %vm1244, %v997, 0
        %v1273 = vsel %vm1244, %v999, 0
        %v1276 = vsel %vm1244, %v1001, 0
        %v1279 = vsel %vm1244, %v1003, 0
        %v1282 = vsel %vm1244, %v1005, 0
        %v1285 = vsel %vm1244, %v1007, 0
        %v1288 = vsel %vm1244, %v1009, 0
        %v1291 = vsel %vm1244, %v1011, 0
        %v1294 = vsel %vm1244, %v1013, 0
        %v1297 = vsel %vm1244, %v1015, 0
        %v1300 = vsel %vm1244, %v1017, 0
        %v1303 = vsel %vm1244, %v1019, 0
        %v1306 = vsel %vm1244, %v1021, 0
        %v1309 = vsel %vm1244, %v1023, 0
        %v1312 = vsel %vm1244, %v1025, 0
        %v1315 = vsel %vm1244, %v1027, 0
        %v1318 = vsel %vm1244, %v1029, 0
        %v1321 = vsel %vm1244, %v1031, 0
        %v1324 = vsel %vm1244, %v1033, 0
        %v1327 = vsel %vm1244, %v1035, 0
        %v1330 = vsel %vm1244, %v1037, 0
        %v1333 = vsel %vm1244, %v1039, 0
        %v1336 = vsel %vm1244, %v1041, 0
        %v1339 = vsel %vm1244, %v1043, 0
        %v1342 = vsel %vm1244, %v1045, 0
        %v1345 = vsel %vm1244, %v1047, 0
        %v1348 = vsel %vm1244, %v1049, 0
        %v1351 = vsel %vm1244, %v1051, 0
        %v1354 = vsel %vm1244, %v1053, 0
        %v1357 = vsel %vm1244, %v1055, 0
        %v1360 = vsel %vm1244, %v1057, 0
        %v1363 = vsel %vm1244, %v1059, 0
        %v1366 = vsel %vm1244, %v1061, 0
        %v1369 = vsel %vm1244, %v1063, 0
        %v1372 = vsel %vm1244, %v1065, 0
        %v1375 = vsel %vm1244, %v1067, 0
        %v1378 = vsel %vm1244, %v1069, 0
        %v1381 = vsel %vm1244, %v1071, 0
        %v1384 = vsel %vm1244, %v1073, 0
        %v1387 = vsel %vm1244, %v1075, 0
        %v1390 = vsel %vm1244, %v1077, 0
        %v1393 = vsel %vm1244, %v1079, 0
        %v1396 = vsel %vm1244, %v1081, 0
        %v1399 = vsel %vm1244, %v1083, 0
        %v1402 = vsel %vm1244, %v1085, 0
        %v1405 = vsel %vm1244, %v1087, 0
        %v1408 = vsel %vm1244, %v1089, 0
        %v1411 = vsel %vm1244, %v1091, 0
        %v1414 = vsel %vm1244, %v1093, 0
        %v1417 = vsel %vm1244, %v1095, 0
        %v1420 = vsel %vm1244, %v1097, 0
        %v1423 = vsel %vm1244, %v1099, 0
        %v1426 = vsel %vm1244, %v1101, 0
        %v1429 = vsel %vm1244, %v1103, 0
        %v1432 = vsel %vm1244, %v1105, 0
        %v1435 = vsel %vm1244, %v1107, 0
        %1437 = vmatpush.bf16.msra.mxu0 %v1227
        %1438 = vmatpush.bf16.msra.mxu0 %v1226
        %1439 = vmatpush.bf16.msra.mxu0 %v1225
        %1440 = vmatpush.bf16.msra.mxu0 %v1224
        %1441 = vmatpush.bf16.msra.mxu0 %v1223
        %1442 = vmatpush.bf16.msra.mxu0 %v1222
        %1443 = vmatpush.bf16.msra.mxu0 %v1221
        %1444 = vmatpush.bf16.msra.mxu0 %v1220
        %1445 = vmatmul.bf16.gmra.mxu0 %v980
        %v1446 = vpop.f32.mrf.mxu0
        %v1447 = vadd.f32 %v594, %v1446
        %v1448 = vpop.f32.mrf.mxu0
        %v1449 = vadd.f32 %v594, %v1448
        %1450 = vmatmul.bf16.gmra.mxu0 %v982
        %v1451 = vpop.f32.mrf.mxu0
        %v1452 = vadd.f32 %v594, %v1451
        %v1453 = vpop.f32.mrf.mxu0
        %v1454 = vadd.f32 %v594, %v1453
        %1455 = vmatmul.bf16.gmra.mxu0 %v984
        %v1456 = vpop.f32.mrf.mxu0
        %v1457 = vadd.f32 %v594, %v1456
        %v1458 = vpop.f32.mrf.mxu0
        %v1459 = vadd.f32 %v594, %v1458
        %1460 = vmatmul.bf16.gmra.mxu0 %v986
        %v1461 = vpop.f32.mrf.mxu0
        %v1462 = vadd.f32 %v594, %v1461
        %v1463 = vpop.f32.mrf.mxu0
        %v1464 = vadd.f32 %v594, %v1463
        %1465 = vmatmul.bf16.gmra.mxu0 %v988
        %v1466 = vpop.f32.mrf.mxu0
        %v1467 = vadd.f32 %v594, %v1466
        %v1468 = vpop.f32.mrf.mxu0
        %v1469 = vadd.f32 %v594, %v1468
        %1470 = vmatmul.bf16.gmra.mxu0 %v990
        %v1471 = vpop.f32.mrf.mxu0
        %v1472 = vadd.f32 %v594, %v1471
        %v1473 = vpop.f32.mrf.mxu0
        %v1474 = vadd.f32 %v594, %v1473
        %1475 = vmatmul.bf16.gmra.mxu0 %v992
        %v1476 = vpop.f32.mrf.mxu0
        %v1477 = vadd.f32 %v594, %v1476
        %v1478 = vpop.f32.mrf.mxu0
        %v1479 = vadd.f32 %v594, %v1478
        %1480 = vmatmul.bf16.gmra.mxu0 %v994
        %v1481 = vpop.f32.mrf.mxu0
        %v1482 = vadd.f32 %v594, %v1481
        %v1483 = vpop.f32.mrf.mxu0
        %v1484 = vadd.f32 %v594, %v1483
        %1485 = vmatmul.bf16.gmra.mxu0 %v996
        %v1486 = vpop.f32.mrf.mxu0
        %v1487 = vadd.f32 %v594, %v1486
        %v1488 = vpop.f32.mrf.mxu0
        %v1489 = vadd.f32 %v594, %v1488
        %1490 = vmatmul.bf16.gmra.mxu0 %v998
        %v1491 = vpop.f32.mrf.mxu0
        %v1492 = vadd.f32 %v594, %v1491
        %v1493 = vpop.f32.mrf.mxu0
        %v1494 = vadd.f32 %v594, %v1493
        %1495 = vmatmul.bf16.gmra.mxu0 %v1000
        %v1496 = vpop.f32.mrf.mxu0
        %v1497 = vadd.f32 %v594, %v1496
        %v1498 = vpop.f32.mrf.mxu0
        %v1499 = vadd.f32 %v594, %v1498
        %1500 = vmatmul.bf16.gmra.mxu0 %v1002
        %v1501 = vpop.f32.mrf.mxu0
        %v1502 = vadd.f32 %v594, %v1501
        %v1503 = vpop.f32.mrf.mxu0
        %v1504 = vadd.f32 %v594, %v1503
        %1505 = vmatmul.bf16.gmra.mxu0 %v1004
        %v1506 = vpop.f32.mrf.mxu0
        %v1507 = vadd.f32 %v594, %v1506
        %v1508 = vpop.f32.mrf.mxu0
        %v1509 = vadd.f32 %v594, %v1508
        %1510 = vmatmul.bf16.gmra.mxu0 %v1006
        %v1511 = vpop.f32.mrf.mxu0
        %v1512 = vadd.f32 %v594, %v1511
        %v1513 = vpop.f32.mrf.mxu0
        %v1514 = vadd.f32 %v594, %v1513
        %1515 = vmatmul.bf16.gmra.mxu0 %v1008
        %v1516 = vpop.f32.mrf.mxu0
        %v1517 = vadd.f32 %v594, %v1516
        %v1518 = vpop.f32.mrf.mxu0
        %v1519 = vadd.f32 %v594, %v1518
        %1520 = vmatmul.bf16.gmra.mxu0 %v1010
        %v1521 = vpop.f32.mrf.mxu0
        %v1522 = vadd.f32 %v594, %v1521
        %v1523 = vpop.f32.mrf.mxu0
        %v1524 = vadd.f32 %v594, %v1523
        %1525 = vmatmul.bf16.gmra.mxu0 %v1012
        %v1526 = vpop.f32.mrf.mxu0
        %v1527 = vadd.f32 %v594, %v1526
        %v1528 = vpop.f32.mrf.mxu0
        %v1529 = vadd.f32 %v594, %v1528
        %1530 = vmatmul.bf16.gmra.mxu0 %v1014
        %v1531 = vpop.f32.mrf.mxu0
        %v1532 = vadd.f32 %v594, %v1531
        %v1533 = vpop.f32.mrf.mxu0
        %v1534 = vadd.f32 %v594, %v1533
        %1535 = vmatmul.bf16.gmra.mxu0 %v1016
        %v1536 = vpop.f32.mrf.mxu0
        %v1537 = vadd.f32 %v594, %v1536
        %v1538 = vpop.f32.mrf.mxu0
        %v1539 = vadd.f32 %v594, %v1538
        %1540 = vmatmul.bf16.gmra.mxu0 %v1018
        %v1541 = vpop.f32.mrf.mxu0
        %v1542 = vadd.f32 %v594, %v1541
        %v1543 = vpop.f32.mrf.mxu0
        %v1544 = vadd.f32 %v594, %v1543
        %1545 = vmatmul.bf16.gmra.mxu0 %v1020
        %v1546 = vpop.f32.mrf.mxu0
        %v1547 = vadd.f32 %v594, %v1546
        %v1548 = vpop.f32.mrf.mxu0
        %v1549 = vadd.f32 %v594, %v1548
        %1550 = vmatmul.bf16.gmra.mxu0 %v1022
        %v1551 = vpop.f32.mrf.mxu0
        %v1552 = vadd.f32 %v594, %v1551
        %v1553 = vpop.f32.mrf.mxu0
        %v1554 = vadd.f32 %v594, %v1553
        %1555 = vmatmul.bf16.gmra.mxu0 %v1024
        %v1556 = vpop.f32.mrf.mxu0
        %v1557 = vadd.f32 %v594, %v1556
        %v1558 = vpop.f32.mrf.mxu0
        %v1559 = vadd.f32 %v594, %v1558
        %1560 = vmatmul.bf16.gmra.mxu0 %v1026
        %v1561 = vpop.f32.mrf.mxu0
        %v1562 = vadd.f32 %v594, %v1561
        %v1563 = vpop.f32.mrf.mxu0
        %v1564 = vadd.f32 %v594, %v1563
        %1565 = vmatmul.bf16.gmra.mxu0 %v1028
        %v1566 = vpop.f32.mrf.mxu0
        %v1567 = vadd.f32 %v594, %v1566
        %v1568 = vpop.f32.mrf.mxu0
        %v1569 = vadd.f32 %v594, %v1568
        %1570 = vmatmul.bf16.gmra.mxu0 %v1030
        %v1571 = vpop.f32.mrf.mxu0
        %v1572 = vadd.f32 %v594, %v1571
        %v1573 = vpop.f32.mrf.mxu0
        %v1574 = vadd.f32 %v594, %v1573
        %1575 = vmatmul.bf16.gmra.mxu0 %v1032
        %v1576 = vpop.f32.mrf.mxu0
        %v1577 = vadd.f32 %v594, %v1576
        %v1578 = vpop.f32.mrf.mxu0
        %v1579 = vadd.f32 %v594, %v1578
        %1580 = vmatmul.bf16.gmra.mxu0 %v1034
        %v1581 = vpop.f32.mrf.mxu0
        %v1582 = vadd.f32 %v594, %v1581
        %v1583 = vpop.f32.mrf.mxu0
        %v1584 = vadd.f32 %v594, %v1583
        %1585 = vmatmul.bf16.gmra.mxu0 %v1036
        %v1586 = vpop.f32.mrf.mxu0
        %v1587 = vadd.f32 %v594, %v1586
        %v1588 = vpop.f32.mrf.mxu0
        %v1589 = vadd.f32 %v594, %v1588
        %1590 = vmatmul.bf16.gmra.mxu0 %v1038
        %v1591 = vpop.f32.mrf.mxu0
        %v1592 = vadd.f32 %v594, %v1591
        %v1593 = vpop.f32.mrf.mxu0
        %v1594 = vadd.f32 %v594, %v1593
        %1595 = vmatmul.bf16.gmra.mxu0 %v1040
        %v1596 = vpop.f32.mrf.mxu0
        %v1597 = vadd.f32 %v594, %v1596
        %v1598 = vpop.f32.mrf.mxu0
        %v1599 = vadd.f32 %v594, %v1598
        %1600 = vmatmul.bf16.gmra.mxu0 %v1042
        %v1601 = vpop.f32.mrf.mxu0
        %v1602 = vadd.f32 %v594, %v1601
        %v1603 = vpop.f32.mrf.mxu0
        %v1604 = vadd.f32 %v594, %v1603
        %1605 = vmatmul.bf16.gmra.mxu0 %v1044
        %v1606 = vpop.f32.mrf.mxu0
        %v1607 = vadd.f32 %v594, %v1606
        %v1608 = vpop.f32.mrf.mxu0
        %v1609 = vadd.f32 %v594, %v1608
        %1610 = vmatmul.bf16.gmra.mxu0 %v1046
        %v1611 = vpop.f32.mrf.mxu0
        %v1612 = vadd.f32 %v594, %v1611
        %v1613 = vpop.f32.mrf.mxu0
        %v1614 = vadd.f32 %v594, %v1613
        %1615 = vmatmul.bf16.gmra.mxu0 %v1048
        %v1616 = vpop.f32.mrf.mxu0
        %v1617 = vadd.f32 %v594, %v1616
        %v1618 = vpop.f32.mrf.mxu0
        %v1619 = vadd.f32 %v594, %v1618
        %1620 = vmatmul.bf16.gmra.mxu0 %v1050
        %v1621 = vpop.f32.mrf.mxu0
        %v1622 = vadd.f32 %v594, %v1621
        %v1623 = vpop.f32.mrf.mxu0
        %v1624 = vadd.f32 %v594, %v1623
        %1625 = vmatmul.bf16.gmra.mxu0 %v1052
        %v1626 = vpop.f32.mrf.mxu0
        %v1627 = vadd.f32 %v594, %v1626
        %v1628 = vpop.f32.mrf.mxu0
        %v1629 = vadd.f32 %v594, %v1628
        %1630 = vmatmul.bf16.gmra.mxu0 %v1054
        %v1631 = vpop.f32.mrf.mxu0
        %v1632 = vadd.f32 %v594, %v1631
        %v1633 = vpop.f32.mrf.mxu0
        %v1634 = vadd.f32 %v594, %v1633
        %1635 = vmatmul.bf16.gmra.mxu0 %v1056
        %v1636 = vpop.f32.mrf.mxu0
        %v1637 = vadd.f32 %v594, %v1636
        %v1638 = vpop.f32.mrf.mxu0
        %v1639 = vadd.f32 %v594, %v1638
        %1640 = vmatmul.bf16.gmra.mxu0 %v1058
        %v1641 = vpop.f32.mrf.mxu0
        %v1642 = vadd.f32 %v594, %v1641
        %v1643 = vpop.f32.mrf.mxu0
        %v1644 = vadd.f32 %v594, %v1643
        %1645 = vmatmul.bf16.gmra.mxu0 %v1060
        %v1646 = vpop.f32.mrf.mxu0
        %v1647 = vadd.f32 %v594, %v1646
        %v1648 = vpop.f32.mrf.mxu0
        %v1649 = vadd.f32 %v594, %v1648
        %1650 = vmatmul.bf16.gmra.mxu0 %v1062
        %v1651 = vpop.f32.mrf.mxu0
        %v1652 = vadd.f32 %v594, %v1651
        %v1653 = vpop.f32.mrf.mxu0
        %v1654 = vadd.f32 %v594, %v1653
        %1655 = vmatmul.bf16.gmra.mxu0 %v1064
        %v1656 = vpop.f32.mrf.mxu0
        %v1657 = vadd.f32 %v594, %v1656
        %v1658 = vpop.f32.mrf.mxu0
        %v1659 = vadd.f32 %v594, %v1658
        %1660 = vmatmul.bf16.gmra.mxu0 %v1066
        %v1661 = vpop.f32.mrf.mxu0
        %v1662 = vadd.f32 %v594, %v1661
        %v1663 = vpop.f32.mrf.mxu0
        %v1664 = vadd.f32 %v594, %v1663
        %1665 = vmatmul.bf16.gmra.mxu0 %v1068
        %v1666 = vpop.f32.mrf.mxu0
        %v1667 = vadd.f32 %v594, %v1666
        %v1668 = vpop.f32.mrf.mxu0
        %v1669 = vadd.f32 %v594, %v1668
        %1670 = vmatmul.bf16.gmra.mxu0 %v1070
        %v1671 = vpop.f32.mrf.mxu0
        %v1672 = vadd.f32 %v594, %v1671
        %v1673 = vpop.f32.mrf.mxu0
        %v1674 = vadd.f32 %v594, %v1673
        %1675 = vmatmul.bf16.gmra.mxu0 %v1072
        %v1676 = vpop.f32.mrf.mxu0
        %v1677 = vadd.f32 %v594, %v1676
        %v1678 = vpop.f32.mrf.mxu0
        %v1679 = vadd.f32 %v594, %v1678
        %1680 = vmatmul.bf16.gmra.mxu0 %v1074
        %v1681 = vpop.f32.mrf.mxu0
        %v1682 = vadd.f32 %v594, %v1681
        %v1683 = vpop.f32.mrf.mxu0
        %v1684 = vadd.f32 %v594, %v1683
        %1685 = vmatmul.bf16.gmra.mxu0 %v1076
        %v1686 = vpop.f32.mrf.mxu0
        %v1687 = vadd.f32 %v594, %v1686
        %v1688 = vpop.f32.mrf.mxu0
        %v1689 = vadd.f32 %v594, %v1688
        %1690 = vmatmul.bf16.gmra.mxu0 %v1078
        %v1691 = vpop.f32.mrf.mxu0
        %v1692 = vadd.f32 %v594, %v1691
        %v1693 = vpop.f32.mrf.mxu0
        %v1694 = vadd.f32 %v594, %v1693
        %1695 = vmatmul.bf16.gmra.mxu0 %v1080
        %v1696 = vpop.f32.mrf.mxu0
        %v1697 = vadd.f32 %v594, %v1696
        %v1698 = vpop.f32.mrf.mxu0
        %v1699 = vadd.f32 %v594, %v1698
        %1700 = vmatmul.bf16.gmra.mxu0 %v1082
        %v1701 = vpop.f32.mrf.mxu0
        %v1702 = vadd.f32 %v594, %v1701
        %v1703 = vpop.f32.mrf.mxu0
        %v1704 = vadd.f32 %v594, %v1703
        %1705 = vmatmul.bf16.gmra.mxu0 %v1084
        %v1706 = vpop.f32.mrf.mxu0
        %v1707 = vadd.f32 %v594, %v1706
        %v1708 = vpop.f32.mrf.mxu0
        %v1709 = vadd.f32 %v594, %v1708
        %1710 = vmatmul.bf16.gmra.mxu0 %v1086
        %v1711 = vpop.f32.mrf.mxu0
        %v1712 = vadd.f32 %v594, %v1711
        %v1713 = vpop.f32.mrf.mxu0
        %v1714 = vadd.f32 %v594, %v1713
        %1715 = vmatmul.bf16.gmra.mxu0 %v1088
        %v1716 = vpop.f32.mrf.mxu0
        %v1717 = vadd.f32 %v594, %v1716
        %v1718 = vpop.f32.mrf.mxu0
        %v1719 = vadd.f32 %v594, %v1718
        %1720 = vmatmul.bf16.gmra.mxu0 %v1090
        %v1721 = vpop.f32.mrf.mxu0
        %v1722 = vadd.f32 %v594, %v1721
        %v1723 = vpop.f32.mrf.mxu0
        %v1724 = vadd.f32 %v594, %v1723
        %1725 = vmatmul.bf16.gmra.mxu0 %v1092
        %v1726 = vpop.f32.mrf.mxu0
        %v1727 = vadd.f32 %v594, %v1726
        %v1728 = vpop.f32.mrf.mxu0
        %v1729 = vadd.f32 %v594, %v1728
        %1730 = vmatmul.bf16.gmra.mxu0 %v1094
        %v1731 = vpop.f32.mrf.mxu0
        %v1732 = vadd.f32 %v594, %v1731
        %v1733 = vpop.f32.mrf.mxu0
        %v1734 = vadd.f32 %v594, %v1733
        %1735 = vmatmul.bf16.gmra.mxu0 %v1096
        %v1736 = vpop.f32.mrf.mxu0
        %v1737 = vadd.f32 %v594, %v1736
        %v1738 = vpop.f32.mrf.mxu0
        %v1739 = vadd.f32 %v594, %v1738
        %1740 = vmatmul.bf16.gmra.mxu0 %v1098
        %v1741 = vpop.f32.mrf.mxu0
        %v1742 = vadd.f32 %v594, %v1741
        %v1743 = vpop.f32.mrf.mxu0
        %v1744 = vadd.f32 %v594, %v1743
        %1745 = vmatmul.bf16.gmra.mxu0 %v1100
        %v1746 = vpop.f32.mrf.mxu0
        %v1747 = vadd.f32 %v594, %v1746
        %v1748 = vpop.f32.mrf.mxu0
        %v1749 = vadd.f32 %v594, %v1748
        %1750 = vmatmul.bf16.gmra.mxu0 %v1102
        %v1751 = vpop.f32.mrf.mxu0
        %v1752 = vadd.f32 %v594, %v1751
        %v1753 = vpop.f32.mrf.mxu0
        %v1754 = vadd.f32 %v594, %v1753
        %1755 = vmatmul.bf16.gmra.mxu0 %v1104
        %v1756 = vpop.f32.mrf.mxu0
        %v1757 = vadd.f32 %v594, %v1756
        %v1758 = vpop.f32.mrf.mxu0
        %v1759 = vadd.f32 %v594, %v1758
        %1760 = vmatmul.bf16.gmra.mxu0 %v1106
        %v1761 = vpop.f32.mrf.mxu0
        %v1762 = vadd.f32 %v594, %v1761
        %v1763 = vpop.f32.mrf.mxu0
        %v1764 = vadd.f32 %v594, %v1763
        %1765 = vdwg.mxu0
        %1766 = vmatpush.bf16.msra.mxu0 0
        %1767 = vmatpush.bf16.msra.mxu0 0
        %1768 = vmatpush.bf16.msra.mxu0 0
        %1769 = vmatpush.bf16.msra.mxu0 0
        %1770 = vmatpush.bf16.msra.mxu0 %v1231
        %1771 = vmatpush.bf16.msra.mxu0 %v1230
        %1772 = vmatpush.bf16.msra.mxu0 %v1229
        %1773 = vmatpush.bf16.msra.mxu0 %v1228
        %1774 = vmatmul.bf16.gmra.mxu0 %v1246
        %v1775 = vpop.f32.mrf.mxu0
        %v1776 = vadd.f32 %v1447, %v1775
        %v1777 = vpop.f32.mrf.mxu0
        %v1778 = vadd.f32 %v1449, %v1777
        %1779 = vmatmul.bf16.gmra.mxu0 %v1249
        %v1780 = vpop.f32.mrf.mxu0
        %v1781 = vadd.f32 %v1452, %v1780
        %v1782 = vpop.f32.mrf.mxu0
        %v1783 = vadd.f32 %v1454, %v1782
        %1784 = vmatmul.bf16.gmra.mxu0 %v1252
        %v1785 = vpop.f32.mrf.mxu0
        %v1786 = vadd.f32 %v1457, %v1785
        %v1787 = vpop.f32.mrf.mxu0
        %v1788 = vadd.f32 %v1459, %v1787
        %1789 = vmatmul.bf16.gmra.mxu0 %v1255
        %v1790 = vpop.f32.mrf.mxu0
        %v1791 = vadd.f32 %v1462, %v1790
        %v1792 = vpop.f32.mrf.mxu0
        %v1793 = vadd.f32 %v1464, %v1792
        %1794 = vmatmul.bf16.gmra.mxu0 %v1258
        %v1795 = vpop.f32.mrf.mxu0
        %v1796 = vadd.f32 %v1467, %v1795
        %v1797 = vpop.f32.mrf.mxu0
        %v1798 = vadd.f32 %v1469, %v1797
        %1799 = vmatmul.bf16.gmra.mxu0 %v1261
        %v1800 = vpop.f32.mrf.mxu0
        %v1801 = vadd.f32 %v1472, %v1800
        %v1802 = vpop.f32.mrf.mxu0
        %v1803 = vadd.f32 %v1474, %v1802
        %1804 = vmatmul.bf16.gmra.mxu0 %v1264
        %v1805 = vpop.f32.mrf.mxu0
        %v1806 = vadd.f32 %v1477, %v1805
        %v1807 = vpop.f32.mrf.mxu0
        %v1808 = vadd.f32 %v1479, %v1807
        %1809 = vmatmul.bf16.gmra.mxu0 %v1267
        %v1810 = vpop.f32.mrf.mxu0
        %v1811 = vadd.f32 %v1482, %v1810
        %v1812 = vpop.f32.mrf.mxu0
        %v1813 = vadd.f32 %v1484, %v1812
        %1814 = vmatmul.bf16.gmra.mxu0 %v1270
        %v1815 = vpop.f32.mrf.mxu0
        %v1816 = vadd.f32 %v1487, %v1815
        %v1817 = vpop.f32.mrf.mxu0
        %v1818 = vadd.f32 %v1489, %v1817
        %1819 = vmatmul.bf16.gmra.mxu0 %v1273
        %v1820 = vpop.f32.mrf.mxu0
        %v1821 = vadd.f32 %v1492, %v1820
        %v1822 = vpop.f32.mrf.mxu0
        %v1823 = vadd.f32 %v1494, %v1822
        %1824 = vmatmul.bf16.gmra.mxu0 %v1276
        %v1825 = vpop.f32.mrf.mxu0
        %v1826 = vadd.f32 %v1497, %v1825
        %v1827 = vpop.f32.mrf.mxu0
        %v1828 = vadd.f32 %v1499, %v1827
        %1829 = vmatmul.bf16.gmra.mxu0 %v1279
        %v1830 = vpop.f32.mrf.mxu0
        %v1831 = vadd.f32 %v1502, %v1830
        %v1832 = vpop.f32.mrf.mxu0
        %v1833 = vadd.f32 %v1504, %v1832
        %1834 = vmatmul.bf16.gmra.mxu0 %v1282
        %v1835 = vpop.f32.mrf.mxu0
        %v1836 = vadd.f32 %v1507, %v1835
        %v1837 = vpop.f32.mrf.mxu0
        %v1838 = vadd.f32 %v1509, %v1837
        %1839 = vmatmul.bf16.gmra.mxu0 %v1285
        %v1840 = vpop.f32.mrf.mxu0
        %v1841 = vadd.f32 %v1512, %v1840
        %v1842 = vpop.f32.mrf.mxu0
        %v1843 = vadd.f32 %v1514, %v1842
        %1844 = vmatmul.bf16.gmra.mxu0 %v1288
        %v1845 = vpop.f32.mrf.mxu0
        %v1846 = vadd.f32 %v1517, %v1845
        %v1847 = vpop.f32.mrf.mxu0
        %v1848 = vadd.f32 %v1519, %v1847
        %1849 = vmatmul.bf16.gmra.mxu0 %v1291
        %v1850 = vpop.f32.mrf.mxu0
        %v1851 = vadd.f32 %v1522, %v1850
        %v1852 = vpop.f32.mrf.mxu0
        %v1853 = vadd.f32 %v1524, %v1852
        %1854 = vmatmul.bf16.gmra.mxu0 %v1294
        %v1855 = vpop.f32.mrf.mxu0
        %v1856 = vadd.f32 %v1527, %v1855
        %v1857 = vpop.f32.mrf.mxu0
        %v1858 = vadd.f32 %v1529, %v1857
        %1859 = vmatmul.bf16.gmra.mxu0 %v1297
        %v1860 = vpop.f32.mrf.mxu0
        %v1861 = vadd.f32 %v1532, %v1860
        %v1862 = vpop.f32.mrf.mxu0
        %v1863 = vadd.f32 %v1534, %v1862
        %1864 = vmatmul.bf16.gmra.mxu0 %v1300
        %v1865 = vpop.f32.mrf.mxu0
        %v1866 = vadd.f32 %v1537, %v1865
        %v1867 = vpop.f32.mrf.mxu0
        %v1868 = vadd.f32 %v1539, %v1867
        %1869 = vmatmul.bf16.gmra.mxu0 %v1303
        %v1870 = vpop.f32.mrf.mxu0
        %v1871 = vadd.f32 %v1542, %v1870
        %v1872 = vpop.f32.mrf.mxu0
        %v1873 = vadd.f32 %v1544, %v1872
        %1874 = vmatmul.bf16.gmra.mxu0 %v1306
        %v1875 = vpop.f32.mrf.mxu0
        %v1876 = vadd.f32 %v1547, %v1875
        %v1877 = vpop.f32.mrf.mxu0
        %v1878 = vadd.f32 %v1549, %v1877
        %1879 = vmatmul.bf16.gmra.mxu0 %v1309
        %v1880 = vpop.f32.mrf.mxu0
        %v1881 = vadd.f32 %v1552, %v1880
        %v1882 = vpop.f32.mrf.mxu0
        %v1883 = vadd.f32 %v1554, %v1882
        %1884 = vmatmul.bf16.gmra.mxu0 %v1312
        %v1885 = vpop.f32.mrf.mxu0
        %v1886 = vadd.f32 %v1557, %v1885
        %v1887 = vpop.f32.mrf.mxu0
        %v1888 = vadd.f32 %v1559, %v1887
        %1889 = vmatmul.bf16.gmra.mxu0 %v1315
        %v1890 = vpop.f32.mrf.mxu0
        %v1891 = vadd.f32 %v1562, %v1890
        %v1892 = vpop.f32.mrf.mxu0
        %v1893 = vadd.f32 %v1564, %v1892
        %1894 = vmatmul.bf16.gmra.mxu0 %v1318
        %v1895 = vpop.f32.mrf.mxu0
        %v1896 = vadd.f32 %v1567, %v1895
        %v1897 = vpop.f32.mrf.mxu0
        %v1898 = vadd.f32 %v1569, %v1897
        %1899 = vmatmul.bf16.gmra.mxu0 %v1321
        %v1900 = vpop.f32.mrf.mxu0
        %v1901 = vadd.f32 %v1572, %v1900
        %v1902 = vpop.f32.mrf.mxu0
        %v1903 = vadd.f32 %v1574, %v1902
        %1904 = vmatmul.bf16.gmra.mxu0 %v1324
        %v1905 = vpop.f32.mrf.mxu0
        %v1906 = vadd.f32 %v1577, %v1905
        %v1907 = vpop.f32.mrf.mxu0
        %v1908 = vadd.f32 %v1579, %v1907
        %1909 = vmatmul.bf16.gmra.mxu0 %v1327
        %v1910 = vpop.f32.mrf.mxu0
        %v1911 = vadd.f32 %v1582, %v1910
        %v1912 = vpop.f32.mrf.mxu0
        %v1913 = vadd.f32 %v1584, %v1912
        %1914 = vmatmul.bf16.gmra.mxu0 %v1330
        %v1915 = vpop.f32.mrf.mxu0
        %v1916 = vadd.f32 %v1587, %v1915
        %v1917 = vpop.f32.mrf.mxu0
        %v1918 = vadd.f32 %v1589, %v1917
        %1919 = vmatmul.bf16.gmra.mxu0 %v1333
        %v1920 = vpop.f32.mrf.mxu0
        %v1921 = vadd.f32 %v1592, %v1920
        %v1922 = vpop.f32.mrf.mxu0
        %v1923 = vadd.f32 %v1594, %v1922
        %1924 = vmatmul.bf16.gmra.mxu0 %v1336
        %v1925 = vpop.f32.mrf.mxu0
        %v1926 = vadd.f32 %v1597, %v1925
        %v1927 = vpop.f32.mrf.mxu0
        %v1928 = vadd.f32 %v1599, %v1927
        %1929 = vmatmul.bf16.gmra.mxu0 %v1339
        %v1930 = vpop.f32.mrf.mxu0
        %v1931 = vadd.f32 %v1602, %v1930
        %v1932 = vpop.f32.mrf.mxu0
        %v1933 = vadd.f32 %v1604, %v1932
        %1934 = vmatmul.bf16.gmra.mxu0 %v1342
        %v1935 = vpop.f32.mrf.mxu0
        %v1936 = vadd.f32 %v1607, %v1935
        %v1937 = vpop.f32.mrf.mxu0
        %v1938 = vadd.f32 %v1609, %v1937
        %1939 = vmatmul.bf16.gmra.mxu0 %v1345
        %v1940 = vpop.f32.mrf.mxu0
        %v1941 = vadd.f32 %v1612, %v1940
        %v1942 = vpop.f32.mrf.mxu0
        %v1943 = vadd.f32 %v1614, %v1942
        %1944 = vmatmul.bf16.gmra.mxu0 %v1348
        %v1945 = vpop.f32.mrf.mxu0
        %v1946 = vadd.f32 %v1617, %v1945
        %v1947 = vpop.f32.mrf.mxu0
        %v1948 = vadd.f32 %v1619, %v1947
        %1949 = vmatmul.bf16.gmra.mxu0 %v1351
        %v1950 = vpop.f32.mrf.mxu0
        %v1951 = vadd.f32 %v1622, %v1950
        %v1952 = vpop.f32.mrf.mxu0
        %v1953 = vadd.f32 %v1624, %v1952
        %1954 = vmatmul.bf16.gmra.mxu0 %v1354
        %v1955 = vpop.f32.mrf.mxu0
        %v1956 = vadd.f32 %v1627, %v1955
        %v1957 = vpop.f32.mrf.mxu0
        %v1958 = vadd.f32 %v1629, %v1957
        %1959 = vmatmul.bf16.gmra.mxu0 %v1357
        %v1960 = vpop.f32.mrf.mxu0
        %v1961 = vadd.f32 %v1632, %v1960
        %v1962 = vpop.f32.mrf.mxu0
        %v1963 = vadd.f32 %v1634, %v1962
        %1964 = vmatmul.bf16.gmra.mxu0 %v1360
        %v1965 = vpop.f32.mrf.mxu0
        %v1966 = vadd.f32 %v1637, %v1965
        %v1967 = vpop.f32.mrf.mxu0
        %v1968 = vadd.f32 %v1639, %v1967
        %1969 = vmatmul.bf16.gmra.mxu0 %v1363
        %v1970 = vpop.f32.mrf.mxu0
        %v1971 = vadd.f32 %v1642, %v1970
        %v1972 = vpop.f32.mrf.mxu0
        %v1973 = vadd.f32 %v1644, %v1972
        %1974 = vmatmul.bf16.gmra.mxu0 %v1366
        %v1975 = vpop.f32.mrf.mxu0
        %v1976 = vadd.f32 %v1647, %v1975
        %v1977 = vpop.f32.mrf.mxu0
        %v1978 = vadd.f32 %v1649, %v1977
        %1979 = vmatmul.bf16.gmra.mxu0 %v1369
        %v1980 = vpop.f32.mrf.mxu0
        %v1981 = vadd.f32 %v1652, %v1980
        %v1982 = vpop.f32.mrf.mxu0
        %v1983 = vadd.f32 %v1654, %v1982
        %1984 = vmatmul.bf16.gmra.mxu0 %v1372
        %v1985 = vpop.f32.mrf.mxu0
        %v1986 = vadd.f32 %v1657, %v1985
        %v1987 = vpop.f32.mrf.mxu0
        %v1988 = vadd.f32 %v1659, %v1987
        %1989 = vmatmul.bf16.gmra.mxu0 %v1375
        %v1990 = vpop.f32.mrf.mxu0
        %v1991 = vadd.f32 %v1662, %v1990
        %v1992 = vpop.f32.mrf.mxu0
        %v1993 = vadd.f32 %v1664, %v1992
        %1994 = vmatmul.bf16.gmra.mxu0 %v1378
        %v1995 = vpop.f32.mrf.mxu0
        %v1996 = vadd.f32 %v1667, %v1995
        %v1997 = vpop.f32.mrf.mxu0
        %v1998 = vadd.f32 %v1669, %v1997
        %1999 = vmatmul.bf16.gmra.mxu0 %v1381
        %v2000 = vpop.f32.mrf.mxu0
        %v2001 = vadd.f32 %v1672, %v2000
        %v2002 = vpop.f32.mrf.mxu0
        %v2003 = vadd.f32 %v1674, %v2002
        %2004 = vmatmul.bf16.gmra.mxu0 %v1384
        %v2005 = vpop.f32.mrf.mxu0
        %v2006 = vadd.f32 %v1677, %v2005
        %v2007 = vpop.f32.mrf.mxu0
        %v2008 = vadd.f32 %v1679, %v2007
        %2009 = vmatmul.bf16.gmra.mxu0 %v1387
        %v2010 = vpop.f32.mrf.mxu0
        %v2011 = vadd.f32 %v1682, %v2010
        %v2012 = vpop.f32.mrf.mxu0
        %v2013 = vadd.f32 %v1684, %v2012
        %2014 = vmatmul.bf16.gmra.mxu0 %v1390
        %v2015 = vpop.f32.mrf.mxu0
        %v2016 = vadd.f32 %v1687, %v2015
        %v2017 = vpop.f32.mrf.mxu0
        %v2018 = vadd.f32 %v1689, %v2017
        %2019 = vmatmul.bf16.gmra.mxu0 %v1393
        %v2020 = vpop.f32.mrf.mxu0
        %v2021 = vadd.f32 %v1692, %v2020
        %v2022 = vpop.f32.mrf.mxu0
        %v2023 = vadd.f32 %v1694, %v2022
        %2024 = vmatmul.bf16.gmra.mxu0 %v1396
        %v2025 = vpop.f32.mrf.mxu0
        %v2026 = vadd.f32 %v1697, %v2025
        %v2027 = vpop.f32.mrf.mxu0
        %v2028 = vadd.f32 %v1699, %v2027
        %2029 = vmatmul.bf16.gmra.mxu0 %v1399
        %v2030 = vpop.f32.mrf.mxu0
        %v2031 = vadd.f32 %v1702, %v2030
        %v2032 = vpop.f32.mrf.mxu0
        %v2033 = vadd.f32 %v1704, %v2032
        %2034 = vmatmul.bf16.gmra.mxu0 %v1402
        %v2035 = vpop.f32.mrf.mxu0
        %v2036 = vadd.f32 %v1707, %v2035
        %v2037 = vpop.f32.mrf.mxu0
        %v2038 = vadd.f32 %v1709, %v2037
        %2039 = vmatmul.bf16.gmra.mxu0 %v1405
        %v2040 = vpop.f32.mrf.mxu0
        %v2041 = vadd.f32 %v1712, %v2040
        %v2042 = vpop.f32.mrf.mxu0
        %v2043 = vadd.f32 %v1714, %v2042
        %2044 = vmatmul.bf16.gmra.mxu0 %v1408
        %v2045 = vpop.f32.mrf.mxu0
        %v2046 = vadd.f32 %v1717, %v2045
        %v2047 = vpop.f32.mrf.mxu0
        %v2048 = vadd.f32 %v1719, %v2047
        %2049 = vmatmul.bf16.gmra.mxu0 %v1411
        %v2050 = vpop.f32.mrf.mxu0
        %v2051 = vadd.f32 %v1722, %v2050
        %v2052 = vpop.f32.mrf.mxu0
        %v2053 = vadd.f32 %v1724, %v2052
        %2054 = vmatmul.bf16.gmra.mxu0 %v1414
        %v2055 = vpop.f32.mrf.mxu0
        %v2056 = vadd.f32 %v1727, %v2055
        %v2057 = vpop.f32.mrf.mxu0
        %v2058 = vadd.f32 %v1729, %v2057
        %2059 = vmatmul.bf16.gmra.mxu0 %v1417
        %v2060 = vpop.f32.mrf.mxu0
        %v2061 = vadd.f32 %v1732, %v2060
        %v2062 = vpop.f32.mrf.mxu0
        %v2063 = vadd.f32 %v1734, %v2062
        %2064 = vmatmul.bf16.gmra.mxu0 %v1420
        %v2065 = vpop.f32.mrf.mxu0
        %v2066 = vadd.f32 %v1737, %v2065
        %v2067 = vpop.f32.mrf.mxu0
        %v2068 = vadd.f32 %v1739, %v2067
        %2069 = vmatmul.bf16.gmra.mxu0 %v1423
        %v2070 = vpop.f32.mrf.mxu0
        %v2071 = vadd.f32 %v1742, %v2070
        %v2072 = vpop.f32.mrf.mxu0
        %v2073 = vadd.f32 %v1744, %v2072
        %2074 = vmatmul.bf16.gmra.mxu0 %v1426
        %v2075 = vpop.f32.mrf.mxu0
        %v2076 = vadd.f32 %v1747, %v2075
        %v2077 = vpop.f32.mrf.mxu0
        %v2078 = vadd.f32 %v1749, %v2077
        %2079 = vmatmul.bf16.gmra.mxu0 %v1429
        %v2080 = vpop.f32.mrf.mxu0
        %v2081 = vadd.f32 %v1752, %v2080
        %v2082 = vpop.f32.mrf.mxu0
        %v2083 = vadd.f32 %v1754, %v2082
        %2084 = vmatmul.bf16.gmra.mxu0 %v1432
        %v2085 = vpop.f32.mrf.mxu0
        %v2086 = vadd.f32 %v1757, %v2085
        %v2087 = vpop.f32.mrf.mxu0
        %v2088 = vadd.f32 %v1759, %v2087
        %2089 = vmatmul.bf16.gmra.mxu0 %v1435
        %v2090 = vpop.f32.mrf.mxu0
        %v2091 = vadd.f32 %v1762, %v2090
        %v2092 = vpop.f32.mrf.mxu0
        %v2093 = vadd.f32 %v1764, %v2092
        %2094 = vdwg.mxu0
        %v2095 = vmax.f32 %v1776, 0.0
        %v2096 = vmax.f32 %v1778, 0.0
        %v2097 = vmax.f32 %v1781, 0.0
        %v2098 = vmax.f32 %v1783, 0.0
        %v2099 = vmax.f32 %v1786, 0.0
        %v2100 = vmax.f32 %v1788, 0.0
        %v2101 = vmax.f32 %v1791, 0.0
        %v2102 = vmax.f32 %v1793, 0.0
        %v2103 = vmax.f32 %v1796, 0.0
        %v2104 = vmax.f32 %v1798, 0.0
        %v2105 = vmax.f32 %v1801, 0.0
        %v2106 = vmax.f32 %v1803, 0.0
        %v2107 = vmax.f32 %v1806, 0.0
        %v2108 = vmax.f32 %v1808, 0.0
        %v2109 = vmax.f32 %v1811, 0.0
        %v2110 = vmax.f32 %v1813, 0.0
        %v2111 = vmax.f32 %v1816, 0.0
        %v2112 = vmax.f32 %v1818, 0.0
        %v2113 = vmax.f32 %v1821, 0.0
        %v2114 = vmax.f32 %v1823, 0.0
        %v2115 = vmax.f32 %v1826, 0.0
        %v2116 = vmax.f32 %v1828, 0.0
        %v2117 = vmax.f32 %v1831, 0.0
        %v2118 = vmax.f32 %v1833, 0.0
        %v2119 = vmax.f32 %v1836, 0.0
        %v2120 = vmax.f32 %v1838, 0.0
        %v2121 = vmax.f32 %v1841, 0.0
        %v2122 = vmax.f32 %v1843, 0.0
        %v2123 = vmax.f32 %v1846, 0.0
        %v2124 = vmax.f32 %v1848, 0.0
        %v2125 = vmax.f32 %v1851, 0.0
        %v2126 = vmax.f32 %v1853, 0.0
        %v2127 = vmax.f32 %v1856, 0.0
        %v2128 = vmax.f32 %v1858, 0.0
        %v2129 = vmax.f32 %v1861, 0.0
        %v2130 = vmax.f32 %v1863, 0.0
        %v2131 = vmax.f32 %v1866, 0.0
        %v2132 = vmax.f32 %v1868, 0.0
        %v2133 = vmax.f32 %v1871, 0.0
        %v2134 = vmax.f32 %v1873, 0.0
        %v2135 = vmax.f32 %v1876, 0.0
        %v2136 = vmax.f32 %v1878, 0.0
        %v2137 = vmax.f32 %v1881, 0.0
        %v2138 = vmax.f32 %v1883, 0.0
        %v2139 = vmax.f32 %v1886, 0.0
        %v2140 = vmax.f32 %v1888, 0.0
        %v2141 = vmax.f32 %v1891, 0.0
        %v2142 = vmax.f32 %v1893, 0.0
        %v2143 = vmax.f32 %v1896, 0.0
        %v2144 = vmax.f32 %v1898, 0.0
        %v2145 = vmax.f32 %v1901, 0.0
        %v2146 = vmax.f32 %v1903, 0.0
        %v2147 = vmax.f32 %v1906, 0.0
        %v2148 = vmax.f32 %v1908, 0.0
        %v2149 = vmax.f32 %v1911, 0.0
        %v2150 = vmax.f32 %v1913, 0.0
        %v2151 = vmax.f32 %v1916, 0.0
        %v2152 = vmax.f32 %v1918, 0.0
        %v2153 = vmax.f32 %v1921, 0.0
        %v2154 = vmax.f32 %v1923, 0.0
        %v2155 = vmax.f32 %v1926, 0.0
        %v2156 = vmax.f32 %v1928, 0.0
        %v2157 = vmax.f32 %v1931, 0.0
        %v2158 = vmax.f32 %v1933, 0.0
        %v2159 = vmax.f32 %v1936, 0.0
        %v2160 = vmax.f32 %v1938, 0.0
        %v2161 = vmax.f32 %v1941, 0.0
        %v2162 = vmax.f32 %v1943, 0.0
        %v2163 = vmax.f32 %v1946, 0.0
        %v2164 = vmax.f32 %v1948, 0.0
        %v2165 = vmax.f32 %v1951, 0.0
        %v2166 = vmax.f32 %v1953, 0.0
        %v2167 = vmax.f32 %v1956, 0.0
        %v2168 = vmax.f32 %v1958, 0.0
        %v2169 = vmax.f32 %v1961, 0.0
        %v2170 = vmax.f32 %v1963, 0.0
        %v2171 = vmax.f32 %v1966, 0.0
        %v2172 = vmax.f32 %v1968, 0.0
        %v2173 = vmax.f32 %v1971, 0.0
        %v2174 = vmax.f32 %v1973, 0.0
        %v2175 = vmax.f32 %v1976, 0.0
        %v2176 = vmax.f32 %v1978, 0.0
        %v2177 = vmax.f32 %v1981, 0.0
        %v2178 = vmax.f32 %v1983, 0.0
        %v2179 = vmax.f32 %v1986, 0.0
        %v2180 = vmax.f32 %v1988, 0.0
        %v2181 = vmax.f32 %v1991, 0.0
        %v2182 = vmax.f32 %v1993, 0.0
        %v2183 = vmax.f32 %v1996, 0.0
        %v2184 = vmax.f32 %v1998, 0.0
        %v2185 = vmax.f32 %v2001, 0.0
        %v2186 = vmax.f32 %v2003, 0.0
        %v2187 = vmax.f32 %v2006, 0.0
        %v2188 = vmax.f32 %v2008, 0.0
        %v2189 = vmax.f32 %v2011, 0.0
        %v2190 = vmax.f32 %v2013, 0.0
        %v2191 = vmax.f32 %v2016, 0.0
        %v2192 = vmax.f32 %v2018, 0.0
        %v2193 = vmax.f32 %v2021, 0.0
        %v2194 = vmax.f32 %v2023, 0.0
        %v2195 = vmax.f32 %v2026, 0.0
        %v2196 = vmax.f32 %v2028, 0.0
        %v2197 = vmax.f32 %v2031, 0.0
        %v2198 = vmax.f32 %v2033, 0.0
        %v2199 = vmax.f32 %v2036, 0.0
        %v2200 = vmax.f32 %v2038, 0.0
        %v2201 = vmax.f32 %v2041, 0.0
        %v2202 = vmax.f32 %v2043, 0.0
        %v2203 = vmax.f32 %v2046, 0.0
        %v2204 = vmax.f32 %v2048, 0.0
        %v2205 = vmax.f32 %v2051, 0.0
        %v2206 = vmax.f32 %v2053, 0.0
        %v2207 = vmax.f32 %v2056, 0.0
        %v2208 = vmax.f32 %v2058, 0.0
        %v2209 = vmax.f32 %v2061, 0.0
        %v2210 = vmax.f32 %v2063, 0.0
        %v2211 = vmax.f32 %v2066, 0.0
        %v2212 = vmax.f32 %v2068, 0.0
        %v2213 = vmax.f32 %v2071, 0.0
        %v2214 = vmax.f32 %v2073, 0.0
        %v2215 = vmax.f32 %v2076, 0.0
        %v2216 = vmax.f32 %v2078, 0.0
        %v2217 = vmax.f32 %v2081, 0.0
        %v2218 = vmax.f32 %v2083, 0.0
        %v2219 = vmax.f32 %v2086, 0.0
        %v2220 = vmax.f32 %v2088, 0.0
        %v2221 = vmax.f32 %v2091, 0.0
        %v2222 = vmax.f32 %v2093, 0.0
        %vm2223 = vcmask 261120
        %2224 = vst.msk [vmem:[#allocation2] sm:$0xff] %vm2223, %v2095
        %2225 = vst.msk [vmem:[#allocation2 + $0x8] sm:$0xff] %vm2223, %v2096
        %2226 = vst.msk [vmem:[#allocation2 + $0x10] sm:$0xff] %vm2223, %v2097
        %2227 = vst.msk [vmem:[#allocation2 + $0x18] sm:$0xff] %vm2223, %v2098
        %2228 = vst.msk [vmem:[#allocation2 + $0x20] sm:$0xff] %vm2223, %v2099
        %2229 = vst.msk [vmem:[#allocation2 + $0x28] sm:$0xff] %vm2223, %v2100
        %2230 = vst.msk [vmem:[#allocation2 + $0x30] sm:$0xff] %vm2223, %v2101
        %2231 = vst.msk [vmem:[#allocation2 + $0x38] sm:$0xff] %vm2223, %v2102
        %2232 = vst.msk [vmem:[#allocation2 + $0x40] sm:$0xff] %vm2223, %v2103
        %2233 = vst.msk [vmem:[#allocation2 + $0x48] sm:$0xff] %vm2223, %v2104
        %2234 = vst.msk [vmem:[#allocation2 + $0x50] sm:$0xff] %vm2223, %v2105
        %2235 = vst.msk [vmem:[#allocation2 + $0x58] sm:$0xff] %vm2223, %v2106
        %2236 = vst.msk [vmem:[#allocation2 + $0x60] sm:$0xff] %vm2223, %v2107
        %2237 = vst.msk [vmem:[#allocation2 + $0x68] sm:$0xff] %vm2223, %v2108
        %2238 = vst.msk [vmem:[#allocation2 + $0x70] sm:$0xff] %vm2223, %v2109
        %2239 = vst.msk [vmem:[#allocation2 + $0x78] sm:$0xff] %vm2223, %v2110
        %2240 = vst.msk [vmem:[#allocation2 + $0x80] sm:$0xff] %vm2223, %v2111
        %2241 = vst.msk [vmem:[#allocation2 + $0x88] sm:$0xff] %vm2223, %v2112
        %2242 = vst.msk [vmem:[#allocation2 + $0x90] sm:$0xff] %vm2223, %v2113
        %2243 = vst.msk [vmem:[#allocation2 + $0x98] sm:$0xff] %vm2223, %v2114
        %2244 = vst.msk [vmem:[#allocation2 + $0xa0] sm:$0xff] %vm2223, %v2115
        %2245 = vst.msk [vmem:[#allocation2 + $0xa8] sm:$0xff] %vm2223, %v2116
        %2246 = vst.msk [vmem:[#allocation2 + $0xb0] sm:$0xff] %vm2223, %v2117
        %2247 = vst.msk [vmem:[#allocation2 + $0xb8] sm:$0xff] %vm2223, %v2118
        %2248 = vst.msk [vmem:[#allocation2 + $0xc0] sm:$0xff] %vm2223, %v2119
        %2249 = vst.msk [vmem:[#allocation2 + $0xc8] sm:$0xff] %vm2223, %v2120
        %2250 = vst.msk [vmem:[#allocation2 + $0xd0] sm:$0xff] %vm2223, %v2121
        %2251 = vst.msk [vmem:[#allocation2 + $0xd8] sm:$0xff] %vm2223, %v2122
        %2252 = vst.msk [vmem:[#allocation2 + $0xe0] sm:$0xff] %vm2223, %v2123
        %2253 = vst.msk [vmem:[#allocation2 + $0xe8] sm:$0xff] %vm2223, %v2124
        %2254 = vst.msk [vmem:[#allocation2 + $0xf0] sm:$0xff] %vm2223, %v2125
        %2255 = vst.msk [vmem:[#allocation2 + $0xf8] sm:$0xff] %vm2223, %v2126
        %2256 = vst.msk [vmem:[#allocation2 + $0x100] sm:$0xff] %vm2223, %v2127
        %2257 = vst.msk [vmem:[#allocation2 + $0x108] sm:$0xff] %vm2223, %v2128
        %2258 = vst.msk [vmem:[#allocation2 + $0x110] sm:$0xff] %vm2223, %v2129
        %2259 = vst.msk [vmem:[#allocation2 + $0x118] sm:$0xff] %vm2223, %v2130
        %2260 = vst.msk [vmem:[#allocation2 + $0x120] sm:$0xff] %vm2223, %v2131
        %2261 = vst.msk [vmem:[#allocation2 + $0x128] sm:$0xff] %vm2223, %v2132
        %2262 = vst.msk [vmem:[#allocation2 + $0x130] sm:$0xff] %vm2223, %v2133
        %2263 = vst.msk [vmem:[#allocation2 + $0x138] sm:$0xff] %vm2223, %v2134
        %2264 = vst.msk [vmem:[#allocation2 + $0x140] sm:$0xff] %vm2223, %v2135
        %2265 = vst.msk [vmem:[#allocation2 + $0x148] sm:$0xff] %vm2223, %v2136
        %2266 = vst.msk [vmem:[#allocation2 + $0x150] sm:$0xff] %vm2223, %v2137
        %2267 = vst.msk [vmem:[#allocation2 + $0x158] sm:$0xff] %vm2223, %v2138
        %2268 = vst.msk [vmem:[#allocation2 + $0x160] sm:$0xff] %vm2223, %v2139
        %2269 = vst.msk [vmem:[#allocation2 + $0x168] sm:$0xff] %vm2223, %v2140
        %2270 = vst.msk [vmem:[#allocation2 + $0x170] sm:$0xff] %vm2223, %v2141
        %2271 = vst.msk [vmem:[#allocation2 + $0x178] sm:$0xff] %vm2223, %v2142
        %2272 = vst.msk [vmem:[#allocation2 + $0x180] sm:$0xff] %vm2223, %v2143
        %2273 = vst.msk [vmem:[#allocation2 + $0x188] sm:$0xff] %vm2223, %v2144
        %2274 = vst.msk [vmem:[#allocation2 + $0x190] sm:$0xff] %vm2223, %v2145
        %2275 = vst.msk [vmem:[#allocation2 + $0x198] sm:$0xff] %vm2223, %v2146
        %2276 = vst.msk [vmem:[#allocation2 + $0x1a0] sm:$0xff] %vm2223, %v2147
        %2277 = vst.msk [vmem:[#allocation2 + $0x1a8] sm:$0xff] %vm2223, %v2148
        %2278 = vst.msk [vmem:[#allocation2 + $0x1b0] sm:$0xff] %vm2223, %v2149
        %2279 = vst.msk [vmem:[#allocation2 + $0x1b8] sm:$0xff] %vm2223, %v2150
        %2280 = vst.msk [vmem:[#allocation2 + $0x1c0] sm:$0xff] %vm2223, %v2151
        %2281 = vst.msk [vmem:[#allocation2 + $0x1c8] sm:$0xff] %vm2223, %v2152
        %2282 = vst.msk [vmem:[#allocation2 + $0x1d0] sm:$0xff] %vm2223, %v2153
        %2283 = vst.msk [vmem:[#allocation2 + $0x1d8] sm:$0xff] %vm2223, %v2154
        %2284 = vst.msk [vmem:[#allocation2 + $0x1e0] sm:$0xff] %vm2223, %v2155
        %2285 = vst.msk [vmem:[#allocation2 + $0x1e8] sm:$0xff] %vm2223, %v2156
        %2286 = vst.msk [vmem:[#allocation2 + $0x1f0] sm:$0xff] %vm2223, %v2157
        %2287 = vst.msk [vmem:[#allocation2 + $0x1f8] sm:$0xff] %vm2223, %v2158
        %2288 = vst.msk [vmem:[#allocation2 + $0x200] sm:$0xff] %vm2223, %v2159
        %2289 = vst.msk [vmem:[#allocation2 + $0x208] sm:$0xff] %vm2223, %v2160
        %2290 = vst.msk [vmem:[#allocation2 + $0x210] sm:$0xff] %vm2223, %v2161
        %2291 = vst.msk [vmem:[#allocation2 + $0x218] sm:$0xff] %vm2223, %v2162
        %2292 = vst.msk [vmem:[#allocation2 + $0x220] sm:$0xff] %vm2223, %v2163
        %2293 = vst.msk [vmem:[#allocation2 + $0x228] sm:$0xff] %vm2223, %v2164
        %2294 = vst.msk [vmem:[#allocation2 + $0x230] sm:$0xff] %vm2223, %v2165
        %2295 = vst.msk [vmem:[#allocation2 + $0x238] sm:$0xff] %vm2223, %v2166
        %2296 = vst.msk [vmem:[#allocation2 + $0x240] sm:$0xff] %vm2223, %v2167
        %2297 = vst.msk [vmem:[#allocation2 + $0x248] sm:$0xff] %vm2223, %v2168
        %2298 = vst.msk [vmem:[#allocation2 + $0x250] sm:$0xff] %vm2223, %v2169
        %2299 = vst.msk [vmem:[#allocation2 + $0x258] sm:$0xff] %vm2223, %v2170
        %2300 = vst.msk [vmem:[#allocation2 + $0x260] sm:$0xff] %vm2223, %v2171
        %2301 = vst.msk [vmem:[#allocation2 + $0x268] sm:$0xff] %vm2223, %v2172
        %2302 = vst.msk [vmem:[#allocation2 + $0x270] sm:$0xff] %vm2223, %v2173
        %2303 = vst.msk [vmem:[#allocation2 + $0x278] sm:$0xff] %vm2223, %v2174
        %2304 = vst.msk [vmem:[#allocation2 + $0x280] sm:$0xff] %vm2223, %v2175
        %2305 = vst.msk [vmem:[#allocation2 + $0x288] sm:$0xff] %vm2223, %v2176
        %2306 = vst.msk [vmem:[#allocation2 + $0x290] sm:$0xff] %vm2223, %v2177
        %2307 = vst.msk [vmem:[#allocation2 + $0x298] sm:$0xff] %vm2223, %v2178
        %2308 = vst.msk [vmem:[#allocation2 + $0x2a0] sm:$0xff] %vm2223, %v2179
        %2309 = vst.msk [vmem:[#allocation2 + $0x2a8] sm:$0xff] %vm2223, %v2180
        %2310 = vst.msk [vmem:[#allocation2 + $0x2b0] sm:$0xff] %vm2223, %v2181
        %2311 = vst.msk [vmem:[#allocation2 + $0x2b8] sm:$0xff] %vm2223, %v2182
        %2312 = vst.msk [vmem:[#allocation2 + $0x2c0] sm:$0xff] %vm2223, %v2183
        %2313 = vst.msk [vmem:[#allocation2 + $0x2c8] sm:$0xff] %vm2223, %v2184
        %2314 = vst.msk [vmem:[#allocation2 + $0x2d0] sm:$0xff] %vm2223, %v2185
        %2315 = vst.msk [vmem:[#allocation2 + $0x2d8] sm:$0xff] %vm2223, %v2186
        %2316 = vst.msk [vmem:[#allocation2 + $0x2e0] sm:$0xff] %vm2223, %v2187
        %2317 = vst.msk [vmem:[#allocation2 + $0x2e8] sm:$0xff] %vm2223, %v2188
        %2318 = vst.msk [vmem:[#allocation2 + $0x2f0] sm:$0xff] %vm2223, %v2189
        %2319 = vst.msk [vmem:[#allocation2 + $0x2f8] sm:$0xff] %vm2223, %v2190
        %2320 = vst.msk [vmem:[#allocation2 + $0x300] sm:$0xff] %vm2223, %v2191
        %2321 = vst.msk [vmem:[#allocation2 + $0x308] sm:$0xff] %vm2223, %v2192
        %2322 = vst.msk [vmem:[#allocation2 + $0x310] sm:$0xff] %vm2223, %v2193
        %2323 = vst.msk [vmem:[#allocation2 + $0x318] sm:$0xff] %vm2223, %v2194
        %2324 = vst.msk [vmem:[#allocation2 + $0x320] sm:$0xff] %vm2223, %v2195
        %2325 = vst.msk [vmem:[#allocation2 + $0x328] sm:$0xff] %vm2223, %v2196
        %2326 = vst.msk [vmem:[#allocation2 + $0x330] sm:$0xff] %vm2223, %v2197
        %2327 = vst.msk [vmem:[#allocation2 + $0x338] sm:$0xff] %vm2223, %v2198
        %2328 = vst.msk [vmem:[#allocation2 + $0x340] sm:$0xff] %vm2223, %v2199
        %2329 = vst.msk [vmem:[#allocation2 + $0x348] sm:$0xff] %vm2223, %v2200
        %2330 = vst.msk [vmem:[#allocation2 + $0x350] sm:$0xff] %vm2223, %v2201
        %2331 = vst.msk [vmem:[#allocation2 + $0x358] sm:$0xff] %vm2223, %v2202
        %2332 = vst.msk [vmem:[#allocation2 + $0x360] sm:$0xff] %vm2223, %v2203
        %2333 = vst.msk [vmem:[#allocation2 + $0x368] sm:$0xff] %vm2223, %v2204
        %2334 = vst.msk [vmem:[#allocation2 + $0x370] sm:$0xff] %vm2223, %v2205
        %2335 = vst.msk [vmem:[#allocation2 + $0x378] sm:$0xff] %vm2223, %v2206
        %2336 = vst.msk [vmem:[#allocation2 + $0x380] sm:$0xff] %vm2223, %v2207
        %2337 = vst.msk [vmem:[#allocation2 + $0x388] sm:$0xff] %vm2223, %v2208
        %2338 = vst.msk [vmem:[#allocation2 + $0x390] sm:$0xff] %vm2223, %v2209
        %2339 = vst.msk [vmem:[#allocation2 + $0x398] sm:$0xff] %vm2223, %v2210
        %2340 = vst.msk [vmem:[#allocation2 + $0x3a0] sm:$0xff] %vm2223, %v2211
        %2341 = vst.msk [vmem:[#allocation2 + $0x3a8] sm:$0xff] %vm2223, %v2212
        %2342 = vst.msk [vmem:[#allocation2 + $0x3b0] sm:$0xff] %vm2223, %v2213
        %2343 = vst.msk [vmem:[#allocation2 + $0x3b8] sm:$0xff] %vm2223, %v2214
        %2344 = vst.msk [vmem:[#allocation2 + $0x3c0] sm:$0xff] %vm2223, %v2215
        %2345 = vst.msk [vmem:[#allocation2 + $0x3c8] sm:$0xff] %vm2223, %v2216
        %2346 = vst.msk [vmem:[#allocation2 + $0x3d0] sm:$0xff] %vm2223, %v2217
        %2347 = vst.msk [vmem:[#allocation2 + $0x3d8] sm:$0xff] %vm2223, %v2218
        %2348 = vst.msk [vmem:[#allocation2 + $0x3e0] sm:$0xff] %vm2223, %v2219
        %2349 = vst.msk [vmem:[#allocation2 + $0x3e8] sm:$0xff] %vm2223, %v2220
        %2350 = vst.msk [vmem:[#allocation2 + $0x3f0] sm:$0xff] %vm2223, %v2221
        %2351 = vst.msk [vmem:[#allocation2 + $0x3f8] sm:$0xff] %vm2223, %v2222
        %2352 = vst.msk [vmem:[#allocation2 + $0x400] sm:$0xff] %vm2223, 0.0
        %2353 = vst.msk [vmem:[#allocation2 + $0x408] sm:$0xff] %vm2223, 0.0
        %2354 = vst.msk [vmem:[#allocation2 + $0x410] sm:$0xff] %vm2223, 0.0
        %2355 = vst.msk [vmem:[#allocation2 + $0x418] sm:$0xff] %vm2223, 0.0
        %2356 = vst.msk [vmem:[#allocation2 + $0x420] sm:$0xff] %vm2223, 0.0
        %v2357 = vld [vmem:[#allocation2] sm:$0xff]
        %v2358 = vld [vmem:[#allocation2 + $0x8] sm:$0xff]
        %v2359 = vld [vmem:[#allocation2 + $0x10] sm:$0xff]
        %v2360 = vld [vmem:[#allocation2 + $0x18] sm:$0xff]
        %v2361 = vld [vmem:[#allocation2 + $0x20] sm:$0xff]
        %v2362 = vld [vmem:[#allocation2 + $0x28] sm:$0xff]
        %v2363 = vld [vmem:[#allocation2 + $0x30] sm:$0xff]
        %v2364 = vld [vmem:[#allocation2 + $0x38] sm:$0xff]
        %v2365 = vld [vmem:[#allocation2 + $0x40] sm:$0xff]
        %v2366 = vld [vmem:[#allocation2 + $0x48] sm:$0xff]
        %v2367 = vld [vmem:[#allocation2 + $0x50] sm:$0xff]
        %v2368 = vld [vmem:[#allocation2 + $0x58] sm:$0xff]
        %v2369 = vld [vmem:[#allocation2 + $0x60] sm:$0xff]
        %v2370 = vld [vmem:[#allocation2 + $0x68] sm:$0xff]
        %v2371 = vld [vmem:[#allocation2 + $0x70] sm:$0xff]
        %v2372 = vld [vmem:[#allocation2 + $0x78] sm:$0xff]
        %v2373 = vld [vmem:[#allocation2 + $0x80] sm:$0xff]
        %v2374 = vld [vmem:[#allocation2 + $0x88] sm:$0xff]
        %v2375 = vld [vmem:[#allocation2 + $0x90] sm:$0xff]
        %v2376 = vld [vmem:[#allocation2 + $0x98] sm:$0xff]
        %v2377 = vld [vmem:[#allocation2 + $0xa0] sm:$0xff]
        %v2378 = vld [vmem:[#allocation2 + $0xa8] sm:$0xff]
        %v2379 = vld [vmem:[#allocation2 + $0xb0] sm:$0xff]
        %v2380 = vld [vmem:[#allocation2 + $0xb8] sm:$0xff]
        %v2381 = vld [vmem:[#allocation2 + $0xc0] sm:$0xff]
        %v2382 = vld [vmem:[#allocation2 + $0xc8] sm:$0xff]
        %v2383 = vld [vmem:[#allocation2 + $0xd0] sm:$0xff]
        %v2384 = vld [vmem:[#allocation2 + $0xd8] sm:$0xff]
        %v2385 = vld [vmem:[#allocation2 + $0xe0] sm:$0xff]
        %v2386 = vld [vmem:[#allocation2 + $0xe8] sm:$0xff]
        %v2387 = vld [vmem:[#allocation2 + $0xf0] sm:$0xff]
        %v2388 = vld [vmem:[#allocation2 + $0xf8] sm:$0xff]
        %v2389 = vld [vmem:[#allocation2 + $0x100] sm:$0xff]
        %v2390 = vld [vmem:[#allocation2 + $0x108] sm:$0xff]
        %v2391 = vld [vmem:[#allocation2 + $0x110] sm:$0xff]
        %v2392 = vld [vmem:[#allocation2 + $0x118] sm:$0xff]
        %v2393 = vld [vmem:[#allocation2 + $0x120] sm:$0xff]
        %v2394 = vld [vmem:[#allocation2 + $0x128] sm:$0xff]
        %v2395 = vld [vmem:[#allocation2 + $0x130] sm:$0xff]
        %v2396 = vld [vmem:[#allocation2 + $0x138] sm:$0xff]
        %v2397 = vld [vmem:[#allocation2 + $0x140] sm:$0xff]
        %v2398 = vld [vmem:[#allocation2 + $0x148] sm:$0xff]
        %v2399 = vld [vmem:[#allocation2 + $0x150] sm:$0xff]
        %v2400 = vld [vmem:[#allocation2 + $0x158] sm:$0xff]
        %v2401 = vld [vmem:[#allocation2 + $0x160] sm:$0xff]
        %v2402 = vld [vmem:[#allocation2 + $0x168] sm:$0xff]
        %v2403 = vld [vmem:[#allocation2 + $0x170] sm:$0xff]
        %v2404 = vld [vmem:[#allocation2 + $0x178] sm:$0xff]
        %v2405 = vld [vmem:[#allocation2 + $0x180] sm:$0xff]
        %v2406 = vld [vmem:[#allocation2 + $0x188] sm:$0xff]
        %v2407 = vld [vmem:[#allocation2 + $0x190] sm:$0xff]
        %v2408 = vld [vmem:[#allocation2 + $0x198] sm:$0xff]
        %v2409 = vld [vmem:[#allocation2 + $0x1a0] sm:$0xff]
        %v2410 = vld [vmem:[#allocation2 + $0x1a8] sm:$0xff]
        %v2411 = vld [vmem:[#allocation2 + $0x1b0] sm:$0xff]
        %v2412 = vld [vmem:[#allocation2 + $0x1b8] sm:$0xff]
        %v2413 = vld [vmem:[#allocation2 + $0x1c0] sm:$0xff]
        %v2414 = vld [vmem:[#allocation2 + $0x1c8] sm:$0xff]
        %v2415 = vld [vmem:[#allocation2 + $0x1d0] sm:$0xff]
        %v2416 = vld [vmem:[#allocation2 + $0x1d8] sm:$0xff]
        %v2417 = vld [vmem:[#allocation2 + $0x1e0] sm:$0xff]
        %v2418 = vld [vmem:[#allocation2 + $0x1e8] sm:$0xff]
        %v2419 = vld [vmem:[#allocation2 + $0x1f0] sm:$0xff]
        %v2420 = vld [vmem:[#allocation2 + $0x1f8] sm:$0xff]
        %v2421 = vld [vmem:[#allocation2 + $0x200] sm:$0xff]
        %v2422 = vld [vmem:[#allocation2 + $0x208] sm:$0xff]
        %v2423 = vld [vmem:[#allocation2 + $0x210] sm:$0xff]
        %v2424 = vld [vmem:[#allocation2 + $0x218] sm:$0xff]
        %v2425 = vld [vmem:[#allocation2 + $0x220] sm:$0xff]
        %v2426 = vld [vmem:[#allocation2 + $0x228] sm:$0xff]
        %v2427 = vld [vmem:[#allocation2 + $0x230] sm:$0xff]
        %v2428 = vld [vmem:[#allocation2 + $0x238] sm:$0xff]
        %v2429 = vld [vmem:[#allocation2 + $0x240] sm:$0xff]
        %v2430 = vld [vmem:[#allocation2 + $0x248] sm:$0xff]
        %v2431 = vld [vmem:[#allocation2 + $0x250] sm:$0xff]
        %v2432 = vld [vmem:[#allocation2 + $0x258] sm:$0xff]
        %v2433 = vld [vmem:[#allocation2 + $0x260] sm:$0xff]
        %v2434 = vld [vmem:[#allocation2 + $0x268] sm:$0xff]
        %v2435 = vld [vmem:[#allocation2 + $0x270] sm:$0xff]
        %v2436 = vld [vmem:[#allocation2 + $0x278] sm:$0xff]
        %v2437 = vld [vmem:[#allocation2 + $0x280] sm:$0xff]
        %v2438 = vld [vmem:[#allocation2 + $0x288] sm:$0xff]
        %v2439 = vld [vmem:[#allocation2 + $0x290] sm:$0xff]
        %v2440 = vld [vmem:[#allocation2 + $0x298] sm:$0xff]
        %v2441 = vld [vmem:[#allocation2 + $0x2a0] sm:$0xff]
        %v2442 = vld [vmem:[#allocation2 + $0x2a8] sm:$0xff]
        %v2443 = vld [vmem:[#allocation2 + $0x2b0] sm:$0xff]
        %v2444 = vld [vmem:[#allocation2 + $0x2b8] sm:$0xff]
        %v2445 = vld [vmem:[#allocation2 + $0x2c0] sm:$0xff]
        %v2446 = vld [vmem:[#allocation2 + $0x2c8] sm:$0xff]
        %v2447 = vld [vmem:[#allocation2 + $0x2d0] sm:$0xff]
        %v2448 = vld [vmem:[#allocation2 + $0x2d8] sm:$0xff]
        %v2449 = vld [vmem:[#allocation2 + $0x2e0] sm:$0xff]
        %v2450 = vld [vmem:[#allocation2 + $0x2e8] sm:$0xff]
        %v2451 = vld [vmem:[#allocation2 + $0x2f0] sm:$0xff]
        %v2452 = vld [vmem:[#allocation2 + $0x2f8] sm:$0xff]
        %v2453 = vld [vmem:[#allocation2 + $0x300] sm:$0xff]
        %v2454 = vld [vmem:[#allocation2 + $0x308] sm:$0xff]
        %v2455 = vld [vmem:[#allocation2 + $0x310] sm:$0xff]
        %v2456 = vld [vmem:[#allocation2 + $0x318] sm:$0xff]
        %v2457 = vld [vmem:[#allocation2 + $0x320] sm:$0xff]
        %v2458 = vld [vmem:[#allocation2 + $0x328] sm:$0xff]
        %v2459 = vld [vmem:[#allocation2 + $0x330] sm:$0xff]
        %v2460 = vld [vmem:[#allocation2 + $0x338] sm:$0xff]
        %v2461 = vld [vmem:[#allocation2 + $0x340] sm:$0xff]
        %v2462 = vld [vmem:[#allocation2 + $0x348] sm:$0xff]
        %v2463 = vld [vmem:[#allocation2 + $0x350] sm:$0xff]
        %v2464 = vld [vmem:[#allocation2 + $0x358] sm:$0xff]
        %v2465 = vld [vmem:[#allocation2 + $0x360] sm:$0xff]
        %v2466 = vld [vmem:[#allocation2 + $0x368] sm:$0xff]
        %v2467 = vld [vmem:[#allocation2 + $0x370] sm:$0xff]
        %v2468 = vld [vmem:[#allocation2 + $0x378] sm:$0xff]
        %v2469 = vld [vmem:[#allocation2 + $0x380] sm:$0xff]
        %v2470 = vld [vmem:[#allocation2 + $0x388] sm:$0xff]
        %v2471 = vld [vmem:[#allocation2 + $0x390] sm:$0xff]
        %v2472 = vld [vmem:[#allocation2 + $0x398] sm:$0xff]
        %v2473 = vld [vmem:[#allocation2 + $0x3a0] sm:$0xff]
        %v2474 = vld [vmem:[#allocation2 + $0x3a8] sm:$0xff]
        %v2475 = vld [vmem:[#allocation2 + $0x3b0] sm:$0xff]
        %v2476 = vld [vmem:[#allocation2 + $0x3b8] sm:$0xff]
        %v2477 = vld [vmem:[#allocation2 + $0x3c0] sm:$0xff]
        %v2478 = vld [vmem:[#allocation2 + $0x3c8] sm:$0xff]
        %v2479 = vld [vmem:[#allocation2 + $0x3d0] sm:$0xff]
        %v2480 = vld [vmem:[#allocation2 + $0x3d8] sm:$0xff]
        %v2481 = vld [vmem:[#allocation2 + $0x3e0] sm:$0xff]
        %v2482 = vld [vmem:[#allocation2 + $0x3e8] sm:$0xff]
        %v2483 = vld [vmem:[#allocation2 + $0x3f0] sm:$0xff]
        %v2484 = vld [vmem:[#allocation2 + $0x3f8] sm:$0xff]
        %v2485 = vld [vmem:[#allocation2 + $0x1] sm:$0xff]
        %v2486 = vld [vmem:[#allocation2 + $0x9] sm:$0xff]
        %v2487 = vld [vmem:[#allocation2 + $0x11] sm:$0xff]
        %v2488 = vld [vmem:[#allocation2 + $0x19] sm:$0xff]
        %v2489 = vld [vmem:[#allocation2 + $0x21] sm:$0xff]
        %v2490 = vld [vmem:[#allocation2 + $0x29] sm:$0xff]
        %v2491 = vld [vmem:[#allocation2 + $0x31] sm:$0xff]
        %v2492 = vld [vmem:[#allocation2 + $0x39] sm:$0xff]
        %v2493 = vld [vmem:[#allocation2 + $0x41] sm:$0xff]
        %v2494 = vld [vmem:[#allocation2 + $0x49] sm:$0xff]
        %v2495 = vld [vmem:[#allocation2 + $0x51] sm:$0xff]
        %v2496 = vld [vmem:[#allocation2 + $0x59] sm:$0xff]
        %v2497 = vld [vmem:[#allocation2 + $0x61] sm:$0xff]
        %v2498 = vld [vmem:[#allocation2 + $0x69] sm:$0xff]
        %v2499 = vld [vmem:[#allocation2 + $0x71] sm:$0xff]
        %v2500 = vld [vmem:[#allocation2 + $0x79] sm:$0xff]
        %v2501 = vld [vmem:[#allocation2 + $0x81] sm:$0xff]
        %v2502 = vld [vmem:[#allocation2 + $0x89] sm:$0xff]
        %v2503 = vld [vmem:[#allocation2 + $0x91] sm:$0xff]
        %v2504 = vld [vmem:[#allocation2 + $0x99] sm:$0xff]
        %v2505 = vld [vmem:[#allocation2 + $0xa1] sm:$0xff]
        %v2506 = vld [vmem:[#allocation2 + $0xa9] sm:$0xff]
        %v2507 = vld [vmem:[#allocation2 + $0xb1] sm:$0xff]
        %v2508 = vld [vmem:[#allocation2 + $0xb9] sm:$0xff]
        %v2509 = vld [vmem:[#allocation2 + $0xc1] sm:$0xff]
        %v2510 = vld [vmem:[#allocation2 + $0xc9] sm:$0xff]
        %v2511 = vld [vmem:[#allocation2 + $0xd1] sm:$0xff]
        %v2512 = vld [vmem:[#allocation2 + $0xd9] sm:$0xff]
        %v2513 = vld [vmem:[#allocation2 + $0xe1] sm:$0xff]
        %v2514 = vld [vmem:[#allocation2 + $0xe9] sm:$0xff]
        %v2515 = vld [vmem:[#allocation2 + $0xf1] sm:$0xff]
        %v2516 = vld [vmem:[#allocation2 + $0xf9] sm:$0xff]
        %v2517 = vld [vmem:[#allocation2 + $0x101] sm:$0xff]
        %v2518 = vld [vmem:[#allocation2 + $0x109] sm:$0xff]
        %v2519 = vld [vmem:[#allocation2 + $0x111] sm:$0xff]
        %v2520 = vld [vmem:[#allocation2 + $0x119] sm:$0xff]
        %v2521 = vld [vmem:[#allocation2 + $0x121] sm:$0xff]
        %v2522 = vld [vmem:[#allocation2 + $0x129] sm:$0xff]
        %v2523 = vld [vmem:[#allocation2 + $0x131] sm:$0xff]
        %v2524 = vld [vmem:[#allocation2 + $0x139] sm:$0xff]
        %v2525 = vld [vmem:[#allocation2 + $0x141] sm:$0xff]
        %v2526 = vld [vmem:[#allocation2 + $0x149] sm:$0xff]
        %v2527 = vld [vmem:[#allocation2 + $0x151] sm:$0xff]
        %v2528 = vld [vmem:[#allocation2 + $0x159] sm:$0xff]
        %v2529 = vld [vmem:[#allocation2 + $0x161] sm:$0xff]
        %v2530 = vld [vmem:[#allocation2 + $0x169] sm:$0xff]
        %v2531 = vld [vmem:[#allocation2 + $0x171] sm:$0xff]
        %v2532 = vld [vmem:[#allocation2 + $0x179] sm:$0xff]
        %v2533 = vld [vmem:[#allocation2 + $0x181] sm:$0xff]
        %v2534 = vld [vmem:[#allocation2 + $0x189] sm:$0xff]
        %v2535 = vld [vmem:[#allocation2 + $0x191] sm:$0xff]
        %v2536 = vld [vmem:[#allocation2 + $0x199] sm:$0xff]
        %v2537 = vld [vmem:[#allocation2 + $0x1a1] sm:$0xff]
        %v2538 = vld [vmem:[#allocation2 + $0x1a9] sm:$0xff]
        %v2539 = vld [vmem:[#allocation2 + $0x1b1] sm:$0xff]
        %v2540 = vld [vmem:[#allocation2 + $0x1b9] sm:$0xff]
        %v2541 = vld [vmem:[#allocation2 + $0x1c1] sm:$0xff]
        %v2542 = vld [vmem:[#allocation2 + $0x1c9] sm:$0xff]
        %v2543 = vld [vmem:[#allocation2 + $0x1d1] sm:$0xff]
        %v2544 = vld [vmem:[#allocation2 + $0x1d9] sm:$0xff]
        %v2545 = vld [vmem:[#allocation2 + $0x1e1] sm:$0xff]
        %v2546 = vld [vmem:[#allocation2 + $0x1e9] sm:$0xff]
        %v2547 = vld [vmem:[#allocation2 + $0x1f1] sm:$0xff]
        %v2548 = vld [vmem:[#allocation2 + $0x1f9] sm:$0xff]
        %v2549 = vld [vmem:[#allocation2 + $0x201] sm:$0xff]
        %v2550 = vld [vmem:[#allocation2 + $0x209] sm:$0xff]
        %v2551 = vld [vmem:[#allocation2 + $0x211] sm:$0xff]
        %v2552 = vld [vmem:[#allocation2 + $0x219] sm:$0xff]
        %v2553 = vld [vmem:[#allocation2 + $0x221] sm:$0xff]
        %v2554 = vld [vmem:[#allocation2 + $0x229] sm:$0xff]
        %v2555 = vld [vmem:[#allocation2 + $0x231] sm:$0xff]
        %v2556 = vld [vmem:[#allocation2 + $0x239] sm:$0xff]
        %v2557 = vld [vmem:[#allocation2 + $0x241] sm:$0xff]
        %v2558 = vld [vmem:[#allocation2 + $0x249] sm:$0xff]
        %v2559 = vld [vmem:[#allocation2 + $0x251] sm:$0xff]
        %v2560 = vld [vmem:[#allocation2 + $0x259] sm:$0xff]
        %v2561 = vld [vmem:[#allocation2 + $0x261] sm:$0xff]
        %v2562 = vld [vmem:[#allocation2 + $0x269] sm:$0xff]
        %v2563 = vld [vmem:[#allocation2 + $0x271] sm:$0xff]
        %v2564 = vld [vmem:[#allocation2 + $0x279] sm:$0xff]
        %v2565 = vld [vmem:[#allocation2 + $0x281] sm:$0xff]
        %v2566 = vld [vmem:[#allocation2 + $0x289] sm:$0xff]
        %v2567 = vld [vmem:[#allocation2 + $0x291] sm:$0xff]
        %v2568 = vld [vmem:[#allocation2 + $0x299] sm:$0xff]
        %v2569 = vld [vmem:[#allocation2 + $0x2a1] sm:$0xff]
        %v2570 = vld [vmem:[#allocation2 + $0x2a9] sm:$0xff]
        %v2571 = vld [vmem:[#allocation2 + $0x2b1] sm:$0xff]
        %v2572 = vld [vmem:[#allocation2 + $0x2b9] sm:$0xff]
        %v2573 = vld [vmem:[#allocation2 + $0x2c1] sm:$0xff]
        %v2574 = vld [vmem:[#allocation2 + $0x2c9] sm:$0xff]
        %v2575 = vld [vmem:[#allocation2 + $0x2d1] sm:$0xff]
        %v2576 = vld [vmem:[#allocation2 + $0x2d9] sm:$0xff]
        %v2577 = vld [vmem:[#allocation2 + $0x2e1] sm:$0xff]
        %v2578 = vld [vmem:[#allocation2 + $0x2e9] sm:$0xff]
        %v2579 = vld [vmem:[#allocation2 + $0x2f1] sm:$0xff]
        %v2580 = vld [vmem:[#allocation2 + $0x2f9] sm:$0xff]
        %v2581 = vld [vmem:[#allocation2 + $0x301] sm:$0xff]
        %v2582 = vld [vmem:[#allocation2 + $0x309] sm:$0xff]
        %v2583 = vld [vmem:[#allocation2 + $0x311] sm:$0xff]
        %v2584 = vld [vmem:[#allocation2 + $0x319] sm:$0xff]
        %v2585 = vld [vmem:[#allocation2 + $0x321] sm:$0xff]
        %v2586 = vld [vmem:[#allocation2 + $0x329] sm:$0xff]
        %v2587 = vld [vmem:[#allocation2 + $0x331] sm:$0xff]
        %v2588 = vld [vmem:[#allocation2 + $0x339] sm:$0xff]
        %v2589 = vld [vmem:[#allocation2 + $0x341] sm:$0xff]
        %v2590 = vld [vmem:[#allocation2 + $0x349] sm:$0xff]
        %v2591 = vld [vmem:[#allocation2 + $0x351] sm:$0xff]
        %v2592 = vld [vmem:[#allocation2 + $0x359] sm:$0xff]
        %v2593 = vld [vmem:[#allocation2 + $0x361] sm:$0xff]
        %v2594 = vld [vmem:[#allocation2 + $0x369] sm:$0xff]
        %v2595 = vld [vmem:[#allocation2 + $0x371] sm:$0xff]
        %v2596 = vld [vmem:[#allocation2 + $0x379] sm:$0xff]
        %v2597 = vld [vmem:[#allocation2 + $0x381] sm:$0xff]
        %v2598 = vld [vmem:[#allocation2 + $0x389] sm:$0xff]
        %v2599 = vld [vmem:[#allocation2 + $0x391] sm:$0xff]
        %v2600 = vld [vmem:[#allocation2 + $0x399] sm:$0xff]
        %v2601 = vld [vmem:[#allocation2 + $0x3a1] sm:$0xff]
        %v2602 = vld [vmem:[#allocation2 + $0x3a9] sm:$0xff]
        %v2603 = vld [vmem:[#allocation2 + $0x3b1] sm:$0xff]
        %v2604 = vld [vmem:[#allocation2 + $0x3b9] sm:$0xff]
        %v2605 = vld [vmem:[#allocation2 + $0x3c1] sm:$0xff]
        %v2606 = vld [vmem:[#allocation2 + $0x3c9] sm:$0xff]
        %v2607 = vld [vmem:[#allocation2 + $0x3d1] sm:$0xff]
        %v2608 = vld [vmem:[#allocation2 + $0x3d9] sm:$0xff]
        %v2609 = vld [vmem:[#allocation2 + $0x3e1] sm:$0xff]
        %v2610 = vld [vmem:[#allocation2 + $0x3e9] sm:$0xff]
        %v2611 = vld [vmem:[#allocation2 + $0x3f1] sm:$0xff]
        %v2612 = vld [vmem:[#allocation2 + $0x3f9] sm:$0xff]
        %v2613 = vmax.f32 %v2357, %v2485
        %v2614 = vmax.f32 %v2358, %v2486
        %v2615 = vmax.f32 %v2359, %v2487
        %v2616 = vmax.f32 %v2360, %v2488
        %v2617 = vmax.f32 %v2361, %v2489
        %v2618 = vmax.f32 %v2362, %v2490
        %v2619 = vmax.f32 %v2363, %v2491
        %v2620 = vmax.f32 %v2364, %v2492
        %v2621 = vmax.f32 %v2365, %v2493
        %v2622 = vmax.f32 %v2366, %v2494
        %v2623 = vmax.f32 %v2367, %v2495
        %v2624 = vmax.f32 %v2368, %v2496
        %v2625 = vmax.f32 %v2369, %v2497
        %v2626 = vmax.f32 %v2370, %v2498
        %v2627 = vmax.f32 %v2371, %v2499
        %v2628 = vmax.f32 %v2372, %v2500
        %v2629 = vmax.f32 %v2373, %v2501
        %v2630 = vmax.f32 %v2374, %v2502
        %v2631 = vmax.f32 %v2375, %v2503
        %v2632 = vmax.f32 %v2376, %v2504
        %v2633 = vmax.f32 %v2377, %v2505
        %v2634 = vmax.f32 %v2378, %v2506
        %v2635 = vmax.f32 %v2379, %v2507
        %v2636 = vmax.f32 %v2380, %v2508
        %v2637 = vmax.f32 %v2381, %v2509
        %v2638 = vmax.f32 %v2382, %v2510
        %v2639 = vmax.f32 %v2383, %v2511
        %v2640 = vmax.f32 %v2384, %v2512
        %v2641 = vmax.f32 %v2385, %v2513
        %v2642 = vmax.f32 %v2386, %v2514
        %v2643 = vmax.f32 %v2387, %v2515
        %v2644 = vmax.f32 %v2388, %v2516
        %v2645 = vmax.f32 %v2389, %v2517
        %v2646 = vmax.f32 %v2390, %v2518
        %v2647 = vmax.f32 %v2391, %v2519
        %v2648 = vmax.f32 %v2392, %v2520
        %v2649 = vmax.f32 %v2393, %v2521
        %v2650 = vmax.f32 %v2394, %v2522
        %v2651 = vmax.f32 %v2395, %v2523
        %v2652 = vmax.f32 %v2396, %v2524
        %v2653 = vmax.f32 %v2397, %v2525
        %v2654 = vmax.f32 %v2398, %v2526
        %v2655 = vmax.f32 %v2399, %v2527
        %v2656 = vmax.f32 %v2400, %v2528
        %v2657 = vmax.f32 %v2401, %v2529
        %v2658 = vmax.f32 %v2402, %v2530
        %v2659 = vmax.f32 %v2403, %v2531
        %v2660 = vmax.f32 %v2404, %v2532
        %v2661 = vmax.f32 %v2405, %v2533
        %v2662 = vmax.f32 %v2406, %v2534
        %v2663 = vmax.f32 %v2407, %v2535
        %v2664 = vmax.f32 %v2408, %v2536
        %v2665 = vmax.f32 %v2409, %v2537
        %v2666 = vmax.f32 %v2410, %v2538
        %v2667 = vmax.f32 %v2411, %v2539
        %v2668 = vmax.f32 %v2412, %v2540
        %v2669 = vmax.f32 %v2413, %v2541
        %v2670 = vmax.f32 %v2414, %v2542
        %v2671 = vmax.f32 %v2415, %v2543
        %v2672 = vmax.f32 %v2416, %v2544
        %v2673 = vmax.f32 %v2417, %v2545
        %v2674 = vmax.f32 %v2418, %v2546
        %v2675 = vmax.f32 %v2419, %v2547
        %v2676 = vmax.f32 %v2420, %v2548
        %v2677 = vmax.f32 %v2421, %v2549
        %v2678 = vmax.f32 %v2422, %v2550
        %v2679 = vmax.f32 %v2423, %v2551
        %v2680 = vmax.f32 %v2424, %v2552
        %v2681 = vmax.f32 %v2425, %v2553
        %v2682 = vmax.f32 %v2426, %v2554
        %v2683 = vmax.f32 %v2427, %v2555
        %v2684 = vmax.f32 %v2428, %v2556
        %v2685 = vmax.f32 %v2429, %v2557
        %v2686 = vmax.f32 %v2430, %v2558
        %v2687 = vmax.f32 %v2431, %v2559
        %v2688 = vmax.f32 %v2432, %v2560
        %v2689 = vmax.f32 %v2433, %v2561
        %v2690 = vmax.f32 %v2434, %v2562
        %v2691 = vmax.f32 %v2435, %v2563
        %v2692 = vmax.f32 %v2436, %v2564
        %v2693 = vmax.f32 %v2437, %v2565
        %v2694 = vmax.f32 %v2438, %v2566
        %v2695 = vmax.f32 %v2439, %v2567
        %v2696 = vmax.f32 %v2440, %v2568
        %v2697 = vmax.f32 %v2441, %v2569
        %v2698 = vmax.f32 %v2442, %v2570
        %v2699 = vmax.f32 %v2443, %v2571
        %v2700 = vmax.f32 %v2444, %v2572
        %v2701 = vmax.f32 %v2445, %v2573
        %v2702 = vmax.f32 %v2446, %v2574
        %v2703 = vmax.f32 %v2447, %v2575
        %v2704 = vmax.f32 %v2448, %v2576
        %v2705 = vmax.f32 %v2449, %v2577
        %v2706 = vmax.f32 %v2450, %v2578
        %v2707 = vmax.f32 %v2451, %v2579
        %v2708 = vmax.f32 %v2452, %v2580
        %v2709 = vmax.f32 %v2453, %v2581
        %v2710 = vmax.f32 %v2454, %v2582
        %v2711 = vmax.f32 %v2455, %v2583
        %v2712 = vmax.f32 %v2456, %v2584
        %v2713 = vmax.f32 %v2457, %v2585
        %v2714 = vmax.f32 %v2458, %v2586
        %v2715 = vmax.f32 %v2459, %v2587
        %v2716 = vmax.f32 %v2460, %v2588
        %v2717 = vmax.f32 %v2461, %v2589
        %v2718 = vmax.f32 %v2462, %v2590
        %v2719 = vmax.f32 %v2463, %v2591
        %v2720 = vmax.f32 %v2464, %v2592
        %v2721 = vmax.f32 %v2465, %v2593
        %v2722 = vmax.f32 %v2466, %v2594
        %v2723 = vmax.f32 %v2467, %v2595
        %v2724 = vmax.f32 %v2468, %v2596
        %v2725 = vmax.f32 %v2469, %v2597
        %v2726 = vmax.f32 %v2470, %v2598
        %v2727 = vmax.f32 %v2471, %v2599
        %v2728 = vmax.f32 %v2472, %v2600
        %v2729 = vmax.f32 %v2473, %v2601
        %v2730 = vmax.f32 %v2474, %v2602
        %v2731 = vmax.f32 %v2475, %v2603
        %v2732 = vmax.f32 %v2476, %v2604
        %v2733 = vmax.f32 %v2477, %v2605
        %v2734 = vmax.f32 %v2478, %v2606
        %v2735 = vmax.f32 %v2479, %v2607
        %v2736 = vmax.f32 %v2480, %v2608
        %v2737 = vmax.f32 %v2481, %v2609
        %v2738 = vmax.f32 %v2482, %v2610
        %v2739 = vmax.f32 %v2483, %v2611
        %v2740 = vmax.f32 %v2484, %v2612
        %v2741 = vld [vmem:[#allocation2 + $0x400] sm:$0xff]
        %v2742 = vld [vmem:[#allocation2 + $0x408] sm:$0xff]
        %v2743 = vld [vmem:[#allocation2 + $0x410] sm:$0xff]
        %v2744 = vld [vmem:[#allocation2 + $0x418] sm:$0xff]
        %v2745 = vld [vmem:[#allocation2 + $0x401] sm:$0xff]
        %v2746 = vld [vmem:[#allocation2 + $0x409] sm:$0xff]
        %v2747 = vld [vmem:[#allocation2 + $0x411] sm:$0xff]
        %v2748 = vld [vmem:[#allocation2 + $0x419] sm:$0xff]
        %v2749 = vmax.f32 %v2741, %v2745
        %v2750 = vmax.f32 %v2742, %v2746
        %v2751 = vmax.f32 %v2743, %v2747
        %v2752 = vmax.f32 %v2744, %v2748
        %v2753 = vmax.f32 %v2613, %v2617
        %v2754 = vmax.f32 %v2614, %v2618
        %v2755 = vmax.f32 %v2615, %v2619
        %v2756 = vmax.f32 %v2616, %v2620
        %v2757 = vmax.f32 %v2617, %v2621
        %v2758 = vmax.f32 %v2618, %v2622
        %v2759 = vmax.f32 %v2619, %v2623
        %v2760 = vmax.f32 %v2620, %v2624
        %v2761 = vmax.f32 %v2621, %v2625
        %v2762 = vmax.f32 %v2622, %v2626
        %v2763 = vmax.f32 %v2623, %v2627
        %v2764 = vmax.f32 %v2624, %v2628
        %v2765 = vmax.f32 %v2625, %v2629
        %v2766 = vmax.f32 %v2626, %v2630
        %v2767 = vmax.f32 %v2627, %v2631
        %v2768 = vmax.f32 %v2628, %v2632
        %v2769 = vmax.f32 %v2629, %v2633
        %v2770 = vmax.f32 %v2630, %v2634
        %v2771 = vmax.f32 %v2631, %v2635
        %v2772 = vmax.f32 %v2632, %v2636
        %v2773 = vmax.f32 %v2633, %v2637
        %v2774 = vmax.f32 %v2634, %v2638
        %v2775 = vmax.f32 %v2635, %v2639
        %v2776 = vmax.f32 %v2636, %v2640
        %v2777 = vmax.f32 %v2637, %v2641
        %v2778 = vmax.f32 %v2638, %v2642
        %v2779 = vmax.f32 %v2639, %v2643
        %v2780 = vmax.f32 %v2640, %v2644
        %v2781 = vmax.f32 %v2641, %v2645
        %v2782 = vmax.f32 %v2642, %v2646
        %v2783 = vmax.f32 %v2643, %v2647
        %v2784 = vmax.f32 %v2644, %v2648
        %v2785 = vmax.f32 %v2645, %v2649
        %v2786 = vmax.f32 %v2646, %v2650
        %v2787 = vmax.f32 %v2647, %v2651
        %v2788 = vmax.f32 %v2648, %v2652
        %v2789 = vmax.f32 %v2649, %v2653
        %v2790 = vmax.f32 %v2650, %v2654
        %v2791 = vmax.f32 %v2651, %v2655
        %v2792 = vmax.f32 %v2652, %v2656
        %v2793 = vmax.f32 %v2653, %v2657
        %v2794 = vmax.f32 %v2654, %v2658
        %v2795 = vmax.f32 %v2655, %v2659
        %v2796 = vmax.f32 %v2656, %v2660
        %v2797 = vmax.f32 %v2657, %v2661
        %v2798 = vmax.f32 %v2658, %v2662
        %v2799 = vmax.f32 %v2659, %v2663
        %v2800 = vmax.f32 %v2660, %v2664
        %v2801 = vmax.f32 %v2661, %v2665
        %v2802 = vmax.f32 %v2662, %v2666
        %v2803 = vmax.f32 %v2663, %v2667
        %v2804 = vmax.f32 %v2664, %v2668
        %v2805 = vmax.f32 %v2665, %v2669
        %v2806 = vmax.f32 %v2666, %v2670
        %v2807 = vmax.f32 %v2667, %v2671
        %v2808 = vmax.f32 %v2668, %v2672
        %v2809 = vmax.f32 %v2669, %v2673
        %v2810 = vmax.f32 %v2670, %v2674
        %v2811 = vmax.f32 %v2671, %v2675
        %v2812 = vmax.f32 %v2672, %v2676
        %v2813 = vmax.f32 %v2673, %v2677
        %v2814 = vmax.f32 %v2674, %v2678
        %v2815 = vmax.f32 %v2675, %v2679
        %v2816 = vmax.f32 %v2676, %v2680
        %v2817 = vmax.f32 %v2677, %v2681
        %v2818 = vmax.f32 %v2678, %v2682
        %v2819 = vmax.f32 %v2679, %v2683
        %v2820 = vmax.f32 %v2680, %v2684
        %v2821 = vmax.f32 %v2681, %v2685
        %v2822 = vmax.f32 %v2682, %v2686
        %v2823 = vmax.f32 %v2683, %v2687
        %v2824 = vmax.f32 %v2684, %v2688
        %v2825 = vmax.f32 %v2685, %v2689
        %v2826 = vmax.f32 %v2686, %v2690
        %v2827 = vmax.f32 %v2687, %v2691
        %v2828 = vmax.f32 %v2688, %v2692
        %v2829 = vmax.f32 %v2689, %v2693
        %v2830 = vmax.f32 %v2690, %v2694
        %v2831 = vmax.f32 %v2691, %v2695
        %v2832 = vmax.f32 %v2692, %v2696
        %v2833 = vmax.f32 %v2693, %v2697
        %v2834 = vmax.f32 %v2694, %v2698
        %v2835 = vmax.f32 %v2695, %v2699
        %v2836 = vmax.f32 %v2696, %v2700
        %v2837 = vmax.f32 %v2697, %v2701
        %v2838 = vmax.f32 %v2698, %v2702
        %v2839 = vmax.f32 %v2699, %v2703
        %v2840 = vmax.f32 %v2700, %v2704
        %v2841 = vmax.f32 %v2701, %v2705
        %v2842 = vmax.f32 %v2702, %v2706
        %v2843 = vmax.f32 %v2703, %v2707
        %v2844 = vmax.f32 %v2704, %v2708
        %v2845 = vmax.f32 %v2705, %v2709
        %v2846 = vmax.f32 %v2706, %v2710
        %v2847 = vmax.f32 %v2707, %v2711
        %v2848 = vmax.f32 %v2708, %v2712
        %v2849 = vmax.f32 %v2709, %v2713
        %v2850 = vmax.f32 %v2710, %v2714
        %v2851 = vmax.f32 %v2711, %v2715
        %v2852 = vmax.f32 %v2712, %v2716
        %v2853 = vmax.f32 %v2713, %v2717
        %v2854 = vmax.f32 %v2714, %v2718
        %v2855 = vmax.f32 %v2715, %v2719
        %v2856 = vmax.f32 %v2716, %v2720
        %v2857 = vmax.f32 %v2717, %v2721
        %v2858 = vmax.f32 %v2718, %v2722
        %v2859 = vmax.f32 %v2719, %v2723
        %v2860 = vmax.f32 %v2720, %v2724
        %v2861 = vmax.f32 %v2721, %v2725
        %v2862 = vmax.f32 %v2722, %v2726
        %v2863 = vmax.f32 %v2723, %v2727
        %v2864 = vmax.f32 %v2724, %v2728
        %v2865 = vmax.f32 %v2725, %v2729
        %v2866 = vmax.f32 %v2726, %v2730
        %v2867 = vmax.f32 %v2727, %v2731
        %v2868 = vmax.f32 %v2728, %v2732
        %v2869 = vmax.f32 %v2729, %v2733
        %v2870 = vmax.f32 %v2730, %v2734
        %v2871 = vmax.f32 %v2731, %v2735
        %v2872 = vmax.f32 %v2732, %v2736
        %v2873 = vmax.f32 %v2733, %v2737
        %v2874 = vmax.f32 %v2734, %v2738
        %v2875 = vmax.f32 %v2735, %v2739
        %v2876 = vmax.f32 %v2736, %v2740
        %v2877 = vmax.f32 %v2737, %v2749
        %v2878 = vmax.f32 %v2738, %v2750
        %v2879 = vmax.f32 %v2739, %v2751
        %v2880 = vmax.f32 %v2740, %v2752
        %v2881 = vld [vmem:[%s7] sm:$0xff]
        %v2882 = vld [vmem:[%s7 + $0x8] sm:$0xff]
        %v2883 = vld [vmem:[%s7 + $0x10] sm:$0xff]
        %v2884 = vld [vmem:[%s7 + $0x18] sm:$0xff]
        %v2885 = vld [vmem:[%s7 + $0x20] sm:$0xff]
        %v2886 = vld [vmem:[%s7 + $0x28] sm:$0xff]
        %v2887 = vld [vmem:[%s7 + $0x30] sm:$0xff]
        %v2888 = vld [vmem:[%s7 + $0x38] sm:$0xff]
        %v2889 = vld [vmem:[%s7 + $0x40] sm:$0xff]
        %v2890 = vld [vmem:[%s7 + $0x48] sm:$0xff]
        %v2891 = vld [vmem:[%s7 + $0x50] sm:$0xff]
        %v2892 = vld [vmem:[%s7 + $0x58] sm:$0xff]
        %v2893 = vld [vmem:[%s7 + $0x60] sm:$0xff]
        %v2894 = vld [vmem:[%s7 + $0x68] sm:$0xff]
        %v2895 = vld [vmem:[%s7 + $0x70] sm:$0xff]
        %v2896 = vld [vmem:[%s7 + $0x78] sm:$0xff]
        %v2897 = vld [vmem:[%s7 + $0x80] sm:$0xff]
        %v2898 = vld [vmem:[%s7 + $0x88] sm:$0xff]
        %v2899 = vld [vmem:[%s7 + $0x90] sm:$0xff]
        %v2900 = vld [vmem:[%s7 + $0x98] sm:$0xff]
        %v2901 = vld [vmem:[%s7 + $0xa0] sm:$0xff]
        %v2902 = vld [vmem:[%s7 + $0xa8] sm:$0xff]
        %v2903 = vld [vmem:[%s7 + $0xb0] sm:$0xff]
        %v2904 = vld [vmem:[%s7 + $0xb8] sm:$0xff]
        %v2905 = vld [vmem:[%s7 + $0xc0] sm:$0xff]
        %v2906 = vld [vmem:[%s7 + $0xc8] sm:$0xff]
        %v2907 = vld [vmem:[%s7 + $0xd0] sm:$0xff]
        %v2908 = vld [vmem:[%s7 + $0xd8] sm:$0xff]
        %v2909 = vld [vmem:[%s7 + $0xe0] sm:$0xff]
        %v2910 = vld [vmem:[%s7 + $0xe8] sm:$0xff]
        %v2911 = vld [vmem:[%s7 + $0xf0] sm:$0xff]
        %v2912 = vld [vmem:[%s7 + $0xf8] sm:$0xff]
        %v2913 = vld [vmem:[%s7 + $0x100] sm:$0xff]
        %v2914 = vld [vmem:[%s7 + $0x108] sm:$0xff]
        %v2915 = vld [vmem:[%s7 + $0x110] sm:$0xff]
        %v2916 = vld [vmem:[%s7 + $0x118] sm:$0xff]
        %v2917 = vld [vmem:[%s7 + $0x120] sm:$0xff]
        %v2918 = vld [vmem:[%s7 + $0x128] sm:$0xff]
        %v2919 = vld [vmem:[%s7 + $0x130] sm:$0xff]
        %v2920 = vld [vmem:[%s7 + $0x138] sm:$0xff]
        %v2921 = vld [vmem:[%s7 + $0x140] sm:$0xff]
        %v2922 = vld [vmem:[%s7 + $0x148] sm:$0xff]
        %v2923 = vld [vmem:[%s7 + $0x150] sm:$0xff]
        %v2924 = vld [vmem:[%s7 + $0x158] sm:$0xff]
        %v2925 = vld [vmem:[%s7 + $0x160] sm:$0xff]
        %v2926 = vld [vmem:[%s7 + $0x168] sm:$0xff]
        %v2927 = vld [vmem:[%s7 + $0x170] sm:$0xff]
        %v2928 = vld [vmem:[%s7 + $0x178] sm:$0xff]
        %v2929 = vld [vmem:[%s7 + $0x180] sm:$0xff]
        %v2930 = vld [vmem:[%s7 + $0x188] sm:$0xff]
        %v2931 = vld [vmem:[%s7 + $0x190] sm:$0xff]
        %v2932 = vld [vmem:[%s7 + $0x198] sm:$0xff]
        %v2933 = vld [vmem:[%s7 + $0x1a0] sm:$0xff]
        %v2934 = vld [vmem:[%s7 + $0x1a8] sm:$0xff]
        %v2935 = vld [vmem:[%s7 + $0x1b0] sm:$0xff]
        %v2936 = vld [vmem:[%s7 + $0x1b8] sm:$0xff]
        %v2937 = vld [vmem:[%s7 + $0x1c0] sm:$0xff]
        %v2938 = vld [vmem:[%s7 + $0x1c8] sm:$0xff]
        %v2939 = vld [vmem:[%s7 + $0x1d0] sm:$0xff]
        %v2940 = vld [vmem:[%s7 + $0x1d8] sm:$0xff]
        %v2941 = vld [vmem:[%s7 + $0x1e0] sm:$0xff]
        %v2942 = vld [vmem:[%s7 + $0x1e8] sm:$0xff]
        %v2943 = vld [vmem:[%s7 + $0x1f0] sm:$0xff]
        %v2944 = vld [vmem:[%s7 + $0x1f8] sm:$0xff]
        %v2945 = vld [vmem:[%s7 + $0x200] sm:$0xff]
        %v2946 = vld [vmem:[%s7 + $0x208] sm:$0xff]
        %v2947 = vld [vmem:[%s7 + $0x210] sm:$0xff]
        %v2948 = vld [vmem:[%s7 + $0x218] sm:$0xff]
        %v2949 = vld [vmem:[%s7 + $0x220] sm:$0xff]
        %v2950 = vld [vmem:[%s7 + $0x228] sm:$0xff]
        %v2951 = vld [vmem:[%s7 + $0x230] sm:$0xff]
        %v2952 = vld [vmem:[%s7 + $0x238] sm:$0xff]
        %v2953 = vld [vmem:[%s7 + $0x240] sm:$0xff]
        %v2954 = vld [vmem:[%s7 + $0x248] sm:$0xff]
        %v2955 = vld [vmem:[%s7 + $0x250] sm:$0xff]
        %v2956 = vld [vmem:[%s7 + $0x258] sm:$0xff]
        %v2957 = vld [vmem:[%s7 + $0x260] sm:$0xff]
        %v2958 = vld [vmem:[%s7 + $0x268] sm:$0xff]
        %v2959 = vld [vmem:[%s7 + $0x270] sm:$0xff]
        %v2960 = vld [vmem:[%s7 + $0x278] sm:$0xff]
        %v2961 = vld [vmem:[%s7 + $0x280] sm:$0xff]
        %v2962 = vld [vmem:[%s7 + $0x288] sm:$0xff]
        %v2963 = vld [vmem:[%s7 + $0x290] sm:$0xff]
        %v2964 = vld [vmem:[%s7 + $0x298] sm:$0xff]
        %v2965 = vld [vmem:[%s7 + $0x2a0] sm:$0xff]
        %v2966 = vld [vmem:[%s7 + $0x2a8] sm:$0xff]
        %v2967 = vld [vmem:[%s7 + $0x2b0] sm:$0xff]
        %v2968 = vld [vmem:[%s7 + $0x2b8] sm:$0xff]
        %v2969 = vld [vmem:[%s7 + $0x2c0] sm:$0xff]
        %v2970 = vld [vmem:[%s7 + $0x2c8] sm:$0xff]
        %v2971 = vld [vmem:[%s7 + $0x2d0] sm:$0xff]
        %v2972 = vld [vmem:[%s7 + $0x2d8] sm:$0xff]
        %v2973 = vld [vmem:[%s7 + $0x2e0] sm:$0xff]
        %v2974 = vld [vmem:[%s7 + $0x2e8] sm:$0xff]
        %v2975 = vld [vmem:[%s7 + $0x2f0] sm:$0xff]
        %v2976 = vld [vmem:[%s7 + $0x2f8] sm:$0xff]
        %v2977 = vld [vmem:[%s7 + $0x300] sm:$0xff]
        %v2978 = vld [vmem:[%s7 + $0x308] sm:$0xff]
        %v2979 = vld [vmem:[%s7 + $0x310] sm:$0xff]
        %v2980 = vld [vmem:[%s7 + $0x318] sm:$0xff]
        %v2981 = vld [vmem:[%s7 + $0x320] sm:$0xff]
        %v2982 = vld [vmem:[%s7 + $0x328] sm:$0xff]
        %v2983 = vld [vmem:[%s7 + $0x330] sm:$0xff]
        %v2984 = vld [vmem:[%s7 + $0x338] sm:$0xff]
        %v2985 = vld [vmem:[%s7 + $0x340] sm:$0xff]
        %v2986 = vld [vmem:[%s7 + $0x348] sm:$0xff]
        %v2987 = vld [vmem:[%s7 + $0x350] sm:$0xff]
        %v2988 = vld [vmem:[%s7 + $0x358] sm:$0xff]
        %v2989 = vld [vmem:[%s7 + $0x360] sm:$0xff]
        %v2990 = vld [vmem:[%s7 + $0x368] sm:$0xff]
        %v2991 = vld [vmem:[%s7 + $0x370] sm:$0xff]
        %v2992 = vld [vmem:[%s7 + $0x378] sm:$0xff]
        %v2993 = vld [vmem:[%s7 + $0x380] sm:$0xff]
        %v2994 = vld [vmem:[%s7 + $0x388] sm:$0xff]
        %v2995 = vld [vmem:[%s7 + $0x390] sm:$0xff]
        %v2996 = vld [vmem:[%s7 + $0x398] sm:$0xff]
        %v2997 = vld [vmem:[%s7 + $0x3a0] sm:$0xff]
        %v2998 = vld [vmem:[%s7 + $0x3a8] sm:$0xff]
        %v2999 = vld [vmem:[%s7 + $0x3b0] sm:$0xff]
        %v3000 = vld [vmem:[%s7 + $0x3b8] sm:$0xff]
        %v3001 = vld [vmem:[%s7 + $0x3c0] sm:$0xff]
        %v3002 = vld [vmem:[%s7 + $0x3c8] sm:$0xff]
        %v3003 = vld [vmem:[%s7 + $0x3d0] sm:$0xff]
        %v3004 = vld [vmem:[%s7 + $0x3d8] sm:$0xff]
        %v3005 = vld [vmem:[%s7 + $0x3e0] sm:$0xff]
        %v3006 = vld [vmem:[%s7 + $0x3e8] sm:$0xff]
        %v3007 = vld [vmem:[%s7 + $0x3f0] sm:$0xff]
        %v3008 = vld [vmem:[%s7 + $0x3f8] sm:$0xff]
        %v3009 = vpack.c.bf16 %v2754, %v2753
        %v3010 = vpack.c.bf16 %v2756, %v2755
        %v3011 = vpack.c.bf16 %v2758, %v2757
        %v3012 = vpack.c.bf16 %v2760, %v2759
        %v3013 = vpack.c.bf16 %v2762, %v2761
        %v3014 = vpack.c.bf16 %v2764, %v2763
        %v3015 = vpack.c.bf16 %v2766, %v2765
        %v3016 = vpack.c.bf16 %v2768, %v2767
        %v3017 = vpack.c.bf16 %v2770, %v2769
        %v3018 = vpack.c.bf16 %v2772, %v2771
        %v3019 = vpack.c.bf16 %v2774, %v2773
        %v3020 = vpack.c.bf16 %v2776, %v2775
        %v3021 = vpack.c.bf16 %v2778, %v2777
        %v3022 = vpack.c.bf16 %v2780, %v2779
        %v3023 = vpack.c.bf16 %v2782, %v2781
        %v3024 = vpack.c.bf16 %v2784, %v2783
        %v3025 = vpack.c.bf16 %v2786, %v2785
        %v3026 = vpack.c.bf16 %v2788, %v2787
        %v3027 = vpack.c.bf16 %v2790, %v2789
        %v3028 = vpack.c.bf16 %v2792, %v2791
        %v3029 = vpack.c.bf16 %v2794, %v2793
        %v3030 = vpack.c.bf16 %v2796, %v2795
        %v3031 = vpack.c.bf16 %v2798, %v2797
        %v3032 = vpack.c.bf16 %v2800, %v2799
        %v3033 = vpack.c.bf16 %v2802, %v2801
        %v3034 = vpack.c.bf16 %v2804, %v2803
        %v3035 = vpack.c.bf16 %v2806, %v2805
        %v3036 = vpack.c.bf16 %v2808, %v2807
        %v3037 = vpack.c.bf16 %v2810, %v2809
        %v3038 = vpack.c.bf16 %v2812, %v2811
        %v3039 = vpack.c.bf16 %v2814, %v2813
        %v3040 = vpack.c.bf16 %v2816, %v2815
        %v3041 = vpack.c.bf16 %v2818, %v2817
        %v3042 = vpack.c.bf16 %v2820, %v2819
        %v3043 = vpack.c.bf16 %v2822, %v2821
        %v3044 = vpack.c.bf16 %v2824, %v2823
        %v3045 = vpack.c.bf16 %v2826, %v2825
        %v3046 = vpack.c.bf16 %v2828, %v2827
        %v3047 = vpack.c.bf16 %v2830, %v2829
        %v3048 = vpack.c.bf16 %v2832, %v2831
        %v3049 = vpack.c.bf16 %v2834, %v2833
        %v3050 = vpack.c.bf16 %v2836, %v2835
        %v3051 = vpack.c.bf16 %v2838, %v2837
        %v3052 = vpack.c.bf16 %v2840, %v2839
        %v3053 = vpack.c.bf16 %v2842, %v2841
        %v3054 = vpack.c.bf16 %v2844, %v2843
        %v3055 = vpack.c.bf16 %v2846, %v2845
        %v3056 = vpack.c.bf16 %v2848, %v2847
        %v3057 = vpack.c.bf16 %v2850, %v2849
        %v3058 = vpack.c.bf16 %v2852, %v2851
        %v3059 = vpack.c.bf16 %v2854, %v2853
        %v3060 = vpack.c.bf16 %v2856, %v2855
        %v3061 = vpack.c.bf16 %v2858, %v2857
        %v3062 = vpack.c.bf16 %v2860, %v2859
        %v3063 = vpack.c.bf16 %v2862, %v2861
        %v3064 = vpack.c.bf16 %v2864, %v2863
        %v3065 = vpack.c.bf16 %v2866, %v2865
        %v3066 = vpack.c.bf16 %v2868, %v2867
        %v3067 = vpack.c.bf16 %v2870, %v2869
        %v3068 = vpack.c.bf16 %v2872, %v2871
        %v3069 = vpack.c.bf16 %v2874, %v2873
        %v3070 = vpack.c.bf16 %v2876, %v2875
        %v3071 = vpack.c.bf16 %v2878, %v2877
        %v3072 = vpack.c.bf16 %v2880, %v2879
        %v3201 = vunpack.c.l.b16 %v2881
        %v3202 = vunpack.c.h.b16 %v2881
        %v3203 = vunpack.c.l.b16 %v2882
        %v3204 = vunpack.c.h.b16 %v2882
        %v3205 = vunpack.c.l.b16 %v2883
        %v3206 = vunpack.c.h.b16 %v2883
        %v3207 = vunpack.c.l.b16 %v2884
        %v3208 = vunpack.c.h.b16 %v2884
        %v3209 = vunpack.c.l.b16 %v2885
        %v3210 = vunpack.c.h.b16 %v2885
        %v3211 = vunpack.c.l.b16 %v2886
        %v3212 = vunpack.c.h.b16 %v2886
        %v3213 = vunpack.c.l.b16 %v2887
        %v3214 = vunpack.c.h.b16 %v2887
        %v3215 = vunpack.c.l.b16 %v2888
        %v3216 = vunpack.c.h.b16 %v2888
        %v3217 = vunpack.c.l.b16 %v2889
        %v3218 = vunpack.c.h.b16 %v2889
        %v3219 = vunpack.c.l.b16 %v2890
        %v3220 = vunpack.c.h.b16 %v2890
        %v3221 = vunpack.c.l.b16 %v2891
        %v3222 = vunpack.c.h.b16 %v2891
        %v3223 = vunpack.c.l.b16 %v2892
        %v3224 = vunpack.c.h.b16 %v2892
        %v3225 = vunpack.c.l.b16 %v2893
        %v3226 = vunpack.c.h.b16 %v2893
        %v3227 = vunpack.c.l.b16 %v2894
        %v3228 = vunpack.c.h.b16 %v2894
        %v3229 = vunpack.c.l.b16 %v2895
        %v3230 = vunpack.c.h.b16 %v2895
        %v3231 = vunpack.c.l.b16 %v2896
        %v3232 = vunpack.c.h.b16 %v2896
        %v3233 = vunpack.c.l.b16 %v2897
        %v3234 = vunpack.c.h.b16 %v2897
        %v3235 = vunpack.c.l.b16 %v2898
        %v3236 = vunpack.c.h.b16 %v2898
        %v3237 = vunpack.c.l.b16 %v2899
        %v3238 = vunpack.c.h.b16 %v2899
        %v3239 = vunpack.c.l.b16 %v2900
        %v3240 = vunpack.c.h.b16 %v2900
        %v3241 = vunpack.c.l.b16 %v2901
        %v3242 = vunpack.c.h.b16 %v2901
        %v3243 = vunpack.c.l.b16 %v2902
        %v3244 = vunpack.c.h.b16 %v2902
        %v3245 = vunpack.c.l.b16 %v2903
        %v3246 = vunpack.c.h.b16 %v2903
        %v3247 = vunpack.c.l.b16 %v2904
        %v3248 = vunpack.c.h.b16 %v2904
        %v3249 = vunpack.c.l.b16 %v2905
        %v3250 = vunpack.c.h.b16 %v2905
        %v3251 = vunpack.c.l.b16 %v2906
        %v3252 = vunpack.c.h.b16 %v2906
        %v3253 = vunpack.c.l.b16 %v2907
        %v3254 = vunpack.c.h.b16 %v2907
        %v3255 = vunpack.c.l.b16 %v2908
        %v3256 = vunpack.c.h.b16 %v2908
        %v3257 = vunpack.c.l.b16 %v2909
        %v3258 = vunpack.c.h.b16 %v2909
        %v3259 = vunpack.c.l.b16 %v2910
        %v3260 = vunpack.c.h.b16 %v2910
        %v3261 = vunpack.c.l.b16 %v2911
        %v3262 = vunpack.c.h.b16 %v2911
        %v3263 = vunpack.c.l.b16 %v2912
        %v3264 = vunpack.c.h.b16 %v2912
        %v3265 = vunpack.c.l.b16 %v2913
        %v3266 = vunpack.c.h.b16 %v2913
        %v3267 = vunpack.c.l.b16 %v2914
        %v3268 = vunpack.c.h.b16 %v2914
        %v3269 = vunpack.c.l.b16 %v2915
        %v3270 = vunpack.c.h.b16 %v2915
        %v3271 = vunpack.c.l.b16 %v2916
        %v3272 = vunpack.c.h.b16 %v2916
        %v3273 = vunpack.c.l.b16 %v2917
        %v3274 = vunpack.c.h.b16 %v2917
        %v3275 = vunpack.c.l.b16 %v2918
        %v3276 = vunpack.c.h.b16 %v2918
        %v3277 = vunpack.c.l.b16 %v2919
        %v3278 = vunpack.c.h.b16 %v2919
        %v3279 = vunpack.c.l.b16 %v2920
        %v3280 = vunpack.c.h.b16 %v2920
        %v3281 = vunpack.c.l.b16 %v2921
        %v3282 = vunpack.c.h.b16 %v2921
        %v3283 = vunpack.c.l.b16 %v2922
        %v3284 = vunpack.c.h.b16 %v2922
        %v3285 = vunpack.c.l.b16 %v2923
        %v3286 = vunpack.c.h.b16 %v2923
        %v3287 = vunpack.c.l.b16 %v2924
        %v3288 = vunpack.c.h.b16 %v2924
        %v3289 = vunpack.c.l.b16 %v2925
        %v3290 = vunpack.c.h.b16 %v2925
        %v3291 = vunpack.c.l.b16 %v2926
        %v3292 = vunpack.c.h.b16 %v2926
        %v3293 = vunpack.c.l.b16 %v2927
        %v3294 = vunpack.c.h.b16 %v2927
        %v3295 = vunpack.c.l.b16 %v2928
        %v3296 = vunpack.c.h.b16 %v2928
        %v3297 = vunpack.c.l.b16 %v2929
        %v3298 = vunpack.c.h.b16 %v2929
        %v3299 = vunpack.c.l.b16 %v2930
        %v3300 = vunpack.c.h.b16 %v2930
        %v3301 = vunpack.c.l.b16 %v2931
        %v3302 = vunpack.c.h.b16 %v2931
        %v3303 = vunpack.c.l.b16 %v2932
        %v3304 = vunpack.c.h.b16 %v2932
        %v3305 = vunpack.c.l.b16 %v2933
        %v3306 = vunpack.c.h.b16 %v2933
        %v3307 = vunpack.c.l.b16 %v2934
        %v3308 = vunpack.c.h.b16 %v2934
        %v3309 = vunpack.c.l.b16 %v2935
        %v3310 = vunpack.c.h.b16 %v2935
        %v3311 = vunpack.c.l.b16 %v2936
        %v3312 = vunpack.c.h.b16 %v2936
        %v3313 = vunpack.c.l.b16 %v2937
        %v3314 = vunpack.c.h.b16 %v2937
        %v3315 = vunpack.c.l.b16 %v2938
        %v3316 = vunpack.c.h.b16 %v2938
        %v3317 = vunpack.c.l.b16 %v2939
        %v3318 = vunpack.c.h.b16 %v2939
        %v3319 = vunpack.c.l.b16 %v2940
        %v3320 = vunpack.c.h.b16 %v2940
        %v3321 = vunpack.c.l.b16 %v2941
        %v3322 = vunpack.c.h.b16 %v2941
        %v3323 = vunpack.c.l.b16 %v2942
        %v3324 = vunpack.c.h.b16 %v2942
        %v3325 = vunpack.c.l.b16 %v2943
        %v3326 = vunpack.c.h.b16 %v2943
        %v3327 = vunpack.c.l.b16 %v2944
        %v3328 = vunpack.c.h.b16 %v2944
        %v3329 = vunpack.c.l.b16 %v2945
        %v3330 = vunpack.c.h.b16 %v2945
        %v3331 = vunpack.c.l.b16 %v2946
        %v3332 = vunpack.c.h.b16 %v2946
        %v3333 = vunpack.c.l.b16 %v2947
        %v3334 = vunpack.c.h.b16 %v2947
        %v3335 = vunpack.c.l.b16 %v2948
        %v3336 = vunpack.c.h.b16 %v2948
        %v3337 = vunpack.c.l.b16 %v2949
        %v3338 = vunpack.c.h.b16 %v2949
        %v3339 = vunpack.c.l.b16 %v2950
        %v3340 = vunpack.c.h.b16 %v2950
        %v3341 = vunpack.c.l.b16 %v2951
        %v3342 = vunpack.c.h.b16 %v2951
        %v3343 = vunpack.c.l.b16 %v2952
        %v3344 = vunpack.c.h.b16 %v2952
        %v3345 = vunpack.c.l.b16 %v2953
        %v3346 = vunpack.c.h.b16 %v2953
        %v3347 = vunpack.c.l.b16 %v2954
        %v3348 = vunpack.c.h.b16 %v2954
        %v3349 = vunpack.c.l.b16 %v2955
        %v3350 = vunpack.c.h.b16 %v2955
        %v3351 = vunpack.c.l.b16 %v2956
        %v3352 = vunpack.c.h.b16 %v2956
        %v3353 = vunpack.c.l.b16 %v2957
        %v3354 = vunpack.c.h.b16 %v2957
        %v3355 = vunpack.c.l.b16 %v2958
        %v3356 = vunpack.c.h.b16 %v2958
        %v3357 = vunpack.c.l.b16 %v2959
        %v3358 = vunpack.c.h.b16 %v2959
        %v3359 = vunpack.c.l.b16 %v2960
        %v3360 = vunpack.c.h.b16 %v2960
        %v3361 = vunpack.c.l.b16 %v2961
        %v3362 = vunpack.c.h.b16 %v2961
        %v3363 = vunpack.c.l.b16 %v2962
        %v3364 = vunpack.c.h.b16 %v2962
        %v3365 = vunpack.c.l.b16 %v2963
        %v3366 = vunpack.c.h.b16 %v2963
        %v3367 = vunpack.c.l.b16 %v2964
        %v3368 = vunpack.c.h.b16 %v2964
        %v3369 = vunpack.c.l.b16 %v2965
        %v3370 = vunpack.c.h.b16 %v2965
        %v3371 = vunpack.c.l.b16 %v2966
        %v3372 = vunpack.c.h.b16 %v2966
        %v3373 = vunpack.c.l.b16 %v2967
        %v3374 = vunpack.c.h.b16 %v2967
        %v3375 = vunpack.c.l.b16 %v2968
        %v3376 = vunpack.c.h.b16 %v2968
        %v3377 = vunpack.c.l.b16 %v2969
        %v3378 = vunpack.c.h.b16 %v2969
        %v3379 = vunpack.c.l.b16 %v2970
        %v3380 = vunpack.c.h.b16 %v2970
        %v3381 = vunpack.c.l.b16 %v2971
        %v3382 = vunpack.c.h.b16 %v2971
        %v3383 = vunpack.c.l.b16 %v2972
        %v3384 = vunpack.c.h.b16 %v2972
        %v3385 = vunpack.c.l.b16 %v2973
        %v3386 = vunpack.c.h.b16 %v2973
        %v3387 = vunpack.c.l.b16 %v2974
        %v3388 = vunpack.c.h.b16 %v2974
        %v3389 = vunpack.c.l.b16 %v2975
        %v3390 = vunpack.c.h.b16 %v2975
        %v3391 = vunpack.c.l.b16 %v2976
        %v3392 = vunpack.c.h.b16 %v2976
        %v3393 = vunpack.c.l.b16 %v2977
        %v3394 = vunpack.c.h.b16 %v2977
        %v3395 = vunpack.c.l.b16 %v2978
        %v3396 = vunpack.c.h.b16 %v2978
        %v3397 = vunpack.c.l.b16 %v2979
        %v3398 = vunpack.c.h.b16 %v2979
        %v3399 = vunpack.c.l.b16 %v2980
        %v3400 = vunpack.c.h.b16 %v2980
        %v3401 = vunpack.c.l.b16 %v2981
        %v3402 = vunpack.c.h.b16 %v2981
        %v3403 = vunpack.c.l.b16 %v2982
        %v3404 = vunpack.c.h.b16 %v2982
        %v3405 = vunpack.c.l.b16 %v2983
        %v3406 = vunpack.c.h.b16 %v2983
        %v3407 = vunpack.c.l.b16 %v2984
        %v3408 = vunpack.c.h.b16 %v2984
        %v3409 = vunpack.c.l.b16 %v2985
        %v3410 = vunpack.c.h.b16 %v2985
        %v3411 = vunpack.c.l.b16 %v2986
        %v3412 = vunpack.c.h.b16 %v2986
        %v3413 = vunpack.c.l.b16 %v2987
        %v3414 = vunpack.c.h.b16 %v2987
        %v3415 = vunpack.c.l.b16 %v2988
        %v3416 = vunpack.c.h.b16 %v2988
        %v3417 = vunpack.c.l.b16 %v2989
        %v3418 = vunpack.c.h.b16 %v2989
        %v3419 = vunpack.c.l.b16 %v2990
        %v3420 = vunpack.c.h.b16 %v2990
        %v3421 = vunpack.c.l.b16 %v2991
        %v3422 = vunpack.c.h.b16 %v2991
        %v3423 = vunpack.c.l.b16 %v2992
        %v3424 = vunpack.c.h.b16 %v2992
        %v3425 = vunpack.c.l.b16 %v2993
        %v3426 = vunpack.c.h.b16 %v2993
        %v3427 = vunpack.c.l.b16 %v2994
        %v3428 = vunpack.c.h.b16 %v2994
        %v3429 = vunpack.c.l.b16 %v2995
        %v3430 = vunpack.c.h.b16 %v2995
        %v3431 = vunpack.c.l.b16 %v2996
        %v3432 = vunpack.c.h.b16 %v2996
        %v3433 = vunpack.c.l.b16 %v2997
        %v3434 = vunpack.c.h.b16 %v2997
        %v3435 = vunpack.c.l.b16 %v2998
        %v3436 = vunpack.c.h.b16 %v2998
        %v3437 = vunpack.c.l.b16 %v2999
        %v3438 = vunpack.c.h.b16 %v2999
        %v3439 = vunpack.c.l.b16 %v3000
        %v3440 = vunpack.c.h.b16 %v3000
        %v3441 = vunpack.c.l.b16 %v3001
        %v3442 = vunpack.c.h.b16 %v3001
        %v3443 = vunpack.c.l.b16 %v3002
        %v3444 = vunpack.c.h.b16 %v3002
        %v3445 = vunpack.c.l.b16 %v3003
        %v3446 = vunpack.c.h.b16 %v3003
        %v3447 = vunpack.c.l.b16 %v3004
        %v3448 = vunpack.c.h.b16 %v3004
        %v3449 = vunpack.c.l.b16 %v3005
        %v3450 = vunpack.c.h.b16 %v3005
        %v3451 = vunpack.c.l.b16 %v3006
        %v3452 = vunpack.c.h.b16 %v3006
        %v3453 = vunpack.c.l.b16 %v3007
        %v3454 = vunpack.c.h.b16 %v3007
        %v3455 = vunpack.c.l.b16 %v3008
        %v3456 = vunpack.c.h.b16 %v3008
        %v3457 = vpack.c.b16 %v3209, %v3201
        %v3458 = vpack.c.b16 %v3210, %v3202
        %v3459 = vpack.c.b16 %v3211, %v3203
        %v3460 = vpack.c.b16 %v3212, %v3204
        %v3461 = vpack.c.b16 %v3213, %v3205
        %v3462 = vpack.c.b16 %v3214, %v3206
        %v3463 = vpack.c.b16 %v3215, %v3207
        %v3464 = vpack.c.b16 %v3216, %v3208
        %v3465 = vpack.c.b16 %v3225, %v3217
        %v3466 = vpack.c.b16 %v3226, %v3218
        %v3467 = vpack.c.b16 %v3227, %v3219
        %v3468 = vpack.c.b16 %v3228, %v3220
        %v3469 = vpack.c.b16 %v3229, %v3221
        %v3470 = vpack.c.b16 %v3230, %v3222
        %v3471 = vpack.c.b16 %v3231, %v3223
        %v3472 = vpack.c.b16 %v3232, %v3224
        %v3473 = vpack.c.b16 %v3241, %v3233
        %v3474 = vpack.c.b16 %v3242, %v3234
        %v3475 = vpack.c.b16 %v3243, %v3235
        %v3476 = vpack.c.b16 %v3244, %v3236
        %v3477 = vpack.c.b16 %v3245, %v3237
        %v3478 = vpack.c.b16 %v3246, %v3238
        %v3479 = vpack.c.b16 %v3247, %v3239
        %v3480 = vpack.c.b16 %v3248, %v3240
        %v3481 = vpack.c.b16 %v3257, %v3249
        %v3482 = vpack.c.b16 %v3258, %v3250
        %v3483 = vpack.c.b16 %v3259, %v3251
        %v3484 = vpack.c.b16 %v3260, %v3252
        %v3485 = vpack.c.b16 %v3261, %v3253
        %v3486 = vpack.c.b16 %v3262, %v3254
        %v3487 = vpack.c.b16 %v3263, %v3255
        %v3488 = vpack.c.b16 %v3264, %v3256
        %v3489 = vpack.c.b16 %v3273, %v3265
        %v3490 = vpack.c.b16 %v3274, %v3266
        %v3491 = vpack.c.b16 %v3275, %v3267
        %v3492 = vpack.c.b16 %v3276, %v3268
        %v3493 = vpack.c.b16 %v3277, %v3269
        %v3494 = vpack.c.b16 %v3278, %v3270
        %v3495 = vpack.c.b16 %v3279, %v3271
        %v3496 = vpack.c.b16 %v3280, %v3272
        %v3497 = vpack.c.b16 %v3289, %v3281
        %v3498 = vpack.c.b16 %v3290, %v3282
        %v3499 = vpack.c.b16 %v3291, %v3283
        %v3500 = vpack.c.b16 %v3292, %v3284
        %v3501 = vpack.c.b16 %v3293, %v3285
        %v3502 = vpack.c.b16 %v3294, %v3286
        %v3503 = vpack.c.b16 %v3295, %v3287
        %v3504 = vpack.c.b16 %v3296, %v3288
        %v3505 = vpack.c.b16 %v3305, %v3297
        %v3506 = vpack.c.b16 %v3306, %v3298
        %v3507 = vpack.c.b16 %v3307, %v3299
        %v3508 = vpack.c.b16 %v3308, %v3300
        %v3509 = vpack.c.b16 %v3309, %v3301
        %v3510 = vpack.c.b16 %v3310, %v3302
        %v3511 = vpack.c.b16 %v3311, %v3303
        %v3512 = vpack.c.b16 %v3312, %v3304
        %v3513 = vpack.c.b16 %v3321, %v3313
        %v3514 = vpack.c.b16 %v3322, %v3314
        %v3515 = vpack.c.b16 %v3323, %v3315
        %v3516 = vpack.c.b16 %v3324, %v3316
        %v3517 = vpack.c.b16 %v3325, %v3317
        %v3518 = vpack.c.b16 %v3326, %v3318
        %v3519 = vpack.c.b16 %v3327, %v3319
        %v3520 = vpack.c.b16 %v3328, %v3320
        %v3521 = vpack.c.b16 %v3337, %v3329
        %v3522 = vpack.c.b16 %v3338, %v3330
        %v3523 = vpack.c.b16 %v3339, %v3331
        %v3524 = vpack.c.b16 %v3340, %v3332
        %v3525 = vpack.c.b16 %v3341, %v3333
        %v3526 = vpack.c.b16 %v3342, %v3334
        %v3527 = vpack.c.b16 %v3343, %v3335
        %v3528 = vpack.c.b16 %v3344, %v3336
        %v3529 = vpack.c.b16 %v3353, %v3345
        %v3530 = vpack.c.b16 %v3354, %v3346
        %v3531 = vpack.c.b16 %v3355, %v3347
        %v3532 = vpack.c.b16 %v3356, %v3348
        %v3533 = vpack.c.b16 %v3357, %v3349
        %v3534 = vpack.c.b16 %v3358, %v3350
        %v3535 = vpack.c.b16 %v3359, %v3351
        %v3536 = vpack.c.b16 %v3360, %v3352
        %v3537 = vpack.c.b16 %v3369, %v3361
        %v3538 = vpack.c.b16 %v3370, %v3362
        %v3539 = vpack.c.b16 %v3371, %v3363
        %v3540 = vpack.c.b16 %v3372, %v3364
        %v3541 = vpack.c.b16 %v3373, %v3365
        %v3542 = vpack.c.b16 %v3374, %v3366
        %v3543 = vpack.c.b16 %v3375, %v3367
        %v3544 = vpack.c.b16 %v3376, %v3368
        %v3545 = vpack.c.b16 %v3385, %v3377
        %v3546 = vpack.c.b16 %v3386, %v3378
        %v3547 = vpack.c.b16 %v3387, %v3379
        %v3548 = vpack.c.b16 %v3388, %v3380
        %v3549 = vpack.c.b16 %v3389, %v3381
        %v3550 = vpack.c.b16 %v3390, %v3382
        %v3551 = vpack.c.b16 %v3391, %v3383
        %v3552 = vpack.c.b16 %v3392, %v3384
        %v3553 = vpack.c.b16 %v3401, %v3393
        %v3554 = vpack.c.b16 %v3402, %v3394
        %v3555 = vpack.c.b16 %v3403, %v3395
        %v3556 = vpack.c.b16 %v3404, %v3396
        %v3557 = vpack.c.b16 %v3405, %v3397
        %v3558 = vpack.c.b16 %v3406, %v3398
        %v3559 = vpack.c.b16 %v3407, %v3399
        %v3560 = vpack.c.b16 %v3408, %v3400
        %v3561 = vpack.c.b16 %v3417, %v3409
        %v3562 = vpack.c.b16 %v3418, %v3410
        %v3563 = vpack.c.b16 %v3419, %v3411
        %v3564 = vpack.c.b16 %v3420, %v3412
        %v3565 = vpack.c.b16 %v3421, %v3413
        %v3566 = vpack.c.b16 %v3422, %v3414
        %v3567 = vpack.c.b16 %v3423, %v3415
        %v3568 = vpack.c.b16 %v3424, %v3416
        %v3569 = vpack.c.b16 %v3433, %v3425
        %v3570 = vpack.c.b16 %v3434, %v3426
        %v3571 = vpack.c.b16 %v3435, %v3427
        %v3572 = vpack.c.b16 %v3436, %v3428
        %v3573 = vpack.c.b16 %v3437, %v3429
        %v3574 = vpack.c.b16 %v3438, %v3430
        %v3575 = vpack.c.b16 %v3439, %v3431
        %v3576 = vpack.c.b16 %v3440, %v3432
        %v3577 = vpack.c.b16 %v3449, %v3441
        %v3578 = vpack.c.b16 %v3450, %v3442
        %v3579 = vpack.c.b16 %v3451, %v3443
        %v3580 = vpack.c.b16 %v3452, %v3444
        %v3581 = vpack.c.b16 %v3453, %v3445
        %v3582 = vpack.c.b16 %v3454, %v3446
        %v3583 = vpack.c.b16 %v3455, %v3447
        %v3584 = vpack.c.b16 %v3456, %v3448
        %3713 = vmatpush.bf16.msra.mxu0 %v3016
        %3714 = vmatpush.bf16.msra.mxu0 %v3015
        %3715 = vmatpush.bf16.msra.mxu0 %v3014
        %3716 = vmatpush.bf16.msra.mxu0 %v3013
        %3717 = vmatpush.bf16.msra.mxu0 %v3012
        %3718 = vmatpush.bf16.msra.mxu0 %v3011
        %3719 = vmatpush.bf16.msra.mxu0 %v3010
        %3720 = vmatpush.bf16.msra.mxu0 %v3009
        %3721 = vmatmul.bf16.gmra.mxu0 %v3457
        %v3722 = vpop.f32.mrf.mxu0
        %v3723 = vadd.f32 0.0, %v3722
        %v3724 = vpop.f32.mrf.mxu0
        %v3725 = vadd.f32 0.0, %v3724
        %3726 = vmatmul.bf16.gmra.mxu0 %v3465
        %v3727 = vpop.f32.mrf.mxu0
        %v3728 = vadd.f32 0.0, %v3727
        %v3729 = vpop.f32.mrf.mxu0
        %v3730 = vadd.f32 0.0, %v3729
        %3731 = vmatmul.bf16.gmra.mxu0 %v3473
        %v3732 = vpop.f32.mrf.mxu0
        %v3733 = vadd.f32 0.0, %v3732
        %v3734 = vpop.f32.mrf.mxu0
        %v3735 = vadd.f32 0.0, %v3734
        %3736 = vmatmul.bf16.gmra.mxu0 %v3481
        %v3737 = vpop.f32.mrf.mxu0
        %v3738 = vadd.f32 0.0, %v3737
        %v3739 = vpop.f32.mrf.mxu0
        %v3740 = vadd.f32 0.0, %v3739
        %3741 = vmatmul.bf16.gmra.mxu0 %v3489
        %v3742 = vpop.f32.mrf.mxu0
        %v3743 = vadd.f32 0.0, %v3742
        %v3744 = vpop.f32.mrf.mxu0
        %v3745 = vadd.f32 0.0, %v3744
        %3746 = vmatmul.bf16.gmra.mxu0 %v3497
        %v3747 = vpop.f32.mrf.mxu0
        %v3748 = vadd.f32 0.0, %v3747
        %v3749 = vpop.f32.mrf.mxu0
        %v3750 = vadd.f32 0.0, %v3749
        %3751 = vmatmul.bf16.gmra.mxu0 %v3505
        %v3752 = vpop.f32.mrf.mxu0
        %v3753 = vadd.f32 0.0, %v3752
        %v3754 = vpop.f32.mrf.mxu0
        %v3755 = vadd.f32 0.0, %v3754
        %3756 = vmatmul.bf16.gmra.mxu0 %v3513
        %v3757 = vpop.f32.mrf.mxu0
        %v3758 = vadd.f32 0.0, %v3757
        %v3759 = vpop.f32.mrf.mxu0
        %v3760 = vadd.f32 0.0, %v3759
        %3761 = vmatmul.bf16.gmra.mxu0 %v3521
        %v3762 = vpop.f32.mrf.mxu0
        %v3763 = vadd.f32 0.0, %v3762
        %v3764 = vpop.f32.mrf.mxu0
        %v3765 = vadd.f32 0.0, %v3764
        %3766 = vmatmul.bf16.gmra.mxu0 %v3529
        %v3767 = vpop.f32.mrf.mxu0
        %v3768 = vadd.f32 0.0, %v3767
        %v3769 = vpop.f32.mrf.mxu0
        %v3770 = vadd.f32 0.0, %v3769
        %3771 = vmatmul.bf16.gmra.mxu0 %v3537
        %v3772 = vpop.f32.mrf.mxu0
        %v3773 = vadd.f32 0.0, %v3772
        %v3774 = vpop.f32.mrf.mxu0
        %v3775 = vadd.f32 0.0, %v3774
        %3776 = vmatmul.bf16.gmra.mxu0 %v3545
        %v3777 = vpop.f32.mrf.mxu0
        %v3778 = vadd.f32 0.0, %v3777
        %v3779 = vpop.f32.mrf.mxu0
        %v3780 = vadd.f32 0.0, %v3779
        %3781 = vmatmul.bf16.gmra.mxu0 %v3553
        %v3782 = vpop.f32.mrf.mxu0
        %v3783 = vadd.f32 0.0, %v3782
        %v3784 = vpop.f32.mrf.mxu0
        %v3785 = vadd.f32 0.0, %v3784
        %3786 = vmatmul.bf16.gmra.mxu0 %v3561
        %v3787 = vpop.f32.mrf.mxu0
        %v3788 = vadd.f32 0.0, %v3787
        %v3789 = vpop.f32.mrf.mxu0
        %v3790 = vadd.f32 0.0, %v3789
        %3791 = vmatmul.bf16.gmra.mxu0 %v3569
        %v3792 = vpop.f32.mrf.mxu0
        %v3793 = vadd.f32 0.0, %v3792
        %v3794 = vpop.f32.mrf.mxu0
        %v3795 = vadd.f32 0.0, %v3794
        %3796 = vmatmul.bf16.gmra.mxu0 %v3577
        %v3797 = vpop.f32.mrf.mxu0
        %v3798 = vadd.f32 0.0, %v3797
        %v3799 = vpop.f32.mrf.mxu0
        %v3800 = vadd.f32 0.0, %v3799
        %3801 = vdwg.mxu0
        %3802 = vmatpush.bf16.msra.mxu0 %v3024
        %3803 = vmatpush.bf16.msra.mxu0 %v3023
        %3804 = vmatpush.bf16.msra.mxu0 %v3022
        %3805 = vmatpush.bf16.msra.mxu0 %v3021
        %3806 = vmatpush.bf16.msra.mxu0 %v3020
        %3807 = vmatpush.bf16.msra.mxu0 %v3019
        %3808 = vmatpush.bf16.msra.mxu0 %v3018
        %3809 = vmatpush.bf16.msra.mxu0 %v3017
        %3810 = vmatmul.bf16.gmra.mxu0 %v3458
        %v3811 = vpop.f32.mrf.mxu0
        %v3812 = vadd.f32 %v3723, %v3811
        %v3813 = vpop.f32.mrf.mxu0
        %v3814 = vadd.f32 %v3725, %v3813
        %3815 = vmatmul.bf16.gmra.mxu0 %v3466
        %v3816 = vpop.f32.mrf.mxu0
        %v3817 = vadd.f32 %v3728, %v3816
        %v3818 = vpop.f32.mrf.mxu0
        %v3819 = vadd.f32 %v3730, %v3818
        %3820 = vmatmul.bf16.gmra.mxu0 %v3474
        %v3821 = vpop.f32.mrf.mxu0
        %v3822 = vadd.f32 %v3733, %v3821
        %v3823 = vpop.f32.mrf.mxu0
        %v3824 = vadd.f32 %v3735, %v3823
        %3825 = vmatmul.bf16.gmra.mxu0 %v3482
        %v3826 = vpop.f32.mrf.mxu0
        %v3827 = vadd.f32 %v3738, %v3826
        %v3828 = vpop.f32.mrf.mxu0
        %v3829 = vadd.f32 %v3740, %v3828
        %3830 = vmatmul.bf16.gmra.mxu0 %v3490
        %v3831 = vpop.f32.mrf.mxu0
        %v3832 = vadd.f32 %v3743, %v3831
        %v3833 = vpop.f32.mrf.mxu0
        %v3834 = vadd.f32 %v3745, %v3833
        %3835 = vmatmul.bf16.gmra.mxu0 %v3498
        %v3836 = vpop.f32.mrf.mxu0
        %v3837 = vadd.f32 %v3748, %v3836
        %v3838 = vpop.f32.mrf.mxu0
        %v3839 = vadd.f32 %v3750, %v3838
        %3840 = vmatmul.bf16.gmra.mxu0 %v3506
        %v3841 = vpop.f32.mrf.mxu0
        %v3842 = vadd.f32 %v3753, %v3841
        %v3843 = vpop.f32.mrf.mxu0
        %v3844 = vadd.f32 %v3755, %v3843
        %3845 = vmatmul.bf16.gmra.mxu0 %v3514
        %v3846 = vpop.f32.mrf.mxu0
        %v3847 = vadd.f32 %v3758, %v3846
        %v3848 = vpop.f32.mrf.mxu0
        %v3849 = vadd.f32 %v3760, %v3848
        %3850 = vmatmul.bf16.gmra.mxu0 %v3522
        %v3851 = vpop.f32.mrf.mxu0
        %v3852 = vadd.f32 %v3763, %v3851
        %v3853 = vpop.f32.mrf.mxu0
        %v3854 = vadd.f32 %v3765, %v3853
        %3855 = vmatmul.bf16.gmra.mxu0 %v3530
        %v3856 = vpop.f32.mrf.mxu0
        %v3857 = vadd.f32 %v3768, %v3856
        %v3858 = vpop.f32.mrf.mxu0
        %v3859 = vadd.f32 %v3770, %v3858
        %3860 = vmatmul.bf16.gmra.mxu0 %v3538
        %v3861 = vpop.f32.mrf.mxu0
        %v3862 = vadd.f32 %v3773, %v3861
        %v3863 = vpop.f32.mrf.mxu0
        %v3864 = vadd.f32 %v3775, %v3863
        %3865 = vmatmul.bf16.gmra.mxu0 %v3546
        %v3866 = vpop.f32.mrf.mxu0
        %v3867 = vadd.f32 %v3778, %v3866
        %v3868 = vpop.f32.mrf.mxu0
        %v3869 = vadd.f32 %v3780, %v3868
        %3870 = vmatmul.bf16.gmra.mxu0 %v3554
        %v3871 = vpop.f32.mrf.mxu0
        %v3872 = vadd.f32 %v3783, %v3871
        %v3873 = vpop.f32.mrf.mxu0
        %v3874 = vadd.f32 %v3785, %v3873
        %3875 = vmatmul.bf16.gmra.mxu0 %v3562
        %v3876 = vpop.f32.mrf.mxu0
        %v3877 = vadd.f32 %v3788, %v3876
        %v3878 = vpop.f32.mrf.mxu0
        %v3879 = vadd.f32 %v3790, %v3878
        %3880 = vmatmul.bf16.gmra.mxu0 %v3570
        %v3881 = vpop.f32.mrf.mxu0
        %v3882 = vadd.f32 %v3793, %v3881
        %v3883 = vpop.f32.mrf.mxu0
        %v3884 = vadd.f32 %v3795, %v3883
        %3885 = vmatmul.bf16.gmra.mxu0 %v3578
        %v3886 = vpop.f32.mrf.mxu0
        %v3887 = vadd.f32 %v3798, %v3886
        %v3888 = vpop.f32.mrf.mxu0
        %v3889 = vadd.f32 %v3800, %v3888
        %3890 = vdwg.mxu0
        %3891 = vmatpush.bf16.msra.mxu0 %v3032
        %3892 = vmatpush.bf16.msra.mxu0 %v3031
        %3893 = vmatpush.bf16.msra.mxu0 %v3030
        %3894 = vmatpush.bf16.msra.mxu0 %v3029
        %3895 = vmatpush.bf16.msra.mxu0 %v3028
        %3896 = vmatpush.bf16.msra.mxu0 %v3027
        %3897 = vmatpush.bf16.msra.mxu0 %v3026
        %3898 = vmatpush.bf16.msra.mxu0 %v3025
        %3899 = vmatmul.bf16.gmra.mxu0 %v3459
        %v3900 = vpop.f32.mrf.mxu0
        %v3901 = vadd.f32 %v3812, %v3900
        %v3902 = vpop.f32.mrf.mxu0
        %v3903 = vadd.f32 %v3814, %v3902
        %3904 = vmatmul.bf16.gmra.mxu0 %v3467
        %v3905 = vpop.f32.mrf.mxu0
        %v3906 = vadd.f32 %v3817, %v3905
        %v3907 = vpop.f32.mrf.mxu0
        %v3908 = vadd.f32 %v3819, %v3907
        %3909 = vmatmul.bf16.gmra.mxu0 %v3475
        %v3910 = vpop.f32.mrf.mxu0
        %v3911 = vadd.f32 %v3822, %v3910
        %v3912 = vpop.f32.mrf.mxu0
        %v3913 = vadd.f32 %v3824, %v3912
        %3914 = vmatmul.bf16.gmra.mxu0 %v3483
        %v3915 = vpop.f32.mrf.mxu0
        %v3916 = vadd.f32 %v3827, %v3915
        %v3917 = vpop.f32.mrf.mxu0
        %v3918 = vadd.f32 %v3829, %v3917
        %3919 = vmatmul.bf16.gmra.mxu0 %v3491
        %v3920 = vpop.f32.mrf.mxu0
        %v3921 = vadd.f32 %v3832, %v3920
        %v3922 = vpop.f32.mrf.mxu0
        %v3923 = vadd.f32 %v3834, %v3922
        %3924 = vmatmul.bf16.gmra.mxu0 %v3499
        %v3925 = vpop.f32.mrf.mxu0
        %v3926 = vadd.f32 %v3837, %v3925
        %v3927 = vpop.f32.mrf.mxu0
        %v3928 = vadd.f32 %v3839, %v3927
        %3929 = vmatmul.bf16.gmra.mxu0 %v3507
        %v3930 = vpop.f32.mrf.mxu0
        %v3931 = vadd.f32 %v3842, %v3930
        %v3932 = vpop.f32.mrf.mxu0
        %v3933 = vadd.f32 %v3844, %v3932
        %3934 = vmatmul.bf16.gmra.mxu0 %v3515
        %v3935 = vpop.f32.mrf.mxu0
        %v3936 = vadd.f32 %v3847, %v3935
        %v3937 = vpop.f32.mrf.mxu0
        %v3938 = vadd.f32 %v3849, %v3937
        %3939 = vmatmul.bf16.gmra.mxu0 %v3523
        %v3940 = vpop.f32.mrf.mxu0
        %v3941 = vadd.f32 %v3852, %v3940
        %v3942 = vpop.f32.mrf.mxu0
        %v3943 = vadd.f32 %v3854, %v3942
        %3944 = vmatmul.bf16.gmra.mxu0 %v3531
        %v3945 = vpop.f32.mrf.mxu0
        %v3946 = vadd.f32 %v3857, %v3945
        %v3947 = vpop.f32.mrf.mxu0
        %v3948 = vadd.f32 %v3859, %v3947
        %3949 = vmatmul.bf16.gmra.mxu0 %v3539
        %v3950 = vpop.f32.mrf.mxu0
        %v3951 = vadd.f32 %v3862, %v3950
        %v3952 = vpop.f32.mrf.mxu0
        %v3953 = vadd.f32 %v3864, %v3952
        %3954 = vmatmul.bf16.gmra.mxu0 %v3547
        %v3955 = vpop.f32.mrf.mxu0
        %v3956 = vadd.f32 %v3867, %v3955
        %v3957 = vpop.f32.mrf.mxu0
        %v3958 = vadd.f32 %v3869, %v3957
        %3959 = vmatmul.bf16.gmra.mxu0 %v3555
        %v3960 = vpop.f32.mrf.mxu0
        %v3961 = vadd.f32 %v3872, %v3960
        %v3962 = vpop.f32.mrf.mxu0
        %v3963 = vadd.f32 %v3874, %v3962
        %3964 = vmatmul.bf16.gmra.mxu0 %v3563
        %v3965 = vpop.f32.mrf.mxu0
        %v3966 = vadd.f32 %v3877, %v3965
        %v3967 = vpop.f32.mrf.mxu0
        %v3968 = vadd.f32 %v3879, %v3967
        %3969 = vmatmul.bf16.gmra.mxu0 %v3571
        %v3970 = vpop.f32.mrf.mxu0
        %v3971 = vadd.f32 %v3882, %v3970
        %v3972 = vpop.f32.mrf.mxu0
        %v3973 = vadd.f32 %v3884, %v3972
        %3974 = vmatmul.bf16.gmra.mxu0 %v3579
        %v3975 = vpop.f32.mrf.mxu0
        %v3976 = vadd.f32 %v3887, %v3975
        %v3977 = vpop.f32.mrf.mxu0
        %v3978 = vadd.f32 %v3889, %v3977
        %3979 = vdwg.mxu0
        %3980 = vmatpush.bf16.msra.mxu0 %v3040
        %3981 = vmatpush.bf16.msra.mxu0 %v3039
        %3982 = vmatpush.bf16.msra.mxu0 %v3038
        %3983 = vmatpush.bf16.msra.mxu0 %v3037
        %3984 = vmatpush.bf16.msra.mxu0 %v3036
        %3985 = vmatpush.bf16.msra.mxu0 %v3035
        %3986 = vmatpush.bf16.msra.mxu0 %v3034
        %3987 = vmatpush.bf16.msra.mxu0 %v3033
        %3988 = vmatmul.bf16.gmra.mxu0 %v3460
        %v3989 = vpop.f32.mrf.mxu0
        %v3990 = vadd.f32 %v3901, %v3989
        %v3991 = vpop.f32.mrf.mxu0
        %v3992 = vadd.f32 %v3903, %v3991
        %3993 = vmatmul.bf16.gmra.mxu0 %v3468
        %v3994 = vpop.f32.mrf.mxu0
        %v3995 = vadd.f32 %v3906, %v3994
        %v3996 = vpop.f32.mrf.mxu0
        %v3997 = vadd.f32 %v3908, %v3996
        %3998 = vmatmul.bf16.gmra.mxu0 %v3476
        %v3999 = vpop.f32.mrf.mxu0
        %v4000 = vadd.f32 %v3911, %v3999
        %v4001 = vpop.f32.mrf.mxu0
        %v4002 = vadd.f32 %v3913, %v4001
        %4003 = vmatmul.bf16.gmra.mxu0 %v3484
        %v4004 = vpop.f32.mrf.mxu0
        %v4005 = vadd.f32 %v3916, %v4004
        %v4006 = vpop.f32.mrf.mxu0
        %v4007 = vadd.f32 %v3918, %v4006
        %4008 = vmatmul.bf16.gmra.mxu0 %v3492
        %v4009 = vpop.f32.mrf.mxu0
        %v4010 = vadd.f32 %v3921, %v4009
        %v4011 = vpop.f32.mrf.mxu0
        %v4012 = vadd.f32 %v3923, %v4011
        %4013 = vmatmul.bf16.gmra.mxu0 %v3500
        %v4014 = vpop.f32.mrf.mxu0
        %v4015 = vadd.f32 %v3926, %v4014
        %v4016 = vpop.f32.mrf.mxu0
        %v4017 = vadd.f32 %v3928, %v4016
        %4018 = vmatmul.bf16.gmra.mxu0 %v3508
        %v4019 = vpop.f32.mrf.mxu0
        %v4020 = vadd.f32 %v3931, %v4019
        %v4021 = vpop.f32.mrf.mxu0
        %v4022 = vadd.f32 %v3933, %v4021
        %4023 = vmatmul.bf16.gmra.mxu0 %v3516
        %v4024 = vpop.f32.mrf.mxu0
        %v4025 = vadd.f32 %v3936, %v4024
        %v4026 = vpop.f32.mrf.mxu0
        %v4027 = vadd.f32 %v3938, %v4026
        %4028 = vmatmul.bf16.gmra.mxu0 %v3524
        %v4029 = vpop.f32.mrf.mxu0
        %v4030 = vadd.f32 %v3941, %v4029
        %v4031 = vpop.f32.mrf.mxu0
        %v4032 = vadd.f32 %v3943, %v4031
        %4033 = vmatmul.bf16.gmra.mxu0 %v3532
        %v4034 = vpop.f32.mrf.mxu0
        %v4035 = vadd.f32 %v3946, %v4034
        %v4036 = vpop.f32.mrf.mxu0
        %v4037 = vadd.f32 %v3948, %v4036
        %4038 = vmatmul.bf16.gmra.mxu0 %v3540
        %v4039 = vpop.f32.mrf.mxu0
        %v4040 = vadd.f32 %v3951, %v4039
        %v4041 = vpop.f32.mrf.mxu0
        %v4042 = vadd.f32 %v3953, %v4041
        %4043 = vmatmul.bf16.gmra.mxu0 %v3548
        %v4044 = vpop.f32.mrf.mxu0
        %v4045 = vadd.f32 %v3956, %v4044
        %v4046 = vpop.f32.mrf.mxu0
        %v4047 = vadd.f32 %v3958, %v4046
        %4048 = vmatmul.bf16.gmra.mxu0 %v3556
        %v4049 = vpop.f32.mrf.mxu0
        %v4050 = vadd.f32 %v3961, %v4049
        %v4051 = vpop.f32.mrf.mxu0
        %v4052 = vadd.f32 %v3963, %v4051
        %4053 = vmatmul.bf16.gmra.mxu0 %v3564
        %v4054 = vpop.f32.mrf.mxu0
        %v4055 = vadd.f32 %v3966, %v4054
        %v4056 = vpop.f32.mrf.mxu0
        %v4057 = vadd.f32 %v3968, %v4056
        %4058 = vmatmul.bf16.gmra.mxu0 %v3572
        %v4059 = vpop.f32.mrf.mxu0
        %v4060 = vadd.f32 %v3971, %v4059
        %v4061 = vpop.f32.mrf.mxu0
        %v4062 = vadd.f32 %v3973, %v4061
        %4063 = vmatmul.bf16.gmra.mxu0 %v3580
        %v4064 = vpop.f32.mrf.mxu0
        %v4065 = vadd.f32 %v3976, %v4064
        %v4066 = vpop.f32.mrf.mxu0
        %v4067 = vadd.f32 %v3978, %v4066
        %4068 = vdwg.mxu0
        %4069 = vmatpush.bf16.msra.mxu0 %v3048
        %4070 = vmatpush.bf16.msra.mxu0 %v3047
        %4071 = vmatpush.bf16.msra.mxu0 %v3046
        %4072 = vmatpush.bf16.msra.mxu0 %v3045
        %4073 = vmatpush.bf16.msra.mxu0 %v3044
        %4074 = vmatpush.bf16.msra.mxu0 %v3043
        %4075 = vmatpush.bf16.msra.mxu0 %v3042
        %4076 = vmatpush.bf16.msra.mxu0 %v3041
        %4077 = vmatmul.bf16.gmra.mxu0 %v3461
        %v4078 = vpop.f32.mrf.mxu0
        %v4079 = vadd.f32 %v3990, %v4078
        %v4080 = vpop.f32.mrf.mxu0
        %v4081 = vadd.f32 %v3992, %v4080
        %4082 = vmatmul.bf16.gmra.mxu0 %v3469
        %v4083 = vpop.f32.mrf.mxu0
        %v4084 = vadd.f32 %v3995, %v4083
        %v4085 = vpop.f32.mrf.mxu0
        %v4086 = vadd.f32 %v3997, %v4085
        %4087 = vmatmul.bf16.gmra.mxu0 %v3477
        %v4088 = vpop.f32.mrf.mxu0
        %v4089 = vadd.f32 %v4000, %v4088
        %v4090 = vpop.f32.mrf.mxu0
        %v4091 = vadd.f32 %v4002, %v4090
        %4092 = vmatmul.bf16.gmra.mxu0 %v3485
        %v4093 = vpop.f32.mrf.mxu0
        %v4094 = vadd.f32 %v4005, %v4093
        %v4095 = vpop.f32.mrf.mxu0
        %v4096 = vadd.f32 %v4007, %v4095
        %4097 = vmatmul.bf16.gmra.mxu0 %v3493
        %v4098 = vpop.f32.mrf.mxu0
        %v4099 = vadd.f32 %v4010, %v4098
        %v4100 = vpop.f32.mrf.mxu0
        %v4101 = vadd.f32 %v4012, %v4100
        %4102 = vmatmul.bf16.gmra.mxu0 %v3501
        %v4103 = vpop.f32.mrf.mxu0
        %v4104 = vadd.f32 %v4015, %v4103
        %v4105 = vpop.f32.mrf.mxu0
        %v4106 = vadd.f32 %v4017, %v4105
        %4107 = vmatmul.bf16.gmra.mxu0 %v3509
        %v4108 = vpop.f32.mrf.mxu0
        %v4109 = vadd.f32 %v4020, %v4108
        %v4110 = vpop.f32.mrf.mxu0
        %v4111 = vadd.f32 %v4022, %v4110
        %4112 = vmatmul.bf16.gmra.mxu0 %v3517
        %v4113 = vpop.f32.mrf.mxu0
        %v4114 = vadd.f32 %v4025, %v4113
        %v4115 = vpop.f32.mrf.mxu0
        %v4116 = vadd.f32 %v4027, %v4115
        %4117 = vmatmul.bf16.gmra.mxu0 %v3525
        %v4118 = vpop.f32.mrf.mxu0
        %v4119 = vadd.f32 %v4030, %v4118
        %v4120 = vpop.f32.mrf.mxu0
        %v4121 = vadd.f32 %v4032, %v4120
        %4122 = vmatmul.bf16.gmra.mxu0 %v3533
        %v4123 = vpop.f32.mrf.mxu0
        %v4124 = vadd.f32 %v4035, %v4123
        %v4125 = vpop.f32.mrf.mxu0
        %v4126 = vadd.f32 %v4037, %v4125
        %4127 = vmatmul.bf16.gmra.mxu0 %v3541
        %v4128 = vpop.f32.mrf.mxu0
        %v4129 = vadd.f32 %v4040, %v4128
        %v4130 = vpop.f32.mrf.mxu0
        %v4131 = vadd.f32 %v4042, %v4130
        %4132 = vmatmul.bf16.gmra.mxu0 %v3549
        %v4133 = vpop.f32.mrf.mxu0
        %v4134 = vadd.f32 %v4045, %v4133
        %v4135 = vpop.f32.mrf.mxu0
        %v4136 = vadd.f32 %v4047, %v4135
        %4137 = vmatmul.bf16.gmra.mxu0 %v3557
        %v4138 = vpop.f32.mrf.mxu0
        %v4139 = vadd.f32 %v4050, %v4138
        %v4140 = vpop.f32.mrf.mxu0
        %v4141 = vadd.f32 %v4052, %v4140
        %4142 = vmatmul.bf16.gmra.mxu0 %v3565
        %v4143 = vpop.f32.mrf.mxu0
        %v4144 = vadd.f32 %v4055, %v4143
        %v4145 = vpop.f32.mrf.mxu0
        %v4146 = vadd.f32 %v4057, %v4145
        %4147 = vmatmul.bf16.gmra.mxu0 %v3573
        %v4148 = vpop.f32.mrf.mxu0
        %v4149 = vadd.f32 %v4060, %v4148
        %v4150 = vpop.f32.mrf.mxu0
        %v4151 = vadd.f32 %v4062, %v4150
        %4152 = vmatmul.bf16.gmra.mxu0 %v3581
        %v4153 = vpop.f32.mrf.mxu0
        %v4154 = vadd.f32 %v4065, %v4153
        %v4155 = vpop.f32.mrf.mxu0
        %v4156 = vadd.f32 %v4067, %v4155
        %4157 = vdwg.mxu0
        %4158 = vmatpush.bf16.msra.mxu0 %v3056
        %4159 = vmatpush.bf16.msra.mxu0 %v3055
        %4160 = vmatpush.bf16.msra.mxu0 %v3054
        %4161 = vmatpush.bf16.msra.mxu0 %v3053
        %4162 = vmatpush.bf16.msra.mxu0 %v3052
        %4163 = vmatpush.bf16.msra.mxu0 %v3051
        %4164 = vmatpush.bf16.msra.mxu0 %v3050
        %4165 = vmatpush.bf16.msra.mxu0 %v3049
        %4166 = vmatmul.bf16.gmra.mxu0 %v3462
        %v4167 = vpop.f32.mrf.mxu0
        %v4168 = vadd.f32 %v4079, %v4167
        %v4169 = vpop.f32.mrf.mxu0
        %v4170 = vadd.f32 %v4081, %v4169
        %4171 = vmatmul.bf16.gmra.mxu0 %v3470
        %v4172 = vpop.f32.mrf.mxu0
        %v4173 = vadd.f32 %v4084, %v4172
        %v4174 = vpop.f32.mrf.mxu0
        %v4175 = vadd.f32 %v4086, %v4174
        %4176 = vmatmul.bf16.gmra.mxu0 %v3478
        %v4177 = vpop.f32.mrf.mxu0
        %v4178 = vadd.f32 %v4089, %v4177
        %v4179 = vpop.f32.mrf.mxu0
        %v4180 = vadd.f32 %v4091, %v4179
        %4181 = vmatmul.bf16.gmra.mxu0 %v3486
        %v4182 = vpop.f32.mrf.mxu0
        %v4183 = vadd.f32 %v4094, %v4182
        %v4184 = vpop.f32.mrf.mxu0
        %v4185 = vadd.f32 %v4096, %v4184
        %4186 = vmatmul.bf16.gmra.mxu0 %v3494
        %v4187 = vpop.f32.mrf.mxu0
        %v4188 = vadd.f32 %v4099, %v4187
        %v4189 = vpop.f32.mrf.mxu0
        %v4190 = vadd.f32 %v4101, %v4189
        %4191 = vmatmul.bf16.gmra.mxu0 %v3502
        %v4192 = vpop.f32.mrf.mxu0
        %v4193 = vadd.f32 %v4104, %v4192
        %v4194 = vpop.f32.mrf.mxu0
        %v4195 = vadd.f32 %v4106, %v4194
        %4196 = vmatmul.bf16.gmra.mxu0 %v3510
        %v4197 = vpop.f32.mrf.mxu0
        %v4198 = vadd.f32 %v4109, %v4197
        %v4199 = vpop.f32.mrf.mxu0
        %v4200 = vadd.f32 %v4111, %v4199
        %4201 = vmatmul.bf16.gmra.mxu0 %v3518
        %v4202 = vpop.f32.mrf.mxu0
        %v4203 = vadd.f32 %v4114, %v4202
        %v4204 = vpop.f32.mrf.mxu0
        %v4205 = vadd.f32 %v4116, %v4204
        %4206 = vmatmul.bf16.gmra.mxu0 %v3526
        %v4207 = vpop.f32.mrf.mxu0
        %v4208 = vadd.f32 %v4119, %v4207
        %v4209 = vpop.f32.mrf.mxu0
        %v4210 = vadd.f32 %v4121, %v4209
        %4211 = vmatmul.bf16.gmra.mxu0 %v3534
        %v4212 = vpop.f32.mrf.mxu0
        %v4213 = vadd.f32 %v4124, %v4212
        %v4214 = vpop.f32.mrf.mxu0
        %v4215 = vadd.f32 %v4126, %v4214
        %4216 = vmatmul.bf16.gmra.mxu0 %v3542
        %v4217 = vpop.f32.mrf.mxu0
        %v4218 = vadd.f32 %v4129, %v4217
        %v4219 = vpop.f32.mrf.mxu0
        %v4220 = vadd.f32 %v4131, %v4219
        %4221 = vmatmul.bf16.gmra.mxu0 %v3550
        %v4222 = vpop.f32.mrf.mxu0
        %v4223 = vadd.f32 %v4134, %v4222
        %v4224 = vpop.f32.mrf.mxu0
        %v4225 = vadd.f32 %v4136, %v4224
        %4226 = vmatmul.bf16.gmra.mxu0 %v3558
        %v4227 = vpop.f32.mrf.mxu0
        %v4228 = vadd.f32 %v4139, %v4227
        %v4229 = vpop.f32.mrf.mxu0
        %v4230 = vadd.f32 %v4141, %v4229
        %4231 = vmatmul.bf16.gmra.mxu0 %v3566
        %v4232 = vpop.f32.mrf.mxu0
        %v4233 = vadd.f32 %v4144, %v4232
        %v4234 = vpop.f32.mrf.mxu0
        %v4235 = vadd.f32 %v4146, %v4234
        %4236 = vmatmul.bf16.gmra.mxu0 %v3574
        %v4237 = vpop.f32.mrf.mxu0
        %v4238 = vadd.f32 %v4149, %v4237
        %v4239 = vpop.f32.mrf.mxu0
        %v4240 = vadd.f32 %v4151, %v4239
        %4241 = vmatmul.bf16.gmra.mxu0 %v3582
        %v4242 = vpop.f32.mrf.mxu0
        %v4243 = vadd.f32 %v4154, %v4242
        %v4244 = vpop.f32.mrf.mxu0
        %v4245 = vadd.f32 %v4156, %v4244
        %4246 = vdwg.mxu0
        %4247 = vmatpush.bf16.msra.mxu0 %v3064
        %4248 = vmatpush.bf16.msra.mxu0 %v3063
        %4249 = vmatpush.bf16.msra.mxu0 %v3062
        %4250 = vmatpush.bf16.msra.mxu0 %v3061
        %4251 = vmatpush.bf16.msra.mxu0 %v3060
        %4252 = vmatpush.bf16.msra.mxu0 %v3059
        %4253 = vmatpush.bf16.msra.mxu0 %v3058
        %4254 = vmatpush.bf16.msra.mxu0 %v3057
        %4255 = vmatmul.bf16.gmra.mxu0 %v3463
        %v4256 = vpop.f32.mrf.mxu0
        %v4257 = vadd.f32 %v4168, %v4256
        %v4258 = vpop.f32.mrf.mxu0
        %v4259 = vadd.f32 %v4170, %v4258
        %4260 = vmatmul.bf16.gmra.mxu0 %v3471
        %v4261 = vpop.f32.mrf.mxu0
        %v4262 = vadd.f32 %v4173, %v4261
        %v4263 = vpop.f32.mrf.mxu0
        %v4264 = vadd.f32 %v4175, %v4263
        %4265 = vmatmul.bf16.gmra.mxu0 %v3479
        %v4266 = vpop.f32.mrf.mxu0
        %v4267 = vadd.f32 %v4178, %v4266
        %v4268 = vpop.f32.mrf.mxu0
        %v4269 = vadd.f32 %v4180, %v4268
        %4270 = vmatmul.bf16.gmra.mxu0 %v3487
        %v4271 = vpop.f32.mrf.mxu0
        %v4272 = vadd.f32 %v4183, %v4271
        %v4273 = vpop.f32.mrf.mxu0
        %v4274 = vadd.f32 %v4185, %v4273
        %4275 = vmatmul.bf16.gmra.mxu0 %v3495
        %v4276 = vpop.f32.mrf.mxu0
        %v4277 = vadd.f32 %v4188, %v4276
        %v4278 = vpop.f32.mrf.mxu0
        %v4279 = vadd.f32 %v4190, %v4278
        %4280 = vmatmul.bf16.gmra.mxu0 %v3503
        %v4281 = vpop.f32.mrf.mxu0
        %v4282 = vadd.f32 %v4193, %v4281
        %v4283 = vpop.f32.mrf.mxu0
        %v4284 = vadd.f32 %v4195, %v4283
        %4285 = vmatmul.bf16.gmra.mxu0 %v3511
        %v4286 = vpop.f32.mrf.mxu0
        %v4287 = vadd.f32 %v4198, %v4286
        %v4288 = vpop.f32.mrf.mxu0
        %v4289 = vadd.f32 %v4200, %v4288
        %4290 = vmatmul.bf16.gmra.mxu0 %v3519
        %v4291 = vpop.f32.mrf.mxu0
        %v4292 = vadd.f32 %v4203, %v4291
        %v4293 = vpop.f32.mrf.mxu0
        %v4294 = vadd.f32 %v4205, %v4293
        %4295 = vmatmul.bf16.gmra.mxu0 %v3527
        %v4296 = vpop.f32.mrf.mxu0
        %v4297 = vadd.f32 %v4208, %v4296
        %v4298 = vpop.f32.mrf.mxu0
        %v4299 = vadd.f32 %v4210, %v4298
        %4300 = vmatmul.bf16.gmra.mxu0 %v3535
        %v4301 = vpop.f32.mrf.mxu0
        %v4302 = vadd.f32 %v4213, %v4301
        %v4303 = vpop.f32.mrf.mxu0
        %v4304 = vadd.f32 %v4215, %v4303
        %4305 = vmatmul.bf16.gmra.mxu0 %v3543
        %v4306 = vpop.f32.mrf.mxu0
        %v4307 = vadd.f32 %v4218, %v4306
        %v4308 = vpop.f32.mrf.mxu0
        %v4309 = vadd.f32 %v4220, %v4308
        %4310 = vmatmul.bf16.gmra.mxu0 %v3551
        %v4311 = vpop.f32.mrf.mxu0
        %v4312 = vadd.f32 %v4223, %v4311
        %v4313 = vpop.f32.mrf.mxu0
        %v4314 = vadd.f32 %v4225, %v4313
        %4315 = vmatmul.bf16.gmra.mxu0 %v3559
        %v4316 = vpop.f32.mrf.mxu0
        %v4317 = vadd.f32 %v4228, %v4316
        %v4318 = vpop.f32.mrf.mxu0
        %v4319 = vadd.f32 %v4230, %v4318
        %4320 = vmatmul.bf16.gmra.mxu0 %v3567
        %v4321 = vpop.f32.mrf.mxu0
        %v4322 = vadd.f32 %v4233, %v4321
        %v4323 = vpop.f32.mrf.mxu0
        %v4324 = vadd.f32 %v4235, %v4323
        %4325 = vmatmul.bf16.gmra.mxu0 %v3575
        %v4326 = vpop.f32.mrf.mxu0
        %v4327 = vadd.f32 %v4238, %v4326
        %v4328 = vpop.f32.mrf.mxu0
        %v4329 = vadd.f32 %v4240, %v4328
        %4330 = vmatmul.bf16.gmra.mxu0 %v3583
        %v4331 = vpop.f32.mrf.mxu0
        %v4332 = vadd.f32 %v4243, %v4331
        %v4333 = vpop.f32.mrf.mxu0
        %v4334 = vadd.f32 %v4245, %v4333
        %4335 = vdwg.mxu0
        %4336 = vmatpush.bf16.msra.mxu0 %v3072
        %4337 = vmatpush.bf16.msra.mxu0 %v3071
        %4338 = vmatpush.bf16.msra.mxu0 %v3070
        %4339 = vmatpush.bf16.msra.mxu0 %v3069
        %4340 = vmatpush.bf16.msra.mxu0 %v3068
        %4341 = vmatpush.bf16.msra.mxu0 %v3067
        %4342 = vmatpush.bf16.msra.mxu0 %v3066
        %4343 = vmatpush.bf16.msra.mxu0 %v3065
        %4344 = vmatmul.bf16.gmra.mxu0 %v3464
        %v4345 = vpop.f32.mrf.mxu0
        %v4346 = vadd.f32 %v4257, %v4345
        %v4347 = vpop.f32.mrf.mxu0
        %v4348 = vadd.f32 %v4259, %v4347
        %4349 = vmatmul.bf16.gmra.mxu0 %v3472
        %v4350 = vpop.f32.mrf.mxu0
        %v4351 = vadd.f32 %v4262, %v4350
        %v4352 = vpop.f32.mrf.mxu0
        %v4353 = vadd.f32 %v4264, %v4352
        %4354 = vmatmul.bf16.gmra.mxu0 %v3480
        %v4355 = vpop.f32.mrf.mxu0
        %v4356 = vadd.f32 %v4267, %v4355
        %v4357 = vpop.f32.mrf.mxu0
        %v4358 = vadd.f32 %v4269, %v4357
        %4359 = vmatmul.bf16.gmra.mxu0 %v3488
        %v4360 = vpop.f32.mrf.mxu0
        %v4361 = vadd.f32 %v4272, %v4360
        %v4362 = vpop.f32.mrf.mxu0
        %v4363 = vadd.f32 %v4274, %v4362
        %4364 = vmatmul.bf16.gmra.mxu0 %v3496
        %v4365 = vpop.f32.mrf.mxu0
        %v4366 = vadd.f32 %v4277, %v4365
        %v4367 = vpop.f32.mrf.mxu0
        %v4368 = vadd.f32 %v4279, %v4367
        %4369 = vmatmul.bf16.gmra.mxu0 %v3504
        %v4370 = vpop.f32.mrf.mxu0
        %v4371 = vadd.f32 %v4282, %v4370
        %v4372 = vpop.f32.mrf.mxu0
        %v4373 = vadd.f32 %v4284, %v4372
        %4374 = vmatmul.bf16.gmra.mxu0 %v3512
        %v4375 = vpop.f32.mrf.mxu0
        %v4376 = vadd.f32 %v4287, %v4375
        %v4377 = vpop.f32.mrf.mxu0
        %v4378 = vadd.f32 %v4289, %v4377
        %4379 = vmatmul.bf16.gmra.mxu0 %v3520
        %v4380 = vpop.f32.mrf.mxu0
        %v4381 = vadd.f32 %v4292, %v4380
        %v4382 = vpop.f32.mrf.mxu0
        %v4383 = vadd.f32 %v4294, %v4382
        %4384 = vmatmul.bf16.gmra.mxu0 %v3528
        %v4385 = vpop.f32.mrf.mxu0
        %v4386 = vadd.f32 %v4297, %v4385
        %v4387 = vpop.f32.mrf.mxu0
        %v4388 = vadd.f32 %v4299, %v4387
        %4389 = vmatmul.bf16.gmra.mxu0 %v3536
        %v4390 = vpop.f32.mrf.mxu0
        %v4391 = vadd.f32 %v4302, %v4390
        %v4392 = vpop.f32.mrf.mxu0
        %v4393 = vadd.f32 %v4304, %v4392
        %4394 = vmatmul.bf16.gmra.mxu0 %v3544
        %v4395 = vpop.f32.mrf.mxu0
        %v4396 = vadd.f32 %v4307, %v4395
        %v4397 = vpop.f32.mrf.mxu0
        %v4398 = vadd.f32 %v4309, %v4397
        %4399 = vmatmul.bf16.gmra.mxu0 %v3552
        %v4400 = vpop.f32.mrf.mxu0
        %v4401 = vadd.f32 %v4312, %v4400
        %v4402 = vpop.f32.mrf.mxu0
        %v4403 = vadd.f32 %v4314, %v4402
        %4404 = vmatmul.bf16.gmra.mxu0 %v3560
        %v4405 = vpop.f32.mrf.mxu0
        %v4406 = vadd.f32 %v4317, %v4405
        %v4407 = vpop.f32.mrf.mxu0
        %v4408 = vadd.f32 %v4319, %v4407
        %4409 = vmatmul.bf16.gmra.mxu0 %v3568
        %v4410 = vpop.f32.mrf.mxu0
        %v4411 = vadd.f32 %v4322, %v4410
        %v4412 = vpop.f32.mrf.mxu0
        %v4413 = vadd.f32 %v4324, %v4412
        %4414 = vmatmul.bf16.gmra.mxu0 %v3576
        %v4415 = vpop.f32.mrf.mxu0
        %v4416 = vadd.f32 %v4327, %v4415
        %v4417 = vpop.f32.mrf.mxu0
        %v4418 = vadd.f32 %v4329, %v4417
        %4419 = vmatmul.bf16.gmra.mxu0 %v3584
        %v4420 = vpop.f32.mrf.mxu0
        %v4421 = vadd.f32 %v4332, %v4420
        %v4422 = vpop.f32.mrf.mxu0
        %v4423 = vadd.f32 %v4334, %v4422
        %4424 = vdwg.mxu0
        %4425 = vst.msk [vmem:[#allocation3] sm:$0xff] %vm2223, 0.0
        %4426 = vst.msk [vmem:[#allocation3 + $0x8] sm:$0xff] %vm2223, 0.0
        %4427 = vst.msk [vmem:[#allocation3 + $0x10] sm:$0xff] %vm2223, 0.0
        %4428 = vst.msk [vmem:[#allocation3 + $0x118] sm:$0xff] %vm2223, 0.0
        %4429 = vst.msk [vmem:[#allocation3 + $0x120] sm:$0xff] %vm2223, 0.0
        %4430 = vst.msk [vmem:[#allocation3 + $0x128] sm:$0xff] %vm2223, 0.0
        %4431 = vst.msk [vmem:[#allocation3 + $0x18] sm:$0xff] %vm2223, %v4346
        %4432 = vst.msk [vmem:[#allocation3 + $0x20] sm:$0xff] %vm2223, %v4348
        %4433 = vst.msk [vmem:[#allocation3 + $0x28] sm:$0xff] %vm2223, %v4351
        %4434 = vst.msk [vmem:[#allocation3 + $0x30] sm:$0xff] %vm2223, %v4353
        %4435 = vst.msk [vmem:[#allocation3 + $0x38] sm:$0xff] %vm2223, %v4356
        %4436 = vst.msk [vmem:[#allocation3 + $0x40] sm:$0xff] %vm2223, %v4358
        %4437 = vst.msk [vmem:[#allocation3 + $0x48] sm:$0xff] %vm2223, %v4361
        %4438 = vst.msk [vmem:[#allocation3 + $0x50] sm:$0xff] %vm2223, %v4363
        %4439 = vst.msk [vmem:[#allocation3 + $0x58] sm:$0xff] %vm2223, %v4366
        %4440 = vst.msk [vmem:[#allocation3 + $0x60] sm:$0xff] %vm2223, %v4368
        %4441 = vst.msk [vmem:[#allocation3 + $0x68] sm:$0xff] %vm2223, %v4371
        %4442 = vst.msk [vmem:[#allocation3 + $0x70] sm:$0xff] %vm2223, %v4373
        %4443 = vst.msk [vmem:[#allocation3 + $0x78] sm:$0xff] %vm2223, %v4376
        %4444 = vst.msk [vmem:[#allocation3 + $0x80] sm:$0xff] %vm2223, %v4378
        %4445 = vst.msk [vmem:[#allocation3 + $0x88] sm:$0xff] %vm2223, %v4381
        %4446 = vst.msk [vmem:[#allocation3 + $0x90] sm:$0xff] %vm2223, %v4383
        %4447 = vst.msk [vmem:[#allocation3 + $0x98] sm:$0xff] %vm2223, %v4386
        %4448 = vst.msk [vmem:[#allocation3 + $0xa0] sm:$0xff] %vm2223, %v4388
        %4449 = vst.msk [vmem:[#allocation3 + $0xa8] sm:$0xff] %vm2223, %v4391
        %4450 = vst.msk [vmem:[#allocation3 + $0xb0] sm:$0xff] %vm2223, %v4393
        %4451 = vst.msk [vmem:[#allocation3 + $0xb8] sm:$0xff] %vm2223, %v4396
        %4452 = vst.msk [vmem:[#allocation3 + $0xc0] sm:$0xff] %vm2223, %v4398
        %4453 = vst.msk [vmem:[#allocation3 + $0xc8] sm:$0xff] %vm2223, %v4401
        %4454 = vst.msk [vmem:[#allocation3 + $0xd0] sm:$0xff] %vm2223, %v4403
        %4455 = vst.msk [vmem:[#allocation3 + $0xd8] sm:$0xff] %vm2223, %v4406
        %4456 = vst.msk [vmem:[#allocation3 + $0xe0] sm:$0xff] %vm2223, %v4408
        %4457 = vst.msk [vmem:[#allocation3 + $0xe8] sm:$0xff] %vm2223, %v4411
        %4458 = vst.msk [vmem:[#allocation3 + $0xf0] sm:$0xff] %vm2223, %v4413
        %4459 = vst.msk [vmem:[#allocation3 + $0xf8] sm:$0xff] %vm2223, %v4416
        %4460 = vst.msk [vmem:[#allocation3 + $0x100] sm:$0xff] %vm2223, %v4418
        %4461 = vst.msk [vmem:[#allocation3 + $0x108] sm:$0xff] %vm2223, %v4421
        %4462 = vst.msk [vmem:[#allocation3 + $0x110] sm:$0xff] %vm2223, %v4423
        %v4463 = vlaneseq
        %v4464 = vshrl.u32 %v4463, 7
        %v4465 = vadd.s32 %v4464, 8
        %v4466 = vadd.s32 %v4464, 16
        %v4467 = vadd.s32 %v4464, 24
        %v4468 = vadd.s32 %v4464, 32
        %v4469 = vadd.s32 %v4464, 40
        %v4470 = vadd.s32 %v4464, 48
        %v4471 = vadd.s32 %v4464, 56
        %v4472 = vadd.s32 %v4464, 64
        %v4473 = vadd.s32 %v4464, 72
        %v4474 = vadd.s32 %v4464, 80
        %v4475 = vadd.s32 %v4464, 88
        %v4476 = vadd.s32 %v4464, 96
        %v4477 = vadd.s32 %v4464, 104
        %v4478 = vadd.s32 %v4464, 112
        %v4479 = vadd.s32 %v4464, 120
        %v4480 = vadd.s32 %v4464, 128
        %v4481 = vadd.s32 %v4464, 136
        %v4482 = vadd.s32 %v4464, 144
        %v4483 = vadd.s32 %v4464, 152
        %v4484 = vadd.s32 %v4464, 160
        %v4485 = vadd.s32 %v4464, 168
        %v4486 = vadd.s32 %v4464, 176
        %v4487 = vadd.s32 %v4464, 184
        %v4488 = vadd.s32 %v4464, 192
        %v4489 = vadd.s32 %v4464, 200
        %v4490 = vadd.s32 %v4464, 208
        %v4491 = vadd.s32 %v4464, 216
        %v4492 = vadd.s32 %v4464, 224
        %v4493 = vadd.s32 %v4464, 232
        %v4494 = vadd.s32 %v4464, 240
        %v4495 = vadd.s32 %v4464, 248
        %v4496 = vand.u32 %v4464, 15
        %v4497 = vand.u32 %v4465, 15
        %v4498 = vand.u32 %v4466, 15
        %v4499 = vand.u32 %v4467, 15
        %v4500 = vand.u32 %v4468, 15
        %v4501 = vand.u32 %v4469, 15
        %v4502 = vand.u32 %v4470, 15
        %v4503 = vand.u32 %v4471, 15
        %v4504 = vand.u32 %v4472, 15
        %v4505 = vand.u32 %v4473, 15
        %v4506 = vand.u32 %v4474, 15
        %v4507 = vand.u32 %v4475, 15
        %v4508 = vand.u32 %v4476, 15
        %v4509 = vand.u32 %v4477, 15
        %v4510 = vand.u32 %v4478, 15
        %v4511 = vand.u32 %v4479, 15
        %v4512 = vand.u32 %v4480, 15
        %v4513 = vand.u32 %v4481, 15
        %v4514 = vand.u32 %v4482, 15
        %v4515 = vand.u32 %v4483, 15
        %v4516 = vand.u32 %v4484, 15
        %v4517 = vand.u32 %v4485, 15
        %v4518 = vand.u32 %v4486, 15
        %v4519 = vand.u32 %v4487, 15
        %v4520 = vand.u32 %v4488, 15
        %v4521 = vand.u32 %v4489, 15
        %v4522 = vand.u32 %v4490, 15
        %v4523 = vand.u32 %v4491, 15
        %v4524 = vand.u32 %v4492, 15
        %v4525 = vand.u32 %v4493, 15
        %v4526 = vand.u32 %v4494, 15
        %v4527 = vand.u32 %v4495, 15
        %vm4528 = vcmp.eq.s32.totalorder %v4496, 0
        %vm4529 = vcmp.eq.s32.totalorder %v4497, 0
        %vm4530 = vcmp.eq.s32.totalorder %v4498, 0
        %vm4531 = vcmp.eq.s32.totalorder %v4499, 0
        %vm4532 = vcmp.eq.s32.totalorder %v4500, 0
        %vm4533 = vcmp.eq.s32.totalorder %v4501, 0
        %vm4534 = vcmp.eq.s32.totalorder %v4502, 0
        %vm4535 = vcmp.eq.s32.totalorder %v4503, 0
        %vm4536 = vcmp.eq.s32.totalorder %v4504, 0
        %vm4537 = vcmp.eq.s32.totalorder %v4505, 0
        %vm4538 = vcmp.eq.s32.totalorder %v4506, 0
        %vm4539 = vcmp.eq.s32.totalorder %v4507, 0
        %vm4540 = vcmp.eq.s32.totalorder %v4508, 0
        %vm4541 = vcmp.eq.s32.totalorder %v4509, 0
        %vm4542 = vcmp.eq.s32.totalorder %v4510, 0
        %vm4543 = vcmp.eq.s32.totalorder %v4511, 0
        %vm4544 = vcmp.eq.s32.totalorder %v4512, 0
        %vm4545 = vcmp.eq.s32.totalorder %v4513, 0
        %vm4546 = vcmp.eq.s32.totalorder %v4514, 0
        %vm4547 = vcmp.eq.s32.totalorder %v4515, 0
        %vm4548 = vcmp.eq.s32.totalorder %v4516, 0
        %vm4549 = vcmp.eq.s32.totalorder %v4517, 0
        %vm4550 = vcmp.eq.s32.totalorder %v4518, 0
        %vm4551 = vcmp.eq.s32.totalorder %v4519, 0
        %vm4552 = vcmp.eq.s32.totalorder %v4520, 0
        %vm4553 = vcmp.eq.s32.totalorder %v4521, 0
        %vm4554 = vcmp.eq.s32.totalorder %v4522, 0
        %vm4555 = vcmp.eq.s32.totalorder %v4523, 0
        %vm4556 = vcmp.eq.s32.totalorder %v4524, 0
        %vm4557 = vcmp.eq.s32.totalorder %v4525, 0
        %vm4558 = vcmp.eq.s32.totalorder %v4526, 0
        %vm4559 = vcmp.eq.s32.totalorder %v4527, 0
        %vm4560 = vcmp.eq.s32.totalorder %v4496, 15
        %vm4561 = vcmp.eq.s32.totalorder %v4497, 15
        %vm4562 = vcmp.eq.s32.totalorder %v4498, 15
        %vm4563 = vcmp.eq.s32.totalorder %v4499, 15
        %vm4564 = vcmp.eq.s32.totalorder %v4500, 15
        %vm4565 = vcmp.eq.s32.totalorder %v4501, 15
        %vm4566 = vcmp.eq.s32.totalorder %v4502, 15
        %vm4567 = vcmp.eq.s32.totalorder %v4503, 15
        %vm4568 = vcmp.eq.s32.totalorder %v4504, 15
        %vm4569 = vcmp.eq.s32.totalorder %v4505, 15
        %vm4570 = vcmp.eq.s32.totalorder %v4506, 15
        %vm4571 = vcmp.eq.s32.totalorder %v4507, 15
        %vm4572 = vcmp.eq.s32.totalorder %v4508, 15
        %vm4573 = vcmp.eq.s32.totalorder %v4509, 15
        %vm4574 = vcmp.eq.s32.totalorder %v4510, 15
        %vm4575 = vcmp.eq.s32.totalorder %v4511, 15
        %vm4576 = vcmp.eq.s32.totalorder %v4512, 15
        %vm4577 = vcmp.eq.s32.totalorder %v4513, 15
        %vm4578 = vcmp.eq.s32.totalorder %v4514, 15
        %vm4579 = vcmp.eq.s32.totalorder %v4515, 15
        %vm4580 = vcmp.eq.s32.totalorder %v4516, 15
        %vm4581 = vcmp.eq.s32.totalorder %v4517, 15
        %vm4582 = vcmp.eq.s32.totalorder %v4518, 15
        %vm4583 = vcmp.eq.s32.totalorder %v4519, 15
        %vm4584 = vcmp.eq.s32.totalorder %v4520, 15
        %vm4585 = vcmp.eq.s32.totalorder %v4521, 15
        %vm4586 = vcmp.eq.s32.totalorder %v4522, 15
        %vm4587 = vcmp.eq.s32.totalorder %v4523, 15
        %vm4588 = vcmp.eq.s32.totalorder %v4524, 15
        %vm4589 = vcmp.eq.s32.totalorder %v4525, 15
        %vm4590 = vcmp.eq.s32.totalorder %v4526, 15
        %vm4591 = vcmp.eq.s32.totalorder %v4527, 15
        %v4592 = vld [vmem:[#allocation3 + $0x7] sm:$0xff]
        %v4593 = vld [vmem:[#allocation3 + $0xf] sm:$0xff]
        %v4594 = vld [vmem:[#allocation3 + $0x17] sm:$0xff]
        %v4595 = vld [vmem:[#allocation3 + $0x1f] sm:$0xff]
        %v4596 = vld [vmem:[#allocation3 + $0x27] sm:$0xff]
        %v4597 = vld [vmem:[#allocation3 + $0x2f] sm:$0xff]
        %v4598 = vld [vmem:[#allocation3 + $0x37] sm:$0xff]
        %v4599 = vld [vmem:[#allocation3 + $0x3f] sm:$0xff]
        %v4600 = vld [vmem:[#allocation3 + $0x47] sm:$0xff]
        %v4601 = vld [vmem:[#allocation3 + $0x4f] sm:$0xff]
        %v4602 = vld [vmem:[#allocation3 + $0x57] sm:$0xff]
        %v4603 = vld [vmem:[#allocation3 + $0x5f] sm:$0xff]
        %v4604 = vld [vmem:[#allocation3 + $0x67] sm:$0xff]
        %v4605 = vld [vmem:[#allocation3 + $0x6f] sm:$0xff]
        %v4606 = vld [vmem:[#allocation3 + $0x77] sm:$0xff]
        %v4607 = vld [vmem:[#allocation3 + $0x7f] sm:$0xff]
        %v4608 = vld [vmem:[#allocation3 + $0x87] sm:$0xff]
        %v4609 = vld [vmem:[#allocation3 + $0x8f] sm:$0xff]
        %v4610 = vld [vmem:[#allocation3 + $0x97] sm:$0xff]
        %v4611 = vld [vmem:[#allocation3 + $0x9f] sm:$0xff]
        %v4612 = vld [vmem:[#allocation3 + $0xa7] sm:$0xff]
        %v4613 = vld [vmem:[#allocation3 + $0xaf] sm:$0xff]
        %v4614 = vld [vmem:[#allocation3 + $0xb7] sm:$0xff]
        %v4615 = vld [vmem:[#allocation3 + $0xbf] sm:$0xff]
        %v4616 = vld [vmem:[#allocation3 + $0xc7] sm:$0xff]
        %v4617 = vld [vmem:[#allocation3 + $0xcf] sm:$0xff]
        %v4618 = vld [vmem:[#allocation3 + $0xd7] sm:$0xff]
        %v4619 = vld [vmem:[#allocation3 + $0xdf] sm:$0xff]
        %v4620 = vld [vmem:[#allocation3 + $0xe7] sm:$0xff]
        %v4621 = vld [vmem:[#allocation3 + $0xef] sm:$0xff]
        %v4622 = vld [vmem:[#allocation3 + $0xf7] sm:$0xff]
        %v4623 = vld [vmem:[#allocation3 + $0xff] sm:$0xff]
        %v4624 = vsel %vm4528, 0.0, %v4592
        %v4625 = vsel %vm4529, 0.0, %v4593
        %v4626 = vsel %vm4530, 0.0, %v4594
        %v4627 = vsel %vm4531, 0.0, %v4595
        %v4628 = vsel %vm4532, 0.0, %v4596
        %v4629 = vsel %vm4533, 0.0, %v4597
        %v4630 = vsel %vm4534, 0.0, %v4598
        %v4631 = vsel %vm4535, 0.0, %v4599
        %v4632 = vsel %vm4536, 0.0, %v4600
        %v4633 = vsel %vm4537, 0.0, %v4601
        %v4634 = vsel %vm4538, 0.0, %v4602
        %v4635 = vsel %vm4539, 0.0, %v4603
        %v4636 = vsel %vm4540, 0.0, %v4604
        %v4637 = vsel %vm4541, 0.0, %v4605
        %v4638 = vsel %vm4542, 0.0, %v4606
        %v4639 = vsel %vm4543, 0.0, %v4607
        %v4640 = vsel %vm4544, 0.0, %v4608
        %v4641 = vsel %vm4545, 0.0, %v4609
        %v4642 = vsel %vm4546, 0.0, %v4610
        %v4643 = vsel %vm4547, 0.0, %v4611
        %v4644 = vsel %vm4548, 0.0, %v4612
        %v4645 = vsel %vm4549, 0.0, %v4613
        %v4646 = vsel %vm4550, 0.0, %v4614
        %v4647 = vsel %vm4551, 0.0, %v4615
        %v4648 = vsel %vm4552, 0.0, %v4616
        %v4649 = vsel %vm4553, 0.0, %v4617
        %v4650 = vsel %vm4554, 0.0, %v4618
        %v4651 = vsel %vm4555, 0.0, %v4619
        %v4652 = vsel %vm4556, 0.0, %v4620
        %v4653 = vsel %vm4557, 0.0, %v4621
        %v4654 = vsel %vm4558, 0.0, %v4622
        %v4655 = vsel %vm4559, 0.0, %v4623
        %v4656 = vpack.c.bf16 %v4625, %v4624
        %v4657 = vpack.c.bf16 %v4627, %v4626
        %v4658 = vpack.c.bf16 %v4629, %v4628
        %v4659 = vpack.c.bf16 %v4631, %v4630
        %v4660 = vpack.c.bf16 %v4633, %v4632
        %v4661 = vpack.c.bf16 %v4635, %v4634
        %v4662 = vpack.c.bf16 %v4637, %v4636
        %v4663 = vpack.c.bf16 %v4639, %v4638
        %v4664 = vpack.c.bf16 %v4641, %v4640
        %v4665 = vpack.c.bf16 %v4643, %v4642
        %v4666 = vpack.c.bf16 %v4645, %v4644
        %v4667 = vpack.c.bf16 %v4647, %v4646
        %v4668 = vpack.c.bf16 %v4649, %v4648
        %v4669 = vpack.c.bf16 %v4651, %v4650
        %v4670 = vpack.c.bf16 %v4653, %v4652
        %v4671 = vpack.c.bf16 %v4655, %v4654
        %v4672 = vld [vmem:[%s3] sm:$0xf]
        %v4673 = vld [vmem:[%s3 + $0x4] sm:$0xf]
        %v4674 = vld [vmem:[%s3 + $0x8] sm:$0xf]
        %v4675 = vld [vmem:[%s3 + $0xc] sm:$0xf]
        %v4676 = vld [vmem:[#allocation3 + $0x8] sm:$0xff]
        %v4677 = vld [vmem:[#allocation3 + $0x10] sm:$0xff]
        %v4678 = vld [vmem:[#allocation3 + $0x18] sm:$0xff]
        %v4679 = vld [vmem:[#allocation3 + $0x20] sm:$0xff]
        %v4680 = vld [vmem:[#allocation3 + $0x28] sm:$0xff]
        %v4681 = vld [vmem:[#allocation3 + $0x30] sm:$0xff]
        %v4682 = vld [vmem:[#allocation3 + $0x38] sm:$0xff]
        %v4683 = vld [vmem:[#allocation3 + $0x40] sm:$0xff]
        %v4684 = vld [vmem:[#allocation3 + $0x48] sm:$0xff]
        %v4685 = vld [vmem:[#allocation3 + $0x50] sm:$0xff]
        %v4686 = vld [vmem:[#allocation3 + $0x58] sm:$0xff]
        %v4687 = vld [vmem:[#allocation3 + $0x60] sm:$0xff]
        %v4688 = vld [vmem:[#allocation3 + $0x68] sm:$0xff]
        %v4689 = vld [vmem:[#allocation3 + $0x70] sm:$0xff]
        %v4690 = vld [vmem:[#allocation3 + $0x78] sm:$0xff]
        %v4691 = vld [vmem:[#allocation3 + $0x80] sm:$0xff]
        %v4692 = vld [vmem:[#allocation3 + $0x88] sm:$0xff]
        %v4693 = vld [vmem:[#allocation3 + $0x90] sm:$0xff]
        %v4694 = vld [vmem:[#allocation3 + $0x98] sm:$0xff]
        %v4695 = vld [vmem:[#allocation3 + $0xa0] sm:$0xff]
        %v4696 = vld [vmem:[#allocation3 + $0xa8] sm:$0xff]
        %v4697 = vld [vmem:[#allocation3 + $0xb0] sm:$0xff]
        %v4698 = vld [vmem:[#allocation3 + $0xb8] sm:$0xff]
        %v4699 = vld [vmem:[#allocation3 + $0xc0] sm:$0xff]
        %v4700 = vld [vmem:[#allocation3 + $0xc8] sm:$0xff]
        %v4701 = vld [vmem:[#allocation3 + $0xd0] sm:$0xff]
        %v4702 = vld [vmem:[#allocation3 + $0xd8] sm:$0xff]
        %v4703 = vld [vmem:[#allocation3 + $0xe0] sm:$0xff]
        %v4704 = vld [vmem:[#allocation3 + $0xe8] sm:$0xff]
        %v4705 = vld [vmem:[#allocation3 + $0xf0] sm:$0xff]
        %v4706 = vld [vmem:[#allocation3 + $0xf8] sm:$0xff]
        %v4707 = vld [vmem:[#allocation3 + $0x100] sm:$0xff]
        %v4708 = vpack.c.bf16 %v4677, %v4676
        %v4709 = vpack.c.bf16 %v4679, %v4678
        %v4710 = vpack.c.bf16 %v4681, %v4680
        %v4711 = vpack.c.bf16 %v4683, %v4682
        %v4712 = vpack.c.bf16 %v4685, %v4684
        %v4713 = vpack.c.bf16 %v4687, %v4686
        %v4714 = vpack.c.bf16 %v4689, %v4688
        %v4715 = vpack.c.bf16 %v4691, %v4690
        %v4716 = vpack.c.bf16 %v4693, %v4692
        %v4717 = vpack.c.bf16 %v4695, %v4694
        %v4718 = vpack.c.bf16 %v4697, %v4696
        %v4719 = vpack.c.bf16 %v4699, %v4698
        %v4720 = vpack.c.bf16 %v4701, %v4700
        %v4721 = vpack.c.bf16 %v4703, %v4702
        %v4722 = vpack.c.bf16 %v4705, %v4704
        %v4723 = vpack.c.bf16 %v4707, %v4706
        %s4724 = scalar_lea.vmem %s3, 16
        %v4725 = vld [vmem:[%s4724] sm:$0xf]
        %v4726 = vld [vmem:[%s4724 + $0x4] sm:$0xf]
        %v4727 = vld [vmem:[%s4724 + $0x8] sm:$0xf]
        %v4728 = vld [vmem:[%s4724 + $0xc] sm:$0xf]
        %v4733 = vunpack.c.l.b16 %v4725
        %v4734 = vunpack.c.l.b16 %v4726
        %v4735 = vunpack.c.l.b16 %v4727
        %v4736 = vunpack.c.l.b16 %v4728
        %v4737 = vpack.c.b16 %v4734, %v4733
        %v4738 = vpack.c.b16 %v4736, %v4735
        %v4742 = vsel %vm2223, %v4708, 0
        %v4745 = vsel %vm2223, %v4709, 0
        %v4748 = vsel %vm2223, %v4710, 0
        %v4751 = vsel %vm2223, %v4711, 0
        %v4754 = vsel %vm2223, %v4712, 0
        %v4757 = vsel %vm2223, %v4713, 0
        %v4760 = vsel %vm2223, %v4714, 0
        %v4763 = vsel %vm2223, %v4715, 0
        %v4766 = vsel %vm2223, %v4716, 0
        %v4769 = vsel %vm2223, %v4717, 0
        %v4772 = vsel %vm2223, %v4718, 0
        %v4775 = vsel %vm2223, %v4719, 0
        %v4778 = vsel %vm2223, %v4720, 0
        %v4781 = vsel %vm2223, %v4721, 0
        %v4784 = vsel %vm2223, %v4722, 0
        %v4787 = vsel %vm2223, %v4723, 0
        %4789 = vmatpush.bf16.msra.mxu0 0
        %4790 = vmatpush.bf16.msra.mxu0 0
        %4791 = vmatpush.bf16.msra.mxu0 0
        %4792 = vmatpush.bf16.msra.mxu0 0
        %4793 = vmatpush.bf16.msra.mxu0 0
        %4794 = vmatpush.bf16.msra.mxu0 0
        %4795 = vmatpush.bf16.msra.mxu0 %v4738
        %4796 = vmatpush.bf16.msra.mxu0 %v4737
        %4797 = vmatmul.bf16.gmra.mxu0 %v4742
        %v4798 = vpop.f32.mrf.mxu0
        %v4799 = vadd.f32 0.0, %v4798
        %v4800 = vpop.f32.mrf.mxu0
        %v4801 = vadd.f32 0.0, %v4800
        %4802 = vmatmul.bf16.gmra.mxu0 %v4745
        %v4803 = vpop.f32.mrf.mxu0
        %v4804 = vadd.f32 0.0, %v4803
        %v4805 = vpop.f32.mrf.mxu0
        %v4806 = vadd.f32 0.0, %v4805
        %4807 = vmatmul.bf16.gmra.mxu0 %v4748
        %v4808 = vpop.f32.mrf.mxu0
        %v4809 = vadd.f32 0.0, %v4808
        %v4810 = vpop.f32.mrf.mxu0
        %v4811 = vadd.f32 0.0, %v4810
        %4812 = vmatmul.bf16.gmra.mxu0 %v4751
        %v4813 = vpop.f32.mrf.mxu0
        %v4814 = vadd.f32 0.0, %v4813
        %v4815 = vpop.f32.mrf.mxu0
        %v4816 = vadd.f32 0.0, %v4815
        %4817 = vmatmul.bf16.gmra.mxu0 %v4754
        %v4818 = vpop.f32.mrf.mxu0
        %v4819 = vadd.f32 0.0, %v4818
        %v4820 = vpop.f32.mrf.mxu0
        %v4821 = vadd.f32 0.0, %v4820
        %4822 = vmatmul.bf16.gmra.mxu0 %v4757
        %v4823 = vpop.f32.mrf.mxu0
        %v4824 = vadd.f32 0.0, %v4823
        %v4825 = vpop.f32.mrf.mxu0
        %v4826 = vadd.f32 0.0, %v4825
        %4827 = vmatmul.bf16.gmra.mxu0 %v4760
        %v4828 = vpop.f32.mrf.mxu0
        %v4829 = vadd.f32 0.0, %v4828
        %v4830 = vpop.f32.mrf.mxu0
        %v4831 = vadd.f32 0.0, %v4830
        %4832 = vmatmul.bf16.gmra.mxu0 %v4763
        %v4833 = vpop.f32.mrf.mxu0
        %v4834 = vadd.f32 0.0, %v4833
        %v4835 = vpop.f32.mrf.mxu0
        %v4836 = vadd.f32 0.0, %v4835
        %4837 = vmatmul.bf16.gmra.mxu0 %v4766
        %v4838 = vpop.f32.mrf.mxu0
        %v4839 = vadd.f32 0.0, %v4838
        %v4840 = vpop.f32.mrf.mxu0
        %v4841 = vadd.f32 0.0, %v4840
        %4842 = vmatmul.bf16.gmra.mxu0 %v4769
        %v4843 = vpop.f32.mrf.mxu0
        %v4844 = vadd.f32 0.0, %v4843
        %v4845 = vpop.f32.mrf.mxu0
        %v4846 = vadd.f32 0.0, %v4845
        %4847 = vmatmul.bf16.gmra.mxu0 %v4772
        %v4848 = vpop.f32.mrf.mxu0
        %v4849 = vadd.f32 0.0, %v4848
        %v4850 = vpop.f32.mrf.mxu0
        %v4851 = vadd.f32 0.0, %v4850
        %4852 = vmatmul.bf16.gmra.mxu0 %v4775
        %v4853 = vpop.f32.mrf.mxu0
        %v4854 = vadd.f32 0.0, %v4853
        %v4855 = vpop.f32.mrf.mxu0
        %v4856 = vadd.f32 0.0, %v4855
        %4857 = vmatmul.bf16.gmra.mxu0 %v4778
        %v4858 = vpop.f32.mrf.mxu0
        %v4859 = vadd.f32 0.0, %v4858
        %v4860 = vpop.f32.mrf.mxu0
        %v4861 = vadd.f32 0.0, %v4860
        %4862 = vmatmul.bf16.gmra.mxu0 %v4781
        %v4863 = vpop.f32.mrf.mxu0
        %v4864 = vadd.f32 0.0, %v4863
        %v4865 = vpop.f32.mrf.mxu0
        %v4866 = vadd.f32 0.0, %v4865
        %4867 = vmatmul.bf16.gmra.mxu0 %v4784
        %v4868 = vpop.f32.mrf.mxu0
        %v4869 = vadd.f32 0.0, %v4868
        %v4870 = vpop.f32.mrf.mxu0
        %v4871 = vadd.f32 0.0, %v4870
        %4872 = vmatmul.bf16.gmra.mxu0 %v4787
        %v4873 = vpop.f32.mrf.mxu0
        %v4874 = vadd.f32 0.0, %v4873
        %v4875 = vpop.f32.mrf.mxu0
        %v4876 = vadd.f32 0.0, %v4875
        %4877 = vdwg.mxu0
        %v4882 = vunpack.c.l.b16 %v4672
        %v4883 = vunpack.c.l.b16 %v4673
        %v4884 = vunpack.c.l.b16 %v4674
        %v4885 = vunpack.c.l.b16 %v4675
        %v4886 = vpack.c.b16 %v4883, %v4882
        %v4887 = vpack.c.b16 %v4885, %v4884
        %v4891 = vsel %vm2223, %v4656, 0
        %v4894 = vsel %vm2223, %v4657, 0
        %v4897 = vsel %vm2223, %v4658, 0
        %v4900 = vsel %vm2223, %v4659, 0
        %v4903 = vsel %vm2223, %v4660, 0
        %v4906 = vsel %vm2223, %v4661, 0
        %v4909 = vsel %vm2223, %v4662, 0
        %v4912 = vsel %vm2223, %v4663, 0
        %v4915 = vsel %vm2223, %v4664, 0
        %v4918 = vsel %vm2223, %v4665, 0
        %v4921 = vsel %vm2223, %v4666, 0
        %v4924 = vsel %vm2223, %v4667, 0
        %v4927 = vsel %vm2223, %v4668, 0
        %v4930 = vsel %vm2223, %v4669, 0
        %v4933 = vsel %vm2223, %v4670, 0
        %v4936 = vsel %vm2223, %v4671, 0
        %4938 = vmatpush.bf16.msra.mxu0 0
        %4939 = vmatpush.bf16.msra.mxu0 0
        %4940 = vmatpush.bf16.msra.mxu0 0
        %4941 = vmatpush.bf16.msra.mxu0 0
        %4942 = vmatpush.bf16.msra.mxu0 0
        %4943 = vmatpush.bf16.msra.mxu0 0
        %4944 = vmatpush.bf16.msra.mxu0 %v4887
        %4945 = vmatpush.bf16.msra.mxu0 %v4886
        %4946 = vmatmul.bf16.gmra.mxu0 %v4891
        %v4947 = vpop.f32.mrf.mxu0
        %v4948 = vadd.f32 %v4799, %v4947
        %v4949 = vpop.f32.mrf.mxu0
        %v4950 = vadd.f32 %v4801, %v4949
        %4951 = vmatmul.bf16.gmra.mxu0 %v4894
        %v4952 = vpop.f32.mrf.mxu0
        %v4953 = vadd.f32 %v4804, %v4952
        %v4954 = vpop.f32.mrf.mxu0
        %v4955 = vadd.f32 %v4806, %v4954
        %4956 = vmatmul.bf16.gmra.mxu0 %v4897
        %v4957 = vpop.f32.mrf.mxu0
        %v4958 = vadd.f32 %v4809, %v4957
        %v4959 = vpop.f32.mrf.mxu0
        %v4960 = vadd.f32 %v4811, %v4959
        %4961 = vmatmul.bf16.gmra.mxu0 %v4900
        %v4962 = vpop.f32.mrf.mxu0
        %v4963 = vadd.f32 %v4814, %v4962
        %v4964 = vpop.f32.mrf.mxu0
        %v4965 = vadd.f32 %v4816, %v4964
        %4966 = vmatmul.bf16.gmra.mxu0 %v4903
        %v4967 = vpop.f32.mrf.mxu0
        %v4968 = vadd.f32 %v4819, %v4967
        %v4969 = vpop.f32.mrf.mxu0
        %v4970 = vadd.f32 %v4821, %v4969
        %4971 = vmatmul.bf16.gmra.mxu0 %v4906
        %v4972 = vpop.f32.mrf.mxu0
        %v4973 = vadd.f32 %v4824, %v4972
        %v4974 = vpop.f32.mrf.mxu0
        %v4975 = vadd.f32 %v4826, %v4974
        %4976 = vmatmul.bf16.gmra.mxu0 %v4909
        %v4977 = vpop.f32.mrf.mxu0
        %v4978 = vadd.f32 %v4829, %v4977
        %v4979 = vpop.f32.mrf.mxu0
        %v4980 = vadd.f32 %v4831, %v4979
        %4981 = vmatmul.bf16.gmra.mxu0 %v4912
        %v4982 = vpop.f32.mrf.mxu0
        %v4983 = vadd.f32 %v4834, %v4982
        %v4984 = vpop.f32.mrf.mxu0
        %v4985 = vadd.f32 %v4836, %v4984
        %4986 = vmatmul.bf16.gmra.mxu0 %v4915
        %v4987 = vpop.f32.mrf.mxu0
        %v4988 = vadd.f32 %v4839, %v4987
        %v4989 = vpop.f32.mrf.mxu0
        %v4990 = vadd.f32 %v4841, %v4989
        %4991 = vmatmul.bf16.gmra.mxu0 %v4918
        %v4992 = vpop.f32.mrf.mxu0
        %v4993 = vadd.f32 %v4844, %v4992
        %v4994 = vpop.f32.mrf.mxu0
        %v4995 = vadd.f32 %v4846, %v4994
        %4996 = vmatmul.bf16.gmra.mxu0 %v4921
        %v4997 = vpop.f32.mrf.mxu0
        %v4998 = vadd.f32 %v4849, %v4997
        %v4999 = vpop.f32.mrf.mxu0
        %v5000 = vadd.f32 %v4851, %v4999
        %5001 = vmatmul.bf16.gmra.mxu0 %v4924
        %v5002 = vpop.f32.mrf.mxu0
        %v5003 = vadd.f32 %v4854, %v5002
        %v5004 = vpop.f32.mrf.mxu0
        %v5005 = vadd.f32 %v4856, %v5004
        %5006 = vmatmul.bf16.gmra.mxu0 %v4927
        %v5007 = vpop.f32.mrf.mxu0
        %v5008 = vadd.f32 %v4859, %v5007
        %v5009 = vpop.f32.mrf.mxu0
        %v5010 = vadd.f32 %v4861, %v5009
        %5011 = vmatmul.bf16.gmra.mxu0 %v4930
        %v5012 = vpop.f32.mrf.mxu0
        %v5013 = vadd.f32 %v4864, %v5012
        %v5014 = vpop.f32.mrf.mxu0
        %v5015 = vadd.f32 %v4866, %v5014
        %5016 = vmatmul.bf16.gmra.mxu0 %v4933
        %v5017 = vpop.f32.mrf.mxu0
        %v5018 = vadd.f32 %v4869, %v5017
        %v5019 = vpop.f32.mrf.mxu0
        %v5020 = vadd.f32 %v4871, %v5019
        %5021 = vmatmul.bf16.gmra.mxu0 %v4936
        %v5022 = vpop.f32.mrf.mxu0
        %v5023 = vadd.f32 %v4874, %v5022
        %v5024 = vpop.f32.mrf.mxu0
        %v5025 = vadd.f32 %v4876, %v5024
        %5026 = vdwg.mxu0
        %v5027 = vld [vmem:[#allocation3 + $0x9] sm:$0xff]
        %v5028 = vld [vmem:[#allocation3 + $0x11] sm:$0xff]
        %v5029 = vld [vmem:[#allocation3 + $0x19] sm:$0xff]
        %v5030 = vld [vmem:[#allocation3 + $0x21] sm:$0xff]
        %v5031 = vld [vmem:[#allocation3 + $0x29] sm:$0xff]
        %v5032 = vld [vmem:[#allocation3 + $0x31] sm:$0xff]
        %v5033 = vld [vmem:[#allocation3 + $0x39] sm:$0xff]
        %v5034 = vld [vmem:[#allocation3 + $0x41] sm:$0xff]
        %v5035 = vld [vmem:[#allocation3 + $0x49] sm:$0xff]
        %v5036 = vld [vmem:[#allocation3 + $0x51] sm:$0xff]
        %v5037 = vld [vmem:[#allocation3 + $0x59] sm:$0xff]
        %v5038 = vld [vmem:[#allocation3 + $0x61] sm:$0xff]
        %v5039 = vld [vmem:[#allocation3 + $0x69] sm:$0xff]
        %v5040 = vld [vmem:[#allocation3 + $0x71] sm:$0xff]
        %v5041 = vld [vmem:[#allocation3 + $0x79] sm:$0xff]
        %v5042 = vld [vmem:[#allocation3 + $0x81] sm:$0xff]
        %v5043 = vld [vmem:[#allocation3 + $0x89] sm:$0xff]
        %v5044 = vld [vmem:[#allocation3 + $0x91] sm:$0xff]
        %v5045 = vld [vmem:[#allocation3 + $0x99] sm:$0xff]
        %v5046 = vld [vmem:[#allocation3 + $0xa1] sm:$0xff]
        %v5047 = vld [vmem:[#allocation3 + $0xa9] sm:$0xff]
        %v5048 = vld [vmem:[#allocation3 + $0xb1] sm:$0xff]
        %v5049 = vld [vmem:[#allocation3 + $0xb9] sm:$0xff]
        %v5050 = vld [vmem:[#allocation3 + $0xc1] sm:$0xff]
        %v5051 = vld [vmem:[#allocation3 + $0xc9] sm:$0xff]
        %v5052 = vld [vmem:[#allocation3 + $0xd1] sm:$0xff]
        %v5053 = vld [vmem:[#allocation3 + $0xd9] sm:$0xff]
        %v5054 = vld [vmem:[#allocation3 + $0xe1] sm:$0xff]
        %v5055 = vld [vmem:[#allocation3 + $0xe9] sm:$0xff]
        %v5056 = vld [vmem:[#allocation3 + $0xf1] sm:$0xff]
        %v5057 = vld [vmem:[#allocation3 + $0xf9] sm:$0xff]
        %v5058 = vld [vmem:[#allocation3 + $0x101] sm:$0xff]
        %v5059 = vsel %vm4560, 0.0, %v5027
        %v5060 = vsel %vm4561, 0.0, %v5028
        %v5061 = vsel %vm4562, 0.0, %v5029
        %v5062 = vsel %vm4563, 0.0, %v5030
        %v5063 = vsel %vm4564, 0.0, %v5031
        %v5064 = vsel %vm4565, 0.0, %v5032
        %v5065 = vsel %vm4566, 0.0, %v5033
        %v5066 = vsel %vm4567, 0.0, %v5034
        %v5067 = vsel %vm4568, 0.0, %v5035
        %v5068 = vsel %vm4569, 0.0, %v5036
        %v5069 = vsel %vm4570, 0.0, %v5037
        %v5070 = vsel %vm4571, 0.0, %v5038
        %v5071 = vsel %vm4572, 0.0, %v5039
        %v5072 = vsel %vm4573, 0.0, %v5040
        %v5073 = vsel %vm4574, 0.0, %v5041
        %v5074 = vsel %vm4575, 0.0, %v5042
        %v5075 = vsel %vm4576, 0.0, %v5043
        %v5076 = vsel %vm4577, 0.0, %v5044
        %v5077 = vsel %vm4578, 0.0, %v5045
        %v5078 = vsel %vm4579, 0.0, %v5046
        %v5079 = vsel %vm4580, 0.0, %v5047
        %v5080 = vsel %vm4581, 0.0, %v5048
        %v5081 = vsel %vm4582, 0.0, %v5049
        %v5082 = vsel %vm4583, 0.0, %v5050
        %v5083 = vsel %vm4584, 0.0, %v5051
        %v5084 = vsel %vm4585, 0.0, %v5052
        %v5085 = vsel %vm4586, 0.0, %v5053
        %v5086 = vsel %vm4587, 0.0, %v5054
        %v5087 = vsel %vm4588, 0.0, %v5055
        %v5088 = vsel %vm4589, 0.0, %v5056
        %v5089 = vsel %vm4590, 0.0, %v5057
        %v5090 = vsel %vm4591, 0.0, %v5058
        %v5091 = vpack.c.bf16 %v5060, %v5059
        %v5092 = vpack.c.bf16 %v5062, %v5061
        %v5093 = vpack.c.bf16 %v5064, %v5063
        %v5094 = vpack.c.bf16 %v5066, %v5065
        %v5095 = vpack.c.bf16 %v5068, %v5067
        %v5096 = vpack.c.bf16 %v5070, %v5069
        %v5097 = vpack.c.bf16 %v5072, %v5071
        %v5098 = vpack.c.bf16 %v5074, %v5073
        %v5099 = vpack.c.bf16 %v5076, %v5075
        %v5100 = vpack.c.bf16 %v5078, %v5077
        %v5101 = vpack.c.bf16 %v5080, %v5079
        %v5102 = vpack.c.bf16 %v5082, %v5081
        %v5103 = vpack.c.bf16 %v5084, %v5083
        %v5104 = vpack.c.bf16 %v5086, %v5085
        %v5105 = vpack.c.bf16 %v5088, %v5087
        %v5106 = vpack.c.bf16 %v5090, %v5089
        %s5107 = scalar_lea.vmem %s3, 32
        %v5108 = vld [vmem:[%s5107] sm:$0xf]
        %v5109 = vld [vmem:[%s5107 + $0x4] sm:$0xf]
        %v5110 = vld [vmem:[%s5107 + $0x8] sm:$0xf]
        %v5111 = vld [vmem:[%s5107 + $0xc] sm:$0xf]
        %v5116 = vunpack.c.l.b16 %v5108
        %v5117 = vunpack.c.l.b16 %v5109
        %v5118 = vunpack.c.l.b16 %v5110
        %v5119 = vunpack.c.l.b16 %v5111
        %v5120 = vpack.c.b16 %v5117, %v5116
        %v5121 = vpack.c.b16 %v5119, %v5118
        %v5125 = vsel %vm2223, %v5091, 0
        %v5128 = vsel %vm2223, %v5092, 0
        %v5131 = vsel %vm2223, %v5093, 0
        %v5134 = vsel %vm2223, %v5094, 0
        %v5137 = vsel %vm2223, %v5095, 0
        %v5140 = vsel %vm2223, %v5096, 0
        %v5143 = vsel %vm2223, %v5097, 0
        %v5146 = vsel %vm2223, %v5098, 0
        %v5149 = vsel %vm2223, %v5099, 0
        %v5152 = vsel %vm2223, %v5100, 0
        %v5155 = vsel %vm2223, %v5101, 0
        %v5158 = vsel %vm2223, %v5102, 0
        %v5161 = vsel %vm2223, %v5103, 0
        %v5164 = vsel %vm2223, %v5104, 0
        %v5167 = vsel %vm2223, %v5105, 0
        %v5170 = vsel %vm2223, %v5106, 0
        %5172 = vmatpush.bf16.msra.mxu0 0
        %5173 = vmatpush.bf16.msra.mxu0 0
        %5174 = vmatpush.bf16.msra.mxu0 0
        %5175 = vmatpush.bf16.msra.mxu0 0
        %5176 = vmatpush.bf16.msra.mxu0 0
        %5177 = vmatpush.bf16.msra.mxu0 0
        %5178 = vmatpush.bf16.msra.mxu0 %v5121
        %5179 = vmatpush.bf16.msra.mxu0 %v5120
        %5180 = vmatmul.bf16.gmra.mxu0 %v5125
        %v5181 = vpop.f32.mrf.mxu0
        %v5182 = vadd.f32 0.0, %v5181
        %v5183 = vpop.f32.mrf.mxu0
        %v5184 = vadd.f32 0.0, %v5183
        %5185 = vmatmul.bf16.gmra.mxu0 %v5128
        %v5186 = vpop.f32.mrf.mxu0
        %v5187 = vadd.f32 0.0, %v5186
        %v5188 = vpop.f32.mrf.mxu0
        %v5189 = vadd.f32 0.0, %v5188
        %5190 = vmatmul.bf16.gmra.mxu0 %v5131
        %v5191 = vpop.f32.mrf.mxu0
        %v5192 = vadd.f32 0.0, %v5191
        %v5193 = vpop.f32.mrf.mxu0
        %v5194 = vadd.f32 0.0, %v5193
        %5195 = vmatmul.bf16.gmra.mxu0 %v5134
        %v5196 = vpop.f32.mrf.mxu0
        %v5197 = vadd.f32 0.0, %v5196
        %v5198 = vpop.f32.mrf.mxu0
        %v5199 = vadd.f32 0.0, %v5198
        %5200 = vmatmul.bf16.gmra.mxu0 %v5137
        %v5201 = vpop.f32.mrf.mxu0
        %v5202 = vadd.f32 0.0, %v5201
        %v5203 = vpop.f32.mrf.mxu0
        %v5204 = vadd.f32 0.0, %v5203
        %5205 = vmatmul.bf16.gmra.mxu0 %v5140
        %v5206 = vpop.f32.mrf.mxu0
        %v5207 = vadd.f32 0.0, %v5206
        %v5208 = vpop.f32.mrf.mxu0
        %v5209 = vadd.f32 0.0, %v5208
        %5210 = vmatmul.bf16.gmra.mxu0 %v5143
        %v5211 = vpop.f32.mrf.mxu0
        %v5212 = vadd.f32 0.0, %v5211
        %v5213 = vpop.f32.mrf.mxu0
        %v5214 = vadd.f32 0.0, %v5213
        %5215 = vmatmul.bf16.gmra.mxu0 %v5146
        %v5216 = vpop.f32.mrf.mxu0
        %v5217 = vadd.f32 0.0, %v5216
        %v5218 = vpop.f32.mrf.mxu0
        %v5219 = vadd.f32 0.0, %v5218
        %5220 = vmatmul.bf16.gmra.mxu0 %v5149
        %v5221 = vpop.f32.mrf.mxu0
        %v5222 = vadd.f32 0.0, %v5221
        %v5223 = vpop.f32.mrf.mxu0
        %v5224 = vadd.f32 0.0, %v5223
        %5225 = vmatmul.bf16.gmra.mxu0 %v5152
        %v5226 = vpop.f32.mrf.mxu0
        %v5227 = vadd.f32 0.0, %v5226
        %v5228 = vpop.f32.mrf.mxu0
        %v5229 = vadd.f32 0.0, %v5228
        %5230 = vmatmul.bf16.gmra.mxu0 %v5155
        %v5231 = vpop.f32.mrf.mxu0
        %v5232 = vadd.f32 0.0, %v5231
        %v5233 = vpop.f32.mrf.mxu0
        %v5234 = vadd.f32 0.0, %v5233
        %5235 = vmatmul.bf16.gmra.mxu0 %v5158
        %v5236 = vpop.f32.mrf.mxu0
        %v5237 = vadd.f32 0.0, %v5236
        %v5238 = vpop.f32.mrf.mxu0
        %v5239 = vadd.f32 0.0, %v5238
        %5240 = vmatmul.bf16.gmra.mxu0 %v5161
        %v5241 = vpop.f32.mrf.mxu0
        %v5242 = vadd.f32 0.0, %v5241
        %v5243 = vpop.f32.mrf.mxu0
        %v5244 = vadd.f32 0.0, %v5243
        %5245 = vmatmul.bf16.gmra.mxu0 %v5164
        %v5246 = vpop.f32.mrf.mxu0
        %v5247 = vadd.f32 0.0, %v5246
        %v5248 = vpop.f32.mrf.mxu0
        %v5249 = vadd.f32 0.0, %v5248
        %5250 = vmatmul.bf16.gmra.mxu0 %v5167
        %v5251 = vpop.f32.mrf.mxu0
        %v5252 = vadd.f32 0.0, %v5251
        %v5253 = vpop.f32.mrf.mxu0
        %v5254 = vadd.f32 0.0, %v5253
        %5255 = vmatmul.bf16.gmra.mxu0 %v5170
        %v5256 = vpop.f32.mrf.mxu0
        %v5257 = vadd.f32 0.0, %v5256
        %v5258 = vpop.f32.mrf.mxu0
        %v5259 = vadd.f32 0.0, %v5258
        %5260 = vdwg.mxu0
        %v5261 = vadd.f32 %v4948, %v5182
        %v5262 = vadd.f32 %v4950, %v5184
        %v5263 = vadd.f32 %v4953, %v5187
        %v5264 = vadd.f32 %v4955, %v5189
        %v5265 = vadd.f32 %v4958, %v5192
        %v5266 = vadd.f32 %v4960, %v5194
        %v5267 = vadd.f32 %v4963, %v5197
        %v5268 = vadd.f32 %v4965, %v5199
        %v5269 = vadd.f32 %v4968, %v5202
        %v5270 = vadd.f32 %v4970, %v5204
        %v5271 = vadd.f32 %v4973, %v5207
        %v5272 = vadd.f32 %v4975, %v5209
        %v5273 = vadd.f32 %v4978, %v5212
        %v5274 = vadd.f32 %v4980, %v5214
        %v5275 = vadd.f32 %v4983, %v5217
        %v5276 = vadd.f32 %v4985, %v5219
        %v5277 = vadd.f32 %v4988, %v5222
        %v5278 = vadd.f32 %v4990, %v5224
        %v5279 = vadd.f32 %v4993, %v5227
        %v5280 = vadd.f32 %v4995, %v5229
        %v5281 = vadd.f32 %v4998, %v5232
        %v5282 = vadd.f32 %v5000, %v5234
        %v5283 = vadd.f32 %v5003, %v5237
        %v5284 = vadd.f32 %v5005, %v5239
        %v5285 = vadd.f32 %v5008, %v5242
        %v5286 = vadd.f32 %v5010, %v5244
        %v5287 = vadd.f32 %v5013, %v5247
        %v5288 = vadd.f32 %v5015, %v5249
        %v5289 = vadd.f32 %v5018, %v5252
        %v5290 = vadd.f32 %v5020, %v5254
        %v5291 = vadd.f32 %v5023, %v5257
        %v5292 = vadd.f32 %v5025, %v5259
        %v5293 = vld [vmem:[#allocation3 + $0x17] sm:$0xff]
        %v5294 = vld [vmem:[#allocation3 + $0x1f] sm:$0xff]
        %v5295 = vld [vmem:[#allocation3 + $0x27] sm:$0xff]
        %v5296 = vld [vmem:[#allocation3 + $0x2f] sm:$0xff]
        %v5297 = vld [vmem:[#allocation3 + $0x37] sm:$0xff]
        %v5298 = vld [vmem:[#allocation3 + $0x3f] sm:$0xff]
        %v5299 = vld [vmem:[#allocation3 + $0x47] sm:$0xff]
        %v5300 = vld [vmem:[#allocation3 + $0x4f] sm:$0xff]
        %v5301 = vld [vmem:[#allocation3 + $0x57] sm:$0xff]
        %v5302 = vld [vmem:[#allocation3 + $0x5f] sm:$0xff]
        %v5303 = vld [vmem:[#allocation3 + $0x67] sm:$0xff]
        %v5304 = vld [vmem:[#allocation3 + $0x6f] sm:$0xff]
        %v5305 = vld [vmem:[#allocation3 + $0x77] sm:$0xff]
        %v5306 = vld [vmem:[#allocation3 + $0x7f] sm:$0xff]
        %v5307 = vld [vmem:[#allocation3 + $0x87] sm:$0xff]
        %v5308 = vld [vmem:[#allocation3 + $0x8f] sm:$0xff]
        %v5309 = vld [vmem:[#allocation3 + $0x97] sm:$0xff]
        %v5310 = vld [vmem:[#allocation3 + $0x9f] sm:$0xff]
        %v5311 = vld [vmem:[#allocation3 + $0xa7] sm:$0xff]
        %v5312 = vld [vmem:[#allocation3 + $0xaf] sm:$0xff]
        %v5313 = vld [vmem:[#allocation3 + $0xb7] sm:$0xff]
        %v5314 = vld [vmem:[#allocation3 + $0xbf] sm:$0xff]
        %v5315 = vld [vmem:[#allocation3 + $0xc7] sm:$0xff]
        %v5316 = vld [vmem:[#allocation3 + $0xcf] sm:$0xff]
        %v5317 = vld [vmem:[#allocation3 + $0xd7] sm:$0xff]
        %v5318 = vld [vmem:[#allocation3 + $0xdf] sm:$0xff]
        %v5319 = vld [vmem:[#allocation3 + $0xe7] sm:$0xff]
        %v5320 = vld [vmem:[#allocation3 + $0xef] sm:$0xff]
        %v5321 = vld [vmem:[#allocation3 + $0xf7] sm:$0xff]
        %v5322 = vld [vmem:[#allocation3 + $0xff] sm:$0xff]
        %v5323 = vld [vmem:[#allocation3 + $0x107] sm:$0xff]
        %v5324 = vld [vmem:[#allocation3 + $0x10f] sm:$0xff]
        %v5325 = vsel %vm4528, 0.0, %v5293
        %v5326 = vsel %vm4529, 0.0, %v5294
        %v5327 = vsel %vm4530, 0.0, %v5295
        %v5328 = vsel %vm4531, 0.0, %v5296
        %v5329 = vsel %vm4532, 0.0, %v5297
        %v5330 = vsel %vm4533, 0.0, %v5298
        %v5331 = vsel %vm4534, 0.0, %v5299
        %v5332 = vsel %vm4535, 0.0, %v5300
        %v5333 = vsel %vm4536, 0.0, %v5301
        %v5334 = vsel %vm4537, 0.0, %v5302
        %v5335 = vsel %vm4538, 0.0, %v5303
        %v5336 = vsel %vm4539, 0.0, %v5304
        %v5337 = vsel %vm4540, 0.0, %v5305
        %v5338 = vsel %vm4541, 0.0, %v5306
        %v5339 = vsel %vm4542, 0.0, %v5307
        %v5340 = vsel %vm4543, 0.0, %v5308
        %v5341 = vsel %vm4544, 0.0, %v5309
        %v5342 = vsel %vm4545, 0.0, %v5310
        %v5343 = vsel %vm4546, 0.0, %v5311
        %v5344 = vsel %vm4547, 0.0, %v5312
        %v5345 = vsel %vm4548, 0.0, %v5313
        %v5346 = vsel %vm4549, 0.0, %v5314
        %v5347 = vsel %vm4550, 0.0, %v5315
        %v5348 = vsel %vm4551, 0.0, %v5316
        %v5349 = vsel %vm4552, 0.0, %v5317
        %v5350 = vsel %vm4553, 0.0, %v5318
        %v5351 = vsel %vm4554, 0.0, %v5319
        %v5352 = vsel %vm4555, 0.0, %v5320
        %v5353 = vsel %vm4556, 0.0, %v5321
        %v5354 = vsel %vm4557, 0.0, %v5322
        %v5355 = vsel %vm4558, 0.0, %v5323
        %v5356 = vsel %vm4559, 0.0, %v5324
        %v5357 = vpack.c.bf16 %v5326, %v5325
        %v5358 = vpack.c.bf16 %v5328, %v5327
        %v5359 = vpack.c.bf16 %v5330, %v5329
        %v5360 = vpack.c.bf16 %v5332, %v5331
        %v5361 = vpack.c.bf16 %v5334, %v5333
        %v5362 = vpack.c.bf16 %v5336, %v5335
        %v5363 = vpack.c.bf16 %v5338, %v5337
        %v5364 = vpack.c.bf16 %v5340, %v5339
        %v5365 = vpack.c.bf16 %v5342, %v5341
        %v5366 = vpack.c.bf16 %v5344, %v5343
        %v5367 = vpack.c.bf16 %v5346, %v5345
        %v5368 = vpack.c.bf16 %v5348, %v5347
        %v5369 = vpack.c.bf16 %v5350, %v5349
        %v5370 = vpack.c.bf16 %v5352, %v5351
        %v5371 = vpack.c.bf16 %v5354, %v5353
        %v5372 = vpack.c.bf16 %v5356, %v5355
        %s5373 = scalar_lea.vmem %s3, 48
        %v5374 = vld [vmem:[%s5373] sm:$0xf]
        %v5375 = vld [vmem:[%s5373 + $0x4] sm:$0xf]
        %v5376 = vld [vmem:[%s5373 + $0x8] sm:$0xf]
        %v5377 = vld [vmem:[%s5373 + $0xc] sm:$0xf]
        %v5382 = vunpack.c.l.b16 %v5374
        %v5383 = vunpack.c.l.b16 %v5375
        %v5384 = vunpack.c.l.b16 %v5376
        %v5385 = vunpack.c.l.b16 %v5377
        %v5386 = vpack.c.b16 %v5383, %v5382
        %v5387 = vpack.c.b16 %v5385, %v5384
        %v5391 = vsel %vm2223, %v5357, 0
        %v5394 = vsel %vm2223, %v5358, 0
        %v5397 = vsel %vm2223, %v5359, 0
        %v5400 = vsel %vm2223, %v5360, 0
        %v5403 = vsel %vm2223, %v5361, 0
        %v5406 = vsel %vm2223, %v5362, 0
        %v5409 = vsel %vm2223, %v5363, 0
        %v5412 = vsel %vm2223, %v5364, 0
        %v5415 = vsel %vm2223, %v5365, 0
        %v5418 = vsel %vm2223, %v5366, 0
        %v5421 = vsel %vm2223, %v5367, 0
        %v5424 = vsel %vm2223, %v5368, 0
        %v5427 = vsel %vm2223, %v5369, 0
        %v5430 = vsel %vm2223, %v5370, 0
        %v5433 = vsel %vm2223, %v5371, 0
        %v5436 = vsel %vm2223, %v5372, 0
        %5438 = vmatpush.bf16.msra.mxu0 0
        %5439 = vmatpush.bf16.msra.mxu0 0
        %5440 = vmatpush.bf16.msra.mxu0 0
        %5441 = vmatpush.bf16.msra.mxu0 0
        %5442 = vmatpush.bf16.msra.mxu0 0
        %5443 = vmatpush.bf16.msra.mxu0 0
        %5444 = vmatpush.bf16.msra.mxu0 %v5387
        %5445 = vmatpush.bf16.msra.mxu0 %v5386
        %5446 = vmatmul.bf16.gmra.mxu0 %v5391
        %v5447 = vpop.f32.mrf.mxu0
        %v5448 = vadd.f32 0.0, %v5447
        %v5449 = vpop.f32.mrf.mxu0
        %v5450 = vadd.f32 0.0, %v5449
        %5451 = vmatmul.bf16.gmra.mxu0 %v5394
        %v5452 = vpop.f32.mrf.mxu0
        %v5453 = vadd.f32 0.0, %v5452
        %v5454 = vpop.f32.mrf.mxu0
        %v5455 = vadd.f32 0.0, %v5454
        %5456 = vmatmul.bf16.gmra.mxu0 %v5397
        %v5457 = vpop.f32.mrf.mxu0
        %v5458 = vadd.f32 0.0, %v5457
        %v5459 = vpop.f32.mrf.mxu0
        %v5460 = vadd.f32 0.0, %v5459
        %5461 = vmatmul.bf16.gmra.mxu0 %v5400
        %v5462 = vpop.f32.mrf.mxu0
        %v5463 = vadd.f32 0.0, %v5462
        %v5464 = vpop.f32.mrf.mxu0
        %v5465 = vadd.f32 0.0, %v5464
        %5466 = vmatmul.bf16.gmra.mxu0 %v5403
        %v5467 = vpop.f32.mrf.mxu0
        %v5468 = vadd.f32 0.0, %v5467
        %v5469 = vpop.f32.mrf.mxu0
        %v5470 = vadd.f32 0.0, %v5469
        %5471 = vmatmul.bf16.gmra.mxu0 %v5406
        %v5472 = vpop.f32.mrf.mxu0
        %v5473 = vadd.f32 0.0, %v5472
        %v5474 = vpop.f32.mrf.mxu0
        %v5475 = vadd.f32 0.0, %v5474
        %5476 = vmatmul.bf16.gmra.mxu0 %v5409
        %v5477 = vpop.f32.mrf.mxu0
        %v5478 = vadd.f32 0.0, %v5477
        %v5479 = vpop.f32.mrf.mxu0
        %v5480 = vadd.f32 0.0, %v5479
        %5481 = vmatmul.bf16.gmra.mxu0 %v5412
        %v5482 = vpop.f32.mrf.mxu0
        %v5483 = vadd.f32 0.0, %v5482
        %v5484 = vpop.f32.mrf.mxu0
        %v5485 = vadd.f32 0.0, %v5484
        %5486 = vmatmul.bf16.gmra.mxu0 %v5415
        %v5487 = vpop.f32.mrf.mxu0
        %v5488 = vadd.f32 0.0, %v5487
        %v5489 = vpop.f32.mrf.mxu0
        %v5490 = vadd.f32 0.0, %v5489
        %5491 = vmatmul.bf16.gmra.mxu0 %v5418
        %v5492 = vpop.f32.mrf.mxu0
        %v5493 = vadd.f32 0.0, %v5492
        %v5494 = vpop.f32.mrf.mxu0
        %v5495 = vadd.f32 0.0, %v5494
        %5496 = vmatmul.bf16.gmra.mxu0 %v5421
        %v5497 = vpop.f32.mrf.mxu0
        %v5498 = vadd.f32 0.0, %v5497
        %v5499 = vpop.f32.mrf.mxu0
        %v5500 = vadd.f32 0.0, %v5499
        %5501 = vmatmul.bf16.gmra.mxu0 %v5424
        %v5502 = vpop.f32.mrf.mxu0
        %v5503 = vadd.f32 0.0, %v5502
        %v5504 = vpop.f32.mrf.mxu0
        %v5505 = vadd.f32 0.0, %v5504
        %5506 = vmatmul.bf16.gmra.mxu0 %v5427
        %v5507 = vpop.f32.mrf.mxu0
        %v5508 = vadd.f32 0.0, %v5507
        %v5509 = vpop.f32.mrf.mxu0
        %v5510 = vadd.f32 0.0, %v5509
        %5511 = vmatmul.bf16.gmra.mxu0 %v5430
        %v5512 = vpop.f32.mrf.mxu0
        %v5513 = vadd.f32 0.0, %v5512
        %v5514 = vpop.f32.mrf.mxu0
        %v5515 = vadd.f32 0.0, %v5514
        %5516 = vmatmul.bf16.gmra.mxu0 %v5433
        %v5517 = vpop.f32.mrf.mxu0
        %v5518 = vadd.f32 0.0, %v5517
        %v5519 = vpop.f32.mrf.mxu0
        %v5520 = vadd.f32 0.0, %v5519
        %5521 = vmatmul.bf16.gmra.mxu0 %v5436
        %v5522 = vpop.f32.mrf.mxu0
        %v5523 = vadd.f32 0.0, %v5522
        %v5524 = vpop.f32.mrf.mxu0
        %v5525 = vadd.f32 0.0, %v5524
        %5526 = vdwg.mxu0
        %v5527 = vadd.f32 %v5261, %v5448
        %v5528 = vadd.f32 %v5262, %v5450
        %v5529 = vadd.f32 %v5263, %v5453
        %v5530 = vadd.f32 %v5264, %v5455
        %v5531 = vadd.f32 %v5265, %v5458
        %v5532 = vadd.f32 %v5266, %v5460
        %v5533 = vadd.f32 %v5267, %v5463
        %v5534 = vadd.f32 %v5268, %v5465
        %v5535 = vadd.f32 %v5269, %v5468
        %v5536 = vadd.f32 %v5270, %v5470
        %v5537 = vadd.f32 %v5271, %v5473
        %v5538 = vadd.f32 %v5272, %v5475
        %v5539 = vadd.f32 %v5273, %v5478
        %v5540 = vadd.f32 %v5274, %v5480
        %v5541 = vadd.f32 %v5275, %v5483
        %v5542 = vadd.f32 %v5276, %v5485
        %v5543 = vadd.f32 %v5277, %v5488
        %v5544 = vadd.f32 %v5278, %v5490
        %v5545 = vadd.f32 %v5279, %v5493
        %v5546 = vadd.f32 %v5280, %v5495
        %v5547 = vadd.f32 %v5281, %v5498
        %v5548 = vadd.f32 %v5282, %v5500
        %v5549 = vadd.f32 %v5283, %v5503
        %v5550 = vadd.f32 %v5284, %v5505
        %v5551 = vadd.f32 %v5285, %v5508
        %v5552 = vadd.f32 %v5286, %v5510
        %v5553 = vadd.f32 %v5287, %v5513
        %v5554 = vadd.f32 %v5288, %v5515
        %v5555 = vadd.f32 %v5289, %v5518
        %v5556 = vadd.f32 %v5290, %v5520
        %v5557 = vadd.f32 %v5291, %v5523
        %v5558 = vadd.f32 %v5292, %v5525
        %v5559 = vld [vmem:[#allocation3 + $0x18] sm:$0xff]
        %v5560 = vld [vmem:[#allocation3 + $0x20] sm:$0xff]
        %v5561 = vld [vmem:[#allocation3 + $0x28] sm:$0xff]
        %v5562 = vld [vmem:[#allocation3 + $0x30] sm:$0xff]
        %v5563 = vld [vmem:[#allocation3 + $0x38] sm:$0xff]
        %v5564 = vld [vmem:[#allocation3 + $0x40] sm:$0xff]
        %v5565 = vld [vmem:[#allocation3 + $0x48] sm:$0xff]
        %v5566 = vld [vmem:[#allocation3 + $0x50] sm:$0xff]
        %v5567 = vld [vmem:[#allocation3 + $0x58] sm:$0xff]
        %v5568 = vld [vmem:[#allocation3 + $0x60] sm:$0xff]
        %v5569 = vld [vmem:[#allocation3 + $0x68] sm:$0xff]
        %v5570 = vld [vmem:[#allocation3 + $0x70] sm:$0xff]
        %v5571 = vld [vmem:[#allocation3 + $0x78] sm:$0xff]
        %v5572 = vld [vmem:[#allocation3 + $0x80] sm:$0xff]
        %v5573 = vld [vmem:[#allocation3 + $0x88] sm:$0xff]
        %v5574 = vld [vmem:[#allocation3 + $0x90] sm:$0xff]
        %v5575 = vld [vmem:[#allocation3 + $0x98] sm:$0xff]
        %v5576 = vld [vmem:[#allocation3 + $0xa0] sm:$0xff]
        %v5577 = vld [vmem:[#allocation3 + $0xa8] sm:$0xff]
        %v5578 = vld [vmem:[#allocation3 + $0xb0] sm:$0xff]
        %v5579 = vld [vmem:[#allocation3 + $0xb8] sm:$0xff]
        %v5580 = vld [vmem:[#allocation3 + $0xc0] sm:$0xff]
        %v5581 = vld [vmem:[#allocation3 + $0xc8] sm:$0xff]
        %v5582 = vld [vmem:[#allocation3 + $0xd0] sm:$0xff]
        %v5583 = vld [vmem:[#allocation3 + $0xd8] sm:$0xff]
        %v5584 = vld [vmem:[#allocation3 + $0xe0] sm:$0xff]
        %v5585 = vld [vmem:[#allocation3 + $0xe8] sm:$0xff]
        %v5586 = vld [vmem:[#allocation3 + $0xf0] sm:$0xff]
        %v5587 = vld [vmem:[#allocation3 + $0xf8] sm:$0xff]
        %v5588 = vld [vmem:[#allocation3 + $0x100] sm:$0xff]
        %v5589 = vld [vmem:[#allocation3 + $0x108] sm:$0xff]
        %v5590 = vld [vmem:[#allocation3 + $0x110] sm:$0xff]
        %v5591 = vpack.c.bf16 %v5560, %v5559
        %v5592 = vpack.c.bf16 %v5562, %v5561
        %v5593 = vpack.c.bf16 %v5564, %v5563
        %v5594 = vpack.c.bf16 %v5566, %v5565
        %v5595 = vpack.c.bf16 %v5568, %v5567
        %v5596 = vpack.c.bf16 %v5570, %v5569
        %v5597 = vpack.c.bf16 %v5572, %v5571
        %v5598 = vpack.c.bf16 %v5574, %v5573
        %v5599 = vpack.c.bf16 %v5576, %v5575
        %v5600 = vpack.c.bf16 %v5578, %v5577
        %v5601 = vpack.c.bf16 %v5580, %v5579
        %v5602 = vpack.c.bf16 %v5582, %v5581
        %v5603 = vpack.c.bf16 %v5584, %v5583
        %v5604 = vpack.c.bf16 %v5586, %v5585
        %v5605 = vpack.c.bf16 %v5588, %v5587
        %v5606 = vpack.c.bf16 %v5590, %v5589
        %s5607 = scalar_lea.vmem %s3, 64
        %v5608 = vld [vmem:[%s5607] sm:$0xf]
        %v5609 = vld [vmem:[%s5607 + $0x4] sm:$0xf]
        %v5610 = vld [vmem:[%s5607 + $0x8] sm:$0xf]
        %v5611 = vld [vmem:[%s5607 + $0xc] sm:$0xf]
        %v5616 = vunpack.c.l.b16 %v5608
        %v5617 = vunpack.c.l.b16 %v5609
        %v5618 = vunpack.c.l.b16 %v5610
        %v5619 = vunpack.c.l.b16 %v5611
        %v5620 = vpack.c.b16 %v5617, %v5616
        %v5621 = vpack.c.b16 %v5619, %v5618
        %v5625 = vsel %vm2223, %v5591, 0
        %v5628 = vsel %vm2223, %v5592, 0
        %v5631 = vsel %vm2223, %v5593, 0
        %v5634 = vsel %vm2223, %v5594, 0
        %v5637 = vsel %vm2223, %v5595, 0
        %v5640 = vsel %vm2223, %v5596, 0
        %v5643 = vsel %vm2223, %v5597, 0
        %v5646 = vsel %vm2223, %v5598, 0
        %v5649 = vsel %vm2223, %v5599, 0
        %v5652 = vsel %vm2223, %v5600, 0
        %v5655 = vsel %vm2223, %v5601, 0
        %v5658 = vsel %vm2223, %v5602, 0
        %v5661 = vsel %vm2223, %v5603, 0
        %v5664 = vsel %vm2223, %v5604, 0
        %v5667 = vsel %vm2223, %v5605, 0
        %v5670 = vsel %vm2223, %v5606, 0
        %5672 = vmatpush.bf16.msra.mxu0 0
        %5673 = vmatpush.bf16.msra.mxu0 0
        %5674 = vmatpush.bf16.msra.mxu0 0
        %5675 = vmatpush.bf16.msra.mxu0 0
        %5676 = vmatpush.bf16.msra.mxu0 0
        %5677 = vmatpush.bf16.msra.mxu0 0
        %5678 = vmatpush.bf16.msra.mxu0 %v5621
        %5679 = vmatpush.bf16.msra.mxu0 %v5620
        %5680 = vmatmul.bf16.gmra.mxu0 %v5625
        %v5681 = vpop.f32.mrf.mxu0
        %v5682 = vadd.f32 0.0, %v5681
        %v5683 = vpop.f32.mrf.mxu0
        %v5684 = vadd.f32 0.0, %v5683
        %5685 = vmatmul.bf16.gmra.mxu0 %v5628
        %v5686 = vpop.f32.mrf.mxu0
        %v5687 = vadd.f32 0.0, %v5686
        %v5688 = vpop.f32.mrf.mxu0
        %v5689 = vadd.f32 0.0, %v5688
        %5690 = vmatmul.bf16.gmra.mxu0 %v5631
        %v5691 = vpop.f32.mrf.mxu0
        %v5692 = vadd.f32 0.0, %v5691
        %v5693 = vpop.f32.mrf.mxu0
        %v5694 = vadd.f32 0.0, %v5693
        %5695 = vmatmul.bf16.gmra.mxu0 %v5634
        %v5696 = vpop.f32.mrf.mxu0
        %v5697 = vadd.f32 0.0, %v5696
        %v5698 = vpop.f32.mrf.mxu0
        %v5699 = vadd.f32 0.0, %v5698
        %5700 = vmatmul.bf16.gmra.mxu0 %v5637
        %v5701 = vpop.f32.mrf.mxu0
        %v5702 = vadd.f32 0.0, %v5701
        %v5703 = vpop.f32.mrf.mxu0
        %v5704 = vadd.f32 0.0, %v5703
        %5705 = vmatmul.bf16.gmra.mxu0 %v5640
        %v5706 = vpop.f32.mrf.mxu0
        %v5707 = vadd.f32 0.0, %v5706
        %v5708 = vpop.f32.mrf.mxu0
        %v5709 = vadd.f32 0.0, %v5708
        %5710 = vmatmul.bf16.gmra.mxu0 %v5643
        %v5711 = vpop.f32.mrf.mxu0
        %v5712 = vadd.f32 0.0, %v5711
        %v5713 = vpop.f32.mrf.mxu0
        %v5714 = vadd.f32 0.0, %v5713
        %5715 = vmatmul.bf16.gmra.mxu0 %v5646
        %v5716 = vpop.f32.mrf.mxu0
        %v5717 = vadd.f32 0.0, %v5716
        %v5718 = vpop.f32.mrf.mxu0
        %v5719 = vadd.f32 0.0, %v5718
        %5720 = vmatmul.bf16.gmra.mxu0 %v5649
        %v5721 = vpop.f32.mrf.mxu0
        %v5722 = vadd.f32 0.0, %v5721
        %v5723 = vpop.f32.mrf.mxu0
        %v5724 = vadd.f32 0.0, %v5723
        %5725 = vmatmul.bf16.gmra.mxu0 %v5652
        %v5726 = vpop.f32.mrf.mxu0
        %v5727 = vadd.f32 0.0, %v5726
        %v5728 = vpop.f32.mrf.mxu0
        %v5729 = vadd.f32 0.0, %v5728
        %5730 = vmatmul.bf16.gmra.mxu0 %v5655
        %v5731 = vpop.f32.mrf.mxu0
        %v5732 = vadd.f32 0.0, %v5731
        %v5733 = vpop.f32.mrf.mxu0
        %v5734 = vadd.f32 0.0, %v5733
        %5735 = vmatmul.bf16.gmra.mxu0 %v5658
        %v5736 = vpop.f32.mrf.mxu0
        %v5737 = vadd.f32 0.0, %v5736
        %v5738 = vpop.f32.mrf.mxu0
        %v5739 = vadd.f32 0.0, %v5738
        %5740 = vmatmul.bf16.gmra.mxu0 %v5661
        %v5741 = vpop.f32.mrf.mxu0
        %v5742 = vadd.f32 0.0, %v5741
        %v5743 = vpop.f32.mrf.mxu0
        %v5744 = vadd.f32 0.0, %v5743
        %5745 = vmatmul.bf16.gmra.mxu0 %v5664
        %v5746 = vpop.f32.mrf.mxu0
        %v5747 = vadd.f32 0.0, %v5746
        %v5748 = vpop.f32.mrf.mxu0
        %v5749 = vadd.f32 0.0, %v5748
        %5750 = vmatmul.bf16.gmra.mxu0 %v5667
        %v5751 = vpop.f32.mrf.mxu0
        %v5752 = vadd.f32 0.0, %v5751
        %v5753 = vpop.f32.mrf.mxu0
        %v5754 = vadd.f32 0.0, %v5753
        %5755 = vmatmul.bf16.gmra.mxu0 %v5670
        %v5756 = vpop.f32.mrf.mxu0
        %v5757 = vadd.f32 0.0, %v5756
        %v5758 = vpop.f32.mrf.mxu0
        %v5759 = vadd.f32 0.0, %v5758
        %5760 = vdwg.mxu0
        %v5761 = vadd.f32 %v5527, %v5682
        %v5762 = vadd.f32 %v5528, %v5684
        %v5763 = vadd.f32 %v5529, %v5687
        %v5764 = vadd.f32 %v5530, %v5689
        %v5765 = vadd.f32 %v5531, %v5692
        %v5766 = vadd.f32 %v5532, %v5694
        %v5767 = vadd.f32 %v5533, %v5697
        %v5768 = vadd.f32 %v5534, %v5699
        %v5769 = vadd.f32 %v5535, %v5702
        %v5770 = vadd.f32 %v5536, %v5704
        %v5771 = vadd.f32 %v5537, %v5707
        %v5772 = vadd.f32 %v5538, %v5709
        %v5773 = vadd.f32 %v5539, %v5712
        %v5774 = vadd.f32 %v5540, %v5714
        %v5775 = vadd.f32 %v5541, %v5717
        %v5776 = vadd.f32 %v5542, %v5719
        %v5777 = vadd.f32 %v5543, %v5722
        %v5778 = vadd.f32 %v5544, %v5724
        %v5779 = vadd.f32 %v5545, %v5727
        %v5780 = vadd.f32 %v5546, %v5729
        %v5781 = vadd.f32 %v5547, %v5732
        %v5782 = vadd.f32 %v5548, %v5734
        %v5783 = vadd.f32 %v5549, %v5737
        %v5784 = vadd.f32 %v5550, %v5739
        %v5785 = vadd.f32 %v5551, %v5742
        %v5786 = vadd.f32 %v5552, %v5744
        %v5787 = vadd.f32 %v5553, %v5747
        %v5788 = vadd.f32 %v5554, %v5749
        %v5789 = vadd.f32 %v5555, %v5752
        %v5790 = vadd.f32 %v5556, %v5754
        %v5791 = vadd.f32 %v5557, %v5757
        %v5792 = vadd.f32 %v5558, %v5759
        %v5793 = vld [vmem:[#allocation3 + $0x19] sm:$0xff]
        %v5794 = vld [vmem:[#allocation3 + $0x21] sm:$0xff]
        %v5795 = vld [vmem:[#allocation3 + $0x29] sm:$0xff]
        %v5796 = vld [vmem:[#allocation3 + $0x31] sm:$0xff]
        %v5797 = vld [vmem:[#allocation3 + $0x39] sm:$0xff]
        %v5798 = vld [vmem:[#allocation3 + $0x41] sm:$0xff]
        %v5799 = vld [vmem:[#allocation3 + $0x49] sm:$0xff]
        %v5800 = vld [vmem:[#allocation3 + $0x51] sm:$0xff]
        %v5801 = vld [vmem:[#allocation3 + $0x59] sm:$0xff]
        %v5802 = vld [vmem:[#allocation3 + $0x61] sm:$0xff]
        %v5803 = vld [vmem:[#allocation3 + $0x69] sm:$0xff]
        %v5804 = vld [vmem:[#allocation3 + $0x71] sm:$0xff]
        %v5805 = vld [vmem:[#allocation3 + $0x79] sm:$0xff]
        %v5806 = vld [vmem:[#allocation3 + $0x81] sm:$0xff]
        %v5807 = vld [vmem:[#allocation3 + $0x89] sm:$0xff]
        %v5808 = vld [vmem:[#allocation3 + $0x91] sm:$0xff]
        %v5809 = vld [vmem:[#allocation3 + $0x99] sm:$0xff]
        %v5810 = vld [vmem:[#allocation3 + $0xa1] sm:$0xff]
        %v5811 = vld [vmem:[#allocation3 + $0xa9] sm:$0xff]
        %v5812 = vld [vmem:[#allocation3 + $0xb1] sm:$0xff]
        %v5813 = vld [vmem:[#allocation3 + $0xb9] sm:$0xff]
        %v5814 = vld [vmem:[#allocation3 + $0xc1] sm:$0xff]
        %v5815 = vld [vmem:[#allocation3 + $0xc9] sm:$0xff]
        %v5816 = vld [vmem:[#allocation3 + $0xd1] sm:$0xff]
        %v5817 = vld [vmem:[#allocation3 + $0xd9] sm:$0xff]
        %v5818 = vld [vmem:[#allocation3 + $0xe1] sm:$0xff]
        %v5819 = vld [vmem:[#allocation3 + $0xe9] sm:$0xff]
        %v5820 = vld [vmem:[#allocation3 + $0xf1] sm:$0xff]
        %v5821 = vld [vmem:[#allocation3 + $0xf9] sm:$0xff]
        %v5822 = vld [vmem:[#allocation3 + $0x101] sm:$0xff]
        %v5823 = vld [vmem:[#allocation3 + $0x109] sm:$0xff]
        %v5824 = vld [vmem:[#allocation3 + $0x111] sm:$0xff]
        %v5825 = vsel %vm4560, 0.0, %v5793
        %v5826 = vsel %vm4561, 0.0, %v5794
        %v5827 = vsel %vm4562, 0.0, %v5795
        %v5828 = vsel %vm4563, 0.0, %v5796
        %v5829 = vsel %vm4564, 0.0, %v5797
        %v5830 = vsel %vm4565, 0.0, %v5798
        %v5831 = vsel %vm4566, 0.0, %v5799
        %v5832 = vsel %vm4567, 0.0, %v5800
        %v5833 = vsel %vm4568, 0.0, %v5801
        %v5834 = vsel %vm4569, 0.0, %v5802
        %v5835 = vsel %vm4570, 0.0, %v5803
        %v5836 = vsel %vm4571, 0.0, %v5804
        %v5837 = vsel %vm4572, 0.0, %v5805
        %v5838 = vsel %vm4573, 0.0, %v5806
        %v5839 = vsel %vm4574, 0.0, %v5807
        %v5840 = vsel %vm4575, 0.0, %v5808
        %v5841 = vsel %vm4576, 0.0, %v5809
        %v5842 = vsel %vm4577, 0.0, %v5810
        %v5843 = vsel %vm4578, 0.0, %v5811
        %v5844 = vsel %vm4579, 0.0, %v5812
        %v5845 = vsel %vm4580, 0.0, %v5813
        %v5846 = vsel %vm4581, 0.0, %v5814
        %v5847 = vsel %vm4582, 0.0, %v5815
        %v5848 = vsel %vm4583, 0.0, %v5816
        %v5849 = vsel %vm4584, 0.0, %v5817
        %v5850 = vsel %vm4585, 0.0, %v5818
        %v5851 = vsel %vm4586, 0.0, %v5819
        %v5852 = vsel %vm4587, 0.0, %v5820
        %v5853 = vsel %vm4588, 0.0, %v5821
        %v5854 = vsel %vm4589, 0.0, %v5822
        %v5855 = vsel %vm4590, 0.0, %v5823
        %v5856 = vsel %vm4591, 0.0, %v5824
        %v5857 = vpack.c.bf16 %v5826, %v5825
        %v5858 = vpack.c.bf16 %v5828, %v5827
        %v5859 = vpack.c.bf16 %v5830, %v5829
        %v5860 = vpack.c.bf16 %v5832, %v5831
        %v5861 = vpack.c.bf16 %v5834, %v5833
        %v5862 = vpack.c.bf16 %v5836, %v5835
        %v5863 = vpack.c.bf16 %v5838, %v5837
        %v5864 = vpack.c.bf16 %v5840, %v5839
        %v5865 = vpack.c.bf16 %v5842, %v5841
        %v5866 = vpack.c.bf16 %v5844, %v5843
        %v5867 = vpack.c.bf16 %v5846, %v5845
        %v5868 = vpack.c.bf16 %v5848, %v5847
        %v5869 = vpack.c.bf16 %v5850, %v5849
        %v5870 = vpack.c.bf16 %v5852, %v5851
        %v5871 = vpack.c.bf16 %v5854, %v5853
        %v5872 = vpack.c.bf16 %v5856, %v5855
        %s5873 = scalar_lea.vmem %s3, 80
        %v5874 = vld [vmem:[%s5873] sm:$0xf]
        %v5875 = vld [vmem:[%s5873 + $0x4] sm:$0xf]
        %v5876 = vld [vmem:[%s5873 + $0x8] sm:$0xf]
        %v5877 = vld [vmem:[%s5873 + $0xc] sm:$0xf]
        %v5882 = vunpack.c.l.b16 %v5874
        %v5883 = vunpack.c.l.b16 %v5875
        %v5884 = vunpack.c.l.b16 %v5876
        %v5885 = vunpack.c.l.b16 %v5877
        %v5886 = vpack.c.b16 %v5883, %v5882
        %v5887 = vpack.c.b16 %v5885, %v5884
        %v5891 = vsel %vm2223, %v5857, 0
        %v5894 = vsel %vm2223, %v5858, 0
        %v5897 = vsel %vm2223, %v5859, 0
        %v5900 = vsel %vm2223, %v5860, 0
        %v5903 = vsel %vm2223, %v5861, 0
        %v5906 = vsel %vm2223, %v5862, 0
        %v5909 = vsel %vm2223, %v5863, 0
        %v5912 = vsel %vm2223, %v5864, 0
        %v5915 = vsel %vm2223, %v5865, 0
        %v5918 = vsel %vm2223, %v5866, 0
        %v5921 = vsel %vm2223, %v5867, 0
        %v5924 = vsel %vm2223, %v5868, 0
        %v5927 = vsel %vm2223, %v5869, 0
        %v5930 = vsel %vm2223, %v5870, 0
        %v5933 = vsel %vm2223, %v5871, 0
        %v5936 = vsel %vm2223, %v5872, 0
        %5938 = vmatpush.bf16.msra.mxu0 0
        %5939 = vmatpush.bf16.msra.mxu0 0
        %5940 = vmatpush.bf16.msra.mxu0 0
        %5941 = vmatpush.bf16.msra.mxu0 0
        %5942 = vmatpush.bf16.msra.mxu0 0
        %5943 = vmatpush.bf16.msra.mxu0 0
        %5944 = vmatpush.bf16.msra.mxu0 %v5887
        %5945 = vmatpush.bf16.msra.mxu0 %v5886
        %5946 = vmatmul.bf16.gmra.mxu0 %v5891
        %v5947 = vpop.f32.mrf.mxu0
        %v5948 = vadd.f32 0.0, %v5947
        %v5949 = vpop.f32.mrf.mxu0
        %v5950 = vadd.f32 0.0, %v5949
        %5951 = vmatmul.bf16.gmra.mxu0 %v5894
        %v5952 = vpop.f32.mrf.mxu0
        %v5953 = vadd.f32 0.0, %v5952
        %v5954 = vpop.f32.mrf.mxu0
        %v5955 = vadd.f32 0.0, %v5954
        %5956 = vmatmul.bf16.gmra.mxu0 %v5897
        %v5957 = vpop.f32.mrf.mxu0
        %v5958 = vadd.f32 0.0, %v5957
        %v5959 = vpop.f32.mrf.mxu0
        %v5960 = vadd.f32 0.0, %v5959
        %5961 = vmatmul.bf16.gmra.mxu0 %v5900
        %v5962 = vpop.f32.mrf.mxu0
        %v5963 = vadd.f32 0.0, %v5962
        %v5964 = vpop.f32.mrf.mxu0
        %v5965 = vadd.f32 0.0, %v5964
        %5966 = vmatmul.bf16.gmra.mxu0 %v5903
        %v5967 = vpop.f32.mrf.mxu0
        %v5968 = vadd.f32 0.0, %v5967
        %v5969 = vpop.f32.mrf.mxu0
        %v5970 = vadd.f32 0.0, %v5969
        %5971 = vmatmul.bf16.gmra.mxu0 %v5906
        %v5972 = vpop.f32.mrf.mxu0
        %v5973 = vadd.f32 0.0, %v5972
        %v5974 = vpop.f32.mrf.mxu0
        %v5975 = vadd.f32 0.0, %v5974
        %5976 = vmatmul.bf16.gmra.mxu0 %v5909
        %v5977 = vpop.f32.mrf.mxu0
        %v5978 = vadd.f32 0.0, %v5977
        %v5979 = vpop.f32.mrf.mxu0
        %v5980 = vadd.f32 0.0, %v5979
        %5981 = vmatmul.bf16.gmra.mxu0 %v5912
        %v5982 = vpop.f32.mrf.mxu0
        %v5983 = vadd.f32 0.0, %v5982
        %v5984 = vpop.f32.mrf.mxu0
        %v5985 = vadd.f32 0.0, %v5984
        %5986 = vmatmul.bf16.gmra.mxu0 %v5915
        %v5987 = vpop.f32.mrf.mxu0
        %v5988 = vadd.f32 0.0, %v5987
        %v5989 = vpop.f32.mrf.mxu0
        %v5990 = vadd.f32 0.0, %v5989
        %5991 = vmatmul.bf16.gmra.mxu0 %v5918
        %v5992 = vpop.f32.mrf.mxu0
        %v5993 = vadd.f32 0.0, %v5992
        %v5994 = vpop.f32.mrf.mxu0
        %v5995 = vadd.f32 0.0, %v5994
        %5996 = vmatmul.bf16.gmra.mxu0 %v5921
        %v5997 = vpop.f32.mrf.mxu0
        %v5998 = vadd.f32 0.0, %v5997
        %v5999 = vpop.f32.mrf.mxu0
        %v6000 = vadd.f32 0.0, %v5999
        %6001 = vmatmul.bf16.gmra.mxu0 %v5924
        %v6002 = vpop.f32.mrf.mxu0
        %v6003 = vadd.f32 0.0, %v6002
        %v6004 = vpop.f32.mrf.mxu0
        %v6005 = vadd.f32 0.0, %v6004
        %6006 = vmatmul.bf16.gmra.mxu0 %v5927
        %v6007 = vpop.f32.mrf.mxu0
        %v6008 = vadd.f32 0.0, %v6007
        %v6009 = vpop.f32.mrf.mxu0
        %v6010 = vadd.f32 0.0, %v6009
        %6011 = vmatmul.bf16.gmra.mxu0 %v5930
        %v6012 = vpop.f32.mrf.mxu0
        %v6013 = vadd.f32 0.0, %v6012
        %v6014 = vpop.f32.mrf.mxu0
        %v6015 = vadd.f32 0.0, %v6014
        %6016 = vmatmul.bf16.gmra.mxu0 %v5933
        %v6017 = vpop.f32.mrf.mxu0
        %v6018 = vadd.f32 0.0, %v6017
        %v6019 = vpop.f32.mrf.mxu0
        %v6020 = vadd.f32 0.0, %v6019
        %6021 = vmatmul.bf16.gmra.mxu0 %v5936
        %v6022 = vpop.f32.mrf.mxu0
        %v6023 = vadd.f32 0.0, %v6022
        %v6024 = vpop.f32.mrf.mxu0
        %v6025 = vadd.f32 0.0, %v6024
        %6026 = vdwg.mxu0
        %v6027 = vadd.f32 %v5761, %v5948
        %v6028 = vadd.f32 %v5762, %v5950
        %v6029 = vadd.f32 %v5763, %v5953
        %v6030 = vadd.f32 %v5764, %v5955
        %v6031 = vadd.f32 %v5765, %v5958
        %v6032 = vadd.f32 %v5766, %v5960
        %v6033 = vadd.f32 %v5767, %v5963
        %v6034 = vadd.f32 %v5768, %v5965
        %v6035 = vadd.f32 %v5769, %v5968
        %v6036 = vadd.f32 %v5770, %v5970
        %v6037 = vadd.f32 %v5771, %v5973
        %v6038 = vadd.f32 %v5772, %v5975
        %v6039 = vadd.f32 %v5773, %v5978
        %v6040 = vadd.f32 %v5774, %v5980
        %v6041 = vadd.f32 %v5775, %v5983
        %v6042 = vadd.f32 %v5776, %v5985
        %v6043 = vadd.f32 %v5777, %v5988
        %v6044 = vadd.f32 %v5778, %v5990
        %v6045 = vadd.f32 %v5779, %v5993
        %v6046 = vadd.f32 %v5780, %v5995
        %v6047 = vadd.f32 %v5781, %v5998
        %v6048 = vadd.f32 %v5782, %v6000
        %v6049 = vadd.f32 %v5783, %v6003
        %v6050 = vadd.f32 %v5784, %v6005
        %v6051 = vadd.f32 %v5785, %v6008
        %v6052 = vadd.f32 %v5786, %v6010
        %v6053 = vadd.f32 %v5787, %v6013
        %v6054 = vadd.f32 %v5788, %v6015
        %v6055 = vadd.f32 %v5789, %v6018
        %v6056 = vadd.f32 %v5790, %v6020
        %v6057 = vadd.f32 %v5791, %v6023
        %v6058 = vadd.f32 %v5792, %v6025
        %v6059 = vld [vmem:[#allocation3 + $0x27] sm:$0xff]
        %v6060 = vld [vmem:[#allocation3 + $0x2f] sm:$0xff]
        %v6061 = vld [vmem:[#allocation3 + $0x37] sm:$0xff]
        %v6062 = vld [vmem:[#allocation3 + $0x3f] sm:$0xff]
        %v6063 = vld [vmem:[#allocation3 + $0x47] sm:$0xff]
        %v6064 = vld [vmem:[#allocation3 + $0x4f] sm:$0xff]
        %v6065 = vld [vmem:[#allocation3 + $0x57] sm:$0xff]
        %v6066 = vld [vmem:[#allocation3 + $0x5f] sm:$0xff]
        %v6067 = vld [vmem:[#allocation3 + $0x67] sm:$0xff]
        %v6068 = vld [vmem:[#allocation3 + $0x6f] sm:$0xff]
        %v6069 = vld [vmem:[#allocation3 + $0x77] sm:$0xff]
        %v6070 = vld [vmem:[#allocation3 + $0x7f] sm:$0xff]
        %v6071 = vld [vmem:[#allocation3 + $0x87] sm:$0xff]
        %v6072 = vld [vmem:[#allocation3 + $0x8f] sm:$0xff]
        %v6073 = vld [vmem:[#allocation3 + $0x97] sm:$0xff]
        %v6074 = vld [vmem:[#allocation3 + $0x9f] sm:$0xff]
        %v6075 = vld [vmem:[#allocation3 + $0xa7] sm:$0xff]
        %v6076 = vld [vmem:[#allocation3 + $0xaf] sm:$0xff]
        %v6077 = vld [vmem:[#allocation3 + $0xb7] sm:$0xff]
        %v6078 = vld [vmem:[#allocation3 + $0xbf] sm:$0xff]
        %v6079 = vld [vmem:[#allocation3 + $0xc7] sm:$0xff]
        %v6080 = vld [vmem:[#allocation3 + $0xcf] sm:$0xff]
        %v6081 = vld [vmem:[#allocation3 + $0xd7] sm:$0xff]
        %v6082 = vld [vmem:[#allocation3 + $0xdf] sm:$0xff]
        %v6083 = vld [vmem:[#allocation3 + $0xe7] sm:$0xff]
        %v6084 = vld [vmem:[#allocation3 + $0xef] sm:$0xff]
        %v6085 = vld [vmem:[#allocation3 + $0xf7] sm:$0xff]
        %v6086 = vld [vmem:[#allocation3 + $0xff] sm:$0xff]
        %v6087 = vld [vmem:[#allocation3 + $0x107] sm:$0xff]
        %v6088 = vld [vmem:[#allocation3 + $0x10f] sm:$0xff]
        %v6089 = vld [vmem:[#allocation3 + $0x117] sm:$0xff]
        %v6090 = vld [vmem:[#allocation3 + $0x11f] sm:$0xff]
        %v6091 = vsel %vm4528, 0.0, %v6059
        %v6092 = vsel %vm4529, 0.0, %v6060
        %v6093 = vsel %vm4530, 0.0, %v6061
        %v6094 = vsel %vm4531, 0.0, %v6062
        %v6095 = vsel %vm4532, 0.0, %v6063
        %v6096 = vsel %vm4533, 0.0, %v6064
        %v6097 = vsel %vm4534, 0.0, %v6065
        %v6098 = vsel %vm4535, 0.0, %v6066
        %v6099 = vsel %vm4536, 0.0, %v6067
        %v6100 = vsel %vm4537, 0.0, %v6068
        %v6101 = vsel %vm4538, 0.0, %v6069
        %v6102 = vsel %vm4539, 0.0, %v6070
        %v6103 = vsel %vm4540, 0.0, %v6071
        %v6104 = vsel %vm4541, 0.0, %v6072
        %v6105 = vsel %vm4542, 0.0, %v6073
        %v6106 = vsel %vm4543, 0.0, %v6074
        %v6107 = vsel %vm4544, 0.0, %v6075
        %v6108 = vsel %vm4545, 0.0, %v6076
        %v6109 = vsel %vm4546, 0.0, %v6077
        %v6110 = vsel %vm4547, 0.0, %v6078
        %v6111 = vsel %vm4548, 0.0, %v6079
        %v6112 = vsel %vm4549, 0.0, %v6080
        %v6113 = vsel %vm4550, 0.0, %v6081
        %v6114 = vsel %vm4551, 0.0, %v6082
        %v6115 = vsel %vm4552, 0.0, %v6083
        %v6116 = vsel %vm4553, 0.0, %v6084
        %v6117 = vsel %vm4554, 0.0, %v6085
        %v6118 = vsel %vm4555, 0.0, %v6086
        %v6119 = vsel %vm4556, 0.0, %v6087
        %v6120 = vsel %vm4557, 0.0, %v6088
        %v6121 = vsel %vm4558, 0.0, %v6089
        %v6122 = vsel %vm4559, 0.0, %v6090
        %v6123 = vpack.c.bf16 %v6092, %v6091
        %v6124 = vpack.c.bf16 %v6094, %v6093
        %v6125 = vpack.c.bf16 %v6096, %v6095
        %v6126 = vpack.c.bf16 %v6098, %v6097
        %v6127 = vpack.c.bf16 %v6100, %v6099
        %v6128 = vpack.c.bf16 %v6102, %v6101
        %v6129 = vpack.c.bf16 %v6104, %v6103
        %v6130 = vpack.c.bf16 %v6106, %v6105
        %v6131 = vpack.c.bf16 %v6108, %v6107
        %v6132 = vpack.c.bf16 %v6110, %v6109
        %v6133 = vpack.c.bf16 %v6112, %v6111
        %v6134 = vpack.c.bf16 %v6114, %v6113
        %v6135 = vpack.c.bf16 %v6116, %v6115
        %v6136 = vpack.c.bf16 %v6118, %v6117
        %v6137 = vpack.c.bf16 %v6120, %v6119
        %v6138 = vpack.c.bf16 %v6122, %v6121
        %s6139 = scalar_lea.vmem %s3, 96
        %v6140 = vld [vmem:[%s6139] sm:$0xf]
        %v6141 = vld [vmem:[%s6139 + $0x4] sm:$0xf]
        %v6142 = vld [vmem:[%s6139 + $0x8] sm:$0xf]
        %v6143 = vld [vmem:[%s6139 + $0xc] sm:$0xf]
        %v6148 = vunpack.c.l.b16 %v6140
        %v6149 = vunpack.c.l.b16 %v6141
        %v6150 = vunpack.c.l.b16 %v6142
        %v6151 = vunpack.c.l.b16 %v6143
        %v6152 = vpack.c.b16 %v6149, %v6148
        %v6153 = vpack.c.b16 %v6151, %v6150
        %v6157 = vsel %vm2223, %v6123, 0
        %v6160 = vsel %vm2223, %v6124, 0
        %v6163 = vsel %vm2223, %v6125, 0
        %v6166 = vsel %vm2223, %v6126, 0
        %v6169 = vsel %vm2223, %v6127, 0
        %v6172 = vsel %vm2223, %v6128, 0
        %v6175 = vsel %vm2223, %v6129, 0
        %v6178 = vsel %vm2223, %v6130, 0
        %v6181 = vsel %vm2223, %v6131, 0
        %v6184 = vsel %vm2223, %v6132, 0
        %v6187 = vsel %vm2223, %v6133, 0
        %v6190 = vsel %vm2223, %v6134, 0
        %v6193 = vsel %vm2223, %v6135, 0
        %v6196 = vsel %vm2223, %v6136, 0
        %v6199 = vsel %vm2223, %v6137, 0
        %v6202 = vsel %vm2223, %v6138, 0
        %6204 = vmatpush.bf16.msra.mxu0 0
        %6205 = vmatpush.bf16.msra.mxu0 0
        %6206 = vmatpush.bf16.msra.mxu0 0
        %6207 = vmatpush.bf16.msra.mxu0 0
        %6208 = vmatpush.bf16.msra.mxu0 0
        %6209 = vmatpush.bf16.msra.mxu0 0
        %6210 = vmatpush.bf16.msra.mxu0 %v6153
        %6211 = vmatpush.bf16.msra.mxu0 %v6152
        %6212 = vmatmul.bf16.gmra.mxu0 %v6157
        %v6213 = vpop.f32.mrf.mxu0
        %v6214 = vadd.f32 0.0, %v6213
        %v6215 = vpop.f32.mrf.mxu0
        %v6216 = vadd.f32 0.0, %v6215
        %6217 = vmatmul.bf16.gmra.mxu0 %v6160
        %v6218 = vpop.f32.mrf.mxu0
        %v6219 = vadd.f32 0.0, %v6218
        %v6220 = vpop.f32.mrf.mxu0
        %v6221 = vadd.f32 0.0, %v6220
        %6222 = vmatmul.bf16.gmra.mxu0 %v6163
        %v6223 = vpop.f32.mrf.mxu0
        %v6224 = vadd.f32 0.0, %v6223
        %v6225 = vpop.f32.mrf.mxu0
        %v6226 = vadd.f32 0.0, %v6225
        %6227 = vmatmul.bf16.gmra.mxu0 %v6166
        %v6228 = vpop.f32.mrf.mxu0
        %v6229 = vadd.f32 0.0, %v6228
        %v6230 = vpop.f32.mrf.mxu0
        %v6231 = vadd.f32 0.0, %v6230
        %6232 = vmatmul.bf16.gmra.mxu0 %v6169
        %v6233 = vpop.f32.mrf.mxu0
        %v6234 = vadd.f32 0.0, %v6233
        %v6235 = vpop.f32.mrf.mxu0
        %v6236 = vadd.f32 0.0, %v6235
        %6237 = vmatmul.bf16.gmra.mxu0 %v6172
        %v6238 = vpop.f32.mrf.mxu0
        %v6239 = vadd.f32 0.0, %v6238
        %v6240 = vpop.f32.mrf.mxu0
        %v6241 = vadd.f32 0.0, %v6240
        %6242 = vmatmul.bf16.gmra.mxu0 %v6175
        %v6243 = vpop.f32.mrf.mxu0
        %v6244 = vadd.f32 0.0, %v6243
        %v6245 = vpop.f32.mrf.mxu0
        %v6246 = vadd.f32 0.0, %v6245
        %6247 = vmatmul.bf16.gmra.mxu0 %v6178
        %v6248 = vpop.f32.mrf.mxu0
        %v6249 = vadd.f32 0.0, %v6248
        %v6250 = vpop.f32.mrf.mxu0
        %v6251 = vadd.f32 0.0, %v6250
        %6252 = vmatmul.bf16.gmra.mxu0 %v6181
        %v6253 = vpop.f32.mrf.mxu0
        %v6254 = vadd.f32 0.0, %v6253
        %v6255 = vpop.f32.mrf.mxu0
        %v6256 = vadd.f32 0.0, %v6255
        %6257 = vmatmul.bf16.gmra.mxu0 %v6184
        %v6258 = vpop.f32.mrf.mxu0
        %v6259 = vadd.f32 0.0, %v6258
        %v6260 = vpop.f32.mrf.mxu0
        %v6261 = vadd.f32 0.0, %v6260
        %6262 = vmatmul.bf16.gmra.mxu0 %v6187
        %v6263 = vpop.f32.mrf.mxu0
        %v6264 = vadd.f32 0.0, %v6263
        %v6265 = vpop.f32.mrf.mxu0
        %v6266 = vadd.f32 0.0, %v6265
        %6267 = vmatmul.bf16.gmra.mxu0 %v6190
        %v6268 = vpop.f32.mrf.mxu0
        %v6269 = vadd.f32 0.0, %v6268
        %v6270 = vpop.f32.mrf.mxu0
        %v6271 = vadd.f32 0.0, %v6270
        %6272 = vmatmul.bf16.gmra.mxu0 %v6193
        %v6273 = vpop.f32.mrf.mxu0
        %v6274 = vadd.f32 0.0, %v6273
        %v6275 = vpop.f32.mrf.mxu0
        %v6276 = vadd.f32 0.0, %v6275
        %6277 = vmatmul.bf16.gmra.mxu0 %v6196
        %v6278 = vpop.f32.mrf.mxu0
        %v6279 = vadd.f32 0.0, %v6278
        %v6280 = vpop.f32.mrf.mxu0
        %v6281 = vadd.f32 0.0, %v6280
        %6282 = vmatmul.bf16.gmra.mxu0 %v6199
        %v6283 = vpop.f32.mrf.mxu0
        %v6284 = vadd.f32 0.0, %v6283
        %v6285 = vpop.f32.mrf.mxu0
        %v6286 = vadd.f32 0.0, %v6285
        %6287 = vmatmul.bf16.gmra.mxu0 %v6202
        %v6288 = vpop.f32.mrf.mxu0
        %v6289 = vadd.f32 0.0, %v6288
        %v6290 = vpop.f32.mrf.mxu0
        %v6291 = vadd.f32 0.0, %v6290
        %6292 = vdwg.mxu0
        %v6293 = vadd.f32 %v6027, %v6214
        %v6294 = vadd.f32 %v6028, %v6216
        %v6295 = vadd.f32 %v6029, %v6219
        %v6296 = vadd.f32 %v6030, %v6221
        %v6297 = vadd.f32 %v6031, %v6224
        %v6298 = vadd.f32 %v6032, %v6226
        %v6299 = vadd.f32 %v6033, %v6229
        %v6300 = vadd.f32 %v6034, %v6231
        %v6301 = vadd.f32 %v6035, %v6234
        %v6302 = vadd.f32 %v6036, %v6236
        %v6303 = vadd.f32 %v6037, %v6239
        %v6304 = vadd.f32 %v6038, %v6241
        %v6305 = vadd.f32 %v6039, %v6244
        %v6306 = vadd.f32 %v6040, %v6246
        %v6307 = vadd.f32 %v6041, %v6249
        %v6308 = vadd.f32 %v6042, %v6251
        %v6309 = vadd.f32 %v6043, %v6254
        %v6310 = vadd.f32 %v6044, %v6256
        %v6311 = vadd.f32 %v6045, %v6259
        %v6312 = vadd.f32 %v6046, %v6261
        %v6313 = vadd.f32 %v6047, %v6264
        %v6314 = vadd.f32 %v6048, %v6266
        %v6315 = vadd.f32 %v6049, %v6269
        %v6316 = vadd.f32 %v6050, %v6271
        %v6317 = vadd.f32 %v6051, %v6274
        %v6318 = vadd.f32 %v6052, %v6276
        %v6319 = vadd.f32 %v6053, %v6279
        %v6320 = vadd.f32 %v6054, %v6281
        %v6321 = vadd.f32 %v6055, %v6284
        %v6322 = vadd.f32 %v6056, %v6286
        %v6323 = vadd.f32 %v6057, %v6289
        %v6324 = vadd.f32 %v6058, %v6291
        %v6325 = vld [vmem:[#allocation3 + $0x28] sm:$0xff]
        %v6326 = vld [vmem:[#allocation3 + $0x30] sm:$0xff]
        %v6327 = vld [vmem:[#allocation3 + $0x38] sm:$0xff]
        %v6328 = vld [vmem:[#allocation3 + $0x40] sm:$0xff]
        %v6329 = vld [vmem:[#allocation3 + $0x48] sm:$0xff]
        %v6330 = vld [vmem:[#allocation3 + $0x50] sm:$0xff]
        %v6331 = vld [vmem:[#allocation3 + $0x58] sm:$0xff]
        %v6332 = vld [vmem:[#allocation3 + $0x60] sm:$0xff]
        %v6333 = vld [vmem:[#allocation3 + $0x68] sm:$0xff]
        %v6334 = vld [vmem:[#allocation3 + $0x70] sm:$0xff]
        %v6335 = vld [vmem:[#allocation3 + $0x78] sm:$0xff]
        %v6336 = vld [vmem:[#allocation3 + $0x80] sm:$0xff]
        %v6337 = vld [vmem:[#allocation3 + $0x88] sm:$0xff]
        %v6338 = vld [vmem:[#allocation3 + $0x90] sm:$0xff]
        %v6339 = vld [vmem:[#allocation3 + $0x98] sm:$0xff]
        %v6340 = vld [vmem:[#allocation3 + $0xa0] sm:$0xff]
        %v6341 = vld [vmem:[#allocation3 + $0xa8] sm:$0xff]
        %v6342 = vld [vmem:[#allocation3 + $0xb0] sm:$0xff]
        %v6343 = vld [vmem:[#allocation3 + $0xb8] sm:$0xff]
        %v6344 = vld [vmem:[#allocation3 + $0xc0] sm:$0xff]
        %v6345 = vld [vmem:[#allocation3 + $0xc8] sm:$0xff]
        %v6346 = vld [vmem:[#allocation3 + $0xd0] sm:$0xff]
        %v6347 = vld [vmem:[#allocation3 + $0xd8] sm:$0xff]
        %v6348 = vld [vmem:[#allocation3 + $0xe0] sm:$0xff]
        %v6349 = vld [vmem:[#allocation3 + $0xe8] sm:$0xff]
        %v6350 = vld [vmem:[#allocation3 + $0xf0] sm:$0xff]
        %v6351 = vld [vmem:[#allocation3 + $0xf8] sm:$0xff]
        %v6352 = vld [vmem:[#allocation3 + $0x100] sm:$0xff]
        %v6353 = vld [vmem:[#allocation3 + $0x108] sm:$0xff]
        %v6354 = vld [vmem:[#allocation3 + $0x110] sm:$0xff]
        %v6355 = vld [vmem:[#allocation3 + $0x118] sm:$0xff]
        %v6356 = vld [vmem:[#allocation3 + $0x120] sm:$0xff]
        %v6357 = vpack.c.bf16 %v6326, %v6325
        %v6358 = vpack.c.bf16 %v6328, %v6327
        %v6359 = vpack.c.bf16 %v6330, %v6329
        %v6360 = vpack.c.bf16 %v6332, %v6331
        %v6361 = vpack.c.bf16 %v6334, %v6333
        %v6362 = vpack.c.bf16 %v6336, %v6335
        %v6363 = vpack.c.bf16 %v6338, %v6337
        %v6364 = vpack.c.bf16 %v6340, %v6339
        %v6365 = vpack.c.bf16 %v6342, %v6341
        %v6366 = vpack.c.bf16 %v6344, %v6343
        %v6367 = vpack.c.bf16 %v6346, %v6345
        %v6368 = vpack.c.bf16 %v6348, %v6347
        %v6369 = vpack.c.bf16 %v6350, %v6349
        %v6370 = vpack.c.bf16 %v6352, %v6351
        %v6371 = vpack.c.bf16 %v6354, %v6353
        %v6372 = vpack.c.bf16 %v6356, %v6355
        %s6373 = scalar_lea.vmem %s3, 112
        %v6374 = vld [vmem:[%s6373] sm:$0xf]
        %v6375 = vld [vmem:[%s6373 + $0x4] sm:$0xf]
        %v6376 = vld [vmem:[%s6373 + $0x8] sm:$0xf]
        %v6377 = vld [vmem:[%s6373 + $0xc] sm:$0xf]
        %v6382 = vunpack.c.l.b16 %v6374
        %v6383 = vunpack.c.l.b16 %v6375
        %v6384 = vunpack.c.l.b16 %v6376
        %v6385 = vunpack.c.l.b16 %v6377
        %v6386 = vpack.c.b16 %v6383, %v6382
        %v6387 = vpack.c.b16 %v6385, %v6384
        %v6391 = vsel %vm2223, %v6357, 0
        %v6394 = vsel %vm2223, %v6358, 0
        %v6397 = vsel %vm2223, %v6359, 0
        %v6400 = vsel %vm2223, %v6360, 0
        %v6403 = vsel %vm2223, %v6361, 0
        %v6406 = vsel %vm2223, %v6362, 0
        %v6409 = vsel %vm2223, %v6363, 0
        %v6412 = vsel %vm2223, %v6364, 0
        %v6415 = vsel %vm2223, %v6365, 0
        %v6418 = vsel %vm2223, %v6366, 0
        %v6421 = vsel %vm2223, %v6367, 0
        %v6424 = vsel %vm2223, %v6368, 0
        %v6427 = vsel %vm2223, %v6369, 0
        %v6430 = vsel %vm2223, %v6370, 0
        %v6433 = vsel %vm2223, %v6371, 0
        %v6436 = vsel %vm2223, %v6372, 0
        %6438 = vmatpush.bf16.msra.mxu0 0
        %6439 = vmatpush.bf16.msra.mxu0 0
        %6440 = vmatpush.bf16.msra.mxu0 0
        %6441 = vmatpush.bf16.msra.mxu0 0
        %6442 = vmatpush.bf16.msra.mxu0 0
        %6443 = vmatpush.bf16.msra.mxu0 0
        %6444 = vmatpush.bf16.msra.mxu0 %v6387
        %6445 = vmatpush.bf16.msra.mxu0 %v6386
        %6446 = vmatmul.bf16.gmra.mxu0 %v6391
        %v6447 = vpop.f32.mrf.mxu0
        %v6448 = vadd.f32 0.0, %v6447
        %v6449 = vpop.f32.mrf.mxu0
        %v6450 = vadd.f32 0.0, %v6449
        %6451 = vmatmul.bf16.gmra.mxu0 %v6394
        %v6452 = vpop.f32.mrf.mxu0
        %v6453 = vadd.f32 0.0, %v6452
        %v6454 = vpop.f32.mrf.mxu0
        %v6455 = vadd.f32 0.0, %v6454
        %6456 = vmatmul.bf16.gmra.mxu0 %v6397
        %v6457 = vpop.f32.mrf.mxu0
        %v6458 = vadd.f32 0.0, %v6457
        %v6459 = vpop.f32.mrf.mxu0
        %v6460 = vadd.f32 0.0, %v6459
        %6461 = vmatmul.bf16.gmra.mxu0 %v6400
        %v6462 = vpop.f32.mrf.mxu0
        %v6463 = vadd.f32 0.0, %v6462
        %v6464 = vpop.f32.mrf.mxu0
        %v6465 = vadd.f32 0.0, %v6464
        %6466 = vmatmul.bf16.gmra.mxu0 %v6403
        %v6467 = vpop.f32.mrf.mxu0
        %v6468 = vadd.f32 0.0, %v6467
        %v6469 = vpop.f32.mrf.mxu0
        %v6470 = vadd.f32 0.0, %v6469
        %6471 = vmatmul.bf16.gmra.mxu0 %v6406
        %v6472 = vpop.f32.mrf.mxu0
        %v6473 = vadd.f32 0.0, %v6472
        %v6474 = vpop.f32.mrf.mxu0
        %v6475 = vadd.f32 0.0, %v6474
        %6476 = vmatmul.bf16.gmra.mxu0 %v6409
        %v6477 = vpop.f32.mrf.mxu0
        %v6478 = vadd.f32 0.0, %v6477
        %v6479 = vpop.f32.mrf.mxu0
        %v6480 = vadd.f32 0.0, %v6479
        %6481 = vmatmul.bf16.gmra.mxu0 %v6412
        %v6482 = vpop.f32.mrf.mxu0
        %v6483 = vadd.f32 0.0, %v6482
        %v6484 = vpop.f32.mrf.mxu0
        %v6485 = vadd.f32 0.0, %v6484
        %6486 = vmatmul.bf16.gmra.mxu0 %v6415
        %v6487 = vpop.f32.mrf.mxu0
        %v6488 = vadd.f32 0.0, %v6487
        %v6489 = vpop.f32.mrf.mxu0
        %v6490 = vadd.f32 0.0, %v6489
        %6491 = vmatmul.bf16.gmra.mxu0 %v6418
        %v6492 = vpop.f32.mrf.mxu0
        %v6493 = vadd.f32 0.0, %v6492
        %v6494 = vpop.f32.mrf.mxu0
        %v6495 = vadd.f32 0.0, %v6494
        %6496 = vmatmul.bf16.gmra.mxu0 %v6421
        %v6497 = vpop.f32.mrf.mxu0
        %v6498 = vadd.f32 0.0, %v6497
        %v6499 = vpop.f32.mrf.mxu0
        %v6500 = vadd.f32 0.0, %v6499
        %6501 = vmatmul.bf16.gmra.mxu0 %v6424
        %v6502 = vpop.f32.mrf.mxu0
        %v6503 = vadd.f32 0.0, %v6502
        %v6504 = vpop.f32.mrf.mxu0
        %v6505 = vadd.f32 0.0, %v6504
        %6506 = vmatmul.bf16.gmra.mxu0 %v6427
        %v6507 = vpop.f32.mrf.mxu0
        %v6508 = vadd.f32 0.0, %v6507
        %v6509 = vpop.f32.mrf.mxu0
        %v6510 = vadd.f32 0.0, %v6509
        %6511 = vmatmul.bf16.gmra.mxu0 %v6430
        %v6512 = vpop.f32.mrf.mxu0
        %v6513 = vadd.f32 0.0, %v6512
        %v6514 = vpop.f32.mrf.mxu0
        %v6515 = vadd.f32 0.0, %v6514
        %6516 = vmatmul.bf16.gmra.mxu0 %v6433
        %v6517 = vpop.f32.mrf.mxu0
        %v6518 = vadd.f32 0.0, %v6517
        %v6519 = vpop.f32.mrf.mxu0
        %v6520 = vadd.f32 0.0, %v6519
        %6521 = vmatmul.bf16.gmra.mxu0 %v6436
        %v6522 = vpop.f32.mrf.mxu0
        %v6523 = vadd.f32 0.0, %v6522
        %v6524 = vpop.f32.mrf.mxu0
        %v6525 = vadd.f32 0.0, %v6524
        %6526 = vdwg.mxu0
        %v6527 = vadd.f32 %v6293, %v6448
        %v6528 = vadd.f32 %v6294, %v6450
        %v6529 = vadd.f32 %v6295, %v6453
        %v6530 = vadd.f32 %v6296, %v6455
        %v6531 = vadd.f32 %v6297, %v6458
        %v6532 = vadd.f32 %v6298, %v6460
        %v6533 = vadd.f32 %v6299, %v6463
        %v6534 = vadd.f32 %v6300, %v6465
        %v6535 = vadd.f32 %v6301, %v6468
        %v6536 = vadd.f32 %v6302, %v6470
        %v6537 = vadd.f32 %v6303, %v6473
        %v6538 = vadd.f32 %v6304, %v6475
        %v6539 = vadd.f32 %v6305, %v6478
        %v6540 = vadd.f32 %v6306, %v6480
        %v6541 = vadd.f32 %v6307, %v6483
        %v6542 = vadd.f32 %v6308, %v6485
        %v6543 = vadd.f32 %v6309, %v6488
        %v6544 = vadd.f32 %v6310, %v6490
        %v6545 = vadd.f32 %v6311, %v6493
        %v6546 = vadd.f32 %v6312, %v6495
        %v6547 = vadd.f32 %v6313, %v6498
        %v6548 = vadd.f32 %v6314, %v6500
        %v6549 = vadd.f32 %v6315, %v6503
        %v6550 = vadd.f32 %v6316, %v6505
        %v6551 = vadd.f32 %v6317, %v6508
        %v6552 = vadd.f32 %v6318, %v6510
        %v6553 = vadd.f32 %v6319, %v6513
        %v6554 = vadd.f32 %v6320, %v6515
        %v6555 = vadd.f32 %v6321, %v6518
        %v6556 = vadd.f32 %v6322, %v6520
        %v6557 = vadd.f32 %v6323, %v6523
        %v6558 = vadd.f32 %v6324, %v6525
        %v6559 = vld [vmem:[#allocation3 + $0x29] sm:$0xff]
        %v6560 = vld [vmem:[#allocation3 + $0x31] sm:$0xff]
        %v6561 = vld [vmem:[#allocation3 + $0x39] sm:$0xff]
        %v6562 = vld [vmem:[#allocation3 + $0x41] sm:$0xff]
        %v6563 = vld [vmem:[#allocation3 + $0x49] sm:$0xff]
        %v6564 = vld [vmem:[#allocation3 + $0x51] sm:$0xff]
        %v6565 = vld [vmem:[#allocation3 + $0x59] sm:$0xff]
        %v6566 = vld [vmem:[#allocation3 + $0x61] sm:$0xff]
        %v6567 = vld [vmem:[#allocation3 + $0x69] sm:$0xff]
        %v6568 = vld [vmem:[#allocation3 + $0x71] sm:$0xff]
        %v6569 = vld [vmem:[#allocation3 + $0x79] sm:$0xff]
        %v6570 = vld [vmem:[#allocation3 + $0x81] sm:$0xff]
        %v6571 = vld [vmem:[#allocation3 + $0x89] sm:$0xff]
        %v6572 = vld [vmem:[#allocation3 + $0x91] sm:$0xff]
        %v6573 = vld [vmem:[#allocation3 + $0x99] sm:$0xff]
        %v6574 = vld [vmem:[#allocation3 + $0xa1] sm:$0xff]
        %v6575 = vld [vmem:[#allocation3 + $0xa9] sm:$0xff]
        %v6576 = vld [vmem:[#allocation3 + $0xb1] sm:$0xff]
        %v6577 = vld [vmem:[#allocation3 + $0xb9] sm:$0xff]
        %v6578 = vld [vmem:[#allocation3 + $0xc1] sm:$0xff]
        %v6579 = vld [vmem:[#allocation3 + $0xc9] sm:$0xff]
        %v6580 = vld [vmem:[#allocation3 + $0xd1] sm:$0xff]
        %v6581 = vld [vmem:[#allocation3 + $0xd9] sm:$0xff]
        %v6582 = vld [vmem:[#allocation3 + $0xe1] sm:$0xff]
        %v6583 = vld [vmem:[#allocation3 + $0xe9] sm:$0xff]
        %v6584 = vld [vmem:[#allocation3 + $0xf1] sm:$0xff]
        %v6585 = vld [vmem:[#allocation3 + $0xf9] sm:$0xff]
        %v6586 = vld [vmem:[#allocation3 + $0x101] sm:$0xff]
        %v6587 = vld [vmem:[#allocation3 + $0x109] sm:$0xff]
        %v6588 = vld [vmem:[#allocation3 + $0x111] sm:$0xff]
        %v6589 = vld [vmem:[#allocation3 + $0x119] sm:$0xff]
        %v6590 = vld [vmem:[#allocation3 + $0x121] sm:$0xff]
        %v6591 = vsel %vm4560, 0.0, %v6559
        %v6592 = vsel %vm4561, 0.0, %v6560
        %v6593 = vsel %vm4562, 0.0, %v6561
        %v6594 = vsel %vm4563, 0.0, %v6562
        %v6595 = vsel %vm4564, 0.0, %v6563
        %v6596 = vsel %vm4565, 0.0, %v6564
        %v6597 = vsel %vm4566, 0.0, %v6565
        %v6598 = vsel %vm4567, 0.0, %v6566
        %v6599 = vsel %vm4568, 0.0, %v6567
        %v6600 = vsel %vm4569, 0.0, %v6568
        %v6601 = vsel %vm4570, 0.0, %v6569
        %v6602 = vsel %vm4571, 0.0, %v6570
        %v6603 = vsel %vm4572, 0.0, %v6571
        %v6604 = vsel %vm4573, 0.0, %v6572
        %v6605 = vsel %vm4574, 0.0, %v6573
        %v6606 = vsel %vm4575, 0.0, %v6574
        %v6607 = vsel %vm4576, 0.0, %v6575
        %v6608 = vsel %vm4577, 0.0, %v6576
        %v6609 = vsel %vm4578, 0.0, %v6577
        %v6610 = vsel %vm4579, 0.0, %v6578
        %v6611 = vsel %vm4580, 0.0, %v6579
        %v6612 = vsel %vm4581, 0.0, %v6580
        %v6613 = vsel %vm4582, 0.0, %v6581
        %v6614 = vsel %vm4583, 0.0, %v6582
        %v6615 = vsel %vm4584, 0.0, %v6583
        %v6616 = vsel %vm4585, 0.0, %v6584
        %v6617 = vsel %vm4586, 0.0, %v6585
        %v6618 = vsel %vm4587, 0.0, %v6586
        %v6619 = vsel %vm4588, 0.0, %v6587
        %v6620 = vsel %vm4589, 0.0, %v6588
        %v6621 = vsel %vm4590, 0.0, %v6589
        %v6622 = vsel %vm4591, 0.0, %v6590
        %v6623 = vpack.c.bf16 %v6592, %v6591
        %v6624 = vpack.c.bf16 %v6594, %v6593
        %v6625 = vpack.c.bf16 %v6596, %v6595
        %v6626 = vpack.c.bf16 %v6598, %v6597
        %v6627 = vpack.c.bf16 %v6600, %v6599
        %v6628 = vpack.c.bf16 %v6602, %v6601
        %v6629 = vpack.c.bf16 %v6604, %v6603
        %v6630 = vpack.c.bf16 %v6606, %v6605
        %v6631 = vpack.c.bf16 %v6608, %v6607
        %v6632 = vpack.c.bf16 %v6610, %v6609
        %v6633 = vpack.c.bf16 %v6612, %v6611
        %v6634 = vpack.c.bf16 %v6614, %v6613
        %v6635 = vpack.c.bf16 %v6616, %v6615
        %v6636 = vpack.c.bf16 %v6618, %v6617
        %v6637 = vpack.c.bf16 %v6620, %v6619
        %v6638 = vpack.c.bf16 %v6622, %v6621
        %s6639 = scalar_lea.vmem %s3, 128
        %v6640 = vld [vmem:[%s6639] sm:$0xf]
        %v6641 = vld [vmem:[%s6639 + $0x4] sm:$0xf]
        %v6642 = vld [vmem:[%s6639 + $0x8] sm:$0xf]
        %v6643 = vld [vmem:[%s6639 + $0xc] sm:$0xf]
        %v6648 = vunpack.c.l.b16 %v6640
        %v6649 = vunpack.c.l.b16 %v6641
        %v6650 = vunpack.c.l.b16 %v6642
        %v6651 = vunpack.c.l.b16 %v6643
        %v6652 = vpack.c.b16 %v6649, %v6648
        %v6653 = vpack.c.b16 %v6651, %v6650
        %v6657 = vsel %vm2223, %v6623, 0
        %v6660 = vsel %vm2223, %v6624, 0
        %v6663 = vsel %vm2223, %v6625, 0
        %v6666 = vsel %vm2223, %v6626, 0
        %v6669 = vsel %vm2223, %v6627, 0
        %v6672 = vsel %vm2223, %v6628, 0
        %v6675 = vsel %vm2223, %v6629, 0
        %v6678 = vsel %vm2223, %v6630, 0
        %v6681 = vsel %vm2223, %v6631, 0
        %v6684 = vsel %vm2223, %v6632, 0
        %v6687 = vsel %vm2223, %v6633, 0
        %v6690 = vsel %vm2223, %v6634, 0
        %v6693 = vsel %vm2223, %v6635, 0
        %v6696 = vsel %vm2223, %v6636, 0
        %v6699 = vsel %vm2223, %v6637, 0
        %v6702 = vsel %vm2223, %v6638, 0
        %6704 = vmatpush.bf16.msra.mxu0 0
        %6705 = vmatpush.bf16.msra.mxu0 0
        %6706 = vmatpush.bf16.msra.mxu0 0
        %6707 = vmatpush.bf16.msra.mxu0 0
        %6708 = vmatpush.bf16.msra.mxu0 0
        %6709 = vmatpush.bf16.msra.mxu0 0
        %6710 = vmatpush.bf16.msra.mxu0 %v6653
        %6711 = vmatpush.bf16.msra.mxu0 %v6652
        %6712 = vmatmul.bf16.gmra.mxu0 %v6657
        %v6713 = vpop.f32.mrf.mxu0
        %v6714 = vadd.f32 0.0, %v6713
        %v6715 = vpop.f32.mrf.mxu0
        %v6716 = vadd.f32 0.0, %v6715
        %6717 = vmatmul.bf16.gmra.mxu0 %v6660
        %v6718 = vpop.f32.mrf.mxu0
        %v6719 = vadd.f32 0.0, %v6718
        %v6720 = vpop.f32.mrf.mxu0
        %v6721 = vadd.f32 0.0, %v6720
        %6722 = vmatmul.bf16.gmra.mxu0 %v6663
        %v6723 = vpop.f32.mrf.mxu0
        %v6724 = vadd.f32 0.0, %v6723
        %v6725 = vpop.f32.mrf.mxu0
        %v6726 = vadd.f32 0.0, %v6725
        %6727 = vmatmul.bf16.gmra.mxu0 %v6666
        %v6728 = vpop.f32.mrf.mxu0
        %v6729 = vadd.f32 0.0, %v6728
        %v6730 = vpop.f32.mrf.mxu0
        %v6731 = vadd.f32 0.0, %v6730
        %6732 = vmatmul.bf16.gmra.mxu0 %v6669
        %v6733 = vpop.f32.mrf.mxu0
        %v6734 = vadd.f32 0.0, %v6733
        %v6735 = vpop.f32.mrf.mxu0
        %v6736 = vadd.f32 0.0, %v6735
        %6737 = vmatmul.bf16.gmra.mxu0 %v6672
        %v6738 = vpop.f32.mrf.mxu0
        %v6739 = vadd.f32 0.0, %v6738
        %v6740 = vpop.f32.mrf.mxu0
        %v6741 = vadd.f32 0.0, %v6740
        %6742 = vmatmul.bf16.gmra.mxu0 %v6675
        %v6743 = vpop.f32.mrf.mxu0
        %v6744 = vadd.f32 0.0, %v6743
        %v6745 = vpop.f32.mrf.mxu0
        %v6746 = vadd.f32 0.0, %v6745
        %6747 = vmatmul.bf16.gmra.mxu0 %v6678
        %v6748 = vpop.f32.mrf.mxu0
        %v6749 = vadd.f32 0.0, %v6748
        %v6750 = vpop.f32.mrf.mxu0
        %v6751 = vadd.f32 0.0, %v6750
        %6752 = vmatmul.bf16.gmra.mxu0 %v6681
        %v6753 = vpop.f32.mrf.mxu0
        %v6754 = vadd.f32 0.0, %v6753
        %v6755 = vpop.f32.mrf.mxu0
        %v6756 = vadd.f32 0.0, %v6755
        %6757 = vmatmul.bf16.gmra.mxu0 %v6684
        %v6758 = vpop.f32.mrf.mxu0
        %v6759 = vadd.f32 0.0, %v6758
        %v6760 = vpop.f32.mrf.mxu0
        %v6761 = vadd.f32 0.0, %v6760
        %6762 = vmatmul.bf16.gmra.mxu0 %v6687
        %v6763 = vpop.f32.mrf.mxu0
        %v6764 = vadd.f32 0.0, %v6763
        %v6765 = vpop.f32.mrf.mxu0
        %v6766 = vadd.f32 0.0, %v6765
        %6767 = vmatmul.bf16.gmra.mxu0 %v6690
        %v6768 = vpop.f32.mrf.mxu0
        %v6769 = vadd.f32 0.0, %v6768
        %v6770 = vpop.f32.mrf.mxu0
        %v6771 = vadd.f32 0.0, %v6770
        %6772 = vmatmul.bf16.gmra.mxu0 %v6693
        %v6773 = vpop.f32.mrf.mxu0
        %v6774 = vadd.f32 0.0, %v6773
        %v6775 = vpop.f32.mrf.mxu0
        %v6776 = vadd.f32 0.0, %v6775
        %6777 = vmatmul.bf16.gmra.mxu0 %v6696
        %v6778 = vpop.f32.mrf.mxu0
        %v6779 = vadd.f32 0.0, %v6778
        %v6780 = vpop.f32.mrf.mxu0
        %v6781 = vadd.f32 0.0, %v6780
        %6782 = vmatmul.bf16.gmra.mxu0 %v6699
        %v6783 = vpop.f32.mrf.mxu0
        %v6784 = vadd.f32 0.0, %v6783
        %v6785 = vpop.f32.mrf.mxu0
        %v6786 = vadd.f32 0.0, %v6785
        %6787 = vmatmul.bf16.gmra.mxu0 %v6702
        %v6788 = vpop.f32.mrf.mxu0
        %v6789 = vadd.f32 0.0, %v6788
        %v6790 = vpop.f32.mrf.mxu0
        %v6791 = vadd.f32 0.0, %v6790
        %6792 = vdwg.mxu0
        %v6793 = vadd.f32 %v6527, %v6714
        %v6794 = vadd.f32 %v6528, %v6716
        %v6795 = vadd.f32 %v6529, %v6719
        %v6796 = vadd.f32 %v6530, %v6721
        %v6797 = vadd.f32 %v6531, %v6724
        %v6798 = vadd.f32 %v6532, %v6726
        %v6799 = vadd.f32 %v6533, %v6729
        %v6800 = vadd.f32 %v6534, %v6731
        %v6801 = vadd.f32 %v6535, %v6734
        %v6802 = vadd.f32 %v6536, %v6736
        %v6803 = vadd.f32 %v6537, %v6739
        %v6804 = vadd.f32 %v6538, %v6741
        %v6805 = vadd.f32 %v6539, %v6744
        %v6806 = vadd.f32 %v6540, %v6746
        %v6807 = vadd.f32 %v6541, %v6749
        %v6808 = vadd.f32 %v6542, %v6751
        %v6809 = vadd.f32 %v6543, %v6754
        %v6810 = vadd.f32 %v6544, %v6756
        %v6811 = vadd.f32 %v6545, %v6759
        %v6812 = vadd.f32 %v6546, %v6761
        %v6813 = vadd.f32 %v6547, %v6764
        %v6814 = vadd.f32 %v6548, %v6766
        %v6815 = vadd.f32 %v6549, %v6769
        %v6816 = vadd.f32 %v6550, %v6771
        %v6817 = vadd.f32 %v6551, %v6774
        %v6818 = vadd.f32 %v6552, %v6776
        %v6819 = vadd.f32 %v6553, %v6779
        %v6820 = vadd.f32 %v6554, %v6781
        %v6821 = vadd.f32 %v6555, %v6784
        %v6822 = vadd.f32 %v6556, %v6786
        %v6823 = vadd.f32 %v6557, %v6789
        %v6824 = vadd.f32 %v6558, %v6791
        %v6825 = vld [vmem:[%s4] sm:$0x1]
        %v6827 = vperm.slane %v6825, 0
        %v6829 = vadd.f32 %v6793, %v6827
        %v6830 = vadd.f32 %v6794, %v6827
        %v6831 = vadd.f32 %v6795, %v6827
        %v6832 = vadd.f32 %v6796, %v6827
        %v6833 = vadd.f32 %v6797, %v6827
        %v6834 = vadd.f32 %v6798, %v6827
        %v6835 = vadd.f32 %v6799, %v6827
        %v6836 = vadd.f32 %v6800, %v6827
        %v6837 = vadd.f32 %v6801, %v6827
        %v6838 = vadd.f32 %v6802, %v6827
        %v6839 = vadd.f32 %v6803, %v6827
        %v6840 = vadd.f32 %v6804, %v6827
        %v6841 = vadd.f32 %v6805, %v6827
        %v6842 = vadd.f32 %v6806, %v6827
        %v6843 = vadd.f32 %v6807, %v6827
        %v6844 = vadd.f32 %v6808, %v6827
        %v6845 = vadd.f32 %v6809, %v6827
        %v6846 = vadd.f32 %v6810, %v6827
        %v6847 = vadd.f32 %v6811, %v6827
        %v6848 = vadd.f32 %v6812, %v6827
        %v6849 = vadd.f32 %v6813, %v6827
        %v6850 = vadd.f32 %v6814, %v6827
        %v6851 = vadd.f32 %v6815, %v6827
        %v6852 = vadd.f32 %v6816, %v6827
        %v6853 = vadd.f32 %v6817, %v6827
        %v6854 = vadd.f32 %v6818, %v6827
        %v6855 = vadd.f32 %v6819, %v6827
        %v6856 = vadd.f32 %v6820, %v6827
        %v6857 = vadd.f32 %v6821, %v6827
        %v6858 = vadd.f32 %v6822, %v6827
        %v6859 = vadd.f32 %v6823, %v6827
        %v6860 = vadd.f32 %v6824, %v6827
        %v6861 = vmax.f32 %v6829, 0.0
        %v6862 = vmax.f32 %v6830, 0.0
        %v6863 = vmax.f32 %v6831, 0.0
        %v6864 = vmax.f32 %v6832, 0.0
        %v6865 = vmax.f32 %v6833, 0.0
        %v6866 = vmax.f32 %v6834, 0.0
        %v6867 = vmax.f32 %v6835, 0.0
        %v6868 = vmax.f32 %v6836, 0.0
        %v6869 = vmax.f32 %v6837, 0.0
        %v6870 = vmax.f32 %v6838, 0.0
        %v6871 = vmax.f32 %v6839, 0.0
        %v6872 = vmax.f32 %v6840, 0.0
        %v6873 = vmax.f32 %v6841, 0.0
        %v6874 = vmax.f32 %v6842, 0.0
        %v6875 = vmax.f32 %v6843, 0.0
        %v6876 = vmax.f32 %v6844, 0.0
        %v6877 = vmax.f32 %v6845, 0.0
        %v6878 = vmax.f32 %v6846, 0.0
        %v6879 = vmax.f32 %v6847, 0.0
        %v6880 = vmax.f32 %v6848, 0.0
        %v6881 = vmax.f32 %v6849, 0.0
        %v6882 = vmax.f32 %v6850, 0.0
        %v6883 = vmax.f32 %v6851, 0.0
        %v6884 = vmax.f32 %v6852, 0.0
        %v6885 = vmax.f32 %v6853, 0.0
        %v6886 = vmax.f32 %v6854, 0.0
        %v6887 = vmax.f32 %v6855, 0.0
        %v6888 = vmax.f32 %v6856, 0.0
        %v6889 = vmax.f32 %v6857, 0.0
        %v6890 = vmax.f32 %v6858, 0.0
        %v6891 = vmax.f32 %v6859, 0.0
        %v6892 = vmax.f32 %v6860, 0.0
        %6893 = vst.msk [vmem:[#allocation4] sm:$0xff] %vm1244, %v6861
        %6894 = vst.msk [vmem:[#allocation4 + $0x8] sm:$0xff] %vm1244, %v6862
        %6895 = vst.msk [vmem:[#allocation4 + $0x10] sm:$0xff] %vm1244, %v6863
        %6896 = vst.msk [vmem:[#allocation4 + $0x18] sm:$0xff] %vm1244, %v6864
        %6897 = vst.msk [vmem:[#allocation4 + $0x20] sm:$0xff] %vm1244, %v6865
        %6898 = vst.msk [vmem:[#allocation4 + $0x28] sm:$0xff] %vm1244, %v6866
        %6899 = vst.msk [vmem:[#allocation4 + $0x30] sm:$0xff] %vm1244, %v6867
        %6900 = vst.msk [vmem:[#allocation4 + $0x38] sm:$0xff] %vm1244, %v6868
        %6901 = vst.msk [vmem:[#allocation4 + $0x40] sm:$0xff] %vm1244, %v6869
        %6902 = vst.msk [vmem:[#allocation4 + $0x48] sm:$0xff] %vm1244, %v6870
        %6903 = vst.msk [vmem:[#allocation4 + $0x50] sm:$0xff] %vm1244, %v6871
        %6904 = vst.msk [vmem:[#allocation4 + $0x58] sm:$0xff] %vm1244, %v6872
        %6905 = vst.msk [vmem:[#allocation4 + $0x60] sm:$0xff] %vm1244, %v6873
        %6906 = vst.msk [vmem:[#allocation4 + $0x68] sm:$0xff] %vm1244, %v6874
        %6907 = vst.msk [vmem:[#allocation4 + $0x70] sm:$0xff] %vm1244, %v6875
        %6908 = vst.msk [vmem:[#allocation4 + $0x78] sm:$0xff] %vm1244, %v6876
        %6909 = vst.msk [vmem:[#allocation4 + $0x80] sm:$0xff] %vm1244, %v6877
        %6910 = vst.msk [vmem:[#allocation4 + $0x88] sm:$0xff] %vm1244, %v6878
        %6911 = vst.msk [vmem:[#allocation4 + $0x90] sm:$0xff] %vm1244, %v6879
        %6912 = vst.msk [vmem:[#allocation4 + $0x98] sm:$0xff] %vm1244, %v6880
        %6913 = vst.msk [vmem:[#allocation4 + $0xa0] sm:$0xff] %vm1244, %v6881
        %6914 = vst.msk [vmem:[#allocation4 + $0xa8] sm:$0xff] %vm1244, %v6882
        %6915 = vst.msk [vmem:[#allocation4 + $0xb0] sm:$0xff] %vm1244, %v6883
        %6916 = vst.msk [vmem:[#allocation4 + $0xb8] sm:$0xff] %vm1244, %v6884
        %6917 = vst.msk [vmem:[#allocation4 + $0xc0] sm:$0xff] %vm1244, %v6885
        %6918 = vst.msk [vmem:[#allocation4 + $0xc8] sm:$0xff] %vm1244, %v6886
        %6919 = vst.msk [vmem:[#allocation4 + $0xd0] sm:$0xff] %vm1244, %v6887
        %6920 = vst.msk [vmem:[#allocation4 + $0xd8] sm:$0xff] %vm1244, %v6888
        %6921 = vst.msk [vmem:[#allocation4 + $0xe0] sm:$0xff] %vm1244, %v6889
        %6922 = vst.msk [vmem:[#allocation4 + $0xe8] sm:$0xff] %vm1244, %v6890
        %6923 = vst.msk [vmem:[#allocation4 + $0xf0] sm:$0xff] %vm1244, %v6891
        %6924 = vst.msk [vmem:[#allocation4 + $0xf8] sm:$0xff] %vm1244, %v6892
        %6925 = vst.msk [vmem:[#allocation4 + $0x100] sm:$0xff] %vm1244, 0.0
        %6926 = vst.msk [vmem:[#allocation4 + $0x108] sm:$0xff] %vm1244, 0.0
        %6927 = vst.msk [vmem:[#allocation4 + $0x110] sm:$0xff] %vm1244, 0.0
        %v6928 = vld [vmem:[#allocation4] sm:$0xff]
        %v6929 = vld [vmem:[#allocation4 + $0x8] sm:$0xff]
        %v6930 = vld [vmem:[#allocation4 + $0x10] sm:$0xff]
        %v6931 = vld [vmem:[#allocation4 + $0x18] sm:$0xff]
        %v6932 = vld [vmem:[#allocation4 + $0x20] sm:$0xff]
        %v6933 = vld [vmem:[#allocation4 + $0x28] sm:$0xff]
        %v6934 = vld [vmem:[#allocation4 + $0x30] sm:$0xff]
        %v6935 = vld [vmem:[#allocation4 + $0x38] sm:$0xff]
        %v6936 = vld [vmem:[#allocation4 + $0x40] sm:$0xff]
        %v6937 = vld [vmem:[#allocation4 + $0x48] sm:$0xff]
        %v6938 = vld [vmem:[#allocation4 + $0x50] sm:$0xff]
        %v6939 = vld [vmem:[#allocation4 + $0x58] sm:$0xff]
        %v6940 = vld [vmem:[#allocation4 + $0x60] sm:$0xff]
        %v6941 = vld [vmem:[#allocation4 + $0x68] sm:$0xff]
        %v6942 = vld [vmem:[#allocation4 + $0x70] sm:$0xff]
        %v6943 = vld [vmem:[#allocation4 + $0x78] sm:$0xff]
        %v6944 = vld [vmem:[#allocation4 + $0x80] sm:$0xff]
        %v6945 = vld [vmem:[#allocation4 + $0x88] sm:$0xff]
        %v6946 = vld [vmem:[#allocation4 + $0x90] sm:$0xff]
        %v6947 = vld [vmem:[#allocation4 + $0x98] sm:$0xff]
        %v6948 = vld [vmem:[#allocation4 + $0xa0] sm:$0xff]
        %v6949 = vld [vmem:[#allocation4 + $0xa8] sm:$0xff]
        %v6950 = vld [vmem:[#allocation4 + $0xb0] sm:$0xff]
        %v6951 = vld [vmem:[#allocation4 + $0xb8] sm:$0xff]
        %v6952 = vld [vmem:[#allocation4 + $0xc0] sm:$0xff]
        %v6953 = vld [vmem:[#allocation4 + $0xc8] sm:$0xff]
        %v6954 = vld [vmem:[#allocation4 + $0xd0] sm:$0xff]
        %v6955 = vld [vmem:[#allocation4 + $0xd8] sm:$0xff]
        %v6956 = vld [vmem:[#allocation4 + $0xe0] sm:$0xff]
        %v6957 = vld [vmem:[#allocation4 + $0xe8] sm:$0xff]
        %v6958 = vld [vmem:[#allocation4 + $0xf0] sm:$0xff]
        %v6959 = vld [vmem:[#allocation4 + $0xf8] sm:$0xff]
        %v6960 = vld [vmem:[#allocation4 + $0x1] sm:$0xff]
        %v6961 = vld [vmem:[#allocation4 + $0x9] sm:$0xff]
        %v6962 = vld [vmem:[#allocation4 + $0x11] sm:$0xff]
        %v6963 = vld [vmem:[#allocation4 + $0x19] sm:$0xff]
        %v6964 = vld [vmem:[#allocation4 + $0x21] sm:$0xff]
        %v6965 = vld [vmem:[#allocation4 + $0x29] sm:$0xff]
        %v6966 = vld [vmem:[#allocation4 + $0x31] sm:$0xff]
        %v6967 = vld [vmem:[#allocation4 + $0x39] sm:$0xff]
        %v6968 = vld [vmem:[#allocation4 + $0x41] sm:$0xff]
        %v6969 = vld [vmem:[#allocation4 + $0x49] sm:$0xff]
        %v6970 = vld [vmem:[#allocation4 + $0x51] sm:$0xff]
        %v6971 = vld [vmem:[#allocation4 + $0x59] sm:$0xff]
        %v6972 = vld [vmem:[#allocation4 + $0x61] sm:$0xff]
        %v6973 = vld [vmem:[#allocation4 + $0x69] sm:$0xff]
        %v6974 = vld [vmem:[#allocation4 + $0x71] sm:$0xff]
        %v6975 = vld [vmem:[#allocation4 + $0x79] sm:$0xff]
        %v6976 = vld [vmem:[#allocation4 + $0x81] sm:$0xff]
        %v6977 = vld [vmem:[#allocation4 + $0x89] sm:$0xff]
        %v6978 = vld [vmem:[#allocation4 + $0x91] sm:$0xff]
        %v6979 = vld [vmem:[#allocation4 + $0x99] sm:$0xff]
        %v6980 = vld [vmem:[#allocation4 + $0xa1] sm:$0xff]
        %v6981 = vld [vmem:[#allocation4 + $0xa9] sm:$0xff]
        %v6982 = vld [vmem:[#allocation4 + $0xb1] sm:$0xff]
        %v6983 = vld [vmem:[#allocation4 + $0xb9] sm:$0xff]
        %v6984 = vld [vmem:[#allocation4 + $0xc1] sm:$0xff]
        %v6985 = vld [vmem:[#allocation4 + $0xc9] sm:$0xff]
        %v6986 = vld [vmem:[#allocation4 + $0xd1] sm:$0xff]
        %v6987 = vld [vmem:[#allocation4 + $0xd9] sm:$0xff]
        %v6988 = vld [vmem:[#allocation4 + $0xe1] sm:$0xff]
        %v6989 = vld [vmem:[#allocation4 + $0xe9] sm:$0xff]
        %v6990 = vld [vmem:[#allocation4 + $0xf1] sm:$0xff]
        %v6991 = vld [vmem:[#allocation4 + $0xf9] sm:$0xff]
        %v6992 = vmax.f32 %v6928, %v6960
        %v6993 = vmax.f32 %v6929, %v6961
        %v6994 = vmax.f32 %v6930, %v6962
        %v6995 = vmax.f32 %v6931, %v6963
        %v6996 = vmax.f32 %v6932, %v6964
        %v6997 = vmax.f32 %v6933, %v6965
        %v6998 = vmax.f32 %v6934, %v6966
        %v6999 = vmax.f32 %v6935, %v6967
        %v7000 = vmax.f32 %v6936, %v6968
        %v7001 = vmax.f32 %v6937, %v6969
        %v7002 = vmax.f32 %v6938, %v6970
        %v7003 = vmax.f32 %v6939, %v6971
        %v7004 = vmax.f32 %v6940, %v6972
        %v7005 = vmax.f32 %v6941, %v6973
        %v7006 = vmax.f32 %v6942, %v6974
        %v7007 = vmax.f32 %v6943, %v6975
        %v7008 = vmax.f32 %v6944, %v6976
        %v7009 = vmax.f32 %v6945, %v6977
        %v7010 = vmax.f32 %v6946, %v6978
        %v7011 = vmax.f32 %v6947, %v6979
        %v7012 = vmax.f32 %v6948, %v6980
        %v7013 = vmax.f32 %v6949, %v6981
        %v7014 = vmax.f32 %v6950, %v6982
        %v7015 = vmax.f32 %v6951, %v6983
        %v7016 = vmax.f32 %v6952, %v6984
        %v7017 = vmax.f32 %v6953, %v6985
        %v7018 = vmax.f32 %v6954, %v6986
        %v7019 = vmax.f32 %v6955, %v6987
        %v7020 = vmax.f32 %v6956, %v6988
        %v7021 = vmax.f32 %v6957, %v6989
        %v7022 = vmax.f32 %v6958, %v6990
        %v7023 = vmax.f32 %v6959, %v6991
        %v7024 = vld [vmem:[#allocation4 + $0x100] sm:$0xff]
        %v7025 = vld [vmem:[#allocation4 + $0x108] sm:$0xff]
        %v7026 = vld [vmem:[#allocation4 + $0x101] sm:$0xff]
        %v7027 = vld [vmem:[#allocation4 + $0x109] sm:$0xff]
        %v7028 = vmax.f32 %v7024, %v7026
        %v7029 = vmax.f32 %v7025, %v7027
        %v7030 = vmax.f32 %v6992, %v6994
        %v7031 = vmax.f32 %v6993, %v6995
        %v7032 = vmax.f32 %v6994, %v6996
        %v7033 = vmax.f32 %v6995, %v6997
        %v7034 = vmax.f32 %v6996, %v6998
        %v7035 = vmax.f32 %v6997, %v6999
        %v7036 = vmax.f32 %v6998, %v7000
        %v7037 = vmax.f32 %v6999, %v7001
        %v7038 = vmax.f32 %v7000, %v7002
        %v7039 = vmax.f32 %v7001, %v7003
        %v7040 = vmax.f32 %v7002, %v7004
        %v7041 = vmax.f32 %v7003, %v7005
        %v7042 = vmax.f32 %v7004, %v7006
        %v7043 = vmax.f32 %v7005, %v7007
        %v7044 = vmax.f32 %v7006, %v7008
        %v7045 = vmax.f32 %v7007, %v7009
        %v7046 = vmax.f32 %v7008, %v7010
        %v7047 = vmax.f32 %v7009, %v7011
        %v7048 = vmax.f32 %v7010, %v7012
        %v7049 = vmax.f32 %v7011, %v7013
        %v7050 = vmax.f32 %v7012, %v7014
        %v7051 = vmax.f32 %v7013, %v7015
        %v7052 = vmax.f32 %v7014, %v7016
        %v7053 = vmax.f32 %v7015, %v7017
        %v7054 = vmax.f32 %v7016, %v7018
        %v7055 = vmax.f32 %v7017, %v7019
        %v7056 = vmax.f32 %v7018, %v7020
        %v7057 = vmax.f32 %v7019, %v7021
        %v7058 = vmax.f32 %v7020, %v7022
        %v7059 = vmax.f32 %v7021, %v7023
        %v7060 = vmax.f32 %v7022, %v7028
        %v7061 = vmax.f32 %v7023, %v7029
        %v7062 = vld [vmem:[%s8] sm:$0xff]
        %v7063 = vld [vmem:[%s8 + $0x8] sm:$0xff]
        %v7064 = vld [vmem:[%s8 + $0x10] sm:$0xff]
        %v7065 = vld [vmem:[%s8 + $0x18] sm:$0xff]
        %v7066 = vld [vmem:[%s8 + $0x20] sm:$0xff]
        %v7067 = vld [vmem:[%s8 + $0x28] sm:$0xff]
        %v7068 = vld [vmem:[%s8 + $0x30] sm:$0xff]
        %v7069 = vld [vmem:[%s8 + $0x38] sm:$0xff]
        %v7070 = vpack.c.bf16 %v7031, %v7030
        %v7071 = vpack.c.bf16 %v7033, %v7032
        %v7072 = vpack.c.bf16 %v7035, %v7034
        %v7073 = vpack.c.bf16 %v7037, %v7036
        %v7074 = vpack.c.bf16 %v7039, %v7038
        %v7075 = vpack.c.bf16 %v7041, %v7040
        %v7076 = vpack.c.bf16 %v7043, %v7042
        %v7077 = vpack.c.bf16 %v7045, %v7044
        %v7078 = vpack.c.bf16 %v7047, %v7046
        %v7079 = vpack.c.bf16 %v7049, %v7048
        %v7080 = vpack.c.bf16 %v7051, %v7050
        %v7081 = vpack.c.bf16 %v7053, %v7052
        %v7082 = vpack.c.bf16 %v7055, %v7054
        %v7083 = vpack.c.bf16 %v7057, %v7056
        %v7084 = vpack.c.bf16 %v7059, %v7058
        %v7085 = vpack.c.bf16 %v7061, %v7060
        %v7094 = vunpack.c.l.b16 %v7062
        %v7095 = vunpack.c.h.b16 %v7062
        %v7096 = vunpack.c.l.b16 %v7063
        %v7097 = vunpack.c.h.b16 %v7063
        %v7098 = vunpack.c.l.b16 %v7064
        %v7099 = vunpack.c.h.b16 %v7064
        %v7100 = vunpack.c.l.b16 %v7065
        %v7101 = vunpack.c.h.b16 %v7065
        %v7102 = vunpack.c.l.b16 %v7066
        %v7103 = vunpack.c.h.b16 %v7066
        %v7104 = vunpack.c.l.b16 %v7067
        %v7105 = vunpack.c.h.b16 %v7067
        %v7106 = vunpack.c.l.b16 %v7068
        %v7107 = vunpack.c.h.b16 %v7068
        %v7108 = vunpack.c.l.b16 %v7069
        %v7109 = vunpack.c.h.b16 %v7069
        %v7110 = vpack.c.b16 %v7096, %v7094
        %v7111 = vpack.c.b16 %v7097, %v7095
        %v7112 = vpack.c.b16 %v7100, %v7098
        %v7113 = vpack.c.b16 %v7101, %v7099
        %v7114 = vpack.c.b16 %v7104, %v7102
        %v7115 = vpack.c.b16 %v7105, %v7103
        %v7116 = vpack.c.b16 %v7108, %v7106
        %v7117 = vpack.c.b16 %v7109, %v7107
        %7126 = vmatpush.bf16.msra.mxu0 %v7077
        %7127 = vmatpush.bf16.msra.mxu0 %v7076
        %7128 = vmatpush.bf16.msra.mxu0 %v7075
        %7129 = vmatpush.bf16.msra.mxu0 %v7074
        %7130 = vmatpush.bf16.msra.mxu0 %v7073
        %7131 = vmatpush.bf16.msra.mxu0 %v7072
        %7132 = vmatpush.bf16.msra.mxu0 %v7071
        %7133 = vmatpush.bf16.msra.mxu0 %v7070
        %7134 = vmatmul.bf16.gmra.mxu0 %v7110
        %v7135 = vpop.f32.mrf.mxu0
        %v7136 = vadd.f32 0.0, %v7135
        %v7137 = vpop.f32.mrf.mxu0
        %v7138 = vadd.f32 0.0, %v7137
        %7139 = vmatmul.bf16.gmra.mxu0 %v7112
        %v7140 = vpop.f32.mrf.mxu0
        %v7141 = vadd.f32 0.0, %v7140
        %v7142 = vpop.f32.mrf.mxu0
        %v7143 = vadd.f32 0.0, %v7142
        %7144 = vmatmul.bf16.gmra.mxu0 %v7114
        %v7145 = vpop.f32.mrf.mxu0
        %v7146 = vadd.f32 0.0, %v7145
        %v7147 = vpop.f32.mrf.mxu0
        %v7148 = vadd.f32 0.0, %v7147
        %7149 = vmatmul.bf16.gmra.mxu0 %v7116
        %v7150 = vpop.f32.mrf.mxu0
        %v7151 = vadd.f32 0.0, %v7150
        %v7152 = vpop.f32.mrf.mxu0
        %v7153 = vadd.f32 0.0, %v7152
        %7154 = vdwg.mxu0
        %7155 = vmatpush.bf16.msra.mxu0 %v7085
        %7156 = vmatpush.bf16.msra.mxu0 %v7084
        %7157 = vmatpush.bf16.msra.mxu0 %v7083
        %7158 = vmatpush.bf16.msra.mxu0 %v7082
        %7159 = vmatpush.bf16.msra.mxu0 %v7081
        %7160 = vmatpush.bf16.msra.mxu0 %v7080
        %7161 = vmatpush.bf16.msra.mxu0 %v7079
        %7162 = vmatpush.bf16.msra.mxu0 %v7078
        %7163 = vmatmul.bf16.gmra.mxu0 %v7111
        %v7164 = vpop.f32.mrf.mxu0
        %v7165 = vadd.f32 %v7136, %v7164
        %v7166 = vpop.f32.mrf.mxu0
        %v7167 = vadd.f32 %v7138, %v7166
        %7168 = vmatmul.bf16.gmra.mxu0 %v7113
        %v7169 = vpop.f32.mrf.mxu0
        %v7170 = vadd.f32 %v7141, %v7169
        %v7171 = vpop.f32.mrf.mxu0
        %v7172 = vadd.f32 %v7143, %v7171
        %7173 = vmatmul.bf16.gmra.mxu0 %v7115
        %v7174 = vpop.f32.mrf.mxu0
        %v7175 = vadd.f32 %v7146, %v7174
        %v7176 = vpop.f32.mrf.mxu0
        %v7177 = vadd.f32 %v7148, %v7176
        %7178 = vmatmul.bf16.gmra.mxu0 %v7117
        %v7179 = vpop.f32.mrf.mxu0
        %v7180 = vadd.f32 %v7151, %v7179
        %v7181 = vpop.f32.mrf.mxu0
        %v7182 = vadd.f32 %v7153, %v7181
        %7183 = vdwg.mxu0
        %7184 = vst.msk [vmem:[#allocation5] sm:$0xff] %vm1244, 0.0
        %7185 = vst.msk [vmem:[#allocation5 + $0x8] sm:$0xff] %vm1244, 0.0
        %7186 = vst.msk [vmem:[#allocation5 + $0x50] sm:$0xff] %vm1244, 0.0
        %7187 = vst.msk [vmem:[#allocation5 + $0x58] sm:$0xff] %vm1244, 0.0
        %7188 = vst.msk [vmem:[#allocation5 + $0x10] sm:$0xff] %vm1244, %v7165
        %7189 = vst.msk [vmem:[#allocation5 + $0x18] sm:$0xff] %vm1244, %v7167
        %7190 = vst.msk [vmem:[#allocation5 + $0x20] sm:$0xff] %vm1244, %v7170
        %7191 = vst.msk [vmem:[#allocation5 + $0x28] sm:$0xff] %vm1244, %v7172
        %7192 = vst.msk [vmem:[#allocation5 + $0x30] sm:$0xff] %vm1244, %v7175
        %7193 = vst.msk [vmem:[#allocation5 + $0x38] sm:$0xff] %vm1244, %v7177
        %7194 = vst.msk [vmem:[#allocation5 + $0x40] sm:$0xff] %vm1244, %v7180
        %7195 = vst.msk [vmem:[#allocation5 + $0x48] sm:$0xff] %vm1244, %v7182
        %v7196 = vand.u32 %v4464, 7
        %v7197 = vand.u32 %v4465, 7
        %v7198 = vand.u32 %v4466, 7
        %v7199 = vand.u32 %v4467, 7
        %v7200 = vand.u32 %v4468, 7
        %v7201 = vand.u32 %v4469, 7
        %v7202 = vand.u32 %v4470, 7
        %v7203 = vand.u32 %v4471, 7
        %vm7204 = vcmp.eq.s32.totalorder %v7196, 0
        %vm7205 = vcmp.eq.s32.totalorder %v7197, 0
        %vm7206 = vcmp.eq.s32.totalorder %v7198, 0
        %vm7207 = vcmp.eq.s32.totalorder %v7199, 0
        %vm7208 = vcmp.eq.s32.totalorder %v7200, 0
        %vm7209 = vcmp.eq.s32.totalorder %v7201, 0
        %vm7210 = vcmp.eq.s32.totalorder %v7202, 0
        %vm7211 = vcmp.eq.s32.totalorder %v7203, 0
        %vm7212 = vcmp.eq.s32.totalorder %v7196, 7
        %vm7213 = vcmp.eq.s32.totalorder %v7197, 7
        %vm7214 = vcmp.eq.s32.totalorder %v7198, 7
        %vm7215 = vcmp.eq.s32.totalorder %v7199, 7
        %vm7216 = vcmp.eq.s32.totalorder %v7200, 7
        %vm7217 = vcmp.eq.s32.totalorder %v7201, 7
        %vm7218 = vcmp.eq.s32.totalorder %v7202, 7
        %vm7219 = vcmp.eq.s32.totalorder %v7203, 7
        %v7220 = vld [vmem:[#allocation5 + $0x7] sm:$0xff]
        %v7221 = vld [vmem:[#allocation5 + $0xf] sm:$0xff]
        %v7222 = vld [vmem:[#allocation5 + $0x17] sm:$0xff]
        %v7223 = vld [vmem:[#allocation5 + $0x1f] sm:$0xff]
        %v7224 = vld [vmem:[#allocation5 + $0x27] sm:$0xff]
        %v7225 = vld [vmem:[#allocation5 + $0x2f] sm:$0xff]
        %v7226 = vld [vmem:[#allocation5 + $0x37] sm:$0xff]
        %v7227 = vld [vmem:[#allocation5 + $0x3f] sm:$0xff]
        %v7228 = vsel %vm7204, 0.0, %v7220
        %v7229 = vsel %vm7205, 0.0, %v7221
        %v7230 = vsel %vm7206, 0.0, %v7222
        %v7231 = vsel %vm7207, 0.0, %v7223
        %v7232 = vsel %vm7208, 0.0, %v7224
        %v7233 = vsel %vm7209, 0.0, %v7225
        %v7234 = vsel %vm7210, 0.0, %v7226
        %v7235 = vsel %vm7211, 0.0, %v7227
        %v7236 = vpack.c.bf16 %v7229, %v7228
        %v7237 = vpack.c.bf16 %v7231, %v7230
        %v7238 = vpack.c.bf16 %v7233, %v7232
        %v7239 = vpack.c.bf16 %v7235, %v7234
        %v7240 = vld [vmem:[%s5] sm:$0xf]
        %v7241 = vld [vmem:[%s5 + $0x4] sm:$0xf]
        %v7242 = vld [vmem:[%s5 + $0x8] sm:$0xf]
        %v7243 = vld [vmem:[%s5 + $0xc] sm:$0xf]
        %v7244 = vld [vmem:[%s5 + $0x10] sm:$0xf]
        %v7245 = vld [vmem:[%s5 + $0x14] sm:$0xf]
        %v7246 = vld [vmem:[%s5 + $0x18] sm:$0xf]
        %v7247 = vld [vmem:[%s5 + $0x1c] sm:$0xf]
        %v7248 = vld [vmem:[#allocation5 + $0x8] sm:$0xff]
        %v7249 = vld [vmem:[#allocation5 + $0x10] sm:$0xff]
        %v7250 = vld [vmem:[#allocation5 + $0x18] sm:$0xff]
        %v7251 = vld [vmem:[#allocation5 + $0x20] sm:$0xff]
        %v7252 = vld [vmem:[#allocation5 + $0x28] sm:$0xff]
        %v7253 = vld [vmem:[#allocation5 + $0x30] sm:$0xff]
        %v7254 = vld [vmem:[#allocation5 + $0x38] sm:$0xff]
        %v7255 = vld [vmem:[#allocation5 + $0x40] sm:$0xff]
        %v7256 = vpack.c.bf16 %v7249, %v7248
        %v7257 = vpack.c.bf16 %v7251, %v7250
        %v7258 = vpack.c.bf16 %v7253, %v7252
        %v7259 = vpack.c.bf16 %v7255, %v7254
        %s7260 = scalar_lea.vmem %s5, 32
        %v7261 = vld [vmem:[%s7260] sm:$0xf]
        %v7262 = vld [vmem:[%s7260 + $0x4] sm:$0xf]
        %v7263 = vld [vmem:[%s7260 + $0x8] sm:$0xf]
        %v7264 = vld [vmem:[%s7260 + $0xc] sm:$0xf]
        %v7265 = vld [vmem:[%s7260 + $0x10] sm:$0xf]
        %v7266 = vld [vmem:[%s7260 + $0x14] sm:$0xf]
        %v7267 = vld [vmem:[%s7260 + $0x18] sm:$0xf]
        %v7268 = vld [vmem:[%s7260 + $0x1c] sm:$0xf]
        %v7277 = vunpack.c.l.b16 %v7261
        %v7278 = vunpack.c.l.b16 %v7262
        %v7279 = vunpack.c.l.b16 %v7263
        %v7280 = vunpack.c.l.b16 %v7264
        %v7281 = vunpack.c.l.b16 %v7265
        %v7282 = vunpack.c.l.b16 %v7266
        %v7283 = vunpack.c.l.b16 %v7267
        %v7284 = vunpack.c.l.b16 %v7268
        %v7285 = vpack.c.b16 %v7278, %v7277
        %v7286 = vpack.c.b16 %v7280, %v7279
        %v7287 = vpack.c.b16 %v7282, %v7281
        %v7288 = vpack.c.b16 %v7284, %v7283
        %v7294 = vsel %vm1244, %v7256, 0
        %v7297 = vsel %vm1244, %v7257, 0
        %v7300 = vsel %vm1244, %v7258, 0
        %v7303 = vsel %vm1244, %v7259, 0
        %7305 = vmatpush.bf16.msra.mxu0 0
        %7306 = vmatpush.bf16.msra.mxu0 0
        %7307 = vmatpush.bf16.msra.mxu0 0
        %7308 = vmatpush.bf16.msra.mxu0 0
        %7309 = vmatpush.bf16.msra.mxu0 %v7288
        %7310 = vmatpush.bf16.msra.mxu0 %v7287
        %7311 = vmatpush.bf16.msra.mxu0 %v7286
        %7312 = vmatpush.bf16.msra.mxu0 %v7285
        %7313 = vmatmul.bf16.gmra.mxu0 %v7294
        %v7314 = vpop.f32.mrf.mxu0
        %v7315 = vadd.f32 0.0, %v7314
        %v7316 = vpop.f32.mrf.mxu0
        %v7317 = vadd.f32 0.0, %v7316
        %7318 = vmatmul.bf16.gmra.mxu0 %v7297
        %v7319 = vpop.f32.mrf.mxu0
        %v7320 = vadd.f32 0.0, %v7319
        %v7321 = vpop.f32.mrf.mxu0
        %v7322 = vadd.f32 0.0, %v7321
        %7323 = vmatmul.bf16.gmra.mxu0 %v7300
        %v7324 = vpop.f32.mrf.mxu0
        %v7325 = vadd.f32 0.0, %v7324
        %v7326 = vpop.f32.mrf.mxu0
        %v7327 = vadd.f32 0.0, %v7326
        %7328 = vmatmul.bf16.gmra.mxu0 %v7303
        %v7329 = vpop.f32.mrf.mxu0
        %v7330 = vadd.f32 0.0, %v7329
        %v7331 = vpop.f32.mrf.mxu0
        %v7332 = vadd.f32 0.0, %v7331
        %7333 = vdwg.mxu0
        %v7342 = vunpack.c.l.b16 %v7240
        %v7343 = vunpack.c.l.b16 %v7241
        %v7344 = vunpack.c.l.b16 %v7242
        %v7345 = vunpack.c.l.b16 %v7243
        %v7346 = vunpack.c.l.b16 %v7244
        %v7347 = vunpack.c.l.b16 %v7245
        %v7348 = vunpack.c.l.b16 %v7246
        %v7349 = vunpack.c.l.b16 %v7247
        %v7350 = vpack.c.b16 %v7343, %v7342
        %v7351 = vpack.c.b16 %v7345, %v7344
        %v7352 = vpack.c.b16 %v7347, %v7346
        %v7353 = vpack.c.b16 %v7349, %v7348
        %v7359 = vsel %vm1244, %v7236, 0
        %v7362 = vsel %vm1244, %v7237, 0
        %v7365 = vsel %vm1244, %v7238, 0
        %v7368 = vsel %vm1244, %v7239, 0
        %7370 = vmatpush.bf16.msra.mxu0 0
        %7371 = vmatpush.bf16.msra.mxu0 0
        %7372 = vmatpush.bf16.msra.mxu0 0
        %7373 = vmatpush.bf16.msra.mxu0 0
        %7374 = vmatpush.bf16.msra.mxu0 %v7353
        %7375 = vmatpush.bf16.msra.mxu0 %v7352
        %7376 = vmatpush.bf16.msra.mxu0 %v7351
        %7377 = vmatpush.bf16.msra.mxu0 %v7350
        %7378 = vmatmul.bf16.gmra.mxu0 %v7359
        %v7379 = vpop.f32.mrf.mxu0
        %v7380 = vadd.f32 %v7315, %v7379
        %v7381 = vpop.f32.mrf.mxu0
        %v7382 = vadd.f32 %v7317, %v7381
        %7383 = vmatmul.bf16.gmra.mxu0 %v7362
        %v7384 = vpop.f32.mrf.mxu0
        %v7385 = vadd.f32 %v7320, %v7384
        %v7386 = vpop.f32.mrf.mxu0
        %v7387 = vadd.f32 %v7322, %v7386
        %7388 = vmatmul.bf16.gmra.mxu0 %v7365
        %v7389 = vpop.f32.mrf.mxu0
        %v7390 = vadd.f32 %v7325, %v7389
        %v7391 = vpop.f32.mrf.mxu0
        %v7392 = vadd.f32 %v7327, %v7391
        %7393 = vmatmul.bf16.gmra.mxu0 %v7368
        %v7394 = vpop.f32.mrf.mxu0
        %v7395 = vadd.f32 %v7330, %v7394
        %v7396 = vpop.f32.mrf.mxu0
        %v7397 = vadd.f32 %v7332, %v7396
        %7398 = vdwg.mxu0
        %v7399 = vld [vmem:[#allocation5 + $0x9] sm:$0xff]
        %v7400 = vld [vmem:[#allocation5 + $0x11] sm:$0xff]
        %v7401 = vld [vmem:[#allocation5 + $0x19] sm:$0xff]
        %v7402 = vld [vmem:[#allocation5 + $0x21] sm:$0xff]
        %v7403 = vld [vmem:[#allocation5 + $0x29] sm:$0xff]
        %v7404 = vld [vmem:[#allocation5 + $0x31] sm:$0xff]
        %v7405 = vld [vmem:[#allocation5 + $0x39] sm:$0xff]
        %v7406 = vld [vmem:[#allocation5 + $0x41] sm:$0xff]
        %v7407 = vsel %vm7212, 0.0, %v7399
        %v7408 = vsel %vm7213, 0.0, %v7400
        %v7409 = vsel %vm7214, 0.0, %v7401
        %v7410 = vsel %vm7215, 0.0, %v7402
        %v7411 = vsel %vm7216, 0.0, %v7403
        %v7412 = vsel %vm7217, 0.0, %v7404
        %v7413 = vsel %vm7218, 0.0, %v7405
        %v7414 = vsel %vm7219, 0.0, %v7406
        %v7415 = vpack.c.bf16 %v7408, %v7407
        %v7416 = vpack.c.bf16 %v7410, %v7409
        %v7417 = vpack.c.bf16 %v7412, %v7411
        %v7418 = vpack.c.bf16 %v7414, %v7413
        %s7419 = scalar_lea.vmem %s5, 64
        %v7420 = vld [vmem:[%s7419] sm:$0xf]
        %v7421 = vld [vmem:[%s7419 + $0x4] sm:$0xf]
        %v7422 = vld [vmem:[%s7419 + $0x8] sm:$0xf]
        %v7423 = vld [vmem:[%s7419 + $0xc] sm:$0xf]
        %v7424 = vld [vmem:[%s7419 + $0x10] sm:$0xf]
        %v7425 = vld [vmem:[%s7419 + $0x14] sm:$0xf]
        %v7426 = vld [vmem:[%s7419 + $0x18] sm:$0xf]
        %v7427 = vld [vmem:[%s7419 + $0x1c] sm:$0xf]
        %v7436 = vunpack.c.l.b16 %v7420
        %v7437 = vunpack.c.l.b16 %v7421
        %v7438 = vunpack.c.l.b16 %v7422
        %v7439 = vunpack.c.l.b16 %v7423
        %v7440 = vunpack.c.l.b16 %v7424
        %v7441 = vunpack.c.l.b16 %v7425
        %v7442 = vunpack.c.l.b16 %v7426
        %v7443 = vunpack.c.l.b16 %v7427
        %v7444 = vpack.c.b16 %v7437, %v7436
        %v7445 = vpack.c.b16 %v7439, %v7438
        %v7446 = vpack.c.b16 %v7441, %v7440
        %v7447 = vpack.c.b16 %v7443, %v7442
        %v7453 = vsel %vm1244, %v7415, 0
        %v7456 = vsel %vm1244, %v7416, 0
        %v7459 = vsel %vm1244, %v7417, 0
        %v7462 = vsel %vm1244, %v7418, 0
        %7464 = vmatpush.bf16.msra.mxu0 0
        %7465 = vmatpush.bf16.msra.mxu0 0
        %7466 = vmatpush.bf16.msra.mxu0 0
        %7467 = vmatpush.bf16.msra.mxu0 0
        %7468 = vmatpush.bf16.msra.mxu0 %v7447
        %7469 = vmatpush.bf16.msra.mxu0 %v7446
        %7470 = vmatpush.bf16.msra.mxu0 %v7445
        %7471 = vmatpush.bf16.msra.mxu0 %v7444
        %7472 = vmatmul.bf16.gmra.mxu0 %v7453
        %v7473 = vpop.f32.mrf.mxu0
        %v7474 = vadd.f32 0.0, %v7473
        %v7475 = vpop.f32.mrf.mxu0
        %v7476 = vadd.f32 0.0, %v7475
        %7477 = vmatmul.bf16.gmra.mxu0 %v7456
        %v7478 = vpop.f32.mrf.mxu0
        %v7479 = vadd.f32 0.0, %v7478
        %v7480 = vpop.f32.mrf.mxu0
        %v7481 = vadd.f32 0.0, %v7480
        %7482 = vmatmul.bf16.gmra.mxu0 %v7459
        %v7483 = vpop.f32.mrf.mxu0
        %v7484 = vadd.f32 0.0, %v7483
        %v7485 = vpop.f32.mrf.mxu0
        %v7486 = vadd.f32 0.0, %v7485
        %7487 = vmatmul.bf16.gmra.mxu0 %v7462
        %v7488 = vpop.f32.mrf.mxu0
        %v7489 = vadd.f32 0.0, %v7488
        %v7490 = vpop.f32.mrf.mxu0
        %v7491 = vadd.f32 0.0, %v7490
        %7492 = vdwg.mxu0
        %v7493 = vadd.f32 %v7380, %v7474
        %v7494 = vadd.f32 %v7382, %v7476
        %v7495 = vadd.f32 %v7385, %v7479
        %v7496 = vadd.f32 %v7387, %v7481
        %v7497 = vadd.f32 %v7390, %v7484
        %v7498 = vadd.f32 %v7392, %v7486
        %v7499 = vadd.f32 %v7395, %v7489
        %v7500 = vadd.f32 %v7397, %v7491
        %v7501 = vld [vmem:[#allocation5 + $0xf] sm:$0xff]
        %v7502 = vld [vmem:[#allocation5 + $0x17] sm:$0xff]
        %v7503 = vld [vmem:[#allocation5 + $0x1f] sm:$0xff]
        %v7504 = vld [vmem:[#allocation5 + $0x27] sm:$0xff]
        %v7505 = vld [vmem:[#allocation5 + $0x2f] sm:$0xff]
        %v7506 = vld [vmem:[#allocation5 + $0x37] sm:$0xff]
        %v7507 = vld [vmem:[#allocation5 + $0x3f] sm:$0xff]
        %v7508 = vld [vmem:[#allocation5 + $0x47] sm:$0xff]
        %v7509 = vsel %vm7204, 0.0, %v7501
        %v7510 = vsel %vm7205, 0.0, %v7502
        %v7511 = vsel %vm7206, 0.0, %v7503
        %v7512 = vsel %vm7207, 0.0, %v7504
        %v7513 = vsel %vm7208, 0.0, %v7505
        %v7514 = vsel %vm7209, 0.0, %v7506
        %v7515 = vsel %vm7210, 0.0, %v7507
        %v7516 = vsel %vm7211, 0.0, %v7508
        %v7517 = vpack.c.bf16 %v7510, %v7509
        %v7518 = vpack.c.bf16 %v7512, %v7511
        %v7519 = vpack.c.bf16 %v7514, %v7513
        %v7520 = vpack.c.bf16 %v7516, %v7515
        %s7521 = scalar_lea.vmem %s5, 96
        %v7522 = vld [vmem:[%s7521] sm:$0xf]
        %v7523 = vld [vmem:[%s7521 + $0x4] sm:$0xf]
        %v7524 = vld [vmem:[%s7521 + $0x8] sm:$0xf]
        %v7525 = vld [vmem:[%s7521 + $0xc] sm:$0xf]
        %v7526 = vld [vmem:[%s7521 + $0x10] sm:$0xf]
        %v7527 = vld [vmem:[%s7521 + $0x14] sm:$0xf]
        %v7528 = vld [vmem:[%s7521 + $0x18] sm:$0xf]
        %v7529 = vld [vmem:[%s7521 + $0x1c] sm:$0xf]
        %v7538 = vunpack.c.l.b16 %v7522
        %v7539 = vunpack.c.l.b16 %v7523
        %v7540 = vunpack.c.l.b16 %v7524
        %v7541 = vunpack.c.l.b16 %v7525
        %v7542 = vunpack.c.l.b16 %v7526
        %v7543 = vunpack.c.l.b16 %v7527
        %v7544 = vunpack.c.l.b16 %v7528
        %v7545 = vunpack.c.l.b16 %v7529
        %v7546 = vpack.c.b16 %v7539, %v7538
        %v7547 = vpack.c.b16 %v7541, %v7540
        %v7548 = vpack.c.b16 %v7543, %v7542
        %v7549 = vpack.c.b16 %v7545, %v7544
        %v7555 = vsel %vm1244, %v7517, 0
        %v7558 = vsel %vm1244, %v7518, 0
        %v7561 = vsel %vm1244, %v7519, 0
        %v7564 = vsel %vm1244, %v7520, 0
        %7566 = vmatpush.bf16.msra.mxu0 0
        %7567 = vmatpush.bf16.msra.mxu0 0
        %7568 = vmatpush.bf16.msra.mxu0 0
        %7569 = vmatpush.bf16.msra.mxu0 0
        %7570 = vmatpush.bf16.msra.mxu0 %v7549
        %7571 = vmatpush.bf16.msra.mxu0 %v7548
        %7572 = vmatpush.bf16.msra.mxu0 %v7547
        %7573 = vmatpush.bf16.msra.mxu0 %v7546
        %7574 = vmatmul.bf16.gmra.mxu0 %v7555
        %v7575 = vpop.f32.mrf.mxu0
        %v7576 = vadd.f32 0.0, %v7575
        %v7577 = vpop.f32.mrf.mxu0
        %v7578 = vadd.f32 0.0, %v7577
        %7579 = vmatmul.bf16.gmra.mxu0 %v7558
        %v7580 = vpop.f32.mrf.mxu0
        %v7581 = vadd.f32 0.0, %v7580
        %v7582 = vpop.f32.mrf.mxu0
        %v7583 = vadd.f32 0.0, %v7582
        %7584 = vmatmul.bf16.gmra.mxu0 %v7561
        %v7585 = vpop.f32.mrf.mxu0
        %v7586 = vadd.f32 0.0, %v7585
        %v7587 = vpop.f32.mrf.mxu0
        %v7588 = vadd.f32 0.0, %v7587
        %7589 = vmatmul.bf16.gmra.mxu0 %v7564
        %v7590 = vpop.f32.mrf.mxu0
        %v7591 = vadd.f32 0.0, %v7590
        %v7592 = vpop.f32.mrf.mxu0
        %v7593 = vadd.f32 0.0, %v7592
        %7594 = vdwg.mxu0
        %v7595 = vadd.f32 %v7493, %v7576
        %v7596 = vadd.f32 %v7494, %v7578
        %v7597 = vadd.f32 %v7495, %v7581
        %v7598 = vadd.f32 %v7496, %v7583
        %v7599 = vadd.f32 %v7497, %v7586
        %v7600 = vadd.f32 %v7498, %v7588
        %v7601 = vadd.f32 %v7499, %v7591
        %v7602 = vadd.f32 %v7500, %v7593
        %v7603 = vld [vmem:[#allocation5 + $0x10] sm:$0xff]
        %v7604 = vld [vmem:[#allocation5 + $0x18] sm:$0xff]
        %v7605 = vld [vmem:[#allocation5 + $0x20] sm:$0xff]
        %v7606 = vld [vmem:[#allocation5 + $0x28] sm:$0xff]
        %v7607 = vld [vmem:[#allocation5 + $0x30] sm:$0xff]
        %v7608 = vld [vmem:[#allocation5 + $0x38] sm:$0xff]
        %v7609 = vld [vmem:[#allocation5 + $0x40] sm:$0xff]
        %v7610 = vld [vmem:[#allocation5 + $0x48] sm:$0xff]
        %v7611 = vpack.c.bf16 %v7604, %v7603
        %v7612 = vpack.c.bf16 %v7606, %v7605
        %v7613 = vpack.c.bf16 %v7608, %v7607
        %v7614 = vpack.c.bf16 %v7610, %v7609
        %s7615 = scalar_lea.vmem %s5, 128
        %v7616 = vld [vmem:[%s7615] sm:$0xf]
        %v7617 = vld [vmem:[%s7615 + $0x4] sm:$0xf]
        %v7618 = vld [vmem:[%s7615 + $0x8] sm:$0xf]
        %v7619 = vld [vmem:[%s7615 + $0xc] sm:$0xf]
        %v7620 = vld [vmem:[%s7615 + $0x10] sm:$0xf]
        %v7621 = vld [vmem:[%s7615 + $0x14] sm:$0xf]
        %v7622 = vld [vmem:[%s7615 + $0x18] sm:$0xf]
        %v7623 = vld [vmem:[%s7615 + $0x1c] sm:$0xf]
        %v7632 = vunpack.c.l.b16 %v7616
        %v7633 = vunpack.c.l.b16 %v7617
        %v7634 = vunpack.c.l.b16 %v7618
        %v7635 = vunpack.c.l.b16 %v7619
        %v7636 = vunpack.c.l.b16 %v7620
        %v7637 = vunpack.c.l.b16 %v7621
        %v7638 = vunpack.c.l.b16 %v7622
        %v7639 = vunpack.c.l.b16 %v7623
        %v7640 = vpack.c.b16 %v7633, %v7632
        %v7641 = vpack.c.b16 %v7635, %v7634
        %v7642 = vpack.c.b16 %v7637, %v7636
        %v7643 = vpack.c.b16 %v7639, %v7638
        %v7649 = vsel %vm1244, %v7611, 0
        %v7652 = vsel %vm1244, %v7612, 0
        %v7655 = vsel %vm1244, %v7613, 0
        %v7658 = vsel %vm1244, %v7614, 0
        %7660 = vmatpush.bf16.msra.mxu0 0
        %7661 = vmatpush.bf16.msra.mxu0 0
        %7662 = vmatpush.bf16.msra.mxu0 0
        %7663 = vmatpush.bf16.msra.mxu0 0
        %7664 = vmatpush.bf16.msra.mxu0 %v7643
        %7665 = vmatpush.bf16.msra.mxu0 %v7642
        %7666 = vmatpush.bf16.msra.mxu0 %v7641
        %7667 = vmatpush.bf16.msra.mxu0 %v7640
        %7668 = vmatmul.bf16.gmra.mxu0 %v7649
        %v7669 = vpop.f32.mrf.mxu0
        %v7670 = vadd.f32 0.0, %v7669
        %v7671 = vpop.f32.mrf.mxu0
        %v7672 = vadd.f32 0.0, %v7671
        %7673 = vmatmul.bf16.gmra.mxu0 %v7652
        %v7674 = vpop.f32.mrf.mxu0
        %v7675 = vadd.f32 0.0, %v7674
        %v7676 = vpop.f32.mrf.mxu0
        %v7677 = vadd.f32 0.0, %v7676
        %7678 = vmatmul.bf16.gmra.mxu0 %v7655
        %v7679 = vpop.f32.mrf.mxu0
        %v7680 = vadd.f32 0.0, %v7679
        %v7681 = vpop.f32.mrf.mxu0
        %v7682 = vadd.f32 0.0, %v7681
        %7683 = vmatmul.bf16.gmra.mxu0 %v7658
        %v7684 = vpop.f32.mrf.mxu0
        %v7685 = vadd.f32 0.0, %v7684
        %v7686 = vpop.f32.mrf.mxu0
        %v7687 = vadd.f32 0.0, %v7686
        %7688 = vdwg.mxu0
        %v7689 = vadd.f32 %v7595, %v7670
        %v7690 = vadd.f32 %v7596, %v7672
        %v7691 = vadd.f32 %v7597, %v7675
        %v7692 = vadd.f32 %v7598, %v7677
        %v7693 = vadd.f32 %v7599, %v7680
        %v7694 = vadd.f32 %v7600, %v7682
        %v7695 = vadd.f32 %v7601, %v7685
        %v7696 = vadd.f32 %v7602, %v7687
        %v7697 = vld [vmem:[#allocation5 + $0x11] sm:$0xff]
        %v7698 = vld [vmem:[#allocation5 + $0x19] sm:$0xff]
        %v7699 = vld [vmem:[#allocation5 + $0x21] sm:$0xff]
        %v7700 = vld [vmem:[#allocation5 + $0x29] sm:$0xff]
        %v7701 = vld [vmem:[#allocation5 + $0x31] sm:$0xff]
        %v7702 = vld [vmem:[#allocation5 + $0x39] sm:$0xff]
        %v7703 = vld [vmem:[#allocation5 + $0x41] sm:$0xff]
        %v7704 = vld [vmem:[#allocation5 + $0x49] sm:$0xff]
        %v7705 = vsel %vm7212, 0.0, %v7697
        %v7706 = vsel %vm7213, 0.0, %v7698
        %v7707 = vsel %vm7214, 0.0, %v7699
        %v7708 = vsel %vm7215, 0.0, %v7700
        %v7709 = vsel %vm7216, 0.0, %v7701
        %v7710 = vsel %vm7217, 0.0, %v7702
        %v7711 = vsel %vm7218, 0.0, %v7703
        %v7712 = vsel %vm7219, 0.0, %v7704
        %v7713 = vpack.c.bf16 %v7706, %v7705
        %v7714 = vpack.c.bf16 %v7708, %v7707
        %v7715 = vpack.c.bf16 %v7710, %v7709
        %v7716 = vpack.c.bf16 %v7712, %v7711
        %s7717 = scalar_lea.vmem %s5, 160
        %v7718 = vld [vmem:[%s7717] sm:$0xf]
        %v7719 = vld [vmem:[%s7717 + $0x4] sm:$0xf]
        %v7720 = vld [vmem:[%s7717 + $0x8] sm:$0xf]
        %v7721 = vld [vmem:[%s7717 + $0xc] sm:$0xf]
        %v7722 = vld [vmem:[%s7717 + $0x10] sm:$0xf]
        %v7723 = vld [vmem:[%s7717 + $0x14] sm:$0xf]
        %v7724 = vld [vmem:[%s7717 + $0x18] sm:$0xf]
        %v7725 = vld [vmem:[%s7717 + $0x1c] sm:$0xf]
        %v7734 = vunpack.c.l.b16 %v7718
        %v7735 = vunpack.c.l.b16 %v7719
        %v7736 = vunpack.c.l.b16 %v7720
        %v7737 = vunpack.c.l.b16 %v7721
        %v7738 = vunpack.c.l.b16 %v7722
        %v7739 = vunpack.c.l.b16 %v7723
        %v7740 = vunpack.c.l.b16 %v7724
        %v7741 = vunpack.c.l.b16 %v7725
        %v7742 = vpack.c.b16 %v7735, %v7734
        %v7743 = vpack.c.b16 %v7737, %v7736
        %v7744 = vpack.c.b16 %v7739, %v7738
        %v7745 = vpack.c.b16 %v7741, %v7740
        %v7751 = vsel %vm1244, %v7713, 0
        %v7754 = vsel %vm1244, %v7714, 0
        %v7757 = vsel %vm1244, %v7715, 0
        %v7760 = vsel %vm1244, %v7716, 0
        %7762 = vmatpush.bf16.msra.mxu0 0
        %7763 = vmatpush.bf16.msra.mxu0 0
        %7764 = vmatpush.bf16.msra.mxu0 0
        %7765 = vmatpush.bf16.msra.mxu0 0
        %7766 = vmatpush.bf16.msra.mxu0 %v7745
        %7767 = vmatpush.bf16.msra.mxu0 %v7744
        %7768 = vmatpush.bf16.msra.mxu0 %v7743
        %7769 = vmatpush.bf16.msra.mxu0 %v7742
        %7770 = vmatmul.bf16.gmra.mxu0 %v7751
        %v7771 = vpop.f32.mrf.mxu0
        %v7772 = vadd.f32 0.0, %v7771
        %v7773 = vpop.f32.mrf.mxu0
        %v7774 = vadd.f32 0.0, %v7773
        %7775 = vmatmul.bf16.gmra.mxu0 %v7754
        %v7776 = vpop.f32.mrf.mxu0
        %v7777 = vadd.f32 0.0, %v7776
        %v7778 = vpop.f32.mrf.mxu0
        %v7779 = vadd.f32 0.0, %v7778
        %7780 = vmatmul.bf16.gmra.mxu0 %v7757
        %v7781 = vpop.f32.mrf.mxu0
        %v7782 = vadd.f32 0.0, %v7781
        %v7783 = vpop.f32.mrf.mxu0
        %v7784 = vadd.f32 0.0, %v7783
        %7785 = vmatmul.bf16.gmra.mxu0 %v7760
        %v7786 = vpop.f32.mrf.mxu0
        %v7787 = vadd.f32 0.0, %v7786
        %v7788 = vpop.f32.mrf.mxu0
        %v7789 = vadd.f32 0.0, %v7788
        %7790 = vdwg.mxu0
        %v7791 = vadd.f32 %v7689, %v7772
        %v7792 = vadd.f32 %v7690, %v7774
        %v7793 = vadd.f32 %v7691, %v7777
        %v7794 = vadd.f32 %v7692, %v7779
        %v7795 = vadd.f32 %v7693, %v7782
        %v7796 = vadd.f32 %v7694, %v7784
        %v7797 = vadd.f32 %v7695, %v7787
        %v7798 = vadd.f32 %v7696, %v7789
        %v7799 = vld [vmem:[#allocation5 + $0x17] sm:$0xff]
        %v7800 = vld [vmem:[#allocation5 + $0x1f] sm:$0xff]
        %v7801 = vld [vmem:[#allocation5 + $0x27] sm:$0xff]
        %v7802 = vld [vmem:[#allocation5 + $0x2f] sm:$0xff]
        %v7803 = vld [vmem:[#allocation5 + $0x37] sm:$0xff]
        %v7804 = vld [vmem:[#allocation5 + $0x3f] sm:$0xff]
        %v7805 = vld [vmem:[#allocation5 + $0x47] sm:$0xff]
        %v7806 = vld [vmem:[#allocation5 + $0x4f] sm:$0xff]
        %v7807 = vsel %vm7204, 0.0, %v7799
        %v7808 = vsel %vm7205, 0.0, %v7800
        %v7809 = vsel %vm7206, 0.0, %v7801
        %v7810 = vsel %vm7207, 0.0, %v7802
        %v7811 = vsel %vm7208, 0.0, %v7803
        %v7812 = vsel %vm7209, 0.0, %v7804
        %v7813 = vsel %vm7210, 0.0, %v7805
        %v7814 = vsel %vm7211, 0.0, %v7806
        %v7815 = vpack.c.bf16 %v7808, %v7807
        %v7816 = vpack.c.bf16 %v7810, %v7809
        %v7817 = vpack.c.bf16 %v7812, %v7811
        %v7818 = vpack.c.bf16 %v7814, %v7813
        %s7819 = scalar_lea.vmem %s5, 192
        %v7820 = vld [vmem:[%s7819] sm:$0xf]
        %v7821 = vld [vmem:[%s7819 + $0x4] sm:$0xf]
        %v7822 = vld [vmem:[%s7819 + $0x8] sm:$0xf]
        %v7823 = vld [vmem:[%s7819 + $0xc] sm:$0xf]
        %v7824 = vld [vmem:[%s7819 + $0x10] sm:$0xf]
        %v7825 = vld [vmem:[%s7819 + $0x14] sm:$0xf]
        %v7826 = vld [vmem:[%s7819 + $0x18] sm:$0xf]
        %v7827 = vld [vmem:[%s7819 + $0x1c] sm:$0xf]
        %v7836 = vunpack.c.l.b16 %v7820
        %v7837 = vunpack.c.l.b16 %v7821
        %v7838 = vunpack.c.l.b16 %v7822
        %v7839 = vunpack.c.l.b16 %v7823
        %v7840 = vunpack.c.l.b16 %v7824
        %v7841 = vunpack.c.l.b16 %v7825
        %v7842 = vunpack.c.l.b16 %v7826
        %v7843 = vunpack.c.l.b16 %v7827
        %v7844 = vpack.c.b16 %v7837, %v7836
        %v7845 = vpack.c.b16 %v7839, %v7838
        %v7846 = vpack.c.b16 %v7841, %v7840
        %v7847 = vpack.c.b16 %v7843, %v7842
        %v7853 = vsel %vm1244, %v7815, 0
        %v7856 = vsel %vm1244, %v7816, 0
        %v7859 = vsel %vm1244, %v7817, 0
        %v7862 = vsel %vm1244, %v7818, 0
        %7864 = vmatpush.bf16.msra.mxu0 0
        %7865 = vmatpush.bf16.msra.mxu0 0
        %7866 = vmatpush.bf16.msra.mxu0 0
        %7867 = vmatpush.bf16.msra.mxu0 0
        %7868 = vmatpush.bf16.msra.mxu0 %v7847
        %7869 = vmatpush.bf16.msra.mxu0 %v7846
        %7870 = vmatpush.bf16.msra.mxu0 %v7845
        %7871 = vmatpush.bf16.msra.mxu0 %v7844
        %7872 = vmatmul.bf16.gmra.mxu0 %v7853
        %v7873 = vpop.f32.mrf.mxu0
        %v7874 = vadd.f32 0.0, %v7873
        %v7875 = vpop.f32.mrf.mxu0
        %v7876 = vadd.f32 0.0, %v7875
        %7877 = vmatmul.bf16.gmra.mxu0 %v7856
        %v7878 = vpop.f32.mrf.mxu0
        %v7879 = vadd.f32 0.0, %v7878
        %v7880 = vpop.f32.mrf.mxu0
        %v7881 = vadd.f32 0.0, %v7880
        %7882 = vmatmul.bf16.gmra.mxu0 %v7859
        %v7883 = vpop.f32.mrf.mxu0
        %v7884 = vadd.f32 0.0, %v7883
        %v7885 = vpop.f32.mrf.mxu0
        %v7886 = vadd.f32 0.0, %v7885
        %7887 = vmatmul.bf16.gmra.mxu0 %v7862
        %v7888 = vpop.f32.mrf.mxu0
        %v7889 = vadd.f32 0.0, %v7888
        %v7890 = vpop.f32.mrf.mxu0
        %v7891 = vadd.f32 0.0, %v7890
        %7892 = vdwg.mxu0
        %v7893 = vadd.f32 %v7791, %v7874
        %v7894 = vadd.f32 %v7792, %v7876
        %v7895 = vadd.f32 %v7793, %v7879
        %v7896 = vadd.f32 %v7794, %v7881
        %v7897 = vadd.f32 %v7795, %v7884
        %v7898 = vadd.f32 %v7796, %v7886
        %v7899 = vadd.f32 %v7797, %v7889
        %v7900 = vadd.f32 %v7798, %v7891
        %v7901 = vld [vmem:[#allocation5 + $0x18] sm:$0xff]
        %v7902 = vld [vmem:[#allocation5 + $0x20] sm:$0xff]
        %v7903 = vld [vmem:[#allocation5 + $0x28] sm:$0xff]
        %v7904 = vld [vmem:[#allocation5 + $0x30] sm:$0xff]
        %v7905 = vld [vmem:[#allocation5 + $0x38] sm:$0xff]
        %v7906 = vld [vmem:[#allocation5 + $0x40] sm:$0xff]
        %v7907 = vld [vmem:[#allocation5 + $0x48] sm:$0xff]
        %v7908 = vld [vmem:[#allocation5 + $0x50] sm:$0xff]
        %v7909 = vpack.c.bf16 %v7902, %v7901
        %v7910 = vpack.c.bf16 %v7904, %v7903
        %v7911 = vpack.c.bf16 %v7906, %v7905
        %v7912 = vpack.c.bf16 %v7908, %v7907
        %s7913 = scalar_lea.vmem %s5, 224
        %v7914 = vld [vmem:[%s7913] sm:$0xf]
        %v7915 = vld [vmem:[%s7913 + $0x4] sm:$0xf]
        %v7916 = vld [vmem:[%s7913 + $0x8] sm:$0xf]
        %v7917 = vld [vmem:[%s7913 + $0xc] sm:$0xf]
        %v7918 = vld [vmem:[%s7913 + $0x10] sm:$0xf]
        %v7919 = vld [vmem:[%s7913 + $0x14] sm:$0xf]
        %v7920 = vld [vmem:[%s7913 + $0x18] sm:$0xf]
        %v7921 = vld [vmem:[%s7913 + $0x1c] sm:$0xf]
        %v7930 = vunpack.c.l.b16 %v7914
        %v7931 = vunpack.c.l.b16 %v7915
        %v7932 = vunpack.c.l.b16 %v7916
        %v7933 = vunpack.c.l.b16 %v7917
        %v7934 = vunpack.c.l.b16 %v7918
        %v7935 = vunpack.c.l.b16 %v7919
        %v7936 = vunpack.c.l.b16 %v7920
        %v7937 = vunpack.c.l.b16 %v7921
        %v7938 = vpack.c.b16 %v7931, %v7930
        %v7939 = vpack.c.b16 %v7933, %v7932
        %v7940 = vpack.c.b16 %v7935, %v7934
        %v7941 = vpack.c.b16 %v7937, %v7936
        %v7947 = vsel %vm1244, %v7909, 0
        %v7950 = vsel %vm1244, %v7910, 0
        %v7953 = vsel %vm1244, %v7911, 0
        %v7956 = vsel %vm1244, %v7912, 0
        %7958 = vmatpush.bf16.msra.mxu0 0
        %7959 = vmatpush.bf16.msra.mxu0 0
        %7960 = vmatpush.bf16.msra.mxu0 0
        %7961 = vmatpush.bf16.msra.mxu0 0
        %7962 = vmatpush.bf16.msra.mxu0 %v7941
        %7963 = vmatpush.bf16.msra.mxu0 %v7940
        %7964 = vmatpush.bf16.msra.mxu0 %v7939
        %7965 = vmatpush.bf16.msra.mxu0 %v7938
        %7966 = vmatmul.bf16.gmra.mxu0 %v7947
        %v7967 = vpop.f32.mrf.mxu0
        %v7968 = vadd.f32 0.0, %v7967
        %v7969 = vpop.f32.mrf.mxu0
        %v7970 = vadd.f32 0.0, %v7969
        %7971 = vmatmul.bf16.gmra.mxu0 %v7950
        %v7972 = vpop.f32.mrf.mxu0
        %v7973 = vadd.f32 0.0, %v7972
        %v7974 = vpop.f32.mrf.mxu0
        %v7975 = vadd.f32 0.0, %v7974
        %7976 = vmatmul.bf16.gmra.mxu0 %v7953
        %v7977 = vpop.f32.mrf.mxu0
        %v7978 = vadd.f32 0.0, %v7977
        %v7979 = vpop.f32.mrf.mxu0
        %v7980 = vadd.f32 0.0, %v7979
        %7981 = vmatmul.bf16.gmra.mxu0 %v7956
        %v7982 = vpop.f32.mrf.mxu0
        %v7983 = vadd.f32 0.0, %v7982
        %v7984 = vpop.f32.mrf.mxu0
        %v7985 = vadd.f32 0.0, %v7984
        %7986 = vdwg.mxu0
        %v7987 = vadd.f32 %v7893, %v7968
        %v7988 = vadd.f32 %v7894, %v7970
        %v7989 = vadd.f32 %v7895, %v7973
        %v7990 = vadd.f32 %v7896, %v7975
        %v7991 = vadd.f32 %v7897, %v7978
        %v7992 = vadd.f32 %v7898, %v7980
        %v7993 = vadd.f32 %v7899, %v7983
        %v7994 = vadd.f32 %v7900, %v7985
        %v7995 = vld [vmem:[#allocation5 + $0x19] sm:$0xff]
        %v7996 = vld [vmem:[#allocation5 + $0x21] sm:$0xff]
        %v7997 = vld [vmem:[#allocation5 + $0x29] sm:$0xff]
        %v7998 = vld [vmem:[#allocation5 + $0x31] sm:$0xff]
        %v7999 = vld [vmem:[#allocation5 + $0x39] sm:$0xff]
        %v8000 = vld [vmem:[#allocation5 + $0x41] sm:$0xff]
        %v8001 = vld [vmem:[#allocation5 + $0x49] sm:$0xff]
        %v8002 = vld [vmem:[#allocation5 + $0x51] sm:$0xff]
        %v8003 = vsel %vm7212, 0.0, %v7995
        %v8004 = vsel %vm7213, 0.0, %v7996
        %v8005 = vsel %vm7214, 0.0, %v7997
        %v8006 = vsel %vm7215, 0.0, %v7998
        %v8007 = vsel %vm7216, 0.0, %v7999
        %v8008 = vsel %vm7217, 0.0, %v8000
        %v8009 = vsel %vm7218, 0.0, %v8001
        %v8010 = vsel %vm7219, 0.0, %v8002
        %v8011 = vpack.c.bf16 %v8004, %v8003
        %v8012 = vpack.c.bf16 %v8006, %v8005
        %v8013 = vpack.c.bf16 %v8008, %v8007
        %v8014 = vpack.c.bf16 %v8010, %v8009
        %s8015 = scalar_lea.vmem %s5, 256
        %v8016 = vld [vmem:[%s8015] sm:$0xf]
        %v8017 = vld [vmem:[%s8015 + $0x4] sm:$0xf]
        %v8018 = vld [vmem:[%s8015 + $0x8] sm:$0xf]
        %v8019 = vld [vmem:[%s8015 + $0xc] sm:$0xf]
        %v8020 = vld [vmem:[%s8015 + $0x10] sm:$0xf]
        %v8021 = vld [vmem:[%s8015 + $0x14] sm:$0xf]
        %v8022 = vld [vmem:[%s8015 + $0x18] sm:$0xf]
        %v8023 = vld [vmem:[%s8015 + $0x1c] sm:$0xf]
        %v8032 = vunpack.c.l.b16 %v8016
        %v8033 = vunpack.c.l.b16 %v8017
        %v8034 = vunpack.c.l.b16 %v8018
        %v8035 = vunpack.c.l.b16 %v8019
        %v8036 = vunpack.c.l.b16 %v8020
        %v8037 = vunpack.c.l.b16 %v8021
        %v8038 = vunpack.c.l.b16 %v8022
        %v8039 = vunpack.c.l.b16 %v8023
        %v8040 = vpack.c.b16 %v8033, %v8032
        %v8041 = vpack.c.b16 %v8035, %v8034
        %v8042 = vpack.c.b16 %v8037, %v8036
        %v8043 = vpack.c.b16 %v8039, %v8038
        %v8049 = vsel %vm1244, %v8011, 0
        %v8052 = vsel %vm1244, %v8012, 0
        %v8055 = vsel %vm1244, %v8013, 0
        %v8058 = vsel %vm1244, %v8014, 0
        %8060 = vmatpush.bf16.msra.mxu0 0
        %8061 = vmatpush.bf16.msra.mxu0 0
        %8062 = vmatpush.bf16.msra.mxu0 0
        %8063 = vmatpush.bf16.msra.mxu0 0
        %8064 = vmatpush.bf16.msra.mxu0 %v8043
        %8065 = vmatpush.bf16.msra.mxu0 %v8042
        %8066 = vmatpush.bf16.msra.mxu0 %v8041
        %8067 = vmatpush.bf16.msra.mxu0 %v8040
        %8068 = vmatmul.bf16.gmra.mxu0 %v8049
        %v8069 = vpop.f32.mrf.mxu0
        %v8070 = vadd.f32 0.0, %v8069
        %v8071 = vpop.f32.mrf.mxu0
        %v8072 = vadd.f32 0.0, %v8071
        %8073 = vmatmul.bf16.gmra.mxu0 %v8052
        %v8074 = vpop.f32.mrf.mxu0
        %v8075 = vadd.f32 0.0, %v8074
        %v8076 = vpop.f32.mrf.mxu0
        %v8077 = vadd.f32 0.0, %v8076
        %8078 = vmatmul.bf16.gmra.mxu0 %v8055
        %v8079 = vpop.f32.mrf.mxu0
        %v8080 = vadd.f32 0.0, %v8079
        %v8081 = vpop.f32.mrf.mxu0
        %v8082 = vadd.f32 0.0, %v8081
        %8083 = vmatmul.bf16.gmra.mxu0 %v8058
        %v8084 = vpop.f32.mrf.mxu0
        %v8085 = vadd.f32 0.0, %v8084
        %v8086 = vpop.f32.mrf.mxu0
        %v8087 = vadd.f32 0.0, %v8086
        %8088 = vdwg.mxu0
        %v8089 = vadd.f32 %v7987, %v8070
        %v8090 = vadd.f32 %v7988, %v8072
        %v8091 = vadd.f32 %v7989, %v8075
        %v8092 = vadd.f32 %v7990, %v8077
        %v8093 = vadd.f32 %v7991, %v8080
        %v8094 = vadd.f32 %v7992, %v8082
        %v8095 = vadd.f32 %v7993, %v8085
        %v8096 = vadd.f32 %v7994, %v8087
        %v8097 = vld [vmem:[%s6] sm:$0x1]
        %v8099 = vperm.slane %v8097, 0
        %v8101 = vadd.f32 %v8089, %v8099
        %v8102 = vadd.f32 %v8090, %v8099
        %v8103 = vadd.f32 %v8091, %v8099
        %v8104 = vadd.f32 %v8092, %v8099
        %v8105 = vadd.f32 %v8093, %v8099
        %v8106 = vadd.f32 %v8094, %v8099
        %v8107 = vadd.f32 %v8095, %v8099
        %v8108 = vadd.f32 %v8096, %v8099
        %v8109 = vmax.f32 %v8101, 0.0
        %v8110 = vmax.f32 %v8102, 0.0
        %v8111 = vmax.f32 %v8103, 0.0
        %v8112 = vmax.f32 %v8104, 0.0
        %v8113 = vmax.f32 %v8105, 0.0
        %v8114 = vmax.f32 %v8106, 0.0
        %v8115 = vmax.f32 %v8107, 0.0
        %v8116 = vmax.f32 %v8108, 0.0
        %v8117 = vld [vmem:[%s9] sm:$0xf]
        %v8118 = vld [vmem:[%s9 + $0x4] sm:$0xf]
        %v8119 = vpack.c.bf16 %v8110, %v8109
        %v8120 = vpack.c.bf16 %v8112, %v8111
        %v8121 = vpack.c.bf16 %v8114, %v8113
        %v8122 = vpack.c.bf16 %v8116, %v8115
        %v8125 = vunpack.c.l.b16 %v8117
        %v8126 = vunpack.c.l.b16 %v8118
        %v8127 = vpack.c.b16 %v8126, %v8125
        %v8129 = vsel %vm1244, %v8127, 0
        %8131 = vmatpush.bf16.msra.mxu0 0
        %8132 = vmatpush.bf16.msra.mxu0 0
        %8133 = vmatpush.bf16.msra.mxu0 0
        %8134 = vmatpush.bf16.msra.mxu0 0
        %8135 = vmatpush.bf16.msra.mxu0 %v8122
        %8136 = vmatpush.bf16.msra.mxu0 %v8121
        %8137 = vmatpush.bf16.msra.mxu0 %v8120
        %8138 = vmatpush.bf16.msra.mxu0 %v8119
        %8139 = vmatmul.bf16.gmra.mxu0 %v8129
        %v8140 = vpop.f32.mrf.mxu0
        %v8141 = vadd.f32 0.0, %v8140
        %v8142 = vpop.f32.mrf.mxu0
        %v8143 = vadd.f32 0.0, %v8142
        %8144 = vdwg.mxu0
        %v8145 = vpack.c.bf16 %v8143, %v8141
        %v8146 = vld [vmem:[%s10] sm:$0xff]
        %v8147 = vld [vmem:[%s10 + $0x8] sm:$0xff]
        %v8148 = vld [vmem:[%s10 + $0x10] sm:$0xff]
        %v8149 = vld [vmem:[%s10 + $0x18] sm:$0xff]
        %v8150 = vld [vmem:[%s10 + $0x20] sm:$0xff]
        %v8151 = vld [vmem:[%s10 + $0x28] sm:$0xff]
        %v8152 = vld [vmem:[%s10 + $0x30] sm:$0xff]
        %v8153 = vld [vmem:[%s10 + $0x38] sm:$0xff]
        %v8154 = vld [vmem:[%s10 + $0x40] sm:$0xff]
        %v8155 = vld [vmem:[%s10 + $0x48] sm:$0xff]
        %v8156 = vld [vmem:[%s10 + $0x50] sm:$0xff]
        %v8157 = vld [vmem:[%s10 + $0x58] sm:$0xff]
        %v8158 = vld [vmem:[%s10 + $0x60] sm:$0xff]
        %v8159 = vld [vmem:[%s10 + $0x68] sm:$0xff]
        %v8160 = vld [vmem:[%s10 + $0x70] sm:$0xff]
        %v8161 = vld [vmem:[%s10 + $0x78] sm:$0xff]
        %v8162 = vld [vmem:[%s11] sm:$0x3]
        %v8164 = vperm.slane %v8162, 0
        %v8165 = vperm.slane %v8162, 1
        %v8184 = vunpack.c.l.b16 %v8146
        %v8185 = vunpack.c.h.b16 %v8146
        %v8186 = vunpack.c.l.b16 %v8147
        %v8187 = vunpack.c.h.b16 %v8147
        %v8188 = vunpack.c.l.b16 %v8148
        %v8189 = vunpack.c.h.b16 %v8148
        %v8190 = vunpack.c.l.b16 %v8149
        %v8191 = vunpack.c.h.b16 %v8149
        %v8192 = vunpack.c.l.b16 %v8150
        %v8193 = vunpack.c.h.b16 %v8150
        %v8194 = vunpack.c.l.b16 %v8151
        %v8195 = vunpack.c.h.b16 %v8151
        %v8196 = vunpack.c.l.b16 %v8152
        %v8197 = vunpack.c.h.b16 %v8152
        %v8198 = vunpack.c.l.b16 %v8153
        %v8199 = vunpack.c.h.b16 %v8153
        %v8200 = vunpack.c.l.b16 %v8154
        %v8201 = vunpack.c.h.b16 %v8154
        %v8202 = vunpack.c.l.b16 %v8155
        %v8203 = vunpack.c.h.b16 %v8155
        %v8204 = vunpack.c.l.b16 %v8156
        %v8205 = vunpack.c.h.b16 %v8156
        %v8206 = vunpack.c.l.b16 %v8157
        %v8207 = vunpack.c.h.b16 %v8157
        %v8208 = vunpack.c.l.b16 %v8158
        %v8209 = vunpack.c.h.b16 %v8158
        %v8210 = vunpack.c.l.b16 %v8159
        %v8211 = vunpack.c.h.b16 %v8159
        %v8212 = vunpack.c.l.b16 %v8160
        %v8213 = vunpack.c.h.b16 %v8160
        %v8214 = vunpack.c.l.b16 %v8161
        %v8215 = vunpack.c.h.b16 %v8161
        %v8216 = vpack.c.b16 %v8186, %v8184
        %v8217 = vpack.c.b16 %v8187, %v8185
        %v8218 = vpack.c.b16 %v8190, %v8188
        %v8219 = vpack.c.b16 %v8191, %v8189
        %v8220 = vpack.c.b16 %v8194, %v8192
        %v8221 = vpack.c.b16 %v8195, %v8193
        %v8222 = vpack.c.b16 %v8198, %v8196
        %v8223 = vpack.c.b16 %v8199, %v8197
        %v8224 = vpack.c.b16 %v8202, %v8200
        %v8225 = vpack.c.b16 %v8203, %v8201
        %v8226 = vpack.c.b16 %v8206, %v8204
        %v8227 = vpack.c.b16 %v8207, %v8205
        %v8228 = vpack.c.b16 %v8210, %v8208
        %v8229 = vpack.c.b16 %v8211, %v8209
        %v8230 = vpack.c.b16 %v8214, %v8212
        %v8231 = vpack.c.b16 %v8215, %v8213
        %8248 = vmatpush.bf16.msra.mxu0 %v8230
        %8249 = vmatpush.bf16.msra.mxu0 %v8228
        %8250 = vmatpush.bf16.msra.mxu0 %v8226
        %8251 = vmatpush.bf16.msra.mxu0 %v8224
        %8252 = vmatpush.bf16.msra.mxu0 %v8222
        %8253 = vmatpush.bf16.msra.mxu0 %v8220
        %8254 = vmatpush.bf16.msra.mxu0 %v8218
        %8255 = vmatpush.bf16.msra.mxu0 %v8216
        %8256 = vmatmul.bf16.gmra.mxu0 %v8145
        %v8257 = vpop.f32.mrf.mxu0
        %v8258 = vadd.f32 %v8164, %v8257
        %v8259 = vpop.f32.mrf.mxu0
        %v8260 = vadd.f32 %v8164, %v8259
        %8261 = vdwg.mxu0
        %8262 = vmatpush.bf16.msra.mxu0 %v8231
        %8263 = vmatpush.bf16.msra.mxu0 %v8229
        %8264 = vmatpush.bf16.msra.mxu0 %v8227
        %8265 = vmatpush.bf16.msra.mxu0 %v8225
        %8266 = vmatpush.bf16.msra.mxu0 %v8223
        %8267 = vmatpush.bf16.msra.mxu0 %v8221
        %8268 = vmatpush.bf16.msra.mxu0 %v8219
        %8269 = vmatpush.bf16.msra.mxu0 %v8217
        %8270 = vmatmul.bf16.gmra.mxu0 %v8145
        %v8271 = vpop.f32.mrf.mxu0
        %v8272 = vadd.f32 %v8165, %v8271
        %v8273 = vpop.f32.mrf.mxu0
        %v8274 = vadd.f32 %v8165, %v8273
        %8275 = vdwg.mxu0
        %v8276 = vld [vmem:[%s12] sm:$0xff]
        %v8277 = vld [vmem:[%s12 + $0x8] sm:$0xff]
        %v8278 = vld [vmem:[%s12 + $0x10] sm:$0xff]
        %v8279 = vld [vmem:[%s12 + $0x18] sm:$0xff]
        %v8280 = vadd.f32 %v8258, %v8276
        %v8281 = vadd.f32 %v8272, %v8277
        %v8282 = vadd.f32 %v8260, %v8278
        %v8283 = vadd.f32 %v8274, %v8279
        %8284 = vst [vmem:[%s433] sm:$0xff] %v8280
        %8285 = vst [vmem:[%s433 + $0x8] sm:$0xff] %v8281
        %8286 = vst [vmem:[%s433 + $0x10] sm:$0xff] %v8282
        %8287 = vst [vmem:[%s433 + $0x18] sm:$0xff] %v8283
        %s8288 = sand.u32 %s313, 1
        %s8289 = scalar_lea.sflag [#allocation7], %s8288
        %s8290 = sand.u32 %s313, 1
        %s8291 = smul.addr %s8290, 32
        %s8292 = scalar_lea.vmem [#allocation6], %s8291
        // Predicated region
        $region73: #{simple_vision_encoder.1} parent=71 // pred_check
          %p8293 = pneg %p323
        $region74: #{simple_vision_encoder.1} parent=71 // pred_check_branch
          %8295 = sbr.rel (%p8293) target = $region76
        $region75: #{simple_vision_encoder.1} parent=71 // pred_region
          %8297 = vsyncadd %s8289, 0
          %s8298 = smul.addr %s27, 4
          %s8299 = smul.addr %s8298, 8
          %s8300 = scalar_lea.hbm %s13, %s8299
          %s8301 = sshll.u32 %s8292, 4
          %s8302 = int_to_ptr.vmem [resolvable:$true] %s8301
          %s8303 = sshll.u32 %s8300, 4
          %s8304 = int_to_ptr.hbm [resolvable:$true] %s8303
          %8309 = dma.vmem_to_hbm [thread:$0]  %s8302, 512, %s8304, %s8289, 256, 256, 16
        $region76: #{simple_vision_encoder.1} parent=71 // pred_fallthru
          _
      $region72: #{simple_vision_encoder.1} parent=5 // pred_fallthru
        _
      %p8310 = scmp.le.s32.totalorder 2, %s22
      // Predicated region
      $region77: #{simple_vision_encoder.1} parent=5 // pred_check
        %p8311 = pneg %p8310
      $region78: #{simple_vision_encoder.1} parent=5 // pred_check_branch
        %8313 = sbr.rel (%p8311) target = $region80
      $region79: #{simple_vision_encoder.1} parent=5 // pred_region
        %s8314 = ssub.s32 %s22, 2
        // Predicated region
        $region81: #{simple_vision_encoder.1} parent=79 // pred_check
          %p8315 = pneg %p329
        $region82: #{simple_vision_encoder.1} parent=79 // pred_check_branch
          %8317 = sbr.rel (%p8315) target = $region84
        $region83: #{simple_vision_encoder.1} parent=79 // pred_region
          %s8318 = sand.u32 %s314, 1
          %s8319 = scalar_lea.sflag [#allocation7], %s8318
          %s8320 = sand.u32 %s314, 1
          %s8321 = smul.addr %s8320, 32
          %s8322 = scalar_lea.vmem [#allocation6], %s8321
          %8324 = dma.done %s8319, 512
        $region84: #{simple_vision_encoder.1} parent=79 // pred_fallthru
          _
      $region80: #{simple_vision_encoder.1} parent=5 // pred_fallthru
        _
    $region6: #{simple_vision_encoder.1} parent=1 // loop_footer
      %s26 = sadd.s32 1, %s22
    $region7: #{simple_vision_encoder.1} parent=1 // loop_footer_branch
      %21 = sbr.rel target = $region3
    $region8: #{simple_vision_encoder.1} parent=1 // loop_exit
      _
    %8325 = vsyncpa [#allocation7], 1
    %s8326 = scalar_lea.sflag [#allocation7], 1
    %8327 = vsyncpa %s8326, 1

</llo_original>
